<compile_context>
chip_gen: v5e
topology: v5e:2x2
jax: 0.10.0
libtpu: 0.0.40
codegen_flags: <defaults>
</compile_context>

<pallas_src>
import functools

import numpy as np

import jax
import jax.numpy as jnp
from jax import lax
from jax.experimental import pallas as pl
from jax.experimental.pallas import tpu as pltpu


# ----------------------------------------------------------------------------
# Fused forward kernel (one batch tile per grid step; batch axis is parallel)
# ----------------------------------------------------------------------------
def _mnist_fused_kernel(x_ref, w1_ref, b1_ref, w2_ref, b2_ref,
                        w3_ref, b3_ref, w4_ref, b4_ref, o_ref):
    tb = x_ref.shape[1]                       # x block is (24, tb, 140)
    f32, bf16 = jnp.float32, jnp.bfloat16

    # ---- conv1 (1->32, k=5) as ONE K=140 MXU matmul --------------------------
    # rows = (h_out, n); cols = packed (m, p, c) where m = pool1 window member,
    # p = pool1 output column, c = channel.  Out-of-range (m, p) columns have
    # zero weight/bias, so after ReLU they are 0 and never win the max.
    xs = x_ref[...].reshape(24 * tb, 140).astype(bf16)
    a1 = jnp.dot(xs, w1_ref[...], preferred_element_type=f32) + b1_ref[...]
    a1 = jnp.maximum(a1, 0.0)                                  # (24*tb, 1920)
    # ReLU commutes with max-pool, so relu-first + zero "padding" columns is
    # exactly torch's pool (with -inf padding) followed by relu.

    # ---- pool1 (k=5, s=2, p=2), W direction: max over the 5 aligned groups --
    mw = jnp.maximum(jnp.maximum(a1[:, 0:384], a1[:, 384:768]), a1[:, 768:1152])
    mw = jnp.maximum(jnp.maximum(mw, a1[:, 1152:1536]), a1[:, 1536:1920])
    # mw: (24*tb, 384), lanes = (p, c)

    # ---- pool1, H direction via row parity (no zero-pad concat) -------------
    mh = mw.reshape(12, 2, tb, 384)                            # [j, parity, n, :]
    even = mh[:, 0]                                            # rows 2j
    core = jnp.maximum(even, mh[:, 1])                         # rows {2j, 2j+1}
    mid = jnp.maximum(jnp.maximum(core[1:11], core[0:10]), even[2:12])
    first = jnp.maximum(core[0:1], even[1:2])                  # h=0 window
    last = jnp.maximum(core[10:11], core[11:12])               # h=11 window
    p1 = jnp.concatenate([first, mid, last], axis=0)           # (12, tb, 384) f32

    # ---- conv2 (32->64, k=5) as ONE K=1920 MXU matmul ------------------------
    # lane-concat the 5 kh-shifted row slices (each 384 = 3x128 lanes).
    xs2 = jnp.concatenate([p1[kh:kh + 8] for kh in range(5)], axis=-1)
    xs2 = xs2.reshape(8 * tb, 1920).astype(bf16)
    a2 = jnp.dot(xs2, w2_ref[...], preferred_element_type=f32) + b2_ref[...]
    # a2: (8*tb, 512), lanes packed (parity, w_out, c_out)
    # TODO(synk): nn.Dropout2d is stochastic in training; identity in eval mode.

    # ---- pool2 (2x2, s=2): parity lanes then row pairs, then ReLU ------------
    pw = jnp.maximum(a2[:, 0:256], a2[:, 256:512])             # (8*tb, 256)
    ph = pw.reshape(4, 2, tb, 256)
    p2 = jnp.maximum(jnp.maximum(ph[:, 0], ph[:, 1]), 0.0)     # (4, tb, 256)

    # ---- fc1 (1024->256) as ONE dot + ReLU; dropout = identity ---------------
    hin = jnp.concatenate([p2[j] for j in range(4)], axis=-1)  # (tb, 1024)
    h = jnp.dot(hin.astype(bf16), w3_ref[...], preferred_element_type=f32)
    h = jnp.maximum(h + b3_ref[...], 0.0)                      # (tb, 256)
    # TODO(synk): F.dropout(training=...) is identity in eval mode.

    # ---- fc2 (256->10, zero-padded to 128 lanes for a lane-dense store) ------
    o_ref[...] = (jnp.dot(h.astype(bf16), w4_ref[...],
                          preferred_element_type=f32) + b4_ref[...])


# ----------------------------------------------------------------------------
# Wrapper-side weight packing (pure layout plumbing, tiny arrays, jit-safe)
# ----------------------------------------------------------------------------
def _pack_params(params):
    f32, bf16 = jnp.float32, jnp.bfloat16

    # conv1: W1[kh*28 + w_in, m*384 + p*32 + c] = conv1_w[c, kh, w_in - w]
    # with w = 2p - 2 + m (pool1 window member m of output column p);
    # columns with w outside [0, 24) get zero weight AND zero bias.
    cw1 = params["conv1_w"].astype(f32).reshape(32, 5, 5)        # (c, kh, kw)
    Q1 = np.zeros((5, 28, 5, 12), np.float32)                    # (kw, w_in, m, p)
    V1 = np.zeros((5, 12), np.float32)                           # valid (m, p)
    for m in range(5):
        for p in range(12):
            w = 2 * p - 2 + m
            if 0 <= w < 24:
                V1[m, p] = 1.0
                for kw in range(5):
                    Q1[kw, w + kw, m, p] = 1.0
    w1 = jnp.einsum("aimp,cha->himpc", jnp.asarray(Q1), cw1).reshape(140, 1920)
    b1 = (jnp.asarray(V1)[:, :, None]
          * params["conv1_b"].astype(f32)[None, None, :]).reshape(1, 1920)

    # conv2: W2[kh*384 + wq*32 + ci, par*256 + wo*64 + co]
    #        = conv2_w[co, ci, kh, wq - (2*wo + par)]   (always in range)
    cw2 = params["conv2_w"].astype(f32)                          # (co, ci, kh, kw)
    Q2 = np.zeros((5, 12, 2, 4), np.float32)                     # (kw, wq, par, wo)
    for par in range(2):
        for wo in range(4):
            for kw in range(5):
                Q2[kw, 2 * wo + par + kw, par, wo] = 1.0
    w2 = jnp.einsum("aqpw,oiha->hqipwo", jnp.asarray(Q2), cw2).reshape(1920, 512)
    b2 = jnp.tile(params["conv2_b"].astype(f32), 8).reshape(1, 512)

    # fc1: input lanes in (ho, wo, co) order (matches in-kernel concat).
    # PyTorch flattens NCHW: feature index = co*16 + ho*4 + wo.
    fc1 = params["fc1_w"].astype(f32).reshape(256, 64, 4, 4)     # (o, co, ho, wo)
    w3 = jnp.transpose(fc1, (2, 3, 1, 0)).reshape(1024, 256)
    b3 = params["fc1_b"].astype(f32).reshape(1, 256)

    # fc2 zero-padded to 128 output lanes (lane-dense final store).
    w4 = jnp.zeros((256, 128), f32).at[:, :10].set(params["fc2_w"].astype(f32).T)
    b4 = jnp.zeros((1, 128), f32).at[0, :10].set(params["fc2_b"].astype(f32))

    return (w1.astype(bf16), b1, w2.astype(bf16), b2,
            w3.astype(bf16), b3, w4.astype(bf16), b4)


# ----------------------------------------------------------------------------
# Full forward pass
# ----------------------------------------------------------------------------
@functools.partial(jax.jit, static_argnames=("batch_tile",))
def mnist_net_forward(x_nchw, params, batch_tile=64):
    # batch_tile: 64 is the v7x-safe default (keeps peak VMEM well under the
    # 48 MiB limit below); on v5e/v6e (128 MiB VMEM) 128-256 also works.
    n, c, hh, ww = x_nchw.shape
    assert (c, hh, ww) == (1, 28, 28), "MNIST_Net's lazily-built fc1 fixes 1x28x28"
    tb = min(batch_tile, ((n + 7) // 8) * 8)   # don't over-pad tiny batches
    assert tb % 8 == 0
    npad = ((n + tb - 1) // tb) * tb

    f32 = jnp.float32
    x2 = x_nchw[:, 0, :, :].astype(f32)                          # (N, 28, 28)
    x2 = jnp.pad(x2, ((0, npad - n), (0, 0), (0, 0)))
    # H-direction im2col in the wrapper: x[(h_out, n), (kh, w_in)]; K = 140.
    xw = jnp.stack([x2[:, h:h + 5, :] for h in range(24)], axis=0)  # (24,Np,5,28)
    xw = xw.reshape(24, npad, 140)

    packed = _pack_params(params)
    (w1, b1, w2, b2, w3, b3, w4, b4) = packed

    def full(a):  # grid-invariant full-array block
        return pl.BlockSpec(a.shape, lambda i: (0, 0))

    out = pl.pallas_call(
        _mnist_fused_kernel,
        out_shape=jax.ShapeDtypeStruct((npad, 128), jnp.float32),
        grid=(npad // tb,),
        in_specs=[
            pl.BlockSpec((24, tb, 140), lambda i: (0, i, 0)),    # x batch tile
            full(w1), full(b1), full(w2), full(b2),
            full(w3), full(b3), full(w4), full(b4),
        ],
        out_specs=pl.BlockSpec((tb, 128), lambda i: (i, 0)),
        compiler_params=pltpu.CompilerParams(
            dimension_semantics=("parallel",),
            vmem_limit_bytes=48 * 1024 * 1024,
        ),
    )(xw, w1, b1, w2, b2, w3, b3, w4, b4)
    return out[:n, :10]


# ----------------------------------------------------------------------------
# Pure-JAX reference (same eval-mode semantics) for validation
# ----------------------------------------------------------------------------
def mnist_net_reference(x_nchw, params):
    f32 = jnp.float32
    dn = ("NCHW", "OIHW", "NCHW")
    y = lax.conv_general_dilated(x_nchw.astype(f32), params["conv1_w"].astype(f32),
                                 (1, 1), "VALID", dimension_numbers=dn)
    y = y + params["conv1_b"].astype(f32)[None, :, None, None]
    y = lax.reduce_window(y, -jnp.inf, lax.max, (1, 1, 5, 5), (1, 1, 2, 2),
                          ((0, 0), (0, 0), (2, 2), (2, 2)))
    y = jnp.maximum(y, 0.0)
    y = lax.conv_general_dilated(y, params["conv2_w"].astype(f32),
                                 (1, 1), "VALID", dimension_numbers=dn)
    y = y + params["conv2_b"].astype(f32)[None, :, None, None]
    y = lax.reduce_window(y, -jnp.inf, lax.max, (1, 1, 2, 2), (1, 1, 2, 2),
                          ((0, 0), (0, 0), (0, 0), (0, 0)))
    y = jnp.maximum(y, 0.0)
    flat = y.reshape(y.shape[0], -1)
    h = jnp.maximum(flat @ params["fc1_w"].astype(f32).T + params["fc1_b"], 0.0)
    return h @ params["fc2_w"].astype(f32).T + params["fc2_b"]


# ----------------------------------------------------------------------------
# Deterministic parameter init + smoke test
# ----------------------------------------------------------------------------
def init_params(key):
    ks = jax.random.split(key, 8)
    return {
        "conv1_w": jax.random.normal(ks[0], (32, 1, 5, 5), jnp.float32) * 0.1,
        "conv1_b": jax.random.normal(ks[1], (32,), jnp.float32) * 0.1,
        "conv2_w": jax.random.normal(ks[2], (64, 32, 5, 5), jnp.float32) * 0.05,
        "conv2_b": jax.random.normal(ks[3], (64,), jnp.float32) * 0.05,
        "fc1_w": jax.random.normal(ks[4], (256, 1024), jnp.float32) * 0.05,
        "fc1_b": jax.random.normal(ks[5], (256,), jnp.float32) * 0.05,
        "fc2_w": jax.random.normal(ks[6], (10, 256), jnp.float32) * 0.05,
        "fc2_b": jax.random.normal(ks[7], (10,), jnp.float32) * 0.05,
    }


if __name__ == "__main__":
    key = jax.random.PRNGKey(0)
    pkey, xkey = jax.random.split(key)
    params = init_params(pkey)

    # Small MNIST-shaped batch (module's lazily-built fc1 fixes input to 1x28x28).
    x = jax.random.normal(xkey, (18, 1, 28, 28), jnp.float32)

    ref = jax.block_until_ready(mnist_net_reference(x, params))

    # Multi-step grid (tests pipelining + batch padding): 18 -> 24, 3 steps of 8.
    out_multi = jax.block_until_ready(mnist_net_forward(x, params, batch_tile=8))
    assert out_multi.shape == (18, 10), out_multi.shape
    assert out_multi.dtype == jnp.float32
    assert bool(jnp.all(jnp.isfinite(out_multi)))
    err_multi = float(jnp.max(jnp.abs(out_multi - ref)))
    assert err_multi < 1.5e-1, f"tb=8 mismatch vs reference: max |err| = {err_multi}"

    # Default (large-tile) path.
    out_default = jax.block_until_ready(mnist_net_forward(x, params))
    err_default = float(jnp.max(jnp.abs(out_default - ref)))
    assert err_default < 1.5e-1, (
        f"default-tile mismatch vs reference: max |err| = {err_default}")

    print("KERNEL_OK")
</pallas_src>

<mosaic_0001>
module attributes {stable_mosaic.version = 11 : i64} {
  func.func @_mnist_fused_kernel(%arg0: i32, %arg1: memref<24x8x140xf32, #tpu.memory_space<vmem>>, %arg2: memref<140x1920xbf16, #tpu.memory_space<vmem>>, %arg3: memref<1x1920xf32, #tpu.memory_space<vmem>>, %arg4: memref<1920x512xbf16, #tpu.memory_space<vmem>>, %arg5: memref<1x512xf32, #tpu.memory_space<vmem>>, %arg6: memref<1024x256xbf16, #tpu.memory_space<vmem>>, %arg7: memref<1x256xf32, #tpu.memory_space<vmem>>, %arg8: memref<256x128xbf16, #tpu.memory_space<vmem>>, %arg9: memref<1x128xf32, #tpu.memory_space<vmem>>, %arg10: memref<8x128xf32, #tpu.memory_space<vmem>>) attributes {dimension_semantics = [#tpu.dimension_semantics<parallel>], iteration_bounds = array<i64: 3>, scalar_prefetch = 0 : i64, scratch_operands = 0 : i64, tpu.core_type = #tpu.core_type<tc>, window_params = [{transform_indices = @transform_0, window_bounds = array<i64: 24, 8, 140>}, {pipeline_mode = #tpu.pipeline_mode<synchronous>, transform_indices = @transform_1, window_bounds = array<i64: 140, 1920>}, {pipeline_mode = #tpu.pipeline_mode<synchronous>, transform_indices = @transform_2, window_bounds = array<i64: 1, 1920>}, {pipeline_mode = #tpu.pipeline_mode<synchronous>, transform_indices = @transform_3, window_bounds = array<i64: 1920, 512>}, {pipeline_mode = #tpu.pipeline_mode<synchronous>, transform_indices = @transform_4, window_bounds = array<i64: 1, 512>}, {pipeline_mode = #tpu.pipeline_mode<synchronous>, transform_indices = @transform_5, window_bounds = array<i64: 1024, 256>}, {pipeline_mode = #tpu.pipeline_mode<synchronous>, transform_indices = @transform_6, window_bounds = array<i64: 1, 256>}, {pipeline_mode = #tpu.pipeline_mode<synchronous>, transform_indices = @transform_7, window_bounds = array<i64: 256, 128>}, {pipeline_mode = #tpu.pipeline_mode<synchronous>, transform_indices = @transform_8, window_bounds = array<i64: 1, 128>}, {transform_indices = @transform_9, window_bounds = array<i64: 8, 128>}]} {
    %c0 = arith.constant 0 : index
    %c0_0 = arith.constant 0 : index
    %c0_1 = arith.constant 0 : index
    %0 = vector.load %arg1[%c0, %c0_0, %c0_1] : memref<24x8x140xf32, #tpu.memory_space<vmem>>, vector<24x8x140xf32>
    %1 = vector.shape_cast %0 : vector<24x8x140xf32> to vector<192x140xf32>
    %2 = arith.truncf %1 : vector<192x140xf32> to vector<192x140xbf16>
    %c0_2 = arith.constant 0 : index
    %c0_3 = arith.constant 0 : index
    %3 = vector.load %arg2[%c0_2, %c0_3] : memref<140x1920xbf16, #tpu.memory_space<vmem>>, vector<140x1920xbf16>
    %cst = arith.constant dense<0.000000e+00> : vector<192x1920xf32>
    %4 = tpu.matmul %2, %3, %cst {dimension_numbers = #tpu.dot_dimension_numbers<[1], [0], [0], [1], [0, 0, 1, 1], [], []>} : vector<192x140xbf16>, vector<140x1920xbf16>, vector<192x1920xf32> -> vector<192x1920xf32>
    %c0_4 = arith.constant 0 : index
    %c0_5 = arith.constant 0 : index
    %5 = vector.load %arg3[%c0_4, %c0_5] : memref<1x1920xf32, #tpu.memory_space<vmem>>, vector<1x1920xf32>
    %6 = vector.broadcast %5 : vector<1x1920xf32> to vector<192x1920xf32>
    %7 = arith.addf %4, %6 : vector<192x1920xf32>
    %cst_6 = arith.constant 0.000000e+00 : f32
    %8 = vector.broadcast %cst_6 : f32 to vector<192x1920xf32>
    %9 = arith.maximumf %7, %8 : vector<192x1920xf32>
    %10 = vector.extract_strided_slice %9 {offsets = [0, 0], sizes = [192, 384], strides = [1, 1]} : vector<192x1920xf32> to vector<192x384xf32>
    %11 = vector.extract_strided_slice %9 {offsets = [0, 384], sizes = [192, 384], strides = [1, 1]} : vector<192x1920xf32> to vector<192x384xf32>
    %12 = arith.maximumf %10, %11 : vector<192x384xf32>
    %13 = vector.extract_strided_slice %9 {offsets = [0, 768], sizes = [192, 384], strides = [1, 1]} : vector<192x1920xf32> to vector<192x384xf32>
    %14 = arith.maximumf %12, %13 : vector<192x384xf32>
    %15 = vector.extract_strided_slice %9 {offsets = [0, 1152], sizes = [192, 384], strides = [1, 1]} : vector<192x1920xf32> to vector<192x384xf32>
    %16 = arith.maximumf %14, %15 : vector<192x384xf32>
    %17 = vector.extract_strided_slice %9 {offsets = [0, 1536], sizes = [192, 384], strides = [1, 1]} : vector<192x1920xf32> to vector<192x384xf32>
    %18 = arith.maximumf %16, %17 : vector<192x384xf32>
    %19 = vector.shape_cast %18 : vector<192x384xf32> to vector<12x2x8x384xf32>
    %20 = vector.extract_strided_slice %19 {offsets = [0, 0, 0, 0], sizes = [12, 1, 8, 384], strides = [1, 1, 1, 1]} : vector<12x2x8x384xf32> to vector<12x1x8x384xf32>
    %21 = vector.shape_cast %20 : vector<12x1x8x384xf32> to vector<12x8x384xf32>
    %22 = vector.extract_strided_slice %19 {offsets = [0, 1, 0, 0], sizes = [12, 1, 8, 384], strides = [1, 1, 1, 1]} : vector<12x2x8x384xf32> to vector<12x1x8x384xf32>
    %23 = vector.shape_cast %22 : vector<12x1x8x384xf32> to vector<12x8x384xf32>
    %24 = arith.maximumf %21, %23 : vector<12x8x384xf32>
    %25 = vector.extract_strided_slice %24 {offsets = [1, 0, 0], sizes = [10, 8, 384], strides = [1, 1, 1]} : vector<12x8x384xf32> to vector<10x8x384xf32>
    %26 = vector.extract_strided_slice %24 {offsets = [0, 0, 0], sizes = [10, 8, 384], strides = [1, 1, 1]} : vector<12x8x384xf32> to vector<10x8x384xf32>
    %27 = arith.maximumf %25, %26 : vector<10x8x384xf32>
    %28 = vector.extract_strided_slice %21 {offsets = [2, 0, 0], sizes = [10, 8, 384], strides = [1, 1, 1]} : vector<12x8x384xf32> to vector<10x8x384xf32>
    %29 = arith.maximumf %27, %28 : vector<10x8x384xf32>
    %30 = vector.extract_strided_slice %24 {offsets = [0, 0, 0], sizes = [1, 8, 384], strides = [1, 1, 1]} : vector<12x8x384xf32> to vector<1x8x384xf32>
    %31 = vector.extract_strided_slice %21 {offsets = [1, 0, 0], sizes = [1, 8, 384], strides = [1, 1, 1]} : vector<12x8x384xf32> to vector<1x8x384xf32>
    %32 = arith.maximumf %30, %31 : vector<1x8x384xf32>
    %33 = vector.extract_strided_slice %24 {offsets = [10, 0, 0], sizes = [1, 8, 384], strides = [1, 1, 1]} : vector<12x8x384xf32> to vector<1x8x384xf32>
    %34 = vector.extract_strided_slice %24 {offsets = [11, 0, 0], sizes = [1, 8, 384], strides = [1, 1, 1]} : vector<12x8x384xf32> to vector<1x8x384xf32>
    %35 = arith.maximumf %33, %34 : vector<1x8x384xf32>
    %36 = tpu.concatenate %32, %29, %35 in 0 : vector<1x8x384xf32>, vector<10x8x384xf32>, vector<1x8x384xf32> -> vector<12x8x384xf32>
    %37 = vector.extract_strided_slice %36 {offsets = [0, 0, 0], sizes = [8, 8, 384], strides = [1, 1, 1]} : vector<12x8x384xf32> to vector<8x8x384xf32>
    %38 = vector.extract_strided_slice %36 {offsets = [1, 0, 0], sizes = [8, 8, 384], strides = [1, 1, 1]} : vector<12x8x384xf32> to vector<8x8x384xf32>
    %39 = vector.extract_strided_slice %36 {offsets = [2, 0, 0], sizes = [8, 8, 384], strides = [1, 1, 1]} : vector<12x8x384xf32> to vector<8x8x384xf32>
    %40 = vector.extract_strided_slice %36 {offsets = [3, 0, 0], sizes = [8, 8, 384], strides = [1, 1, 1]} : vector<12x8x384xf32> to vector<8x8x384xf32>
    %41 = vector.extract_strided_slice %36 {offsets = [4, 0, 0], sizes = [8, 8, 384], strides = [1, 1, 1]} : vector<12x8x384xf32> to vector<8x8x384xf32>
    %42 = tpu.concatenate %37, %38, %39, %40, %41 in 2 : vector<8x8x384xf32>, vector<8x8x384xf32>, vector<8x8x384xf32>, vector<8x8x384xf32>, vector<8x8x384xf32> -> vector<8x8x1920xf32>
    %43 = vector.shape_cast %42 : vector<8x8x1920xf32> to vector<64x1920xf32>
    %44 = arith.truncf %43 : vector<64x1920xf32> to vector<64x1920xbf16>
    %c0_7 = arith.constant 0 : index
    %c0_8 = arith.constant 0 : index
    %45 = vector.load %arg4[%c0_7, %c0_8] : memref<1920x512xbf16, #tpu.memory_space<vmem>>, vector<1920x512xbf16>
    %cst_9 = arith.constant dense<0.000000e+00> : vector<64x512xf32>
    %46 = tpu.matmul %44, %45, %cst_9 {dimension_numbers = #tpu.dot_dimension_numbers<[1], [0], [0], [1], [0, 0, 1, 1], [], []>} : vector<64x1920xbf16>, vector<1920x512xbf16>, vector<64x512xf32> -> vector<64x512xf32>
    %c0_10 = arith.constant 0 : index
    %c0_11 = arith.constant 0 : index
    %47 = vector.load %arg5[%c0_10, %c0_11] : memref<1x512xf32, #tpu.memory_space<vmem>>, vector<1x512xf32>
    %48 = vector.broadcast %47 : vector<1x512xf32> to vector<64x512xf32>
    %49 = arith.addf %46, %48 : vector<64x512xf32>
    %50 = vector.extract_strided_slice %49 {offsets = [0, 0], sizes = [64, 256], strides = [1, 1]} : vector<64x512xf32> to vector<64x256xf32>
    %51 = vector.extract_strided_slice %49 {offsets = [0, 256], sizes = [64, 256], strides = [1, 1]} : vector<64x512xf32> to vector<64x256xf32>
    %52 = arith.maximumf %50, %51 : vector<64x256xf32>
    %53 = vector.shape_cast %52 : vector<64x256xf32> to vector<4x2x8x256xf32>
    %54 = vector.extract_strided_slice %53 {offsets = [0, 0, 0, 0], sizes = [4, 1, 8, 256], strides = [1, 1, 1, 1]} : vector<4x2x8x256xf32> to vector<4x1x8x256xf32>
    %55 = vector.shape_cast %54 : vector<4x1x8x256xf32> to vector<4x8x256xf32>
    %56 = vector.extract_strided_slice %53 {offsets = [0, 1, 0, 0], sizes = [4, 1, 8, 256], strides = [1, 1, 1, 1]} : vector<4x2x8x256xf32> to vector<4x1x8x256xf32>
    %57 = vector.shape_cast %56 : vector<4x1x8x256xf32> to vector<4x8x256xf32>
    %58 = arith.maximumf %55, %57 : vector<4x8x256xf32>
    %cst_12 = arith.constant 0.000000e+00 : f32
    %59 = vector.broadcast %cst_12 : f32 to vector<4x8x256xf32>
    %60 = arith.maximumf %58, %59 : vector<4x8x256xf32>
    %61 = vector.extract_strided_slice %60 {offsets = [0, 0, 0], sizes = [1, 8, 256], strides = [1, 1, 1]} : vector<4x8x256xf32> to vector<1x8x256xf32>
    %62 = vector.shape_cast %61 : vector<1x8x256xf32> to vector<8x256xf32>
    %63 = vector.extract_strided_slice %60 {offsets = [1, 0, 0], sizes = [1, 8, 256], strides = [1, 1, 1]} : vector<4x8x256xf32> to vector<1x8x256xf32>
    %64 = vector.shape_cast %63 : vector<1x8x256xf32> to vector<8x256xf32>
    %65 = vector.extract_strided_slice %60 {offsets = [2, 0, 0], sizes = [1, 8, 256], strides = [1, 1, 1]} : vector<4x8x256xf32> to vector<1x8x256xf32>
    %66 = vector.shape_cast %65 : vector<1x8x256xf32> to vector<8x256xf32>
    %67 = vector.extract_strided_slice %60 {offsets = [3, 0, 0], sizes = [1, 8, 256], strides = [1, 1, 1]} : vector<4x8x256xf32> to vector<1x8x256xf32>
    %68 = vector.shape_cast %67 : vector<1x8x256xf32> to vector<8x256xf32>
    %69 = tpu.concatenate %62, %64, %66, %68 in 1 : vector<8x256xf32>, vector<8x256xf32>, vector<8x256xf32>, vector<8x256xf32> -> vector<8x1024xf32>
    %70 = arith.truncf %69 : vector<8x1024xf32> to vector<8x1024xbf16>
    %c0_13 = arith.constant 0 : index
    %c0_14 = arith.constant 0 : index
    %71 = vector.load %arg6[%c0_13, %c0_14] : memref<1024x256xbf16, #tpu.memory_space<vmem>>, vector<1024x256xbf16>
    %cst_15 = arith.constant dense<0.000000e+00> : vector<8x256xf32>
    %72 = tpu.matmul %70, %71, %cst_15 {dimension_numbers = #tpu.dot_dimension_numbers<[1], [0], [0], [1], [0, 0, 1, 1], [], []>} : vector<8x1024xbf16>, vector<1024x256xbf16>, vector<8x256xf32> -> vector<8x256xf32>
    %c0_16 = arith.constant 0 : index
    %c0_17 = arith.constant 0 : index
    %73 = vector.load %arg7[%c0_16, %c0_17] : memref<1x256xf32, #tpu.memory_space<vmem>>, vector<1x256xf32>
    %74 = vector.broadcast %73 : vector<1x256xf32> to vector<8x256xf32>
    %75 = arith.addf %72, %74 : vector<8x256xf32>
    %cst_18 = arith.constant 0.000000e+00 : f32
    %76 = vector.broadcast %cst_18 : f32 to vector<8x256xf32>
    %77 = arith.maximumf %75, %76 : vector<8x256xf32>
    %78 = arith.truncf %77 : vector<8x256xf32> to vector<8x256xbf16>
    %c0_19 = arith.constant 0 : index
    %c0_20 = arith.constant 0 : index
    %79 = vector.load %arg8[%c0_19, %c0_20] : memref<256x128xbf16, #tpu.memory_space<vmem>>, vector<256x128xbf16>
    %cst_21 = arith.constant dense<0.000000e+00> : vector<8x128xf32>
    %80 = tpu.matmul %78, %79, %cst_21 {dimension_numbers = #tpu.dot_dimension_numbers<[1], [0], [0], [1], [0, 0, 1, 1], [], []>} : vector<8x256xbf16>, vector<256x128xbf16>, vector<8x128xf32> -> vector<8x128xf32>
    %c0_22 = arith.constant 0 : index
    %c0_23 = arith.constant 0 : index
    %81 = vector.load %arg9[%c0_22, %c0_23] : memref<1x128xf32, #tpu.memory_space<vmem>>, vector<1x128xf32>
    %82 = vector.broadcast %81 : vector<1x128xf32> to vector<8x128xf32>
    %83 = arith.addf %80, %82 : vector<8x128xf32>
    %c0_24 = arith.constant 0 : index
    %c0_25 = arith.constant 0 : index
    %84 = vector.load %arg10[%c0_24, %c0_25] : memref<8x128xf32, #tpu.memory_space<vmem>>, vector<8x128xf32>
    tpu.vector_store %arg10[%c0_24, %c0_25], %83 {strides = array<i32>} : memref<8x128xf32, #tpu.memory_space<vmem>>, vector<8x128xf32>,
    return
  }
  func.func @transform_0(%arg0: i32) -> (i32, i32, i32) {
    %c0_i32 = arith.constant 0 : i32
    %c0_i32_0 = arith.constant 0 : i32
    %c0_i32_1 = arith.constant 0 : i32
    return %c0_i32, %arg0, %c0_i32_0 : i32, i32, i32
  }
  func.func @transform_1(%arg0: i32) -> (i32, i32) {
    %c0_i32 = arith.constant 0 : i32
    %c0_i32_0 = arith.constant 0 : i32
    %c0_i32_1 = arith.constant 0 : i32
    return %c0_i32, %c0_i32_0 : i32, i32
  }
  func.func @transform_2(%arg0: i32) -> (i32, i32) {
    %c0_i32 = arith.constant 0 : i32
    %c0_i32_0 = arith.constant 0 : i32
    %c0_i32_1 = arith.constant 0 : i32
    return %c0_i32, %c0_i32_0 : i32, i32
  }
  func.func @transform_3(%arg0: i32) -> (i32, i32) {
    %c0_i32 = arith.constant 0 : i32
    %c0_i32_0 = arith.constant 0 : i32
    %c0_i32_1 = arith.constant 0 : i32
    return %c0_i32, %c0_i32_0 : i32, i32
  }
  func.func @transform_4(%arg0: i32) -> (i32, i32) {
    %c0_i32 = arith.constant 0 : i32
    %c0_i32_0 = arith.constant 0 : i32
    %c0_i32_1 = arith.constant 0 : i32
    return %c0_i32, %c0_i32_0 : i32, i32
  }
  func.func @transform_5(%arg0: i32) -> (i32, i32) {
    %c0_i32 = arith.constant 0 : i32
    %c0_i32_0 = arith.constant 0 : i32
    %c0_i32_1 = arith.constant 0 : i32
    return %c0_i32, %c0_i32_0 : i32, i32
  }
  func.func @transform_6(%arg0: i32) -> (i32, i32) {
    %c0_i32 = arith.constant 0 : i32
    %c0_i32_0 = arith.constant 0 : i32
    %c0_i32_1 = arith.constant 0 : i32
    return %c0_i32, %c0_i32_0 : i32, i32
  }
  func.func @transform_7(%arg0: i32) -> (i32, i32) {
    %c0_i32 = arith.constant 0 : i32
    %c0_i32_0 = arith.constant 0 : i32
    %c0_i32_1 = arith.constant 0 : i32
    return %c0_i32, %c0_i32_0 : i32, i32
  }
  func.func @transform_8(%arg0: i32) -> (i32, i32) {
    %c0_i32 = arith.constant 0 : i32
    %c0_i32_0 = arith.constant 0 : i32
    %c0_i32_1 = arith.constant 0 : i32
    return %c0_i32, %c0_i32_0 : i32, i32
  }
  func.func @transform_9(%arg0: i32) -> (i32, i32) {
    %c0_i32 = arith.constant 0 : i32
    %c0_i32_0 = arith.constant 0 : i32
    return %arg0, %c0_i32 : i32, i32
  }
}

</mosaic_0001>

<llo_original>
// kernel: tile.8
$region0: #{tile.8}
  #allocation0 [shape = 's32[1]{0}', space=sflag, size = 0x4, scoped, tag = 'scoped memory for tile.8']
  %s0 = inlined_call_operand.vmem [shape: f32[64], index: 0, kind: input, shape index: {}]
  %s1 = inlined_call_operand.vmem [shape: f32[8,64], index: 1, kind: output, shape index: {}]
  // Predicated region
  $region2: #{tile.8} parent=0 // pred_check
    _
  $region3: #{tile.8} parent=0 // pred_check_branch
    %3 = sbr.rel (0) target = $region5
  $region4: #{tile.8} parent=0 // pred_region
    _
  $region5: #{tile.8} parent=0 // pred_fallthru
    _
  %v4 = vld [vmem:[%s0] ss:$0 sm:$0xff]
  %5 = vst [vmem:[%s1] sm:$0xff] %v4

// kernel: tile.9
$region0: #{tile.9}
  %s0 = inlined_call_operand.vmem [shape: f32[8,64], index: 0, kind: input, shape index: {}]
  %s1 = inlined_call_operand.vmem [shape: f32[1,512], index: 1, kind: output, shape index: {}]
  $region1: #{tile.9} parent=0
    #allocation0 [shape = 'u8[16384]{0}', space=vmem, size = 0x4000, scoped, tag = 'scoped mem for output reshape']
    %v2 = vld [vmem:[%s0] ss:$2 sm:$0xf]
    %vm3 = vcmask 523264
    %4 = vst.msk [vmem:[#allocation0] ss:$8 sm:$0xf] %vm3, %v2
    %s5 = scalar_lea.vmem %s0, 1
    %v6 = vld [vmem:[%s5] ss:$2 sm:$0xf]
    %7 = vrot.lane.b32.xlu0 %v6, 64
    %v8 = vpop.permute.xlu0 %7
    %vm9 = vcmask 1048064
    %10 = vst.msk [vmem:[#allocation0] ss:$8 sm:$0xf] %vm9, %v8
    %s12 = ssub.s32 2, 1
    %v13 = vld [vmem:[#allocation0] sm:%s12]
    %s15 = ssub.s32 2, 1
    %16 = vst [vmem:[%s1] sm:%s15] %v13
    %s17 = scalar_lea.vmem [#allocation0], 8
    %v18 = vld [vmem:[%s17] sm:%s12]
    %s20 = ssub.s32 2, 1
    %s21 = scalar_lea.vmem %s1, 1
    %22 = vst [vmem:[%s21] sm:%s20] %v18
    %s23 = scalar_lea.vmem [#allocation0], 16
    %v24 = vld [vmem:[%s23] sm:%s12]
    %s26 = ssub.s32 2, 1
    %s27 = scalar_lea.vmem %s1, 2
    %28 = vst [vmem:[%s27] sm:%s26] %v24
    %s29 = scalar_lea.vmem [#allocation0], 24
    %v30 = vld [vmem:[%s29] sm:%s12]
    %s32 = ssub.s32 2, 1
    %s33 = scalar_lea.vmem %s1, 3
    %34 = vst [vmem:[%s33] sm:%s32] %v30

// kernel: mnist_net_forward.1
$region0: #{mnist_net_forward.1}
  #allocation0 [shape = 'u32[]', space=smem, size = 0x4, offset = 0x4, fixed_abs, tag = 'smem constant byte address 0x4 - core index']
  #allocation1 [shape = 'u32[72,128]{1,0:T(1,128)}', space=vmem, size = 0x9000, scoped, tag = 'internal scratch']
  %s0 = inlined_call_operand.vmem [shape: f32[24,24,140], index: 0, kind: input, shape index: {}]
  %s1 = inlined_call_operand.vmem [shape: bf16[140,1920], index: 1, kind: input, shape index: {}]
  %s2 = inlined_call_operand.vmem [shape: f32[1,1920], index: 2, kind: input, shape index: {}]
  %s3 = inlined_call_operand.vmem [shape: bf16[1920,512], index: 3, kind: input, shape index: {}]
  %s4 = inlined_call_operand.vmem [shape: f32[1,512], index: 4, kind: input, shape index: {}]
  %s5 = inlined_call_operand.vmem [shape: bf16[1024,256], index: 5, kind: input, shape index: {}]
  %s6 = inlined_call_operand.vmem [shape: f32[1,256], index: 6, kind: input, shape index: {}]
  %s7 = inlined_call_operand.vmem [shape: bf16[256,128], index: 7, kind: input, shape index: {}]
  %s8 = inlined_call_operand.vmem [shape: f32[1,128], index: 8, kind: input, shape index: {}]
  %s9 = inlined_call_operand.vmem [shape: f32[24,128], index: 9, kind: output, shape index: {}]
  %s10 = sld [smem:[#allocation0]]
  $region92: #{mnist_net_forward.1} parent=0
    _
  %s12 = ssub.s32 1, %s10
  %s13 = scalar_select 0, %s12, %s10
  $region1: #{mnist_net_forward.1} parent=0
    #allocation2 [shape = 'u8[393216]{0}', space=vmem, size = 0x60000, scoped, tag = 'input window, operand 0']
    loop: start=0, step=1, limit=5
    $region2: #{mnist_net_forward.1} parent=1 // loop_pre_header
      _
    $region3: #{mnist_net_forward.1} parent=1 // loop_header
      %s15 = sphi 0, %s19
      %p16 = scmp.ge.s32.totalorder %s15, 5
      %s25 = sphi 0, %s27
      %s28 = sphi 0, %s25
      %s29 = sphi 0, %s28
      %s45 = sphi 0, %s29
      %s49 = sphi 0, %s49
      %s51 = sphi 0, %s49
      %s52 = sphi 0, %s51
      %s66 = sphi 0, %s52
      %s70 = sphi 0, %s70
      %s72 = sphi 0, %s70
      %s73 = sphi 0, %s72
      %s87 = sphi 0, %s73
      %s91 = sphi 0, %s91
      %s93 = sphi 0, %s91
      %s94 = sphi 0, %s93
      %s108 = sphi 0, %s94
      %s112 = sphi 0, %s112
      %s114 = sphi 0, %s112
      %s115 = sphi 0, %s114
      %s129 = sphi 0, %s115
      %s133 = sphi 0, %s133
      %s135 = sphi 0, %s133
      %s136 = sphi 0, %s135
      %s150 = sphi 0, %s136
      %s154 = sphi 0, %s154
      %s156 = sphi 0, %s154
      %s157 = sphi 0, %s156
      %s171 = sphi 0, %s157
      %s175 = sphi 0, %s175
      %s177 = sphi 0, %s175
      %s178 = sphi 0, %s177
      %s192 = sphi 0, %s178
      %s196 = sphi 0, %s196
      %s198 = sphi 0, %s196
      %s199 = sphi 0, %s198
      %s213 = sphi 0, %s199
      %s219 = sphi 0, %s221
      %s222 = sphi 0, %s219
      %s223 = sphi 0, %s222
      %s239 = sphi 0, %s223
    $region4: #{mnist_net_forward.1} parent=1 // loop_header_branch
      %18 = sbr.rel (%p16) target = $region8
    $region5: #{mnist_net_forward.1} parent=1 // loop_body
      %s20 = ssub.s32 %s15, 1
      %s21 = ssub.s32 %s15, 2
      %s22 = sadd.s32 %s15, 1
      %s23 = ssub.s32 %s15, %s22
      %p24 = scmp.eq.s32.totalorder %s23, 0
      %s26 = sadd.s32 %s25, 1
      %s27 = scalar_select %p24, %s25, %s26
      %p30 = pneg %p24
      %p31 = scmp.eq.s32.totalorder %s15, 2
      %p32 = por %p30, %p31
      %p33 = scmp.ne.s32.totalorder %s25, %s28
      %p34 = scmp.eq.s32.totalorder %s15, 0
      %p35 = por %p33, %p34
      %p36 = scmp.ne.s32.totalorder %s25, %s28
      %p37 = scmp.eq.s32.totalorder %s20, 2
      %p38 = por %p36, %p37
      %p39 = scmp.ne.s32.totalorder %s28, %s29
      %p40 = scmp.eq.s32.totalorder %s20, 0
      %p41 = por %p39, %p40
      %p42 = scmp.ne.s32.totalorder %s28, %s29
      %p43 = scmp.eq.s32.totalorder %s21, 2
      %p44 = por %p42, %p43
      %p46 = scmp.ne.s32.totalorder %s29, %s45
      %p47 = scmp.eq.s32.totalorder %s21, 0
      %p48 = por %p46, %p47
      %s50 = sadd.s32 %s49, 1
      %p53 = scmp.eq.s32.totalorder %s15, 2
      %p54 = scmp.ne.s32.totalorder %s49, %s51
      %p55 = scmp.eq.s32.totalorder %s15, 0
      %p56 = por %p54, %p55
      %p57 = scmp.ne.s32.totalorder %s49, %s51
      %p58 = scmp.eq.s32.totalorder %s20, 2
      %p59 = por %p57, %p58
      %p60 = scmp.ne.s32.totalorder %s51, %s52
      %p61 = scmp.eq.s32.totalorder %s20, 0
      %p62 = por %p60, %p61
      %p63 = scmp.ne.s32.totalorder %s51, %s52
      %p64 = scmp.eq.s32.totalorder %s21, 2
      %p65 = por %p63, %p64
      %p67 = scmp.ne.s32.totalorder %s52, %s66
      %p68 = scmp.eq.s32.totalorder %s21, 0
      %p69 = por %p67, %p68
      %s71 = sadd.s32 %s70, 1
      %p74 = scmp.eq.s32.totalorder %s15, 2
      %p75 = scmp.ne.s32.totalorder %s70, %s72
      %p76 = scmp.eq.s32.totalorder %s15, 0
      %p77 = por %p75, %p76
      %p78 = scmp.ne.s32.totalorder %s70, %s72
      %p79 = scmp.eq.s32.totalorder %s20, 2
      %p80 = por %p78, %p79
      %p81 = scmp.ne.s32.totalorder %s72, %s73
      %p82 = scmp.eq.s32.totalorder %s20, 0
      %p83 = por %p81, %p82
      %p84 = scmp.ne.s32.totalorder %s72, %s73
      %p85 = scmp.eq.s32.totalorder %s21, 2
      %p86 = por %p84, %p85
      %p88 = scmp.ne.s32.totalorder %s73, %s87
      %p89 = scmp.eq.s32.totalorder %s21, 0
      %p90 = por %p88, %p89
      %s92 = sadd.s32 %s91, 1
      %p95 = scmp.eq.s32.totalorder %s15, 2
      %p96 = scmp.ne.s32.totalorder %s91, %s93
      %p97 = scmp.eq.s32.totalorder %s15, 0
      %p98 = por %p96, %p97
      %p99 = scmp.ne.s32.totalorder %s91, %s93
      %p100 = scmp.eq.s32.totalorder %s20, 2
      %p101 = por %p99, %p100
      %p102 = scmp.ne.s32.totalorder %s93, %s94
      %p103 = scmp.eq.s32.totalorder %s20, 0
      %p104 = por %p102, %p103
      %p105 = scmp.ne.s32.totalorder %s93, %s94
      %p106 = scmp.eq.s32.totalorder %s21, 2
      %p107 = por %p105, %p106
      %p109 = scmp.ne.s32.totalorder %s94, %s108
      %p110 = scmp.eq.s32.totalorder %s21, 0
      %p111 = por %p109, %p110
      %s113 = sadd.s32 %s112, 1
      %p116 = scmp.eq.s32.totalorder %s15, 2
      %p117 = scmp.ne.s32.totalorder %s112, %s114
      %p118 = scmp.eq.s32.totalorder %s15, 0
      %p119 = por %p117, %p118
      %p120 = scmp.ne.s32.totalorder %s112, %s114
      %p121 = scmp.eq.s32.totalorder %s20, 2
      %p122 = por %p120, %p121
      %p123 = scmp.ne.s32.totalorder %s114, %s115
      %p124 = scmp.eq.s32.totalorder %s20, 0
      %p125 = por %p123, %p124
      %p126 = scmp.ne.s32.totalorder %s114, %s115
      %p127 = scmp.eq.s32.totalorder %s21, 2
      %p128 = por %p126, %p127
      %p130 = scmp.ne.s32.totalorder %s115, %s129
      %p131 = scmp.eq.s32.totalorder %s21, 0
      %p132 = por %p130, %p131
      %s134 = sadd.s32 %s133, 1
      %p137 = scmp.eq.s32.totalorder %s15, 2
      %p138 = scmp.ne.s32.totalorder %s133, %s135
      %p139 = scmp.eq.s32.totalorder %s15, 0
      %p140 = por %p138, %p139
      %p141 = scmp.ne.s32.totalorder %s133, %s135
      %p142 = scmp.eq.s32.totalorder %s20, 2
      %p143 = por %p141, %p142
      %p144 = scmp.ne.s32.totalorder %s135, %s136
      %p145 = scmp.eq.s32.totalorder %s20, 0
      %p146 = por %p144, %p145
      %p147 = scmp.ne.s32.totalorder %s135, %s136
      %p148 = scmp.eq.s32.totalorder %s21, 2
      %p149 = por %p147, %p148
      %p151 = scmp.ne.s32.totalorder %s136, %s150
      %p152 = scmp.eq.s32.totalorder %s21, 0
      %p153 = por %p151, %p152
      %s155 = sadd.s32 %s154, 1
      %p158 = scmp.eq.s32.totalorder %s15, 2
      %p159 = scmp.ne.s32.totalorder %s154, %s156
      %p160 = scmp.eq.s32.totalorder %s15, 0
      %p161 = por %p159, %p160
      %p162 = scmp.ne.s32.totalorder %s154, %s156
      %p163 = scmp.eq.s32.totalorder %s20, 2
      %p164 = por %p162, %p163
      %p165 = scmp.ne.s32.totalorder %s156, %s157
      %p166 = scmp.eq.s32.totalorder %s20, 0
      %p167 = por %p165, %p166
      %p168 = scmp.ne.s32.totalorder %s156, %s157
      %p169 = scmp.eq.s32.totalorder %s21, 2
      %p170 = por %p168, %p169
      %p172 = scmp.ne.s32.totalorder %s157, %s171
      %p173 = scmp.eq.s32.totalorder %s21, 0
      %p174 = por %p172, %p173
      %s176 = sadd.s32 %s175, 1
      %p179 = scmp.eq.s32.totalorder %s15, 2
      %p180 = scmp.ne.s32.totalorder %s175, %s177
      %p181 = scmp.eq.s32.totalorder %s15, 0
      %p182 = por %p180, %p181
      %p183 = scmp.ne.s32.totalorder %s175, %s177
      %p184 = scmp.eq.s32.totalorder %s20, 2
      %p185 = por %p183, %p184
      %p186 = scmp.ne.s32.totalorder %s177, %s178
      %p187 = scmp.eq.s32.totalorder %s20, 0
      %p188 = por %p186, %p187
      %p189 = scmp.ne.s32.totalorder %s177, %s178
      %p190 = scmp.eq.s32.totalorder %s21, 2
      %p191 = por %p189, %p190
      %p193 = scmp.ne.s32.totalorder %s178, %s192
      %p194 = scmp.eq.s32.totalorder %s21, 0
      %p195 = por %p193, %p194
      %s197 = sadd.s32 %s196, 1
      %p200 = scmp.eq.s32.totalorder %s15, 2
      %p201 = scmp.ne.s32.totalorder %s196, %s198
      %p202 = scmp.eq.s32.totalorder %s15, 0
      %p203 = por %p201, %p202
      %p204 = scmp.ne.s32.totalorder %s196, %s198
      %p205 = scmp.eq.s32.totalorder %s20, 2
      %p206 = por %p204, %p205
      %p207 = scmp.ne.s32.totalorder %s198, %s199
      %p208 = scmp.eq.s32.totalorder %s20, 0
      %p209 = por %p207, %p208
      %p210 = scmp.ne.s32.totalorder %s198, %s199
      %p211 = scmp.eq.s32.totalorder %s21, 2
      %p212 = por %p210, %p211
      %p214 = scmp.ne.s32.totalorder %s199, %s213
      %p215 = scmp.eq.s32.totalorder %s21, 0
      %p216 = por %p214, %p215
      %s217 = ssub.s32 %s15, %s22
      %p218 = scmp.eq.s32.totalorder %s217, 0
      %s220 = sadd.s32 %s219, 1
      %s221 = scalar_select %p218, %s219, %s220
      %p224 = pneg %p218
      %p225 = scmp.eq.s32.totalorder %s15, 2
      %p226 = por %p224, %p225
      %p227 = scmp.ne.s32.totalorder %s219, %s222
      %p228 = scmp.eq.s32.totalorder %s15, 0
      %p229 = por %p227, %p228
      %p230 = scmp.ne.s32.totalorder %s219, %s222
      %p231 = scmp.eq.s32.totalorder %s20, 2
      %p232 = por %p230, %p231
      %p233 = scmp.ne.s32.totalorder %s222, %s223
      %p234 = scmp.eq.s32.totalorder %s20, 0
      %p235 = por %p233, %p234
      %p236 = scmp.ne.s32.totalorder %s222, %s223
      %p237 = scmp.eq.s32.totalorder %s21, 2
      %p238 = por %p236, %p237
      %p240 = scmp.ne.s32.totalorder %s223, %s239
      %p241 = scmp.eq.s32.totalorder %s21, 0
      %p242 = por %p240, %p241
      %p243 = scmp.le.s32.totalorder 1, %s15
      %p244 = scmp.lt.s32.totalorder %s15, 4
      %p245 = pnand %p243, %p244
      %p246 = pneg %p245
      // Predicated region
      $region9: #{mnist_net_forward.1} parent=5 // pred_check
        _
      $region10: #{mnist_net_forward.1} parent=5 // pred_check_branch
        %248 = sbr.rel (%p245) target = $region12
      $region11: #{mnist_net_forward.1} parent=5 // pred_region
        %s249 = ssub.s32 %s15, 1
        // Predicated region
        $region13: #{mnist_net_forward.1} parent=11 // pred_check
          %p250 = pneg %p62
        $region14: #{mnist_net_forward.1} parent=11 // pred_check_branch
          %252 = sbr.rel (%p250) target = $region16
        $region15: #{mnist_net_forward.1} parent=11 // pred_region
          _
        $region16: #{mnist_net_forward.1} parent=11 // pred_fallthru
          _
        // Predicated region
        $region17: #{mnist_net_forward.1} parent=11 // pred_check
          %p253 = pneg %p83
        $region18: #{mnist_net_forward.1} parent=11 // pred_check_branch
          %255 = sbr.rel (%p253) target = $region20
        $region19: #{mnist_net_forward.1} parent=11 // pred_region
          _
        $region20: #{mnist_net_forward.1} parent=11 // pred_fallthru
          _
        // Predicated region
        $region21: #{mnist_net_forward.1} parent=11 // pred_check
          %p256 = pneg %p104
        $region22: #{mnist_net_forward.1} parent=11 // pred_check_branch
          %258 = sbr.rel (%p256) target = $region24
        $region23: #{mnist_net_forward.1} parent=11 // pred_region
          _
        $region24: #{mnist_net_forward.1} parent=11 // pred_fallthru
          _
        // Predicated region
        $region25: #{mnist_net_forward.1} parent=11 // pred_check
          %p259 = pneg %p125
        $region26: #{mnist_net_forward.1} parent=11 // pred_check_branch
          %261 = sbr.rel (%p259) target = $region28
        $region27: #{mnist_net_forward.1} parent=11 // pred_region
          _
        $region28: #{mnist_net_forward.1} parent=11 // pred_fallthru
          _
        // Predicated region
        $region29: #{mnist_net_forward.1} parent=11 // pred_check
          %p262 = pneg %p146
        $region30: #{mnist_net_forward.1} parent=11 // pred_check_branch
          %264 = sbr.rel (%p262) target = $region32
        $region31: #{mnist_net_forward.1} parent=11 // pred_region
          _
        $region32: #{mnist_net_forward.1} parent=11 // pred_fallthru
          _
        // Predicated region
        $region33: #{mnist_net_forward.1} parent=11 // pred_check
          %p265 = pneg %p167
        $region34: #{mnist_net_forward.1} parent=11 // pred_check_branch
          %267 = sbr.rel (%p265) target = $region36
        $region35: #{mnist_net_forward.1} parent=11 // pred_region
          _
        $region36: #{mnist_net_forward.1} parent=11 // pred_fallthru
          _
        // Predicated region
        $region37: #{mnist_net_forward.1} parent=11 // pred_check
          %p268 = pneg %p188
        $region38: #{mnist_net_forward.1} parent=11 // pred_check_branch
          %270 = sbr.rel (%p268) target = $region40
        $region39: #{mnist_net_forward.1} parent=11 // pred_region
          _
        $region40: #{mnist_net_forward.1} parent=11 // pred_fallthru
          _
        // Predicated region
        $region41: #{mnist_net_forward.1} parent=11 // pred_check
          %p271 = pneg %p209
        $region42: #{mnist_net_forward.1} parent=11 // pred_check_branch
          %273 = sbr.rel (%p271) target = $region44
        $region43: #{mnist_net_forward.1} parent=11 // pred_region
          _
        $region44: #{mnist_net_forward.1} parent=11 // pred_fallthru
          _
      $region12: #{mnist_net_forward.1} parent=5 // pred_fallthru
        _
      %p274 = scmp.lt.s32.totalorder %s15, 3
      // Predicated region
      $region45: #{mnist_net_forward.1} parent=5 // pred_check
        %p275 = pneg %p274
      $region46: #{mnist_net_forward.1} parent=5 // pred_check_branch
        %277 = sbr.rel (%p275) target = $region48
      $region47: #{mnist_net_forward.1} parent=5 // pred_region
        // Predicated region
        $region49: #{mnist_net_forward.1} parent=47 // pred_check
          %p278 = pneg %p35
        $region50: #{mnist_net_forward.1} parent=47 // pred_check_branch
          %280 = sbr.rel (%p278) target = $region52
        $region51: #{mnist_net_forward.1} parent=47 // pred_region
          %s281 = sand.u32 %s25, 1
          %s282 = sand.u32 %s25, 1
          %s283 = smul.addr %s282, 384
          %s284 = scalar_lea.vmem [#allocation2], %s283
          %s285 = smul.addr %s15, 2
          %s286 = smul.addr %s285, 8
          %s287 = scalar_lea.vmem %s0, %s286
          // Predicated region
          $region53: #{mnist_net_forward.1} parent=51 // pred_check
            _
          $region54: #{mnist_net_forward.1} parent=51 // pred_check_branch
            %289 = sbr.rel (0) target = $region56
          $region55: #{mnist_net_forward.1} parent=51 // pred_region
            // Predicated region
            $region57: #{mnist_net_forward.1} parent=55 // pred_check
              _
            $region58: #{mnist_net_forward.1} parent=55 // pred_check_branch
              %291 = sbr.rel (0) target = $region60
            $region59: #{mnist_net_forward.1} parent=55 // pred_region
              loop: start=0, step=1, limit=1
              $region61: #{mnist_net_forward.1} parent=59 // loop_pre_header
                _
              $region62: #{mnist_net_forward.1} parent=59 // loop_header
                %s293 = sphi 0, %s297
                %p294 = scmp.ge.s32.totalorder %s293, 1
                %s298 = sphi %s287, %s287
                %s299 = sphi %s284, %s284
              $region63: #{mnist_net_forward.1} parent=59 // loop_header_branch
                %296 = sbr.rel (%p294) target = $region67
              $region64: #{mnist_net_forward.1} parent=59 // loop_body
                %v300 = vld [vmem:[%s298] sm:$0xff]
                %301 = vst [vmem:[%s299] sm:$0xff] %v300
                %v302 = vld [vmem:[%s298 + $0x8] sm:$0xff]
                %303 = vst [vmem:[%s299 + $0x8] sm:$0xff] %v302
                %v304 = vld [vmem:[%s298 + $0x30] sm:$0xff]
                %305 = vst [vmem:[%s299 + $0x10] sm:$0xff] %v304
                %v306 = vld [vmem:[%s298 + $0x38] sm:$0xff]
                %307 = vst [vmem:[%s299 + $0x18] sm:$0xff] %v306
                %v308 = vld [vmem:[%s298 + $0x60] sm:$0xff]
                %309 = vst [vmem:[%s299 + $0x20] sm:$0xff] %v308
                %v310 = vld [vmem:[%s298 + $0x68] sm:$0xff]
                %311 = vst [vmem:[%s299 + $0x28] sm:$0xff] %v310
                %v312 = vld [vmem:[%s298 + $0x90] sm:$0xff]
                %313 = vst [vmem:[%s299 + $0x30] sm:$0xff] %v312
                %v314 = vld [vmem:[%s298 + $0x98] sm:$0xff]
                %315 = vst [vmem:[%s299 + $0x38] sm:$0xff] %v314
                %v316 = vld [vmem:[%s298 + $0xc0] sm:$0xff]
                %317 = vst [vmem:[%s299 + $0x40] sm:$0xff] %v316
                %v318 = vld [vmem:[%s298 + $0xc8] sm:$0xff]
                %319 = vst [vmem:[%s299 + $0x48] sm:$0xff] %v318
                %v320 = vld [vmem:[%s298 + $0xf0] sm:$0xff]
                %321 = vst [vmem:[%s299 + $0x50] sm:$0xff] %v320
                %v322 = vld [vmem:[%s298 + $0xf8] sm:$0xff]
                %323 = vst [vmem:[%s299 + $0x58] sm:$0xff] %v322
                %v324 = vld [vmem:[%s298 + $0x120] sm:$0xff]
                %325 = vst [vmem:[%s299 + $0x60] sm:$0xff] %v324
                %v326 = vld [vmem:[%s298 + $0x128] sm:$0xff]
                %327 = vst [vmem:[%s299 + $0x68] sm:$0xff] %v326
                %v328 = vld [vmem:[%s298 + $0x150] sm:$0xff]
                %329 = vst [vmem:[%s299 + $0x70] sm:$0xff] %v328
                %v330 = vld [vmem:[%s298 + $0x158] sm:$0xff]
                %331 = vst [vmem:[%s299 + $0x78] sm:$0xff] %v330
                %v332 = vld [vmem:[%s298 + $0x180] sm:$0xff]
                %333 = vst [vmem:[%s299 + $0x80] sm:$0xff] %v332
                %v334 = vld [vmem:[%s298 + $0x188] sm:$0xff]
                %335 = vst [vmem:[%s299 + $0x88] sm:$0xff] %v334
                %v336 = vld [vmem:[%s298 + $0x1b0] sm:$0xff]
                %337 = vst [vmem:[%s299 + $0x90] sm:$0xff] %v336
                %v338 = vld [vmem:[%s298 + $0x1b8] sm:$0xff]
                %339 = vst [vmem:[%s299 + $0x98] sm:$0xff] %v338
                %v340 = vld [vmem:[%s298 + $0x1e0] sm:$0xff]
                %341 = vst [vmem:[%s299 + $0xa0] sm:$0xff] %v340
                %v342 = vld [vmem:[%s298 + $0x1e8] sm:$0xff]
                %343 = vst [vmem:[%s299 + $0xa8] sm:$0xff] %v342
                %v344 = vld [vmem:[%s298 + $0x210] sm:$0xff]
                %345 = vst [vmem:[%s299 + $0xb0] sm:$0xff] %v344
                %v346 = vld [vmem:[%s298 + $0x218] sm:$0xff]
                %347 = vst [vmem:[%s299 + $0xb8] sm:$0xff] %v346
                %v348 = vld [vmem:[%s298 + $0x240] sm:$0xff]
                %349 = vst [vmem:[%s299 + $0xc0] sm:$0xff] %v348
                %v350 = vld [vmem:[%s298 + $0x248] sm:$0xff]
                %351 = vst [vmem:[%s299 + $0xc8] sm:$0xff] %v350
                %v352 = vld [vmem:[%s298 + $0x270] sm:$0xff]
                %353 = vst [vmem:[%s299 + $0xd0] sm:$0xff] %v352
                %v354 = vld [vmem:[%s298 + $0x278] sm:$0xff]
                %355 = vst [vmem:[%s299 + $0xd8] sm:$0xff] %v354
                %v356 = vld [vmem:[%s298 + $0x2a0] sm:$0xff]
                %357 = vst [vmem:[%s299 + $0xe0] sm:$0xff] %v356
                %v358 = vld [vmem:[%s298 + $0x2a8] sm:$0xff]
                %359 = vst [vmem:[%s299 + $0xe8] sm:$0xff] %v358
                %v360 = vld [vmem:[%s298 + $0x2d0] sm:$0xff]
                %361 = vst [vmem:[%s299 + $0xf0] sm:$0xff] %v360
                %v362 = vld [vmem:[%s298 + $0x2d8] sm:$0xff]
                %363 = vst [vmem:[%s299 + $0xf8] sm:$0xff] %v362
                %v364 = vld [vmem:[%s298 + $0x300] sm:$0xff]
                %365 = vst [vmem:[%s299 + $0x100] sm:$0xff] %v364
                %v366 = vld [vmem:[%s298 + $0x308] sm:$0xff]
                %367 = vst [vmem:[%s299 + $0x108] sm:$0xff] %v366
                %v368 = vld [vmem:[%s298 + $0x330] sm:$0xff]
                %369 = vst [vmem:[%s299 + $0x110] sm:$0xff] %v368
                %v370 = vld [vmem:[%s298 + $0x338] sm:$0xff]
                %371 = vst [vmem:[%s299 + $0x118] sm:$0xff] %v370
                %v372 = vld [vmem:[%s298 + $0x360] sm:$0xff]
                %373 = vst [vmem:[%s299 + $0x120] sm:$0xff] %v372
                %v374 = vld [vmem:[%s298 + $0x368] sm:$0xff]
                %375 = vst [vmem:[%s299 + $0x128] sm:$0xff] %v374
                %v376 = vld [vmem:[%s298 + $0x390] sm:$0xff]
                %377 = vst [vmem:[%s299 + $0x130] sm:$0xff] %v376
                %v378 = vld [vmem:[%s298 + $0x398] sm:$0xff]
                %379 = vst [vmem:[%s299 + $0x138] sm:$0xff] %v378
                %v380 = vld [vmem:[%s298 + $0x3c0] sm:$0xff]
                %381 = vst [vmem:[%s299 + $0x140] sm:$0xff] %v380
                %v382 = vld [vmem:[%s298 + $0x3c8] sm:$0xff]
                %383 = vst [vmem:[%s299 + $0x148] sm:$0xff] %v382
                %v384 = vld [vmem:[%s298 + $0x3f0] sm:$0xff]
                %385 = vst [vmem:[%s299 + $0x150] sm:$0xff] %v384
                %v386 = vld [vmem:[%s298 + $0x3f8] sm:$0xff]
                %387 = vst [vmem:[%s299 + $0x158] sm:$0xff] %v386
                %v388 = vld [vmem:[%s298 + $0x420] sm:$0xff]
                %389 = vst [vmem:[%s299 + $0x160] sm:$0xff] %v388
                %v390 = vld [vmem:[%s298 + $0x428] sm:$0xff]
                %391 = vst [vmem:[%s299 + $0x168] sm:$0xff] %v390
                %v392 = vld [vmem:[%s298 + $0x450] sm:$0xff]
                %393 = vst [vmem:[%s299 + $0x170] sm:$0xff] %v392
                %v394 = vld [vmem:[%s298 + $0x458] sm:$0xff]
                %395 = vst [vmem:[%s299 + $0x178] sm:$0xff] %v394
              $region65: #{mnist_net_forward.1} parent=59 // loop_footer
                %s297 = sadd.s32 1, %s293
              $region66: #{mnist_net_forward.1} parent=59 // loop_footer_branch
                %292 = sbr.rel target = $region62
              $region67: #{mnist_net_forward.1} parent=59 // loop_exit
                _
            $region60: #{mnist_net_forward.1} parent=55 // pred_fallthru
              _
            // Predicated region
            $region68: #{mnist_net_forward.1} parent=55 // pred_check
              _
            $region69: #{mnist_net_forward.1} parent=55 // pred_check_branch
              %397 = sbr.rel target = $region71
            $region70: #{mnist_net_forward.1} parent=55 // pred_region
              _
            $region71: #{mnist_net_forward.1} parent=55 // pred_fallthru
              _
          $region56: #{mnist_net_forward.1} parent=51 // pred_fallthru
            _
          %398 = vnop
        $region52: #{mnist_net_forward.1} parent=47 // pred_fallthru
          _
      $region48: #{mnist_net_forward.1} parent=5 // pred_fallthru
        _
      %p399 = scmp.le.s32.totalorder 1, %s15
      %p400 = scmp.lt.s32.totalorder %s15, 4
      %p401 = pnand %p399, %p400
      %p402 = pneg %p401
      // Predicated region
      $region72: #{mnist_net_forward.1} parent=5 // pred_check
        _
      $region73: #{mnist_net_forward.1} parent=5 // pred_check_branch
        %404 = sbr.rel (%p401) target = $region75
      $region74: #{mnist_net_forward.1} parent=5 // pred_region
        %s405 = ssub.s32 %s15, 1
        %s406 = sand.u32 %s28, 1
        %s407 = sand.u32 %s28, 1
        %s408 = smul.addr %s407, 384
        %s409 = scalar_lea.vmem [#allocation2], %s408
        // Predicated region
        $region76: #{mnist_net_forward.1} parent=74 // pred_check
          %p410 = pneg %p41
        $region77: #{mnist_net_forward.1} parent=74 // pred_check_branch
          %412 = sbr.rel (%p410) target = $region79
        $region78: #{mnist_net_forward.1} parent=74 // pred_region
          _
        $region79: #{mnist_net_forward.1} parent=74 // pred_fallthru
          _
        %s413 = sand.u32 %s28, 1
        %s414 = sand.u32 %s28, 1
        %s415 = smul.addr %s414, 384
        %s416 = scalar_lea.vmem [#allocation2], %s415
        %p417 = pneg %p41
        %p418 = pneg %p38
        %p419 = pneg %p62
        %p420 = pneg %p59
        %p421 = pneg %p83
        %p422 = pneg %p80
        %p423 = pneg %p104
        %p424 = pneg %p101
        %p425 = pneg %p125
        %p426 = pneg %p122
        %p427 = pneg %p146
        %p428 = pneg %p143
        %p429 = pneg %p167
        %p430 = pneg %p164
        %p431 = pneg %p188
        %p432 = pneg %p185
        %p433 = pneg %p209
        %p434 = pneg %p206
        %p435 = pneg %p235
        %p436 = pneg %p232
        %p437 = scmp.lt.s32.totalorder %s20, 2
        %s438 = scalar_select %p437, %s20, 2
        %s439 = smul.addr %s438, 8
        %s440 = scalar_lea.vmem %s9, %s439
        %p441 = scmp.lt.s32.totalorder %s20, 2
        %s442 = scalar_select %p441, %s20, 2
        %s443 = smul.addr %s442, 8
        %s444 = scalar_lea.vmem %s9, %s443
        %v446 = vld [vmem:[%s409] sm:$0xff]
        %v447 = vld [vmem:[%s409 + $0x8] sm:$0xff]
        %v448 = vld [vmem:[%s409 + $0x10] sm:$0xff]
        %v449 = vld [vmem:[%s409 + $0x18] sm:$0xff]
        %v450 = vld [vmem:[%s409 + $0x20] sm:$0xff]
        %v451 = vld [vmem:[%s409 + $0x28] sm:$0xff]
        %v452 = vld [vmem:[%s409 + $0x30] sm:$0xff]
        %v453 = vld [vmem:[%s409 + $0x38] sm:$0xff]
        %v454 = vld [vmem:[%s409 + $0x40] sm:$0xff]
        %v455 = vld [vmem:[%s409 + $0x48] sm:$0xff]
        %v456 = vld [vmem:[%s409 + $0x50] sm:$0xff]
        %v457 = vld [vmem:[%s409 + $0x58] sm:$0xff]
        %v458 = vld [vmem:[%s409 + $0x60] sm:$0xff]
        %v459 = vld [vmem:[%s409 + $0x68] sm:$0xff]
        %v460 = vld [vmem:[%s409 + $0x70] sm:$0xff]
        %v461 = vld [vmem:[%s409 + $0x78] sm:$0xff]
        %v462 = vld [vmem:[%s409 + $0x80] sm:$0xff]
        %v463 = vld [vmem:[%s409 + $0x88] sm:$0xff]
        %v464 = vld [vmem:[%s409 + $0x90] sm:$0xff]
        %v465 = vld [vmem:[%s409 + $0x98] sm:$0xff]
        %v466 = vld [vmem:[%s409 + $0xa0] sm:$0xff]
        %v467 = vld [vmem:[%s409 + $0xa8] sm:$0xff]
        %v468 = vld [vmem:[%s409 + $0xb0] sm:$0xff]
        %v469 = vld [vmem:[%s409 + $0xb8] sm:$0xff]
        %v470 = vld [vmem:[%s409 + $0xc0] sm:$0xff]
        %v471 = vld [vmem:[%s409 + $0xc8] sm:$0xff]
        %v472 = vld [vmem:[%s409 + $0xd0] sm:$0xff]
        %v473 = vld [vmem:[%s409 + $0xd8] sm:$0xff]
        %v474 = vld [vmem:[%s409 + $0xe0] sm:$0xff]
        %v475 = vld [vmem:[%s409 + $0xe8] sm:$0xff]
        %v476 = vld [vmem:[%s409 + $0xf0] sm:$0xff]
        %v477 = vld [vmem:[%s409 + $0xf8] sm:$0xff]
        %v478 = vld [vmem:[%s409 + $0x100] sm:$0xff]
        %v479 = vld [vmem:[%s409 + $0x108] sm:$0xff]
        %v480 = vld [vmem:[%s409 + $0x110] sm:$0xff]
        %v481 = vld [vmem:[%s409 + $0x118] sm:$0xff]
        %v482 = vld [vmem:[%s409 + $0x120] sm:$0xff]
        %v483 = vld [vmem:[%s409 + $0x128] sm:$0xff]
        %v484 = vld [vmem:[%s409 + $0x130] sm:$0xff]
        %v485 = vld [vmem:[%s409 + $0x138] sm:$0xff]
        %v486 = vld [vmem:[%s409 + $0x140] sm:$0xff]
        %v487 = vld [vmem:[%s409 + $0x148] sm:$0xff]
        %v488 = vld [vmem:[%s409 + $0x150] sm:$0xff]
        %v489 = vld [vmem:[%s409 + $0x158] sm:$0xff]
        %v490 = vld [vmem:[%s409 + $0x160] sm:$0xff]
        %v491 = vld [vmem:[%s409 + $0x168] sm:$0xff]
        %v492 = vld [vmem:[%s409 + $0x170] sm:$0xff]
        %v493 = vld [vmem:[%s409 + $0x178] sm:$0xff]
        %v494 = vpack.c.bf16 %v448, %v446
        %v495 = vpack.c.bf16 %v449, %v447
        %v496 = vpack.c.bf16 %v452, %v450
        %v497 = vpack.c.bf16 %v453, %v451
        %v498 = vpack.c.bf16 %v456, %v454
        %v499 = vpack.c.bf16 %v457, %v455
        %v500 = vpack.c.bf16 %v460, %v458
        %v501 = vpack.c.bf16 %v461, %v459
        %v502 = vpack.c.bf16 %v464, %v462
        %v503 = vpack.c.bf16 %v465, %v463
        %v504 = vpack.c.bf16 %v468, %v466
        %v505 = vpack.c.bf16 %v469, %v467
        %v506 = vpack.c.bf16 %v472, %v470
        %v507 = vpack.c.bf16 %v473, %v471
        %v508 = vpack.c.bf16 %v476, %v474
        %v509 = vpack.c.bf16 %v477, %v475
        %v510 = vpack.c.bf16 %v480, %v478
        %v511 = vpack.c.bf16 %v481, %v479
        %v512 = vpack.c.bf16 %v484, %v482
        %v513 = vpack.c.bf16 %v485, %v483
        %v514 = vpack.c.bf16 %v488, %v486
        %v515 = vpack.c.bf16 %v489, %v487
        %v516 = vpack.c.bf16 %v492, %v490
        %v517 = vpack.c.bf16 %v493, %v491
        %v518 = vld [vmem:[%s1] sm:$0xff]
        %v519 = vld [vmem:[%s1 + $0x8] sm:$0xff]
        %v520 = vld [vmem:[%s1 + $0x10] sm:$0xff]
        %v521 = vld [vmem:[%s1 + $0x18] sm:$0xff]
        %v522 = vld [vmem:[%s1 + $0x20] sm:$0xff]
        %v523 = vld [vmem:[%s1 + $0x28] sm:$0xff]
        %v524 = vld [vmem:[%s1 + $0x30] sm:$0xff]
        %v525 = vld [vmem:[%s1 + $0x38] sm:$0xf]
        %v526 = vld [vmem:[%s1 + $0x3c] sm:$0xff]
        %v527 = vld [vmem:[%s1 + $0x44] sm:$0xff]
        %v528 = vld [vmem:[%s1 + $0x4c] sm:$0xff]
        %v529 = vld [vmem:[%s1 + $0x54] sm:$0xff]
        %v530 = vld [vmem:[%s1 + $0x5c] sm:$0xff]
        %v531 = vld [vmem:[%s1 + $0x64] sm:$0xff]
        %v532 = vld [vmem:[%s1 + $0x6c] sm:$0xff]
        %v533 = vld [vmem:[%s1 + $0x74] sm:$0xf]
        %v534 = vld [vmem:[%s1 + $0x78] sm:$0xff]
        %v535 = vld [vmem:[%s1 + $0x80] sm:$0xff]
        %v536 = vld [vmem:[%s1 + $0x88] sm:$0xff]
        %v537 = vld [vmem:[%s1 + $0x90] sm:$0xff]
        %v538 = vld [vmem:[%s1 + $0x98] sm:$0xff]
        %v539 = vld [vmem:[%s1 + $0xa0] sm:$0xff]
        %v540 = vld [vmem:[%s1 + $0xa8] sm:$0xff]
        %v541 = vld [vmem:[%s1 + $0xb0] sm:$0xf]
        %v542 = vld [vmem:[%s1 + $0xb4] sm:$0xff]
        %v543 = vld [vmem:[%s1 + $0xbc] sm:$0xff]
        %v544 = vld [vmem:[%s1 + $0xc4] sm:$0xff]
        %v545 = vld [vmem:[%s1 + $0xcc] sm:$0xff]
        %v546 = vld [vmem:[%s1 + $0xd4] sm:$0xff]
        %v547 = vld [vmem:[%s1 + $0xdc] sm:$0xff]
        %v548 = vld [vmem:[%s1 + $0xe4] sm:$0xff]
        %v549 = vld [vmem:[%s1 + $0xec] sm:$0xf]
        %v550 = vld [vmem:[%s1 + $0xf0] sm:$0xff]
        %v551 = vld [vmem:[%s1 + $0xf8] sm:$0xff]
        %v552 = vld [vmem:[%s1 + $0x100] sm:$0xff]
        %v553 = vld [vmem:[%s1 + $0x108] sm:$0xff]
        %v554 = vld [vmem:[%s1 + $0x110] sm:$0xff]
        %v555 = vld [vmem:[%s1 + $0x118] sm:$0xff]
        %v556 = vld [vmem:[%s1 + $0x120] sm:$0xff]
        %v557 = vld [vmem:[%s1 + $0x128] sm:$0xf]
        %v558 = vld [vmem:[%s1 + $0x12c] sm:$0xff]
        %v559 = vld [vmem:[%s1 + $0x134] sm:$0xff]
        %v560 = vld [vmem:[%s1 + $0x13c] sm:$0xff]
        %v561 = vld [vmem:[%s1 + $0x144] sm:$0xff]
        %v562 = vld [vmem:[%s1 + $0x14c] sm:$0xff]
        %v563 = vld [vmem:[%s1 + $0x154] sm:$0xff]
        %v564 = vld [vmem:[%s1 + $0x15c] sm:$0xff]
        %v565 = vld [vmem:[%s1 + $0x164] sm:$0xf]
        %v566 = vld [vmem:[%s1 + $0x168] sm:$0xff]
        %v567 = vld [vmem:[%s1 + $0x170] sm:$0xff]
        %v568 = vld [vmem:[%s1 + $0x178] sm:$0xff]
        %v569 = vld [vmem:[%s1 + $0x180] sm:$0xff]
        %v570 = vld [vmem:[%s1 + $0x188] sm:$0xff]
        %v571 = vld [vmem:[%s1 + $0x190] sm:$0xff]
        %v572 = vld [vmem:[%s1 + $0x198] sm:$0xff]
        %v573 = vld [vmem:[%s1 + $0x1a0] sm:$0xf]
        %v574 = vld [vmem:[%s1 + $0x1a4] sm:$0xff]
        %v575 = vld [vmem:[%s1 + $0x1ac] sm:$0xff]
        %v576 = vld [vmem:[%s1 + $0x1b4] sm:$0xff]
        %v577 = vld [vmem:[%s1 + $0x1bc] sm:$0xff]
        %v578 = vld [vmem:[%s1 + $0x1c4] sm:$0xff]
        %v579 = vld [vmem:[%s1 + $0x1cc] sm:$0xff]
        %v580 = vld [vmem:[%s1 + $0x1d4] sm:$0xff]
        %v581 = vld [vmem:[%s1 + $0x1dc] sm:$0xf]
        %v582 = vld [vmem:[%s1 + $0x1e0] sm:$0xff]
        %v583 = vld [vmem:[%s1 + $0x1e8] sm:$0xff]
        %v584 = vld [vmem:[%s1 + $0x1f0] sm:$0xff]
        %v585 = vld [vmem:[%s1 + $0x1f8] sm:$0xff]
        %v586 = vld [vmem:[%s1 + $0x200] sm:$0xff]
        %v587 = vld [vmem:[%s1 + $0x208] sm:$0xff]
        %v588 = vld [vmem:[%s1 + $0x210] sm:$0xff]
        %v589 = vld [vmem:[%s1 + $0x218] sm:$0xf]
        %v590 = vld [vmem:[%s1 + $0x21c] sm:$0xff]
        %v591 = vld [vmem:[%s1 + $0x224] sm:$0xff]
        %v592 = vld [vmem:[%s1 + $0x22c] sm:$0xff]
        %v593 = vld [vmem:[%s1 + $0x234] sm:$0xff]
        %v594 = vld [vmem:[%s1 + $0x23c] sm:$0xff]
        %v595 = vld [vmem:[%s1 + $0x244] sm:$0xff]
        %v596 = vld [vmem:[%s1 + $0x24c] sm:$0xff]
        %v597 = vld [vmem:[%s1 + $0x254] sm:$0xf]
        %v598 = vld [vmem:[%s1 + $0x258] sm:$0xff]
        %v599 = vld [vmem:[%s1 + $0x260] sm:$0xff]
        %v600 = vld [vmem:[%s1 + $0x268] sm:$0xff]
        %v601 = vld [vmem:[%s1 + $0x270] sm:$0xff]
        %v602 = vld [vmem:[%s1 + $0x278] sm:$0xff]
        %v603 = vld [vmem:[%s1 + $0x280] sm:$0xff]
        %v604 = vld [vmem:[%s1 + $0x288] sm:$0xff]
        %v605 = vld [vmem:[%s1 + $0x290] sm:$0xf]
        %v606 = vld [vmem:[%s1 + $0x294] sm:$0xff]
        %v607 = vld [vmem:[%s1 + $0x29c] sm:$0xff]
        %v608 = vld [vmem:[%s1 + $0x2a4] sm:$0xff]
        %v609 = vld [vmem:[%s1 + $0x2ac] sm:$0xff]
        %v610 = vld [vmem:[%s1 + $0x2b4] sm:$0xff]
        %v611 = vld [vmem:[%s1 + $0x2bc] sm:$0xff]
        %v612 = vld [vmem:[%s1 + $0x2c4] sm:$0xff]
        %v613 = vld [vmem:[%s1 + $0x2cc] sm:$0xf]
        %v614 = vld [vmem:[%s1 + $0x2d0] sm:$0xff]
        %v615 = vld [vmem:[%s1 + $0x2d8] sm:$0xff]
        %v616 = vld [vmem:[%s1 + $0x2e0] sm:$0xff]
        %v617 = vld [vmem:[%s1 + $0x2e8] sm:$0xff]
        %v618 = vld [vmem:[%s1 + $0x2f0] sm:$0xff]
        %v619 = vld [vmem:[%s1 + $0x2f8] sm:$0xff]
        %v620 = vld [vmem:[%s1 + $0x300] sm:$0xff]
        %v621 = vld [vmem:[%s1 + $0x308] sm:$0xf]
        %v622 = vld [vmem:[%s1 + $0x30c] sm:$0xff]
        %v623 = vld [vmem:[%s1 + $0x314] sm:$0xff]
        %v624 = vld [vmem:[%s1 + $0x31c] sm:$0xff]
        %v625 = vld [vmem:[%s1 + $0x324] sm:$0xff]
        %v626 = vld [vmem:[%s1 + $0x32c] sm:$0xff]
        %v627 = vld [vmem:[%s1 + $0x334] sm:$0xff]
        %v628 = vld [vmem:[%s1 + $0x33c] sm:$0xff]
        %v629 = vld [vmem:[%s1 + $0x344] sm:$0xf]
        %v630 = vld [vmem:[%s1 + $0x348] sm:$0xff]
        %v631 = vld [vmem:[%s1 + $0x350] sm:$0xff]
        %v632 = vld [vmem:[%s1 + $0x358] sm:$0xff]
        %v633 = vld [vmem:[%s1 + $0x360] sm:$0xff]
        %v634 = vld [vmem:[%s1 + $0x368] sm:$0xff]
        %v635 = vld [vmem:[%s1 + $0x370] sm:$0xff]
        %v636 = vld [vmem:[%s1 + $0x378] sm:$0xff]
        %v637 = vld [vmem:[%s1 + $0x380] sm:$0xf]
        %v638 = vld [vmem:[%s1 + $0x384] sm:$0xff]
        %v639 = vld [vmem:[%s1 + $0x38c] sm:$0xff]
        %v640 = vld [vmem:[%s1 + $0x394] sm:$0xff]
        %v641 = vld [vmem:[%s1 + $0x39c] sm:$0xff]
        %v642 = vld [vmem:[%s1 + $0x3a4] sm:$0xff]
        %v643 = vld [vmem:[%s1 + $0x3ac] sm:$0xff]
        %v644 = vld [vmem:[%s1 + $0x3b4] sm:$0xff]
        %v645 = vld [vmem:[%s1 + $0x3bc] sm:$0xf]
        %v646 = vld [vmem:[%s1 + $0x3c0] sm:$0xff]
        %v647 = vld [vmem:[%s1 + $0x3c8] sm:$0xff]
        %v648 = vld [vmem:[%s1 + $0x3d0] sm:$0xff]
        %v649 = vld [vmem:[%s1 + $0x3d8] sm:$0xff]
        %v650 = vld [vmem:[%s1 + $0x3e0] sm:$0xff]
        %v651 = vld [vmem:[%s1 + $0x3e8] sm:$0xff]
        %v652 = vld [vmem:[%s1 + $0x3f0] sm:$0xff]
        %v653 = vld [vmem:[%s1 + $0x3f8] sm:$0xf]
        %v654 = vld [vmem:[%s1 + $0x3fc] sm:$0x33]
        %v655 = vld [vmem:[%s1 + $0x404] sm:$0x33]
        %v656 = vld [vmem:[%s1 + $0x40c] sm:$0x33]
        %v657 = vld [vmem:[%s1 + $0x414] sm:$0x33]
        %v658 = vld [vmem:[%s1 + $0x41c] sm:$0x33]
        %v659 = vld [vmem:[%s1 + $0x424] sm:$0x33]
        %v660 = vld [vmem:[%s1 + $0x42c] sm:$0x33]
        %v661 = vld [vmem:[%s1 + $0x434] sm:$0x3]
        %v662 = vld [vmem:[%s2] sm:$0xff]
        %v663 = vld [vmem:[%s2 + $0x8] sm:$0xff]
        %v666 = vperm.slane %v662, 0
        %v667 = vperm.slane %v662, 1
        %v668 = vperm.slane %v662, 2
        %v669 = vperm.slane %v662, 3
        %v670 = vperm.slane %v662, 4
        %v671 = vperm.slane %v662, 5
        %v672 = vperm.slane %v662, 6
        %v673 = vperm.slane %v662, 7
        %v674 = vperm.slane %v663, 0
        %v675 = vperm.slane %v663, 1
        %v676 = vperm.slane %v663, 2
        %v677 = vperm.slane %v663, 3
        %v678 = vperm.slane %v663, 4
        %v679 = vperm.slane %v663, 5
        %v680 = vperm.slane %v663, 6
        %v840 = vunpack.c.l.b16 %v518
        %v841 = vunpack.c.h.b16 %v518
        %v842 = vunpack.c.l.b16 %v519
        %v843 = vunpack.c.h.b16 %v519
        %v844 = vunpack.c.l.b16 %v520
        %v845 = vunpack.c.h.b16 %v520
        %v846 = vunpack.c.l.b16 %v521
        %v847 = vunpack.c.h.b16 %v521
        %v848 = vunpack.c.l.b16 %v522
        %v849 = vunpack.c.h.b16 %v522
        %v850 = vunpack.c.l.b16 %v523
        %v851 = vunpack.c.h.b16 %v523
        %v852 = vunpack.c.l.b16 %v524
        %v853 = vunpack.c.h.b16 %v524
        %v854 = vunpack.c.l.b16 %v525
        %v855 = vunpack.c.l.b16 %v526
        %v856 = vunpack.c.h.b16 %v526
        %v857 = vunpack.c.l.b16 %v527
        %v858 = vunpack.c.h.b16 %v527
        %v859 = vunpack.c.l.b16 %v528
        %v860 = vunpack.c.h.b16 %v528
        %v861 = vunpack.c.l.b16 %v529
        %v862 = vunpack.c.h.b16 %v529
        %v863 = vunpack.c.l.b16 %v530
        %v864 = vunpack.c.h.b16 %v530
        %v865 = vunpack.c.l.b16 %v531
        %v866 = vunpack.c.h.b16 %v531
        %v867 = vunpack.c.l.b16 %v532
        %v868 = vunpack.c.h.b16 %v532
        %v869 = vunpack.c.l.b16 %v533
        %v870 = vunpack.c.l.b16 %v534
        %v871 = vunpack.c.h.b16 %v534
        %v872 = vunpack.c.l.b16 %v535
        %v873 = vunpack.c.h.b16 %v535
        %v874 = vunpack.c.l.b16 %v536
        %v875 = vunpack.c.h.b16 %v536
        %v876 = vunpack.c.l.b16 %v537
        %v877 = vunpack.c.h.b16 %v537
        %v878 = vunpack.c.l.b16 %v538
        %v879 = vunpack.c.h.b16 %v538
        %v880 = vunpack.c.l.b16 %v539
        %v881 = vunpack.c.h.b16 %v539
        %v882 = vunpack.c.l.b16 %v540
        %v883 = vunpack.c.h.b16 %v540
        %v884 = vunpack.c.l.b16 %v541
        %v885 = vunpack.c.l.b16 %v542
        %v886 = vunpack.c.h.b16 %v542
        %v887 = vunpack.c.l.b16 %v543
        %v888 = vunpack.c.h.b16 %v543
        %v889 = vunpack.c.l.b16 %v544
        %v890 = vunpack.c.h.b16 %v544
        %v891 = vunpack.c.l.b16 %v545
        %v892 = vunpack.c.h.b16 %v545
        %v893 = vunpack.c.l.b16 %v546
        %v894 = vunpack.c.h.b16 %v546
        %v895 = vunpack.c.l.b16 %v547
        %v896 = vunpack.c.h.b16 %v547
        %v897 = vunpack.c.l.b16 %v548
        %v898 = vunpack.c.h.b16 %v548
        %v899 = vunpack.c.l.b16 %v549
        %v900 = vunpack.c.l.b16 %v550
        %v901 = vunpack.c.h.b16 %v550
        %v902 = vunpack.c.l.b16 %v551
        %v903 = vunpack.c.h.b16 %v551
        %v904 = vunpack.c.l.b16 %v552
        %v905 = vunpack.c.h.b16 %v552
        %v906 = vunpack.c.l.b16 %v553
        %v907 = vunpack.c.h.b16 %v553
        %v908 = vunpack.c.l.b16 %v554
        %v909 = vunpack.c.h.b16 %v554
        %v910 = vunpack.c.l.b16 %v555
        %v911 = vunpack.c.h.b16 %v555
        %v912 = vunpack.c.l.b16 %v556
        %v913 = vunpack.c.h.b16 %v556
        %v914 = vunpack.c.l.b16 %v557
        %v915 = vunpack.c.l.b16 %v558
        %v916 = vunpack.c.h.b16 %v558
        %v917 = vunpack.c.l.b16 %v559
        %v918 = vunpack.c.h.b16 %v559
        %v919 = vunpack.c.l.b16 %v560
        %v920 = vunpack.c.h.b16 %v560
        %v921 = vunpack.c.l.b16 %v561
        %v922 = vunpack.c.h.b16 %v561
        %v923 = vunpack.c.l.b16 %v562
        %v924 = vunpack.c.h.b16 %v562
        %v925 = vunpack.c.l.b16 %v563
        %v926 = vunpack.c.h.b16 %v563
        %v927 = vunpack.c.l.b16 %v564
        %v928 = vunpack.c.h.b16 %v564
        %v929 = vunpack.c.l.b16 %v565
        %v930 = vunpack.c.l.b16 %v566
        %v931 = vunpack.c.h.b16 %v566
        %v932 = vunpack.c.l.b16 %v567
        %v933 = vunpack.c.h.b16 %v567
        %v934 = vunpack.c.l.b16 %v568
        %v935 = vunpack.c.h.b16 %v568
        %v936 = vunpack.c.l.b16 %v569
        %v937 = vunpack.c.h.b16 %v569
        %v938 = vunpack.c.l.b16 %v570
        %v939 = vunpack.c.h.b16 %v570
        %v940 = vunpack.c.l.b16 %v571
        %v941 = vunpack.c.h.b16 %v571
        %v942 = vunpack.c.l.b16 %v572
        %v943 = vunpack.c.h.b16 %v572
        %v944 = vunpack.c.l.b16 %v573
        %v945 = vunpack.c.l.b16 %v574
        %v946 = vunpack.c.h.b16 %v574
        %v947 = vunpack.c.l.b16 %v575
        %v948 = vunpack.c.h.b16 %v575
        %v949 = vunpack.c.l.b16 %v576
        %v950 = vunpack.c.h.b16 %v576
        %v951 = vunpack.c.l.b16 %v577
        %v952 = vunpack.c.h.b16 %v577
        %v953 = vunpack.c.l.b16 %v578
        %v954 = vunpack.c.h.b16 %v578
        %v955 = vunpack.c.l.b16 %v579
        %v956 = vunpack.c.h.b16 %v579
        %v957 = vunpack.c.l.b16 %v580
        %v958 = vunpack.c.h.b16 %v580
        %v959 = vunpack.c.l.b16 %v581
        %v960 = vunpack.c.l.b16 %v582
        %v961 = vunpack.c.h.b16 %v582
        %v962 = vunpack.c.l.b16 %v583
        %v963 = vunpack.c.h.b16 %v583
        %v964 = vunpack.c.l.b16 %v584
        %v965 = vunpack.c.h.b16 %v584
        %v966 = vunpack.c.l.b16 %v585
        %v967 = vunpack.c.h.b16 %v585
        %v968 = vunpack.c.l.b16 %v586
        %v969 = vunpack.c.h.b16 %v586
        %v970 = vunpack.c.l.b16 %v587
        %v971 = vunpack.c.h.b16 %v587
        %v972 = vunpack.c.l.b16 %v588
        %v973 = vunpack.c.h.b16 %v588
        %v974 = vunpack.c.l.b16 %v589
        %v975 = vunpack.c.l.b16 %v590
        %v976 = vunpack.c.h.b16 %v590
        %v977 = vunpack.c.l.b16 %v591
        %v978 = vunpack.c.h.b16 %v591
        %v979 = vunpack.c.l.b16 %v592
        %v980 = vunpack.c.h.b16 %v592
        %v981 = vunpack.c.l.b16 %v593
        %v982 = vunpack.c.h.b16 %v593
        %v983 = vunpack.c.l.b16 %v594
        %v984 = vunpack.c.h.b16 %v594
        %v985 = vunpack.c.l.b16 %v595
        %v986 = vunpack.c.h.b16 %v595
        %v987 = vunpack.c.l.b16 %v596
        %v988 = vunpack.c.h.b16 %v596
        %v989 = vunpack.c.l.b16 %v597
        %v990 = vunpack.c.l.b16 %v598
        %v991 = vunpack.c.h.b16 %v598
        %v992 = vunpack.c.l.b16 %v599
        %v993 = vunpack.c.h.b16 %v599
        %v994 = vunpack.c.l.b16 %v600
        %v995 = vunpack.c.h.b16 %v600
        %v996 = vunpack.c.l.b16 %v601
        %v997 = vunpack.c.h.b16 %v601
        %v998 = vunpack.c.l.b16 %v602
        %v999 = vunpack.c.h.b16 %v602
        %v1000 = vunpack.c.l.b16 %v603
        %v1001 = vunpack.c.h.b16 %v603
        %v1002 = vunpack.c.l.b16 %v604
        %v1003 = vunpack.c.h.b16 %v604
        %v1004 = vunpack.c.l.b16 %v605
        %v1005 = vunpack.c.l.b16 %v606
        %v1006 = vunpack.c.h.b16 %v606
        %v1007 = vunpack.c.l.b16 %v607
        %v1008 = vunpack.c.h.b16 %v607
        %v1009 = vunpack.c.l.b16 %v608
        %v1010 = vunpack.c.h.b16 %v608
        %v1011 = vunpack.c.l.b16 %v609
        %v1012 = vunpack.c.h.b16 %v609
        %v1013 = vunpack.c.l.b16 %v610
        %v1014 = vunpack.c.h.b16 %v610
        %v1015 = vunpack.c.l.b16 %v611
        %v1016 = vunpack.c.h.b16 %v611
        %v1017 = vunpack.c.l.b16 %v612
        %v1018 = vunpack.c.h.b16 %v612
        %v1019 = vunpack.c.l.b16 %v613
        %v1020 = vunpack.c.l.b16 %v614
        %v1021 = vunpack.c.h.b16 %v614
        %v1022 = vunpack.c.l.b16 %v615
        %v1023 = vunpack.c.h.b16 %v615
        %v1024 = vunpack.c.l.b16 %v616
        %v1025 = vunpack.c.h.b16 %v616
        %v1026 = vunpack.c.l.b16 %v617
        %v1027 = vunpack.c.h.b16 %v617
        %v1028 = vunpack.c.l.b16 %v618
        %v1029 = vunpack.c.h.b16 %v618
        %v1030 = vunpack.c.l.b16 %v619
        %v1031 = vunpack.c.h.b16 %v619
        %v1032 = vunpack.c.l.b16 %v620
        %v1033 = vunpack.c.h.b16 %v620
        %v1034 = vunpack.c.l.b16 %v621
        %v1035 = vunpack.c.l.b16 %v622
        %v1036 = vunpack.c.h.b16 %v622
        %v1037 = vunpack.c.l.b16 %v623
        %v1038 = vunpack.c.h.b16 %v623
        %v1039 = vunpack.c.l.b16 %v624
        %v1040 = vunpack.c.h.b16 %v624
        %v1041 = vunpack.c.l.b16 %v625
        %v1042 = vunpack.c.h.b16 %v625
        %v1043 = vunpack.c.l.b16 %v626
        %v1044 = vunpack.c.h.b16 %v626
        %v1045 = vunpack.c.l.b16 %v627
        %v1046 = vunpack.c.h.b16 %v627
        %v1047 = vunpack.c.l.b16 %v628
        %v1048 = vunpack.c.h.b16 %v628
        %v1049 = vunpack.c.l.b16 %v629
        %v1050 = vunpack.c.l.b16 %v630
        %v1051 = vunpack.c.h.b16 %v630
        %v1052 = vunpack.c.l.b16 %v631
        %v1053 = vunpack.c.h.b16 %v631
        %v1054 = vunpack.c.l.b16 %v632
        %v1055 = vunpack.c.h.b16 %v632
        %v1056 = vunpack.c.l.b16 %v633
        %v1057 = vunpack.c.h.b16 %v633
        %v1058 = vunpack.c.l.b16 %v634
        %v1059 = vunpack.c.h.b16 %v634
        %v1060 = vunpack.c.l.b16 %v635
        %v1061 = vunpack.c.h.b16 %v635
        %v1062 = vunpack.c.l.b16 %v636
        %v1063 = vunpack.c.h.b16 %v636
        %v1064 = vunpack.c.l.b16 %v637
        %v1065 = vunpack.c.l.b16 %v638
        %v1066 = vunpack.c.h.b16 %v638
        %v1067 = vunpack.c.l.b16 %v639
        %v1068 = vunpack.c.h.b16 %v639
        %v1069 = vunpack.c.l.b16 %v640
        %v1070 = vunpack.c.h.b16 %v640
        %v1071 = vunpack.c.l.b16 %v641
        %v1072 = vunpack.c.h.b16 %v641
        %v1073 = vunpack.c.l.b16 %v642
        %v1074 = vunpack.c.h.b16 %v642
        %v1075 = vunpack.c.l.b16 %v643
        %v1076 = vunpack.c.h.b16 %v643
        %v1077 = vunpack.c.l.b16 %v644
        %v1078 = vunpack.c.h.b16 %v644
        %v1079 = vunpack.c.l.b16 %v645
        %v1080 = vunpack.c.l.b16 %v646
        %v1081 = vunpack.c.h.b16 %v646
        %v1082 = vunpack.c.l.b16 %v647
        %v1083 = vunpack.c.h.b16 %v647
        %v1084 = vunpack.c.l.b16 %v648
        %v1085 = vunpack.c.h.b16 %v648
        %v1086 = vunpack.c.l.b16 %v649
        %v1087 = vunpack.c.h.b16 %v649
        %v1088 = vunpack.c.l.b16 %v650
        %v1089 = vunpack.c.h.b16 %v650
        %v1090 = vunpack.c.l.b16 %v651
        %v1091 = vunpack.c.h.b16 %v651
        %v1092 = vunpack.c.l.b16 %v652
        %v1093 = vunpack.c.h.b16 %v652
        %v1094 = vunpack.c.l.b16 %v653
        %v1095 = vunpack.c.l.b16 %v654
        %v1096 = vunpack.c.h.b16 %v654
        %v1097 = vunpack.c.l.b16 %v655
        %v1098 = vunpack.c.h.b16 %v655
        %v1099 = vunpack.c.l.b16 %v656
        %v1100 = vunpack.c.h.b16 %v656
        %v1101 = vunpack.c.l.b16 %v657
        %v1102 = vunpack.c.h.b16 %v657
        %v1103 = vunpack.c.l.b16 %v658
        %v1104 = vunpack.c.h.b16 %v658
        %v1105 = vunpack.c.l.b16 %v659
        %v1106 = vunpack.c.h.b16 %v659
        %v1107 = vunpack.c.l.b16 %v660
        %v1108 = vunpack.c.h.b16 %v660
        %v1109 = vunpack.c.l.b16 %v661
        %v1110 = vpack.c.b16 %v855, %v840
        %v1111 = vpack.c.b16 %v856, %v841
        %v1112 = vpack.c.b16 %v857, %v842
        %v1113 = vpack.c.b16 %v858, %v843
        %v1114 = vpack.c.b16 %v859, %v844
        %v1115 = vpack.c.b16 %v860, %v845
        %v1116 = vpack.c.b16 %v861, %v846
        %v1117 = vpack.c.b16 %v862, %v847
        %v1118 = vpack.c.b16 %v863, %v848
        %v1119 = vpack.c.b16 %v864, %v849
        %v1120 = vpack.c.b16 %v865, %v850
        %v1121 = vpack.c.b16 %v866, %v851
        %v1122 = vpack.c.b16 %v867, %v852
        %v1123 = vpack.c.b16 %v868, %v853
        %v1124 = vpack.c.b16 %v869, %v854
        %v1125 = vpack.c.b16 %v885, %v870
        %v1126 = vpack.c.b16 %v886, %v871
        %v1127 = vpack.c.b16 %v887, %v872
        %v1128 = vpack.c.b16 %v888, %v873
        %v1129 = vpack.c.b16 %v889, %v874
        %v1130 = vpack.c.b16 %v890, %v875
        %v1131 = vpack.c.b16 %v891, %v876
        %v1132 = vpack.c.b16 %v892, %v877
        %v1133 = vpack.c.b16 %v893, %v878
        %v1134 = vpack.c.b16 %v894, %v879
        %v1135 = vpack.c.b16 %v895, %v880
        %v1136 = vpack.c.b16 %v896, %v881
        %v1137 = vpack.c.b16 %v897, %v882
        %v1138 = vpack.c.b16 %v898, %v883
        %v1139 = vpack.c.b16 %v899, %v884
        %v1140 = vpack.c.b16 %v915, %v900
        %v1141 = vpack.c.b16 %v916, %v901
        %v1142 = vpack.c.b16 %v917, %v902
        %v1143 = vpack.c.b16 %v918, %v903
        %v1144 = vpack.c.b16 %v919, %v904
        %v1145 = vpack.c.b16 %v920, %v905
        %v1146 = vpack.c.b16 %v921, %v906
        %v1147 = vpack.c.b16 %v922, %v907
        %v1148 = vpack.c.b16 %v923, %v908
        %v1149 = vpack.c.b16 %v924, %v909
        %v1150 = vpack.c.b16 %v925, %v910
        %v1151 = vpack.c.b16 %v926, %v911
        %v1152 = vpack.c.b16 %v927, %v912
        %v1153 = vpack.c.b16 %v928, %v913
        %v1154 = vpack.c.b16 %v929, %v914
        %v1155 = vpack.c.b16 %v945, %v930
        %v1156 = vpack.c.b16 %v946, %v931
        %v1157 = vpack.c.b16 %v947, %v932
        %v1158 = vpack.c.b16 %v948, %v933
        %v1159 = vpack.c.b16 %v949, %v934
        %v1160 = vpack.c.b16 %v950, %v935
        %v1161 = vpack.c.b16 %v951, %v936
        %v1162 = vpack.c.b16 %v952, %v937
        %v1163 = vpack.c.b16 %v953, %v938
        %v1164 = vpack.c.b16 %v954, %v939
        %v1165 = vpack.c.b16 %v955, %v940
        %v1166 = vpack.c.b16 %v956, %v941
        %v1167 = vpack.c.b16 %v957, %v942
        %v1168 = vpack.c.b16 %v958, %v943
        %v1169 = vpack.c.b16 %v959, %v944
        %v1170 = vpack.c.b16 %v975, %v960
        %v1171 = vpack.c.b16 %v976, %v961
        %v1172 = vpack.c.b16 %v977, %v962
        %v1173 = vpack.c.b16 %v978, %v963
        %v1174 = vpack.c.b16 %v979, %v964
        %v1175 = vpack.c.b16 %v980, %v965
        %v1176 = vpack.c.b16 %v981, %v966
        %v1177 = vpack.c.b16 %v982, %v967
        %v1178 = vpack.c.b16 %v983, %v968
        %v1179 = vpack.c.b16 %v984, %v969
        %v1180 = vpack.c.b16 %v985, %v970
        %v1181 = vpack.c.b16 %v986, %v971
        %v1182 = vpack.c.b16 %v987, %v972
        %v1183 = vpack.c.b16 %v988, %v973
        %v1184 = vpack.c.b16 %v989, %v974
        %v1185 = vpack.c.b16 %v1005, %v990
        %v1186 = vpack.c.b16 %v1006, %v991
        %v1187 = vpack.c.b16 %v1007, %v992
        %v1188 = vpack.c.b16 %v1008, %v993
        %v1189 = vpack.c.b16 %v1009, %v994
        %v1190 = vpack.c.b16 %v1010, %v995
        %v1191 = vpack.c.b16 %v1011, %v996
        %v1192 = vpack.c.b16 %v1012, %v997
        %v1193 = vpack.c.b16 %v1013, %v998
        %v1194 = vpack.c.b16 %v1014, %v999
        %v1195 = vpack.c.b16 %v1015, %v1000
        %v1196 = vpack.c.b16 %v1016, %v1001
        %v1197 = vpack.c.b16 %v1017, %v1002
        %v1198 = vpack.c.b16 %v1018, %v1003
        %v1199 = vpack.c.b16 %v1019, %v1004
        %v1200 = vpack.c.b16 %v1035, %v1020
        %v1201 = vpack.c.b16 %v1036, %v1021
        %v1202 = vpack.c.b16 %v1037, %v1022
        %v1203 = vpack.c.b16 %v1038, %v1023
        %v1204 = vpack.c.b16 %v1039, %v1024
        %v1205 = vpack.c.b16 %v1040, %v1025
        %v1206 = vpack.c.b16 %v1041, %v1026
        %v1207 = vpack.c.b16 %v1042, %v1027
        %v1208 = vpack.c.b16 %v1043, %v1028
        %v1209 = vpack.c.b16 %v1044, %v1029
        %v1210 = vpack.c.b16 %v1045, %v1030
        %v1211 = vpack.c.b16 %v1046, %v1031
        %v1212 = vpack.c.b16 %v1047, %v1032
        %v1213 = vpack.c.b16 %v1048, %v1033
        %v1214 = vpack.c.b16 %v1049, %v1034
        %v1215 = vpack.c.b16 %v1065, %v1050
        %v1216 = vpack.c.b16 %v1066, %v1051
        %v1217 = vpack.c.b16 %v1067, %v1052
        %v1218 = vpack.c.b16 %v1068, %v1053
        %v1219 = vpack.c.b16 %v1069, %v1054
        %v1220 = vpack.c.b16 %v1070, %v1055
        %v1221 = vpack.c.b16 %v1071, %v1056
        %v1222 = vpack.c.b16 %v1072, %v1057
        %v1223 = vpack.c.b16 %v1073, %v1058
        %v1224 = vpack.c.b16 %v1074, %v1059
        %v1225 = vpack.c.b16 %v1075, %v1060
        %v1226 = vpack.c.b16 %v1076, %v1061
        %v1227 = vpack.c.b16 %v1077, %v1062
        %v1228 = vpack.c.b16 %v1078, %v1063
        %v1229 = vpack.c.b16 %v1079, %v1064
        %v1230 = vpack.c.b16 %v1095, %v1080
        %v1231 = vpack.c.b16 %v1096, %v1081
        %v1232 = vpack.c.b16 %v1097, %v1082
        %v1233 = vpack.c.b16 %v1098, %v1083
        %v1234 = vpack.c.b16 %v1099, %v1084
        %v1235 = vpack.c.b16 %v1100, %v1085
        %v1236 = vpack.c.b16 %v1101, %v1086
        %v1237 = vpack.c.b16 %v1102, %v1087
        %v1238 = vpack.c.b16 %v1103, %v1088
        %v1239 = vpack.c.b16 %v1104, %v1089
        %v1240 = vpack.c.b16 %v1105, %v1090
        %v1241 = vpack.c.b16 %v1106, %v1091
        %v1242 = vpack.c.b16 %v1107, %v1092
        %v1243 = vpack.c.b16 %v1108, %v1093
        %v1244 = vpack.c.b16 %v1109, %v1094
        %vm1365 = vcmask 97280
        %v1367 = vsel %vm1365, %v495, 0
        %v1370 = vsel %vm1365, %v497, 0
        %v1373 = vsel %vm1365, %v499, 0
        %v1376 = vsel %vm1365, %v501, 0
        %v1379 = vsel %vm1365, %v503, 0
        %v1382 = vsel %vm1365, %v505, 0
        %v1385 = vsel %vm1365, %v507, 0
        %v1388 = vsel %vm1365, %v509, 0
        %v1391 = vsel %vm1365, %v511, 0
        %v1394 = vsel %vm1365, %v513, 0
        %v1397 = vsel %vm1365, %v515, 0
        %v1400 = vsel %vm1365, %v517, 0
        %vm1402 = vcmask 1045504
        %v1404 = vsel %vm1402, %v1230, 0
        %v1407 = vsel %vm1402, %v1231, 0
        %v1410 = vsel %vm1402, %v1232, 0
        %v1413 = vsel %vm1402, %v1233, 0
        %v1416 = vsel %vm1402, %v1234, 0
        %v1419 = vsel %vm1402, %v1235, 0
        %v1422 = vsel %vm1402, %v1236, 0
        %v1425 = vsel %vm1402, %v1237, 0
        %v1428 = vsel %vm1402, %v1238, 0
        %v1431 = vsel %vm1402, %v1239, 0
        %v1434 = vsel %vm1402, %v1240, 0
        %v1437 = vsel %vm1402, %v1241, 0
        %v1440 = vsel %vm1402, %v1242, 0
        %v1443 = vsel %vm1402, %v1243, 0
        %v1446 = vsel %vm1402, %v1244, 0
        %1448 = vmatpush.bf16.msra.mxu0 %v1215
        %1449 = vmatpush.bf16.msra.mxu0 %v1200
        %1450 = vmatpush.bf16.msra.mxu0 %v1185
        %1451 = vmatpush.bf16.msra.mxu0 %v1170
        %1452 = vmatpush.bf16.msra.mxu0 %v1155
        %1453 = vmatpush.bf16.msra.mxu0 %v1140
        %1454 = vmatpush.bf16.msra.mxu0 %v1125
        %1455 = vmatpush.bf16.msra.mxu0 %v1110
        %1456 = vmatmul.bf16.gmra.mxu0 %v494
        %v1457 = vpop.f32.mrf.mxu0
        %v1458 = vadd.f32 %v666, %v1457
        %v1459 = vpop.f32.mrf.mxu0
        %v1460 = vadd.f32 %v666, %v1459
        %1461 = vmatmul.bf16.gmra.mxu0 %v496
        %v1462 = vpop.f32.mrf.mxu0
        %v1463 = vadd.f32 %v666, %v1462
        %v1464 = vpop.f32.mrf.mxu0
        %v1465 = vadd.f32 %v666, %v1464
        %1466 = vmatmul.bf16.gmra.mxu0 %v498
        %v1467 = vpop.f32.mrf.mxu0
        %v1468 = vadd.f32 %v666, %v1467
        %v1469 = vpop.f32.mrf.mxu0
        %v1470 = vadd.f32 %v666, %v1469
        %1471 = vmatmul.bf16.gmra.mxu0 %v500
        %v1472 = vpop.f32.mrf.mxu0
        %v1473 = vadd.f32 %v666, %v1472
        %v1474 = vpop.f32.mrf.mxu0
        %v1475 = vadd.f32 %v666, %v1474
        %1476 = vmatmul.bf16.gmra.mxu0 %v502
        %v1477 = vpop.f32.mrf.mxu0
        %v1478 = vadd.f32 %v666, %v1477
        %v1479 = vpop.f32.mrf.mxu0
        %v1480 = vadd.f32 %v666, %v1479
        %1481 = vmatmul.bf16.gmra.mxu0 %v504
        %v1482 = vpop.f32.mrf.mxu0
        %v1483 = vadd.f32 %v666, %v1482
        %v1484 = vpop.f32.mrf.mxu0
        %v1485 = vadd.f32 %v666, %v1484
        %1486 = vmatmul.bf16.gmra.mxu0 %v506
        %v1487 = vpop.f32.mrf.mxu0
        %v1488 = vadd.f32 %v666, %v1487
        %v1489 = vpop.f32.mrf.mxu0
        %v1490 = vadd.f32 %v666, %v1489
        %1491 = vmatmul.bf16.gmra.mxu0 %v508
        %v1492 = vpop.f32.mrf.mxu0
        %v1493 = vadd.f32 %v666, %v1492
        %v1494 = vpop.f32.mrf.mxu0
        %v1495 = vadd.f32 %v666, %v1494
        %1496 = vmatmul.bf16.gmra.mxu0 %v510
        %v1497 = vpop.f32.mrf.mxu0
        %v1498 = vadd.f32 %v666, %v1497
        %v1499 = vpop.f32.mrf.mxu0
        %v1500 = vadd.f32 %v666, %v1499
        %1501 = vmatmul.bf16.gmra.mxu0 %v512
        %v1502 = vpop.f32.mrf.mxu0
        %v1503 = vadd.f32 %v666, %v1502
        %v1504 = vpop.f32.mrf.mxu0
        %v1505 = vadd.f32 %v666, %v1504
        %1506 = vmatmul.bf16.gmra.mxu0 %v514
        %v1507 = vpop.f32.mrf.mxu0
        %v1508 = vadd.f32 %v666, %v1507
        %v1509 = vpop.f32.mrf.mxu0
        %v1510 = vadd.f32 %v666, %v1509
        %1511 = vmatmul.bf16.gmra.mxu0 %v516
        %v1512 = vpop.f32.mrf.mxu0
        %v1513 = vadd.f32 %v666, %v1512
        %v1514 = vpop.f32.mrf.mxu0
        %v1515 = vadd.f32 %v666, %v1514
        %1516 = vdwg.mxu0
        %1517 = vmatpush.bf16.msra.mxu0 0
        %1518 = vmatpush.bf16.msra.mxu0 0
        %1519 = vmatpush.bf16.msra.mxu0 0
        %1520 = vmatpush.bf16.msra.mxu0 0
        %1521 = vmatpush.bf16.msra.mxu0 0
        %1522 = vmatpush.bf16.msra.mxu0 0
        %1523 = vmatpush.bf16.msra.mxu0 0
        %1524 = vmatpush.bf16.msra.mxu0 %v1404
        %1525 = vmatmul.bf16.gmra.mxu0 %v1367
        %v1526 = vpop.f32.mrf.mxu0
        %v1527 = vadd.f32 %v1458, %v1526
        %v1528 = vpop.f32.mrf.mxu0
        %v1529 = vadd.f32 %v1460, %v1528
        %1530 = vmatmul.bf16.gmra.mxu0 %v1370
        %v1531 = vpop.f32.mrf.mxu0
        %v1532 = vadd.f32 %v1463, %v1531
        %v1533 = vpop.f32.mrf.mxu0
        %v1534 = vadd.f32 %v1465, %v1533
        %1535 = vmatmul.bf16.gmra.mxu0 %v1373
        %v1536 = vpop.f32.mrf.mxu0
        %v1537 = vadd.f32 %v1468, %v1536
        %v1538 = vpop.f32.mrf.mxu0
        %v1539 = vadd.f32 %v1470, %v1538
        %1540 = vmatmul.bf16.gmra.mxu0 %v1376
        %v1541 = vpop.f32.mrf.mxu0
        %v1542 = vadd.f32 %v1473, %v1541
        %v1543 = vpop.f32.mrf.mxu0
        %v1544 = vadd.f32 %v1475, %v1543
        %1545 = vmatmul.bf16.gmra.mxu0 %v1379
        %v1546 = vpop.f32.mrf.mxu0
        %v1547 = vadd.f32 %v1478, %v1546
        %v1548 = vpop.f32.mrf.mxu0
        %v1549 = vadd.f32 %v1480, %v1548
        %1550 = vmatmul.bf16.gmra.mxu0 %v1382
        %v1551 = vpop.f32.mrf.mxu0
        %v1552 = vadd.f32 %v1483, %v1551
        %v1553 = vpop.f32.mrf.mxu0
        %v1554 = vadd.f32 %v1485, %v1553
        %1555 = vmatmul.bf16.gmra.mxu0 %v1385
        %v1556 = vpop.f32.mrf.mxu0
        %v1557 = vadd.f32 %v1488, %v1556
        %v1558 = vpop.f32.mrf.mxu0
        %v1559 = vadd.f32 %v1490, %v1558
        %1560 = vmatmul.bf16.gmra.mxu0 %v1388
        %v1561 = vpop.f32.mrf.mxu0
        %v1562 = vadd.f32 %v1493, %v1561
        %v1563 = vpop.f32.mrf.mxu0
        %v1564 = vadd.f32 %v1495, %v1563
        %1565 = vmatmul.bf16.gmra.mxu0 %v1391
        %v1566 = vpop.f32.mrf.mxu0
        %v1567 = vadd.f32 %v1498, %v1566
        %v1568 = vpop.f32.mrf.mxu0
        %v1569 = vadd.f32 %v1500, %v1568
        %1570 = vmatmul.bf16.gmra.mxu0 %v1394
        %v1571 = vpop.f32.mrf.mxu0
        %v1572 = vadd.f32 %v1503, %v1571
        %v1573 = vpop.f32.mrf.mxu0
        %v1574 = vadd.f32 %v1505, %v1573
        %1575 = vmatmul.bf16.gmra.mxu0 %v1397
        %v1576 = vpop.f32.mrf.mxu0
        %v1577 = vadd.f32 %v1508, %v1576
        %v1578 = vpop.f32.mrf.mxu0
        %v1579 = vadd.f32 %v1510, %v1578
        %1580 = vmatmul.bf16.gmra.mxu0 %v1400
        %v1581 = vpop.f32.mrf.mxu0
        %v1582 = vadd.f32 %v1513, %v1581
        %v1583 = vpop.f32.mrf.mxu0
        %v1584 = vadd.f32 %v1515, %v1583
        %1585 = vdwg.mxu0
        %1586 = vmatpush.bf16.msra.mxu0 %v1216
        %1587 = vmatpush.bf16.msra.mxu0 %v1201
        %1588 = vmatpush.bf16.msra.mxu0 %v1186
        %1589 = vmatpush.bf16.msra.mxu0 %v1171
        %1590 = vmatpush.bf16.msra.mxu0 %v1156
        %1591 = vmatpush.bf16.msra.mxu0 %v1141
        %1592 = vmatpush.bf16.msra.mxu0 %v1126
        %1593 = vmatpush.bf16.msra.mxu0 %v1111
        %1594 = vmatmul.bf16.gmra.mxu0 %v494
        %v1595 = vpop.f32.mrf.mxu0
        %v1596 = vadd.f32 %v667, %v1595
        %v1597 = vpop.f32.mrf.mxu0
        %v1598 = vadd.f32 %v667, %v1597
        %1599 = vmatmul.bf16.gmra.mxu0 %v496
        %v1600 = vpop.f32.mrf.mxu0
        %v1601 = vadd.f32 %v667, %v1600
        %v1602 = vpop.f32.mrf.mxu0
        %v1603 = vadd.f32 %v667, %v1602
        %1604 = vmatmul.bf16.gmra.mxu0 %v498
        %v1605 = vpop.f32.mrf.mxu0
        %v1606 = vadd.f32 %v667, %v1605
        %v1607 = vpop.f32.mrf.mxu0
        %v1608 = vadd.f32 %v667, %v1607
        %1609 = vmatmul.bf16.gmra.mxu0 %v500
        %v1610 = vpop.f32.mrf.mxu0
        %v1611 = vadd.f32 %v667, %v1610
        %v1612 = vpop.f32.mrf.mxu0
        %v1613 = vadd.f32 %v667, %v1612
        %1614 = vmatmul.bf16.gmra.mxu0 %v502
        %v1615 = vpop.f32.mrf.mxu0
        %v1616 = vadd.f32 %v667, %v1615
        %v1617 = vpop.f32.mrf.mxu0
        %v1618 = vadd.f32 %v667, %v1617
        %1619 = vmatmul.bf16.gmra.mxu0 %v504
        %v1620 = vpop.f32.mrf.mxu0
        %v1621 = vadd.f32 %v667, %v1620
        %v1622 = vpop.f32.mrf.mxu0
        %v1623 = vadd.f32 %v667, %v1622
        %1624 = vmatmul.bf16.gmra.mxu0 %v506
        %v1625 = vpop.f32.mrf.mxu0
        %v1626 = vadd.f32 %v667, %v1625
        %v1627 = vpop.f32.mrf.mxu0
        %v1628 = vadd.f32 %v667, %v1627
        %1629 = vmatmul.bf16.gmra.mxu0 %v508
        %v1630 = vpop.f32.mrf.mxu0
        %v1631 = vadd.f32 %v667, %v1630
        %v1632 = vpop.f32.mrf.mxu0
        %v1633 = vadd.f32 %v667, %v1632
        %1634 = vmatmul.bf16.gmra.mxu0 %v510
        %v1635 = vpop.f32.mrf.mxu0
        %v1636 = vadd.f32 %v667, %v1635
        %v1637 = vpop.f32.mrf.mxu0
        %v1638 = vadd.f32 %v667, %v1637
        %1639 = vmatmul.bf16.gmra.mxu0 %v512
        %v1640 = vpop.f32.mrf.mxu0
        %v1641 = vadd.f32 %v667, %v1640
        %v1642 = vpop.f32.mrf.mxu0
        %v1643 = vadd.f32 %v667, %v1642
        %1644 = vmatmul.bf16.gmra.mxu0 %v514
        %v1645 = vpop.f32.mrf.mxu0
        %v1646 = vadd.f32 %v667, %v1645
        %v1647 = vpop.f32.mrf.mxu0
        %v1648 = vadd.f32 %v667, %v1647
        %1649 = vmatmul.bf16.gmra.mxu0 %v516
        %v1650 = vpop.f32.mrf.mxu0
        %v1651 = vadd.f32 %v667, %v1650
        %v1652 = vpop.f32.mrf.mxu0
        %v1653 = vadd.f32 %v667, %v1652
        %1654 = vdwg.mxu0
        %1655 = vmatpush.bf16.msra.mxu0 0
        %1656 = vmatpush.bf16.msra.mxu0 0
        %1657 = vmatpush.bf16.msra.mxu0 0
        %1658 = vmatpush.bf16.msra.mxu0 0
        %1659 = vmatpush.bf16.msra.mxu0 0
        %1660 = vmatpush.bf16.msra.mxu0 0
        %1661 = vmatpush.bf16.msra.mxu0 0
        %1662 = vmatpush.bf16.msra.mxu0 %v1407
        %1663 = vmatmul.bf16.gmra.mxu0 %v1367
        %v1664 = vpop.f32.mrf.mxu0
        %v1665 = vadd.f32 %v1596, %v1664
        %v1666 = vpop.f32.mrf.mxu0
        %v1667 = vadd.f32 %v1598, %v1666
        %1668 = vmatmul.bf16.gmra.mxu0 %v1370
        %v1669 = vpop.f32.mrf.mxu0
        %v1670 = vadd.f32 %v1601, %v1669
        %v1671 = vpop.f32.mrf.mxu0
        %v1672 = vadd.f32 %v1603, %v1671
        %1673 = vmatmul.bf16.gmra.mxu0 %v1373
        %v1674 = vpop.f32.mrf.mxu0
        %v1675 = vadd.f32 %v1606, %v1674
        %v1676 = vpop.f32.mrf.mxu0
        %v1677 = vadd.f32 %v1608, %v1676
        %1678 = vmatmul.bf16.gmra.mxu0 %v1376
        %v1679 = vpop.f32.mrf.mxu0
        %v1680 = vadd.f32 %v1611, %v1679
        %v1681 = vpop.f32.mrf.mxu0
        %v1682 = vadd.f32 %v1613, %v1681
        %1683 = vmatmul.bf16.gmra.mxu0 %v1379
        %v1684 = vpop.f32.mrf.mxu0
        %v1685 = vadd.f32 %v1616, %v1684
        %v1686 = vpop.f32.mrf.mxu0
        %v1687 = vadd.f32 %v1618, %v1686
        %1688 = vmatmul.bf16.gmra.mxu0 %v1382
        %v1689 = vpop.f32.mrf.mxu0
        %v1690 = vadd.f32 %v1621, %v1689
        %v1691 = vpop.f32.mrf.mxu0
        %v1692 = vadd.f32 %v1623, %v1691
        %1693 = vmatmul.bf16.gmra.mxu0 %v1385
        %v1694 = vpop.f32.mrf.mxu0
        %v1695 = vadd.f32 %v1626, %v1694
        %v1696 = vpop.f32.mrf.mxu0
        %v1697 = vadd.f32 %v1628, %v1696
        %1698 = vmatmul.bf16.gmra.mxu0 %v1388
        %v1699 = vpop.f32.mrf.mxu0
        %v1700 = vadd.f32 %v1631, %v1699
        %v1701 = vpop.f32.mrf.mxu0
        %v1702 = vadd.f32 %v1633, %v1701
        %1703 = vmatmul.bf16.gmra.mxu0 %v1391
        %v1704 = vpop.f32.mrf.mxu0
        %v1705 = vadd.f32 %v1636, %v1704
        %v1706 = vpop.f32.mrf.mxu0
        %v1707 = vadd.f32 %v1638, %v1706
        %1708 = vmatmul.bf16.gmra.mxu0 %v1394
        %v1709 = vpop.f32.mrf.mxu0
        %v1710 = vadd.f32 %v1641, %v1709
        %v1711 = vpop.f32.mrf.mxu0
        %v1712 = vadd.f32 %v1643, %v1711
        %1713 = vmatmul.bf16.gmra.mxu0 %v1397
        %v1714 = vpop.f32.mrf.mxu0
        %v1715 = vadd.f32 %v1646, %v1714
        %v1716 = vpop.f32.mrf.mxu0
        %v1717 = vadd.f32 %v1648, %v1716
        %1718 = vmatmul.bf16.gmra.mxu0 %v1400
        %v1719 = vpop.f32.mrf.mxu0
        %v1720 = vadd.f32 %v1651, %v1719
        %v1721 = vpop.f32.mrf.mxu0
        %v1722 = vadd.f32 %v1653, %v1721
        %1723 = vdwg.mxu0
        %1724 = vmatpush.bf16.msra.mxu0 %v1217
        %1725 = vmatpush.bf16.msra.mxu0 %v1202
        %1726 = vmatpush.bf16.msra.mxu0 %v1187
        %1727 = vmatpush.bf16.msra.mxu0 %v1172
        %1728 = vmatpush.bf16.msra.mxu0 %v1157
        %1729 = vmatpush.bf16.msra.mxu0 %v1142
        %1730 = vmatpush.bf16.msra.mxu0 %v1127
        %1731 = vmatpush.bf16.msra.mxu0 %v1112
        %1732 = vmatmul.bf16.gmra.mxu0 %v494
        %v1733 = vpop.f32.mrf.mxu0
        %v1734 = vadd.f32 %v668, %v1733
        %v1735 = vpop.f32.mrf.mxu0
        %v1736 = vadd.f32 %v668, %v1735
        %1737 = vmatmul.bf16.gmra.mxu0 %v496
        %v1738 = vpop.f32.mrf.mxu0
        %v1739 = vadd.f32 %v668, %v1738
        %v1740 = vpop.f32.mrf.mxu0
        %v1741 = vadd.f32 %v668, %v1740
        %1742 = vmatmul.bf16.gmra.mxu0 %v498
        %v1743 = vpop.f32.mrf.mxu0
        %v1744 = vadd.f32 %v668, %v1743
        %v1745 = vpop.f32.mrf.mxu0
        %v1746 = vadd.f32 %v668, %v1745
        %1747 = vmatmul.bf16.gmra.mxu0 %v500
        %v1748 = vpop.f32.mrf.mxu0
        %v1749 = vadd.f32 %v668, %v1748
        %v1750 = vpop.f32.mrf.mxu0
        %v1751 = vadd.f32 %v668, %v1750
        %1752 = vmatmul.bf16.gmra.mxu0 %v502
        %v1753 = vpop.f32.mrf.mxu0
        %v1754 = vadd.f32 %v668, %v1753
        %v1755 = vpop.f32.mrf.mxu0
        %v1756 = vadd.f32 %v668, %v1755
        %1757 = vmatmul.bf16.gmra.mxu0 %v504
        %v1758 = vpop.f32.mrf.mxu0
        %v1759 = vadd.f32 %v668, %v1758
        %v1760 = vpop.f32.mrf.mxu0
        %v1761 = vadd.f32 %v668, %v1760
        %1762 = vmatmul.bf16.gmra.mxu0 %v506
        %v1763 = vpop.f32.mrf.mxu0
        %v1764 = vadd.f32 %v668, %v1763
        %v1765 = vpop.f32.mrf.mxu0
        %v1766 = vadd.f32 %v668, %v1765
        %1767 = vmatmul.bf16.gmra.mxu0 %v508
        %v1768 = vpop.f32.mrf.mxu0
        %v1769 = vadd.f32 %v668, %v1768
        %v1770 = vpop.f32.mrf.mxu0
        %v1771 = vadd.f32 %v668, %v1770
        %1772 = vmatmul.bf16.gmra.mxu0 %v510
        %v1773 = vpop.f32.mrf.mxu0
        %v1774 = vadd.f32 %v668, %v1773
        %v1775 = vpop.f32.mrf.mxu0
        %v1776 = vadd.f32 %v668, %v1775
        %1777 = vmatmul.bf16.gmra.mxu0 %v512
        %v1778 = vpop.f32.mrf.mxu0
        %v1779 = vadd.f32 %v668, %v1778
        %v1780 = vpop.f32.mrf.mxu0
        %v1781 = vadd.f32 %v668, %v1780
        %1782 = vmatmul.bf16.gmra.mxu0 %v514
        %v1783 = vpop.f32.mrf.mxu0
        %v1784 = vadd.f32 %v668, %v1783
        %v1785 = vpop.f32.mrf.mxu0
        %v1786 = vadd.f32 %v668, %v1785
        %1787 = vmatmul.bf16.gmra.mxu0 %v516
        %v1788 = vpop.f32.mrf.mxu0
        %v1789 = vadd.f32 %v668, %v1788
        %v1790 = vpop.f32.mrf.mxu0
        %v1791 = vadd.f32 %v668, %v1790
        %1792 = vdwg.mxu0
        %1793 = vmatpush.bf16.msra.mxu0 0
        %1794 = vmatpush.bf16.msra.mxu0 0
        %1795 = vmatpush.bf16.msra.mxu0 0
        %1796 = vmatpush.bf16.msra.mxu0 0
        %1797 = vmatpush.bf16.msra.mxu0 0
        %1798 = vmatpush.bf16.msra.mxu0 0
        %1799 = vmatpush.bf16.msra.mxu0 0
        %1800 = vmatpush.bf16.msra.mxu0 %v1410
        %1801 = vmatmul.bf16.gmra.mxu0 %v1367
        %v1802 = vpop.f32.mrf.mxu0
        %v1803 = vadd.f32 %v1734, %v1802
        %v1804 = vpop.f32.mrf.mxu0
        %v1805 = vadd.f32 %v1736, %v1804
        %1806 = vmatmul.bf16.gmra.mxu0 %v1370
        %v1807 = vpop.f32.mrf.mxu0
        %v1808 = vadd.f32 %v1739, %v1807
        %v1809 = vpop.f32.mrf.mxu0
        %v1810 = vadd.f32 %v1741, %v1809
        %1811 = vmatmul.bf16.gmra.mxu0 %v1373
        %v1812 = vpop.f32.mrf.mxu0
        %v1813 = vadd.f32 %v1744, %v1812
        %v1814 = vpop.f32.mrf.mxu0
        %v1815 = vadd.f32 %v1746, %v1814
        %1816 = vmatmul.bf16.gmra.mxu0 %v1376
        %v1817 = vpop.f32.mrf.mxu0
        %v1818 = vadd.f32 %v1749, %v1817
        %v1819 = vpop.f32.mrf.mxu0
        %v1820 = vadd.f32 %v1751, %v1819
        %1821 = vmatmul.bf16.gmra.mxu0 %v1379
        %v1822 = vpop.f32.mrf.mxu0
        %v1823 = vadd.f32 %v1754, %v1822
        %v1824 = vpop.f32.mrf.mxu0
        %v1825 = vadd.f32 %v1756, %v1824
        %1826 = vmatmul.bf16.gmra.mxu0 %v1382
        %v1827 = vpop.f32.mrf.mxu0
        %v1828 = vadd.f32 %v1759, %v1827
        %v1829 = vpop.f32.mrf.mxu0
        %v1830 = vadd.f32 %v1761, %v1829
        %1831 = vmatmul.bf16.gmra.mxu0 %v1385
        %v1832 = vpop.f32.mrf.mxu0
        %v1833 = vadd.f32 %v1764, %v1832
        %v1834 = vpop.f32.mrf.mxu0
        %v1835 = vadd.f32 %v1766, %v1834
        %1836 = vmatmul.bf16.gmra.mxu0 %v1388
        %v1837 = vpop.f32.mrf.mxu0
        %v1838 = vadd.f32 %v1769, %v1837
        %v1839 = vpop.f32.mrf.mxu0
        %v1840 = vadd.f32 %v1771, %v1839
        %1841 = vmatmul.bf16.gmra.mxu0 %v1391
        %v1842 = vpop.f32.mrf.mxu0
        %v1843 = vadd.f32 %v1774, %v1842
        %v1844 = vpop.f32.mrf.mxu0
        %v1845 = vadd.f32 %v1776, %v1844
        %1846 = vmatmul.bf16.gmra.mxu0 %v1394
        %v1847 = vpop.f32.mrf.mxu0
        %v1848 = vadd.f32 %v1779, %v1847
        %v1849 = vpop.f32.mrf.mxu0
        %v1850 = vadd.f32 %v1781, %v1849
        %1851 = vmatmul.bf16.gmra.mxu0 %v1397
        %v1852 = vpop.f32.mrf.mxu0
        %v1853 = vadd.f32 %v1784, %v1852
        %v1854 = vpop.f32.mrf.mxu0
        %v1855 = vadd.f32 %v1786, %v1854
        %1856 = vmatmul.bf16.gmra.mxu0 %v1400
        %v1857 = vpop.f32.mrf.mxu0
        %v1858 = vadd.f32 %v1789, %v1857
        %v1859 = vpop.f32.mrf.mxu0
        %v1860 = vadd.f32 %v1791, %v1859
        %1861 = vdwg.mxu0
        %1862 = vmatpush.bf16.msra.mxu0 %v1218
        %1863 = vmatpush.bf16.msra.mxu0 %v1203
        %1864 = vmatpush.bf16.msra.mxu0 %v1188
        %1865 = vmatpush.bf16.msra.mxu0 %v1173
        %1866 = vmatpush.bf16.msra.mxu0 %v1158
        %1867 = vmatpush.bf16.msra.mxu0 %v1143
        %1868 = vmatpush.bf16.msra.mxu0 %v1128
        %1869 = vmatpush.bf16.msra.mxu0 %v1113
        %1870 = vmatmul.bf16.gmra.mxu0 %v494
        %v1871 = vpop.f32.mrf.mxu0
        %v1872 = vadd.f32 %v669, %v1871
        %v1873 = vpop.f32.mrf.mxu0
        %v1874 = vadd.f32 %v669, %v1873
        %1875 = vmatmul.bf16.gmra.mxu0 %v496
        %v1876 = vpop.f32.mrf.mxu0
        %v1877 = vadd.f32 %v669, %v1876
        %v1878 = vpop.f32.mrf.mxu0
        %v1879 = vadd.f32 %v669, %v1878
        %1880 = vmatmul.bf16.gmra.mxu0 %v498
        %v1881 = vpop.f32.mrf.mxu0
        %v1882 = vadd.f32 %v669, %v1881
        %v1883 = vpop.f32.mrf.mxu0
        %v1884 = vadd.f32 %v669, %v1883
        %1885 = vmatmul.bf16.gmra.mxu0 %v500
        %v1886 = vpop.f32.mrf.mxu0
        %v1887 = vadd.f32 %v669, %v1886
        %v1888 = vpop.f32.mrf.mxu0
        %v1889 = vadd.f32 %v669, %v1888
        %1890 = vmatmul.bf16.gmra.mxu0 %v502
        %v1891 = vpop.f32.mrf.mxu0
        %v1892 = vadd.f32 %v669, %v1891
        %v1893 = vpop.f32.mrf.mxu0
        %v1894 = vadd.f32 %v669, %v1893
        %1895 = vmatmul.bf16.gmra.mxu0 %v504
        %v1896 = vpop.f32.mrf.mxu0
        %v1897 = vadd.f32 %v669, %v1896
        %v1898 = vpop.f32.mrf.mxu0
        %v1899 = vadd.f32 %v669, %v1898
        %1900 = vmatmul.bf16.gmra.mxu0 %v506
        %v1901 = vpop.f32.mrf.mxu0
        %v1902 = vadd.f32 %v669, %v1901
        %v1903 = vpop.f32.mrf.mxu0
        %v1904 = vadd.f32 %v669, %v1903
        %1905 = vmatmul.bf16.gmra.mxu0 %v508
        %v1906 = vpop.f32.mrf.mxu0
        %v1907 = vadd.f32 %v669, %v1906
        %v1908 = vpop.f32.mrf.mxu0
        %v1909 = vadd.f32 %v669, %v1908
        %1910 = vmatmul.bf16.gmra.mxu0 %v510
        %v1911 = vpop.f32.mrf.mxu0
        %v1912 = vadd.f32 %v669, %v1911
        %v1913 = vpop.f32.mrf.mxu0
        %v1914 = vadd.f32 %v669, %v1913
        %1915 = vmatmul.bf16.gmra.mxu0 %v512
        %v1916 = vpop.f32.mrf.mxu0
        %v1917 = vadd.f32 %v669, %v1916
        %v1918 = vpop.f32.mrf.mxu0
        %v1919 = vadd.f32 %v669, %v1918
        %1920 = vmatmul.bf16.gmra.mxu0 %v514
        %v1921 = vpop.f32.mrf.mxu0
        %v1922 = vadd.f32 %v669, %v1921
        %v1923 = vpop.f32.mrf.mxu0
        %v1924 = vadd.f32 %v669, %v1923
        %1925 = vmatmul.bf16.gmra.mxu0 %v516
        %v1926 = vpop.f32.mrf.mxu0
        %v1927 = vadd.f32 %v669, %v1926
        %v1928 = vpop.f32.mrf.mxu0
        %v1929 = vadd.f32 %v669, %v1928
        %1930 = vdwg.mxu0
        %1931 = vmatpush.bf16.msra.mxu0 0
        %1932 = vmatpush.bf16.msra.mxu0 0
        %1933 = vmatpush.bf16.msra.mxu0 0
        %1934 = vmatpush.bf16.msra.mxu0 0
        %1935 = vmatpush.bf16.msra.mxu0 0
        %1936 = vmatpush.bf16.msra.mxu0 0
        %1937 = vmatpush.bf16.msra.mxu0 0
        %1938 = vmatpush.bf16.msra.mxu0 %v1413
        %1939 = vmatmul.bf16.gmra.mxu0 %v1367
        %v1940 = vpop.f32.mrf.mxu0
        %v1941 = vadd.f32 %v1872, %v1940
        %v1942 = vpop.f32.mrf.mxu0
        %v1943 = vadd.f32 %v1874, %v1942
        %1944 = vmatmul.bf16.gmra.mxu0 %v1370
        %v1945 = vpop.f32.mrf.mxu0
        %v1946 = vadd.f32 %v1877, %v1945
        %v1947 = vpop.f32.mrf.mxu0
        %v1948 = vadd.f32 %v1879, %v1947
        %1949 = vmatmul.bf16.gmra.mxu0 %v1373
        %v1950 = vpop.f32.mrf.mxu0
        %v1951 = vadd.f32 %v1882, %v1950
        %v1952 = vpop.f32.mrf.mxu0
        %v1953 = vadd.f32 %v1884, %v1952
        %1954 = vmatmul.bf16.gmra.mxu0 %v1376
        %v1955 = vpop.f32.mrf.mxu0
        %v1956 = vadd.f32 %v1887, %v1955
        %v1957 = vpop.f32.mrf.mxu0
        %v1958 = vadd.f32 %v1889, %v1957
        %1959 = vmatmul.bf16.gmra.mxu0 %v1379
        %v1960 = vpop.f32.mrf.mxu0
        %v1961 = vadd.f32 %v1892, %v1960
        %v1962 = vpop.f32.mrf.mxu0
        %v1963 = vadd.f32 %v1894, %v1962
        %1964 = vmatmul.bf16.gmra.mxu0 %v1382
        %v1965 = vpop.f32.mrf.mxu0
        %v1966 = vadd.f32 %v1897, %v1965
        %v1967 = vpop.f32.mrf.mxu0
        %v1968 = vadd.f32 %v1899, %v1967
        %1969 = vmatmul.bf16.gmra.mxu0 %v1385
        %v1970 = vpop.f32.mrf.mxu0
        %v1971 = vadd.f32 %v1902, %v1970
        %v1972 = vpop.f32.mrf.mxu0
        %v1973 = vadd.f32 %v1904, %v1972
        %1974 = vmatmul.bf16.gmra.mxu0 %v1388
        %v1975 = vpop.f32.mrf.mxu0
        %v1976 = vadd.f32 %v1907, %v1975
        %v1977 = vpop.f32.mrf.mxu0
        %v1978 = vadd.f32 %v1909, %v1977
        %1979 = vmatmul.bf16.gmra.mxu0 %v1391
        %v1980 = vpop.f32.mrf.mxu0
        %v1981 = vadd.f32 %v1912, %v1980
        %v1982 = vpop.f32.mrf.mxu0
        %v1983 = vadd.f32 %v1914, %v1982
        %1984 = vmatmul.bf16.gmra.mxu0 %v1394
        %v1985 = vpop.f32.mrf.mxu0
        %v1986 = vadd.f32 %v1917, %v1985
        %v1987 = vpop.f32.mrf.mxu0
        %v1988 = vadd.f32 %v1919, %v1987
        %1989 = vmatmul.bf16.gmra.mxu0 %v1397
        %v1990 = vpop.f32.mrf.mxu0
        %v1991 = vadd.f32 %v1922, %v1990
        %v1992 = vpop.f32.mrf.mxu0
        %v1993 = vadd.f32 %v1924, %v1992
        %1994 = vmatmul.bf16.gmra.mxu0 %v1400
        %v1995 = vpop.f32.mrf.mxu0
        %v1996 = vadd.f32 %v1927, %v1995
        %v1997 = vpop.f32.mrf.mxu0
        %v1998 = vadd.f32 %v1929, %v1997
        %1999 = vdwg.mxu0
        %2000 = vmatpush.bf16.msra.mxu0 %v1219
        %2001 = vmatpush.bf16.msra.mxu0 %v1204
        %2002 = vmatpush.bf16.msra.mxu0 %v1189
        %2003 = vmatpush.bf16.msra.mxu0 %v1174
        %2004 = vmatpush.bf16.msra.mxu0 %v1159
        %2005 = vmatpush.bf16.msra.mxu0 %v1144
        %2006 = vmatpush.bf16.msra.mxu0 %v1129
        %2007 = vmatpush.bf16.msra.mxu0 %v1114
        %2008 = vmatmul.bf16.gmra.mxu0 %v494
        %v2009 = vpop.f32.mrf.mxu0
        %v2010 = vadd.f32 %v670, %v2009
        %v2011 = vpop.f32.mrf.mxu0
        %v2012 = vadd.f32 %v670, %v2011
        %2013 = vmatmul.bf16.gmra.mxu0 %v496
        %v2014 = vpop.f32.mrf.mxu0
        %v2015 = vadd.f32 %v670, %v2014
        %v2016 = vpop.f32.mrf.mxu0
        %v2017 = vadd.f32 %v670, %v2016
        %2018 = vmatmul.bf16.gmra.mxu0 %v498
        %v2019 = vpop.f32.mrf.mxu0
        %v2020 = vadd.f32 %v670, %v2019
        %v2021 = vpop.f32.mrf.mxu0
        %v2022 = vadd.f32 %v670, %v2021
        %2023 = vmatmul.bf16.gmra.mxu0 %v500
        %v2024 = vpop.f32.mrf.mxu0
        %v2025 = vadd.f32 %v670, %v2024
        %v2026 = vpop.f32.mrf.mxu0
        %v2027 = vadd.f32 %v670, %v2026
        %2028 = vmatmul.bf16.gmra.mxu0 %v502
        %v2029 = vpop.f32.mrf.mxu0
        %v2030 = vadd.f32 %v670, %v2029
        %v2031 = vpop.f32.mrf.mxu0
        %v2032 = vadd.f32 %v670, %v2031
        %2033 = vmatmul.bf16.gmra.mxu0 %v504
        %v2034 = vpop.f32.mrf.mxu0
        %v2035 = vadd.f32 %v670, %v2034
        %v2036 = vpop.f32.mrf.mxu0
        %v2037 = vadd.f32 %v670, %v2036
        %2038 = vmatmul.bf16.gmra.mxu0 %v506
        %v2039 = vpop.f32.mrf.mxu0
        %v2040 = vadd.f32 %v670, %v2039
        %v2041 = vpop.f32.mrf.mxu0
        %v2042 = vadd.f32 %v670, %v2041
        %2043 = vmatmul.bf16.gmra.mxu0 %v508
        %v2044 = vpop.f32.mrf.mxu0
        %v2045 = vadd.f32 %v670, %v2044
        %v2046 = vpop.f32.mrf.mxu0
        %v2047 = vadd.f32 %v670, %v2046
        %2048 = vmatmul.bf16.gmra.mxu0 %v510
        %v2049 = vpop.f32.mrf.mxu0
        %v2050 = vadd.f32 %v670, %v2049
        %v2051 = vpop.f32.mrf.mxu0
        %v2052 = vadd.f32 %v670, %v2051
        %2053 = vmatmul.bf16.gmra.mxu0 %v512
        %v2054 = vpop.f32.mrf.mxu0
        %v2055 = vadd.f32 %v670, %v2054
        %v2056 = vpop.f32.mrf.mxu0
        %v2057 = vadd.f32 %v670, %v2056
        %2058 = vmatmul.bf16.gmra.mxu0 %v514
        %v2059 = vpop.f32.mrf.mxu0
        %v2060 = vadd.f32 %v670, %v2059
        %v2061 = vpop.f32.mrf.mxu0
        %v2062 = vadd.f32 %v670, %v2061
        %2063 = vmatmul.bf16.gmra.mxu0 %v516
        %v2064 = vpop.f32.mrf.mxu0
        %v2065 = vadd.f32 %v670, %v2064
        %v2066 = vpop.f32.mrf.mxu0
        %v2067 = vadd.f32 %v670, %v2066
        %2068 = vdwg.mxu0
        %2069 = vmatpush.bf16.msra.mxu0 0
        %2070 = vmatpush.bf16.msra.mxu0 0
        %2071 = vmatpush.bf16.msra.mxu0 0
        %2072 = vmatpush.bf16.msra.mxu0 0
        %2073 = vmatpush.bf16.msra.mxu0 0
        %2074 = vmatpush.bf16.msra.mxu0 0
        %2075 = vmatpush.bf16.msra.mxu0 0
        %2076 = vmatpush.bf16.msra.mxu0 %v1416
        %2077 = vmatmul.bf16.gmra.mxu0 %v1367
        %v2078 = vpop.f32.mrf.mxu0
        %v2079 = vadd.f32 %v2010, %v2078
        %v2080 = vpop.f32.mrf.mxu0
        %v2081 = vadd.f32 %v2012, %v2080
        %2082 = vmatmul.bf16.gmra.mxu0 %v1370
        %v2083 = vpop.f32.mrf.mxu0
        %v2084 = vadd.f32 %v2015, %v2083
        %v2085 = vpop.f32.mrf.mxu0
        %v2086 = vadd.f32 %v2017, %v2085
        %2087 = vmatmul.bf16.gmra.mxu0 %v1373
        %v2088 = vpop.f32.mrf.mxu0
        %v2089 = vadd.f32 %v2020, %v2088
        %v2090 = vpop.f32.mrf.mxu0
        %v2091 = vadd.f32 %v2022, %v2090
        %2092 = vmatmul.bf16.gmra.mxu0 %v1376
        %v2093 = vpop.f32.mrf.mxu0
        %v2094 = vadd.f32 %v2025, %v2093
        %v2095 = vpop.f32.mrf.mxu0
        %v2096 = vadd.f32 %v2027, %v2095
        %2097 = vmatmul.bf16.gmra.mxu0 %v1379
        %v2098 = vpop.f32.mrf.mxu0
        %v2099 = vadd.f32 %v2030, %v2098
        %v2100 = vpop.f32.mrf.mxu0
        %v2101 = vadd.f32 %v2032, %v2100
        %2102 = vmatmul.bf16.gmra.mxu0 %v1382
        %v2103 = vpop.f32.mrf.mxu0
        %v2104 = vadd.f32 %v2035, %v2103
        %v2105 = vpop.f32.mrf.mxu0
        %v2106 = vadd.f32 %v2037, %v2105
        %2107 = vmatmul.bf16.gmra.mxu0 %v1385
        %v2108 = vpop.f32.mrf.mxu0
        %v2109 = vadd.f32 %v2040, %v2108
        %v2110 = vpop.f32.mrf.mxu0
        %v2111 = vadd.f32 %v2042, %v2110
        %2112 = vmatmul.bf16.gmra.mxu0 %v1388
        %v2113 = vpop.f32.mrf.mxu0
        %v2114 = vadd.f32 %v2045, %v2113
        %v2115 = vpop.f32.mrf.mxu0
        %v2116 = vadd.f32 %v2047, %v2115
        %2117 = vmatmul.bf16.gmra.mxu0 %v1391
        %v2118 = vpop.f32.mrf.mxu0
        %v2119 = vadd.f32 %v2050, %v2118
        %v2120 = vpop.f32.mrf.mxu0
        %v2121 = vadd.f32 %v2052, %v2120
        %2122 = vmatmul.bf16.gmra.mxu0 %v1394
        %v2123 = vpop.f32.mrf.mxu0
        %v2124 = vadd.f32 %v2055, %v2123
        %v2125 = vpop.f32.mrf.mxu0
        %v2126 = vadd.f32 %v2057, %v2125
        %2127 = vmatmul.bf16.gmra.mxu0 %v1397
        %v2128 = vpop.f32.mrf.mxu0
        %v2129 = vadd.f32 %v2060, %v2128
        %v2130 = vpop.f32.mrf.mxu0
        %v2131 = vadd.f32 %v2062, %v2130
        %2132 = vmatmul.bf16.gmra.mxu0 %v1400
        %v2133 = vpop.f32.mrf.mxu0
        %v2134 = vadd.f32 %v2065, %v2133
        %v2135 = vpop.f32.mrf.mxu0
        %v2136 = vadd.f32 %v2067, %v2135
        %2137 = vdwg.mxu0
        %2138 = vmatpush.bf16.msra.mxu0 %v1220
        %2139 = vmatpush.bf16.msra.mxu0 %v1205
        %2140 = vmatpush.bf16.msra.mxu0 %v1190
        %2141 = vmatpush.bf16.msra.mxu0 %v1175
        %2142 = vmatpush.bf16.msra.mxu0 %v1160
        %2143 = vmatpush.bf16.msra.mxu0 %v1145
        %2144 = vmatpush.bf16.msra.mxu0 %v1130
        %2145 = vmatpush.bf16.msra.mxu0 %v1115
        %2146 = vmatmul.bf16.gmra.mxu0 %v494
        %v2147 = vpop.f32.mrf.mxu0
        %v2148 = vadd.f32 %v671, %v2147
        %v2149 = vpop.f32.mrf.mxu0
        %v2150 = vadd.f32 %v671, %v2149
        %2151 = vmatmul.bf16.gmra.mxu0 %v496
        %v2152 = vpop.f32.mrf.mxu0
        %v2153 = vadd.f32 %v671, %v2152
        %v2154 = vpop.f32.mrf.mxu0
        %v2155 = vadd.f32 %v671, %v2154
        %2156 = vmatmul.bf16.gmra.mxu0 %v498
        %v2157 = vpop.f32.mrf.mxu0
        %v2158 = vadd.f32 %v671, %v2157
        %v2159 = vpop.f32.mrf.mxu0
        %v2160 = vadd.f32 %v671, %v2159
        %2161 = vmatmul.bf16.gmra.mxu0 %v500
        %v2162 = vpop.f32.mrf.mxu0
        %v2163 = vadd.f32 %v671, %v2162
        %v2164 = vpop.f32.mrf.mxu0
        %v2165 = vadd.f32 %v671, %v2164
        %2166 = vmatmul.bf16.gmra.mxu0 %v502
        %v2167 = vpop.f32.mrf.mxu0
        %v2168 = vadd.f32 %v671, %v2167
        %v2169 = vpop.f32.mrf.mxu0
        %v2170 = vadd.f32 %v671, %v2169
        %2171 = vmatmul.bf16.gmra.mxu0 %v504
        %v2172 = vpop.f32.mrf.mxu0
        %v2173 = vadd.f32 %v671, %v2172
        %v2174 = vpop.f32.mrf.mxu0
        %v2175 = vadd.f32 %v671, %v2174
        %2176 = vmatmul.bf16.gmra.mxu0 %v506
        %v2177 = vpop.f32.mrf.mxu0
        %v2178 = vadd.f32 %v671, %v2177
        %v2179 = vpop.f32.mrf.mxu0
        %v2180 = vadd.f32 %v671, %v2179
        %2181 = vmatmul.bf16.gmra.mxu0 %v508
        %v2182 = vpop.f32.mrf.mxu0
        %v2183 = vadd.f32 %v671, %v2182
        %v2184 = vpop.f32.mrf.mxu0
        %v2185 = vadd.f32 %v671, %v2184
        %2186 = vmatmul.bf16.gmra.mxu0 %v510
        %v2187 = vpop.f32.mrf.mxu0
        %v2188 = vadd.f32 %v671, %v2187
        %v2189 = vpop.f32.mrf.mxu0
        %v2190 = vadd.f32 %v671, %v2189
        %2191 = vmatmul.bf16.gmra.mxu0 %v512
        %v2192 = vpop.f32.mrf.mxu0
        %v2193 = vadd.f32 %v671, %v2192
        %v2194 = vpop.f32.mrf.mxu0
        %v2195 = vadd.f32 %v671, %v2194
        %2196 = vmatmul.bf16.gmra.mxu0 %v514
        %v2197 = vpop.f32.mrf.mxu0
        %v2198 = vadd.f32 %v671, %v2197
        %v2199 = vpop.f32.mrf.mxu0
        %v2200 = vadd.f32 %v671, %v2199
        %2201 = vmatmul.bf16.gmra.mxu0 %v516
        %v2202 = vpop.f32.mrf.mxu0
        %v2203 = vadd.f32 %v671, %v2202
        %v2204 = vpop.f32.mrf.mxu0
        %v2205 = vadd.f32 %v671, %v2204
        %2206 = vdwg.mxu0
        %2207 = vmatpush.bf16.msra.mxu0 0
        %2208 = vmatpush.bf16.msra.mxu0 0
        %2209 = vmatpush.bf16.msra.mxu0 0
        %2210 = vmatpush.bf16.msra.mxu0 0
        %2211 = vmatpush.bf16.msra.mxu0 0
        %2212 = vmatpush.bf16.msra.mxu0 0
        %2213 = vmatpush.bf16.msra.mxu0 0
        %2214 = vmatpush.bf16.msra.mxu0 %v1419
        %2215 = vmatmul.bf16.gmra.mxu0 %v1367
        %v2216 = vpop.f32.mrf.mxu0
        %v2217 = vadd.f32 %v2148, %v2216
        %v2218 = vpop.f32.mrf.mxu0
        %v2219 = vadd.f32 %v2150, %v2218
        %2220 = vmatmul.bf16.gmra.mxu0 %v1370
        %v2221 = vpop.f32.mrf.mxu0
        %v2222 = vadd.f32 %v2153, %v2221
        %v2223 = vpop.f32.mrf.mxu0
        %v2224 = vadd.f32 %v2155, %v2223
        %2225 = vmatmul.bf16.gmra.mxu0 %v1373
        %v2226 = vpop.f32.mrf.mxu0
        %v2227 = vadd.f32 %v2158, %v2226
        %v2228 = vpop.f32.mrf.mxu0
        %v2229 = vadd.f32 %v2160, %v2228
        %2230 = vmatmul.bf16.gmra.mxu0 %v1376
        %v2231 = vpop.f32.mrf.mxu0
        %v2232 = vadd.f32 %v2163, %v2231
        %v2233 = vpop.f32.mrf.mxu0
        %v2234 = vadd.f32 %v2165, %v2233
        %2235 = vmatmul.bf16.gmra.mxu0 %v1379
        %v2236 = vpop.f32.mrf.mxu0
        %v2237 = vadd.f32 %v2168, %v2236
        %v2238 = vpop.f32.mrf.mxu0
        %v2239 = vadd.f32 %v2170, %v2238
        %2240 = vmatmul.bf16.gmra.mxu0 %v1382
        %v2241 = vpop.f32.mrf.mxu0
        %v2242 = vadd.f32 %v2173, %v2241
        %v2243 = vpop.f32.mrf.mxu0
        %v2244 = vadd.f32 %v2175, %v2243
        %2245 = vmatmul.bf16.gmra.mxu0 %v1385
        %v2246 = vpop.f32.mrf.mxu0
        %v2247 = vadd.f32 %v2178, %v2246
        %v2248 = vpop.f32.mrf.mxu0
        %v2249 = vadd.f32 %v2180, %v2248
        %2250 = vmatmul.bf16.gmra.mxu0 %v1388
        %v2251 = vpop.f32.mrf.mxu0
        %v2252 = vadd.f32 %v2183, %v2251
        %v2253 = vpop.f32.mrf.mxu0
        %v2254 = vadd.f32 %v2185, %v2253
        %2255 = vmatmul.bf16.gmra.mxu0 %v1391
        %v2256 = vpop.f32.mrf.mxu0
        %v2257 = vadd.f32 %v2188, %v2256
        %v2258 = vpop.f32.mrf.mxu0
        %v2259 = vadd.f32 %v2190, %v2258
        %2260 = vmatmul.bf16.gmra.mxu0 %v1394
        %v2261 = vpop.f32.mrf.mxu0
        %v2262 = vadd.f32 %v2193, %v2261
        %v2263 = vpop.f32.mrf.mxu0
        %v2264 = vadd.f32 %v2195, %v2263
        %2265 = vmatmul.bf16.gmra.mxu0 %v1397
        %v2266 = vpop.f32.mrf.mxu0
        %v2267 = vadd.f32 %v2198, %v2266
        %v2268 = vpop.f32.mrf.mxu0
        %v2269 = vadd.f32 %v2200, %v2268
        %2270 = vmatmul.bf16.gmra.mxu0 %v1400
        %v2271 = vpop.f32.mrf.mxu0
        %v2272 = vadd.f32 %v2203, %v2271
        %v2273 = vpop.f32.mrf.mxu0
        %v2274 = vadd.f32 %v2205, %v2273
        %2275 = vdwg.mxu0
        %2276 = vmatpush.bf16.msra.mxu0 %v1221
        %2277 = vmatpush.bf16.msra.mxu0 %v1206
        %2278 = vmatpush.bf16.msra.mxu0 %v1191
        %2279 = vmatpush.bf16.msra.mxu0 %v1176
        %2280 = vmatpush.bf16.msra.mxu0 %v1161
        %2281 = vmatpush.bf16.msra.mxu0 %v1146
        %2282 = vmatpush.bf16.msra.mxu0 %v1131
        %2283 = vmatpush.bf16.msra.mxu0 %v1116
        %2284 = vmatmul.bf16.gmra.mxu0 %v494
        %v2285 = vpop.f32.mrf.mxu0
        %v2286 = vadd.f32 %v672, %v2285
        %v2287 = vpop.f32.mrf.mxu0
        %v2288 = vadd.f32 %v672, %v2287
        %2289 = vmatmul.bf16.gmra.mxu0 %v496
        %v2290 = vpop.f32.mrf.mxu0
        %v2291 = vadd.f32 %v672, %v2290
        %v2292 = vpop.f32.mrf.mxu0
        %v2293 = vadd.f32 %v672, %v2292
        %2294 = vmatmul.bf16.gmra.mxu0 %v498
        %v2295 = vpop.f32.mrf.mxu0
        %v2296 = vadd.f32 %v672, %v2295
        %v2297 = vpop.f32.mrf.mxu0
        %v2298 = vadd.f32 %v672, %v2297
        %2299 = vmatmul.bf16.gmra.mxu0 %v500
        %v2300 = vpop.f32.mrf.mxu0
        %v2301 = vadd.f32 %v672, %v2300
        %v2302 = vpop.f32.mrf.mxu0
        %v2303 = vadd.f32 %v672, %v2302
        %2304 = vmatmul.bf16.gmra.mxu0 %v502
        %v2305 = vpop.f32.mrf.mxu0
        %v2306 = vadd.f32 %v672, %v2305
        %v2307 = vpop.f32.mrf.mxu0
        %v2308 = vadd.f32 %v672, %v2307
        %2309 = vmatmul.bf16.gmra.mxu0 %v504
        %v2310 = vpop.f32.mrf.mxu0
        %v2311 = vadd.f32 %v672, %v2310
        %v2312 = vpop.f32.mrf.mxu0
        %v2313 = vadd.f32 %v672, %v2312
        %2314 = vmatmul.bf16.gmra.mxu0 %v506
        %v2315 = vpop.f32.mrf.mxu0
        %v2316 = vadd.f32 %v672, %v2315
        %v2317 = vpop.f32.mrf.mxu0
        %v2318 = vadd.f32 %v672, %v2317
        %2319 = vmatmul.bf16.gmra.mxu0 %v508
        %v2320 = vpop.f32.mrf.mxu0
        %v2321 = vadd.f32 %v672, %v2320
        %v2322 = vpop.f32.mrf.mxu0
        %v2323 = vadd.f32 %v672, %v2322
        %2324 = vmatmul.bf16.gmra.mxu0 %v510
        %v2325 = vpop.f32.mrf.mxu0
        %v2326 = vadd.f32 %v672, %v2325
        %v2327 = vpop.f32.mrf.mxu0
        %v2328 = vadd.f32 %v672, %v2327
        %2329 = vmatmul.bf16.gmra.mxu0 %v512
        %v2330 = vpop.f32.mrf.mxu0
        %v2331 = vadd.f32 %v672, %v2330
        %v2332 = vpop.f32.mrf.mxu0
        %v2333 = vadd.f32 %v672, %v2332
        %2334 = vmatmul.bf16.gmra.mxu0 %v514
        %v2335 = vpop.f32.mrf.mxu0
        %v2336 = vadd.f32 %v672, %v2335
        %v2337 = vpop.f32.mrf.mxu0
        %v2338 = vadd.f32 %v672, %v2337
        %2339 = vmatmul.bf16.gmra.mxu0 %v516
        %v2340 = vpop.f32.mrf.mxu0
        %v2341 = vadd.f32 %v672, %v2340
        %v2342 = vpop.f32.mrf.mxu0
        %v2343 = vadd.f32 %v672, %v2342
        %2344 = vdwg.mxu0
        %2345 = vmatpush.bf16.msra.mxu0 0
        %2346 = vmatpush.bf16.msra.mxu0 0
        %2347 = vmatpush.bf16.msra.mxu0 0
        %2348 = vmatpush.bf16.msra.mxu0 0
        %2349 = vmatpush.bf16.msra.mxu0 0
        %2350 = vmatpush.bf16.msra.mxu0 0
        %2351 = vmatpush.bf16.msra.mxu0 0
        %2352 = vmatpush.bf16.msra.mxu0 %v1422
        %2353 = vmatmul.bf16.gmra.mxu0 %v1367
        %v2354 = vpop.f32.mrf.mxu0
        %v2355 = vadd.f32 %v2286, %v2354
        %v2356 = vpop.f32.mrf.mxu0
        %v2357 = vadd.f32 %v2288, %v2356
        %2358 = vmatmul.bf16.gmra.mxu0 %v1370
        %v2359 = vpop.f32.mrf.mxu0
        %v2360 = vadd.f32 %v2291, %v2359
        %v2361 = vpop.f32.mrf.mxu0
        %v2362 = vadd.f32 %v2293, %v2361
        %2363 = vmatmul.bf16.gmra.mxu0 %v1373
        %v2364 = vpop.f32.mrf.mxu0
        %v2365 = vadd.f32 %v2296, %v2364
        %v2366 = vpop.f32.mrf.mxu0
        %v2367 = vadd.f32 %v2298, %v2366
        %2368 = vmatmul.bf16.gmra.mxu0 %v1376
        %v2369 = vpop.f32.mrf.mxu0
        %v2370 = vadd.f32 %v2301, %v2369
        %v2371 = vpop.f32.mrf.mxu0
        %v2372 = vadd.f32 %v2303, %v2371
        %2373 = vmatmul.bf16.gmra.mxu0 %v1379
        %v2374 = vpop.f32.mrf.mxu0
        %v2375 = vadd.f32 %v2306, %v2374
        %v2376 = vpop.f32.mrf.mxu0
        %v2377 = vadd.f32 %v2308, %v2376
        %2378 = vmatmul.bf16.gmra.mxu0 %v1382
        %v2379 = vpop.f32.mrf.mxu0
        %v2380 = vadd.f32 %v2311, %v2379
        %v2381 = vpop.f32.mrf.mxu0
        %v2382 = vadd.f32 %v2313, %v2381
        %2383 = vmatmul.bf16.gmra.mxu0 %v1385
        %v2384 = vpop.f32.mrf.mxu0
        %v2385 = vadd.f32 %v2316, %v2384
        %v2386 = vpop.f32.mrf.mxu0
        %v2387 = vadd.f32 %v2318, %v2386
        %2388 = vmatmul.bf16.gmra.mxu0 %v1388
        %v2389 = vpop.f32.mrf.mxu0
        %v2390 = vadd.f32 %v2321, %v2389
        %v2391 = vpop.f32.mrf.mxu0
        %v2392 = vadd.f32 %v2323, %v2391
        %2393 = vmatmul.bf16.gmra.mxu0 %v1391
        %v2394 = vpop.f32.mrf.mxu0
        %v2395 = vadd.f32 %v2326, %v2394
        %v2396 = vpop.f32.mrf.mxu0
        %v2397 = vadd.f32 %v2328, %v2396
        %2398 = vmatmul.bf16.gmra.mxu0 %v1394
        %v2399 = vpop.f32.mrf.mxu0
        %v2400 = vadd.f32 %v2331, %v2399
        %v2401 = vpop.f32.mrf.mxu0
        %v2402 = vadd.f32 %v2333, %v2401
        %2403 = vmatmul.bf16.gmra.mxu0 %v1397
        %v2404 = vpop.f32.mrf.mxu0
        %v2405 = vadd.f32 %v2336, %v2404
        %v2406 = vpop.f32.mrf.mxu0
        %v2407 = vadd.f32 %v2338, %v2406
        %2408 = vmatmul.bf16.gmra.mxu0 %v1400
        %v2409 = vpop.f32.mrf.mxu0
        %v2410 = vadd.f32 %v2341, %v2409
        %v2411 = vpop.f32.mrf.mxu0
        %v2412 = vadd.f32 %v2343, %v2411
        %2413 = vdwg.mxu0
        %2414 = vmatpush.bf16.msra.mxu0 %v1222
        %2415 = vmatpush.bf16.msra.mxu0 %v1207
        %2416 = vmatpush.bf16.msra.mxu0 %v1192
        %2417 = vmatpush.bf16.msra.mxu0 %v1177
        %2418 = vmatpush.bf16.msra.mxu0 %v1162
        %2419 = vmatpush.bf16.msra.mxu0 %v1147
        %2420 = vmatpush.bf16.msra.mxu0 %v1132
        %2421 = vmatpush.bf16.msra.mxu0 %v1117
        %2422 = vmatmul.bf16.gmra.mxu0 %v494
        %v2423 = vpop.f32.mrf.mxu0
        %v2424 = vadd.f32 %v673, %v2423
        %v2425 = vpop.f32.mrf.mxu0
        %v2426 = vadd.f32 %v673, %v2425
        %2427 = vmatmul.bf16.gmra.mxu0 %v496
        %v2428 = vpop.f32.mrf.mxu0
        %v2429 = vadd.f32 %v673, %v2428
        %v2430 = vpop.f32.mrf.mxu0
        %v2431 = vadd.f32 %v673, %v2430
        %2432 = vmatmul.bf16.gmra.mxu0 %v498
        %v2433 = vpop.f32.mrf.mxu0
        %v2434 = vadd.f32 %v673, %v2433
        %v2435 = vpop.f32.mrf.mxu0
        %v2436 = vadd.f32 %v673, %v2435
        %2437 = vmatmul.bf16.gmra.mxu0 %v500
        %v2438 = vpop.f32.mrf.mxu0
        %v2439 = vadd.f32 %v673, %v2438
        %v2440 = vpop.f32.mrf.mxu0
        %v2441 = vadd.f32 %v673, %v2440
        %2442 = vmatmul.bf16.gmra.mxu0 %v502
        %v2443 = vpop.f32.mrf.mxu0
        %v2444 = vadd.f32 %v673, %v2443
        %v2445 = vpop.f32.mrf.mxu0
        %v2446 = vadd.f32 %v673, %v2445
        %2447 = vmatmul.bf16.gmra.mxu0 %v504
        %v2448 = vpop.f32.mrf.mxu0
        %v2449 = vadd.f32 %v673, %v2448
        %v2450 = vpop.f32.mrf.mxu0
        %v2451 = vadd.f32 %v673, %v2450
        %2452 = vmatmul.bf16.gmra.mxu0 %v506
        %v2453 = vpop.f32.mrf.mxu0
        %v2454 = vadd.f32 %v673, %v2453
        %v2455 = vpop.f32.mrf.mxu0
        %v2456 = vadd.f32 %v673, %v2455
        %2457 = vmatmul.bf16.gmra.mxu0 %v508
        %v2458 = vpop.f32.mrf.mxu0
        %v2459 = vadd.f32 %v673, %v2458
        %v2460 = vpop.f32.mrf.mxu0
        %v2461 = vadd.f32 %v673, %v2460
        %2462 = vmatmul.bf16.gmra.mxu0 %v510
        %v2463 = vpop.f32.mrf.mxu0
        %v2464 = vadd.f32 %v673, %v2463
        %v2465 = vpop.f32.mrf.mxu0
        %v2466 = vadd.f32 %v673, %v2465
        %2467 = vmatmul.bf16.gmra.mxu0 %v512
        %v2468 = vpop.f32.mrf.mxu0
        %v2469 = vadd.f32 %v673, %v2468
        %v2470 = vpop.f32.mrf.mxu0
        %v2471 = vadd.f32 %v673, %v2470
        %2472 = vmatmul.bf16.gmra.mxu0 %v514
        %v2473 = vpop.f32.mrf.mxu0
        %v2474 = vadd.f32 %v673, %v2473
        %v2475 = vpop.f32.mrf.mxu0
        %v2476 = vadd.f32 %v673, %v2475
        %2477 = vmatmul.bf16.gmra.mxu0 %v516
        %v2478 = vpop.f32.mrf.mxu0
        %v2479 = vadd.f32 %v673, %v2478
        %v2480 = vpop.f32.mrf.mxu0
        %v2481 = vadd.f32 %v673, %v2480
        %2482 = vdwg.mxu0
        %2483 = vmatpush.bf16.msra.mxu0 0
        %2484 = vmatpush.bf16.msra.mxu0 0
        %2485 = vmatpush.bf16.msra.mxu0 0
        %2486 = vmatpush.bf16.msra.mxu0 0
        %2487 = vmatpush.bf16.msra.mxu0 0
        %2488 = vmatpush.bf16.msra.mxu0 0
        %2489 = vmatpush.bf16.msra.mxu0 0
        %2490 = vmatpush.bf16.msra.mxu0 %v1425
        %2491 = vmatmul.bf16.gmra.mxu0 %v1367
        %v2492 = vpop.f32.mrf.mxu0
        %v2493 = vadd.f32 %v2424, %v2492
        %v2494 = vpop.f32.mrf.mxu0
        %v2495 = vadd.f32 %v2426, %v2494
        %2496 = vmatmul.bf16.gmra.mxu0 %v1370
        %v2497 = vpop.f32.mrf.mxu0
        %v2498 = vadd.f32 %v2429, %v2497
        %v2499 = vpop.f32.mrf.mxu0
        %v2500 = vadd.f32 %v2431, %v2499
        %2501 = vmatmul.bf16.gmra.mxu0 %v1373
        %v2502 = vpop.f32.mrf.mxu0
        %v2503 = vadd.f32 %v2434, %v2502
        %v2504 = vpop.f32.mrf.mxu0
        %v2505 = vadd.f32 %v2436, %v2504
        %2506 = vmatmul.bf16.gmra.mxu0 %v1376
        %v2507 = vpop.f32.mrf.mxu0
        %v2508 = vadd.f32 %v2439, %v2507
        %v2509 = vpop.f32.mrf.mxu0
        %v2510 = vadd.f32 %v2441, %v2509
        %2511 = vmatmul.bf16.gmra.mxu0 %v1379
        %v2512 = vpop.f32.mrf.mxu0
        %v2513 = vadd.f32 %v2444, %v2512
        %v2514 = vpop.f32.mrf.mxu0
        %v2515 = vadd.f32 %v2446, %v2514
        %2516 = vmatmul.bf16.gmra.mxu0 %v1382
        %v2517 = vpop.f32.mrf.mxu0
        %v2518 = vadd.f32 %v2449, %v2517
        %v2519 = vpop.f32.mrf.mxu0
        %v2520 = vadd.f32 %v2451, %v2519
        %2521 = vmatmul.bf16.gmra.mxu0 %v1385
        %v2522 = vpop.f32.mrf.mxu0
        %v2523 = vadd.f32 %v2454, %v2522
        %v2524 = vpop.f32.mrf.mxu0
        %v2525 = vadd.f32 %v2456, %v2524
        %2526 = vmatmul.bf16.gmra.mxu0 %v1388
        %v2527 = vpop.f32.mrf.mxu0
        %v2528 = vadd.f32 %v2459, %v2527
        %v2529 = vpop.f32.mrf.mxu0
        %v2530 = vadd.f32 %v2461, %v2529
        %2531 = vmatmul.bf16.gmra.mxu0 %v1391
        %v2532 = vpop.f32.mrf.mxu0
        %v2533 = vadd.f32 %v2464, %v2532
        %v2534 = vpop.f32.mrf.mxu0
        %v2535 = vadd.f32 %v2466, %v2534
        %2536 = vmatmul.bf16.gmra.mxu0 %v1394
        %v2537 = vpop.f32.mrf.mxu0
        %v2538 = vadd.f32 %v2469, %v2537
        %v2539 = vpop.f32.mrf.mxu0
        %v2540 = vadd.f32 %v2471, %v2539
        %2541 = vmatmul.bf16.gmra.mxu0 %v1397
        %v2542 = vpop.f32.mrf.mxu0
        %v2543 = vadd.f32 %v2474, %v2542
        %v2544 = vpop.f32.mrf.mxu0
        %v2545 = vadd.f32 %v2476, %v2544
        %2546 = vmatmul.bf16.gmra.mxu0 %v1400
        %v2547 = vpop.f32.mrf.mxu0
        %v2548 = vadd.f32 %v2479, %v2547
        %v2549 = vpop.f32.mrf.mxu0
        %v2550 = vadd.f32 %v2481, %v2549
        %2551 = vdwg.mxu0
        %2552 = vmatpush.bf16.msra.mxu0 %v1223
        %2553 = vmatpush.bf16.msra.mxu0 %v1208
        %2554 = vmatpush.bf16.msra.mxu0 %v1193
        %2555 = vmatpush.bf16.msra.mxu0 %v1178
        %2556 = vmatpush.bf16.msra.mxu0 %v1163
        %2557 = vmatpush.bf16.msra.mxu0 %v1148
        %2558 = vmatpush.bf16.msra.mxu0 %v1133
        %2559 = vmatpush.bf16.msra.mxu0 %v1118
        %2560 = vmatmul.bf16.gmra.mxu0 %v494
        %v2561 = vpop.f32.mrf.mxu0
        %v2562 = vadd.f32 %v674, %v2561
        %v2563 = vpop.f32.mrf.mxu0
        %v2564 = vadd.f32 %v674, %v2563
        %2565 = vmatmul.bf16.gmra.mxu0 %v496
        %v2566 = vpop.f32.mrf.mxu0
        %v2567 = vadd.f32 %v674, %v2566
        %v2568 = vpop.f32.mrf.mxu0
        %v2569 = vadd.f32 %v674, %v2568
        %2570 = vmatmul.bf16.gmra.mxu0 %v498
        %v2571 = vpop.f32.mrf.mxu0
        %v2572 = vadd.f32 %v674, %v2571
        %v2573 = vpop.f32.mrf.mxu0
        %v2574 = vadd.f32 %v674, %v2573
        %2575 = vmatmul.bf16.gmra.mxu0 %v500
        %v2576 = vpop.f32.mrf.mxu0
        %v2577 = vadd.f32 %v674, %v2576
        %v2578 = vpop.f32.mrf.mxu0
        %v2579 = vadd.f32 %v674, %v2578
        %2580 = vmatmul.bf16.gmra.mxu0 %v502
        %v2581 = vpop.f32.mrf.mxu0
        %v2582 = vadd.f32 %v674, %v2581
        %v2583 = vpop.f32.mrf.mxu0
        %v2584 = vadd.f32 %v674, %v2583
        %2585 = vmatmul.bf16.gmra.mxu0 %v504
        %v2586 = vpop.f32.mrf.mxu0
        %v2587 = vadd.f32 %v674, %v2586
        %v2588 = vpop.f32.mrf.mxu0
        %v2589 = vadd.f32 %v674, %v2588
        %2590 = vmatmul.bf16.gmra.mxu0 %v506
        %v2591 = vpop.f32.mrf.mxu0
        %v2592 = vadd.f32 %v674, %v2591
        %v2593 = vpop.f32.mrf.mxu0
        %v2594 = vadd.f32 %v674, %v2593
        %2595 = vmatmul.bf16.gmra.mxu0 %v508
        %v2596 = vpop.f32.mrf.mxu0
        %v2597 = vadd.f32 %v674, %v2596
        %v2598 = vpop.f32.mrf.mxu0
        %v2599 = vadd.f32 %v674, %v2598
        %2600 = vmatmul.bf16.gmra.mxu0 %v510
        %v2601 = vpop.f32.mrf.mxu0
        %v2602 = vadd.f32 %v674, %v2601
        %v2603 = vpop.f32.mrf.mxu0
        %v2604 = vadd.f32 %v674, %v2603
        %2605 = vmatmul.bf16.gmra.mxu0 %v512
        %v2606 = vpop.f32.mrf.mxu0
        %v2607 = vadd.f32 %v674, %v2606
        %v2608 = vpop.f32.mrf.mxu0
        %v2609 = vadd.f32 %v674, %v2608
        %2610 = vmatmul.bf16.gmra.mxu0 %v514
        %v2611 = vpop.f32.mrf.mxu0
        %v2612 = vadd.f32 %v674, %v2611
        %v2613 = vpop.f32.mrf.mxu0
        %v2614 = vadd.f32 %v674, %v2613
        %2615 = vmatmul.bf16.gmra.mxu0 %v516
        %v2616 = vpop.f32.mrf.mxu0
        %v2617 = vadd.f32 %v674, %v2616
        %v2618 = vpop.f32.mrf.mxu0
        %v2619 = vadd.f32 %v674, %v2618
        %2620 = vdwg.mxu0
        %2621 = vmatpush.bf16.msra.mxu0 0
        %2622 = vmatpush.bf16.msra.mxu0 0
        %2623 = vmatpush.bf16.msra.mxu0 0
        %2624 = vmatpush.bf16.msra.mxu0 0
        %2625 = vmatpush.bf16.msra.mxu0 0
        %2626 = vmatpush.bf16.msra.mxu0 0
        %2627 = vmatpush.bf16.msra.mxu0 0
        %2628 = vmatpush.bf16.msra.mxu0 %v1428
        %2629 = vmatmul.bf16.gmra.mxu0 %v1367
        %v2630 = vpop.f32.mrf.mxu0
        %v2631 = vadd.f32 %v2562, %v2630
        %v2632 = vpop.f32.mrf.mxu0
        %v2633 = vadd.f32 %v2564, %v2632
        %2634 = vmatmul.bf16.gmra.mxu0 %v1370
        %v2635 = vpop.f32.mrf.mxu0
        %v2636 = vadd.f32 %v2567, %v2635
        %v2637 = vpop.f32.mrf.mxu0
        %v2638 = vadd.f32 %v2569, %v2637
        %2639 = vmatmul.bf16.gmra.mxu0 %v1373
        %v2640 = vpop.f32.mrf.mxu0
        %v2641 = vadd.f32 %v2572, %v2640
        %v2642 = vpop.f32.mrf.mxu0
        %v2643 = vadd.f32 %v2574, %v2642
        %2644 = vmatmul.bf16.gmra.mxu0 %v1376
        %v2645 = vpop.f32.mrf.mxu0
        %v2646 = vadd.f32 %v2577, %v2645
        %v2647 = vpop.f32.mrf.mxu0
        %v2648 = vadd.f32 %v2579, %v2647
        %2649 = vmatmul.bf16.gmra.mxu0 %v1379
        %v2650 = vpop.f32.mrf.mxu0
        %v2651 = vadd.f32 %v2582, %v2650
        %v2652 = vpop.f32.mrf.mxu0
        %v2653 = vadd.f32 %v2584, %v2652
        %2654 = vmatmul.bf16.gmra.mxu0 %v1382
        %v2655 = vpop.f32.mrf.mxu0
        %v2656 = vadd.f32 %v2587, %v2655
        %v2657 = vpop.f32.mrf.mxu0
        %v2658 = vadd.f32 %v2589, %v2657
        %2659 = vmatmul.bf16.gmra.mxu0 %v1385
        %v2660 = vpop.f32.mrf.mxu0
        %v2661 = vadd.f32 %v2592, %v2660
        %v2662 = vpop.f32.mrf.mxu0
        %v2663 = vadd.f32 %v2594, %v2662
        %2664 = vmatmul.bf16.gmra.mxu0 %v1388
        %v2665 = vpop.f32.mrf.mxu0
        %v2666 = vadd.f32 %v2597, %v2665
        %v2667 = vpop.f32.mrf.mxu0
        %v2668 = vadd.f32 %v2599, %v2667
        %2669 = vmatmul.bf16.gmra.mxu0 %v1391
        %v2670 = vpop.f32.mrf.mxu0
        %v2671 = vadd.f32 %v2602, %v2670
        %v2672 = vpop.f32.mrf.mxu0
        %v2673 = vadd.f32 %v2604, %v2672
        %2674 = vmatmul.bf16.gmra.mxu0 %v1394
        %v2675 = vpop.f32.mrf.mxu0
        %v2676 = vadd.f32 %v2607, %v2675
        %v2677 = vpop.f32.mrf.mxu0
        %v2678 = vadd.f32 %v2609, %v2677
        %2679 = vmatmul.bf16.gmra.mxu0 %v1397
        %v2680 = vpop.f32.mrf.mxu0
        %v2681 = vadd.f32 %v2612, %v2680
        %v2682 = vpop.f32.mrf.mxu0
        %v2683 = vadd.f32 %v2614, %v2682
        %2684 = vmatmul.bf16.gmra.mxu0 %v1400
        %v2685 = vpop.f32.mrf.mxu0
        %v2686 = vadd.f32 %v2617, %v2685
        %v2687 = vpop.f32.mrf.mxu0
        %v2688 = vadd.f32 %v2619, %v2687
        %2689 = vdwg.mxu0
        %2690 = vmatpush.bf16.msra.mxu0 %v1224
        %2691 = vmatpush.bf16.msra.mxu0 %v1209
        %2692 = vmatpush.bf16.msra.mxu0 %v1194
        %2693 = vmatpush.bf16.msra.mxu0 %v1179
        %2694 = vmatpush.bf16.msra.mxu0 %v1164
        %2695 = vmatpush.bf16.msra.mxu0 %v1149
        %2696 = vmatpush.bf16.msra.mxu0 %v1134
        %2697 = vmatpush.bf16.msra.mxu0 %v1119
        %2698 = vmatmul.bf16.gmra.mxu0 %v494
        %v2699 = vpop.f32.mrf.mxu0
        %v2700 = vadd.f32 %v675, %v2699
        %v2701 = vpop.f32.mrf.mxu0
        %v2702 = vadd.f32 %v675, %v2701
        %2703 = vmatmul.bf16.gmra.mxu0 %v496
        %v2704 = vpop.f32.mrf.mxu0
        %v2705 = vadd.f32 %v675, %v2704
        %v2706 = vpop.f32.mrf.mxu0
        %v2707 = vadd.f32 %v675, %v2706
        %2708 = vmatmul.bf16.gmra.mxu0 %v498
        %v2709 = vpop.f32.mrf.mxu0
        %v2710 = vadd.f32 %v675, %v2709
        %v2711 = vpop.f32.mrf.mxu0
        %v2712 = vadd.f32 %v675, %v2711
        %2713 = vmatmul.bf16.gmra.mxu0 %v500
        %v2714 = vpop.f32.mrf.mxu0
        %v2715 = vadd.f32 %v675, %v2714
        %v2716 = vpop.f32.mrf.mxu0
        %v2717 = vadd.f32 %v675, %v2716
        %2718 = vmatmul.bf16.gmra.mxu0 %v502
        %v2719 = vpop.f32.mrf.mxu0
        %v2720 = vadd.f32 %v675, %v2719
        %v2721 = vpop.f32.mrf.mxu0
        %v2722 = vadd.f32 %v675, %v2721
        %2723 = vmatmul.bf16.gmra.mxu0 %v504
        %v2724 = vpop.f32.mrf.mxu0
        %v2725 = vadd.f32 %v675, %v2724
        %v2726 = vpop.f32.mrf.mxu0
        %v2727 = vadd.f32 %v675, %v2726
        %2728 = vmatmul.bf16.gmra.mxu0 %v506
        %v2729 = vpop.f32.mrf.mxu0
        %v2730 = vadd.f32 %v675, %v2729
        %v2731 = vpop.f32.mrf.mxu0
        %v2732 = vadd.f32 %v675, %v2731
        %2733 = vmatmul.bf16.gmra.mxu0 %v508
        %v2734 = vpop.f32.mrf.mxu0
        %v2735 = vadd.f32 %v675, %v2734
        %v2736 = vpop.f32.mrf.mxu0
        %v2737 = vadd.f32 %v675, %v2736
        %2738 = vmatmul.bf16.gmra.mxu0 %v510
        %v2739 = vpop.f32.mrf.mxu0
        %v2740 = vadd.f32 %v675, %v2739
        %v2741 = vpop.f32.mrf.mxu0
        %v2742 = vadd.f32 %v675, %v2741
        %2743 = vmatmul.bf16.gmra.mxu0 %v512
        %v2744 = vpop.f32.mrf.mxu0
        %v2745 = vadd.f32 %v675, %v2744
        %v2746 = vpop.f32.mrf.mxu0
        %v2747 = vadd.f32 %v675, %v2746
        %2748 = vmatmul.bf16.gmra.mxu0 %v514
        %v2749 = vpop.f32.mrf.mxu0
        %v2750 = vadd.f32 %v675, %v2749
        %v2751 = vpop.f32.mrf.mxu0
        %v2752 = vadd.f32 %v675, %v2751
        %2753 = vmatmul.bf16.gmra.mxu0 %v516
        %v2754 = vpop.f32.mrf.mxu0
        %v2755 = vadd.f32 %v675, %v2754
        %v2756 = vpop.f32.mrf.mxu0
        %v2757 = vadd.f32 %v675, %v2756
        %2758 = vdwg.mxu0
        %2759 = vmatpush.bf16.msra.mxu0 0
        %2760 = vmatpush.bf16.msra.mxu0 0
        %2761 = vmatpush.bf16.msra.mxu0 0
        %2762 = vmatpush.bf16.msra.mxu0 0
        %2763 = vmatpush.bf16.msra.mxu0 0
        %2764 = vmatpush.bf16.msra.mxu0 0
        %2765 = vmatpush.bf16.msra.mxu0 0
        %2766 = vmatpush.bf16.msra.mxu0 %v1431
        %2767 = vmatmul.bf16.gmra.mxu0 %v1367
        %v2768 = vpop.f32.mrf.mxu0
        %v2769 = vadd.f32 %v2700, %v2768
        %v2770 = vpop.f32.mrf.mxu0
        %v2771 = vadd.f32 %v2702, %v2770
        %2772 = vmatmul.bf16.gmra.mxu0 %v1370
        %v2773 = vpop.f32.mrf.mxu0
        %v2774 = vadd.f32 %v2705, %v2773
        %v2775 = vpop.f32.mrf.mxu0
        %v2776 = vadd.f32 %v2707, %v2775
        %2777 = vmatmul.bf16.gmra.mxu0 %v1373
        %v2778 = vpop.f32.mrf.mxu0
        %v2779 = vadd.f32 %v2710, %v2778
        %v2780 = vpop.f32.mrf.mxu0
        %v2781 = vadd.f32 %v2712, %v2780
        %2782 = vmatmul.bf16.gmra.mxu0 %v1376
        %v2783 = vpop.f32.mrf.mxu0
        %v2784 = vadd.f32 %v2715, %v2783
        %v2785 = vpop.f32.mrf.mxu0
        %v2786 = vadd.f32 %v2717, %v2785
        %2787 = vmatmul.bf16.gmra.mxu0 %v1379
        %v2788 = vpop.f32.mrf.mxu0
        %v2789 = vadd.f32 %v2720, %v2788
        %v2790 = vpop.f32.mrf.mxu0
        %v2791 = vadd.f32 %v2722, %v2790
        %2792 = vmatmul.bf16.gmra.mxu0 %v1382
        %v2793 = vpop.f32.mrf.mxu0
        %v2794 = vadd.f32 %v2725, %v2793
        %v2795 = vpop.f32.mrf.mxu0
        %v2796 = vadd.f32 %v2727, %v2795
        %2797 = vmatmul.bf16.gmra.mxu0 %v1385
        %v2798 = vpop.f32.mrf.mxu0
        %v2799 = vadd.f32 %v2730, %v2798
        %v2800 = vpop.f32.mrf.mxu0
        %v2801 = vadd.f32 %v2732, %v2800
        %2802 = vmatmul.bf16.gmra.mxu0 %v1388
        %v2803 = vpop.f32.mrf.mxu0
        %v2804 = vadd.f32 %v2735, %v2803
        %v2805 = vpop.f32.mrf.mxu0
        %v2806 = vadd.f32 %v2737, %v2805
        %2807 = vmatmul.bf16.gmra.mxu0 %v1391
        %v2808 = vpop.f32.mrf.mxu0
        %v2809 = vadd.f32 %v2740, %v2808
        %v2810 = vpop.f32.mrf.mxu0
        %v2811 = vadd.f32 %v2742, %v2810
        %2812 = vmatmul.bf16.gmra.mxu0 %v1394
        %v2813 = vpop.f32.mrf.mxu0
        %v2814 = vadd.f32 %v2745, %v2813
        %v2815 = vpop.f32.mrf.mxu0
        %v2816 = vadd.f32 %v2747, %v2815
        %2817 = vmatmul.bf16.gmra.mxu0 %v1397
        %v2818 = vpop.f32.mrf.mxu0
        %v2819 = vadd.f32 %v2750, %v2818
        %v2820 = vpop.f32.mrf.mxu0
        %v2821 = vadd.f32 %v2752, %v2820
        %2822 = vmatmul.bf16.gmra.mxu0 %v1400
        %v2823 = vpop.f32.mrf.mxu0
        %v2824 = vadd.f32 %v2755, %v2823
        %v2825 = vpop.f32.mrf.mxu0
        %v2826 = vadd.f32 %v2757, %v2825
        %2827 = vdwg.mxu0
        %2828 = vmatpush.bf16.msra.mxu0 %v1225
        %2829 = vmatpush.bf16.msra.mxu0 %v1210
        %2830 = vmatpush.bf16.msra.mxu0 %v1195
        %2831 = vmatpush.bf16.msra.mxu0 %v1180
        %2832 = vmatpush.bf16.msra.mxu0 %v1165
        %2833 = vmatpush.bf16.msra.mxu0 %v1150
        %2834 = vmatpush.bf16.msra.mxu0 %v1135
        %2835 = vmatpush.bf16.msra.mxu0 %v1120
        %2836 = vmatmul.bf16.gmra.mxu0 %v494
        %v2837 = vpop.f32.mrf.mxu0
        %v2838 = vadd.f32 %v676, %v2837
        %v2839 = vpop.f32.mrf.mxu0
        %v2840 = vadd.f32 %v676, %v2839
        %2841 = vmatmul.bf16.gmra.mxu0 %v496
        %v2842 = vpop.f32.mrf.mxu0
        %v2843 = vadd.f32 %v676, %v2842
        %v2844 = vpop.f32.mrf.mxu0
        %v2845 = vadd.f32 %v676, %v2844
        %2846 = vmatmul.bf16.gmra.mxu0 %v498
        %v2847 = vpop.f32.mrf.mxu0
        %v2848 = vadd.f32 %v676, %v2847
        %v2849 = vpop.f32.mrf.mxu0
        %v2850 = vadd.f32 %v676, %v2849
        %2851 = vmatmul.bf16.gmra.mxu0 %v500
        %v2852 = vpop.f32.mrf.mxu0
        %v2853 = vadd.f32 %v676, %v2852
        %v2854 = vpop.f32.mrf.mxu0
        %v2855 = vadd.f32 %v676, %v2854
        %2856 = vmatmul.bf16.gmra.mxu0 %v502
        %v2857 = vpop.f32.mrf.mxu0
        %v2858 = vadd.f32 %v676, %v2857
        %v2859 = vpop.f32.mrf.mxu0
        %v2860 = vadd.f32 %v676, %v2859
        %2861 = vmatmul.bf16.gmra.mxu0 %v504
        %v2862 = vpop.f32.mrf.mxu0
        %v2863 = vadd.f32 %v676, %v2862
        %v2864 = vpop.f32.mrf.mxu0
        %v2865 = vadd.f32 %v676, %v2864
        %2866 = vmatmul.bf16.gmra.mxu0 %v506
        %v2867 = vpop.f32.mrf.mxu0
        %v2868 = vadd.f32 %v676, %v2867
        %v2869 = vpop.f32.mrf.mxu0
        %v2870 = vadd.f32 %v676, %v2869
        %2871 = vmatmul.bf16.gmra.mxu0 %v508
        %v2872 = vpop.f32.mrf.mxu0
        %v2873 = vadd.f32 %v676, %v2872
        %v2874 = vpop.f32.mrf.mxu0
        %v2875 = vadd.f32 %v676, %v2874
        %2876 = vmatmul.bf16.gmra.mxu0 %v510
        %v2877 = vpop.f32.mrf.mxu0
        %v2878 = vadd.f32 %v676, %v2877
        %v2879 = vpop.f32.mrf.mxu0
        %v2880 = vadd.f32 %v676, %v2879
        %2881 = vmatmul.bf16.gmra.mxu0 %v512
        %v2882 = vpop.f32.mrf.mxu0
        %v2883 = vadd.f32 %v676, %v2882
        %v2884 = vpop.f32.mrf.mxu0
        %v2885 = vadd.f32 %v676, %v2884
        %2886 = vmatmul.bf16.gmra.mxu0 %v514
        %v2887 = vpop.f32.mrf.mxu0
        %v2888 = vadd.f32 %v676, %v2887
        %v2889 = vpop.f32.mrf.mxu0
        %v2890 = vadd.f32 %v676, %v2889
        %2891 = vmatmul.bf16.gmra.mxu0 %v516
        %v2892 = vpop.f32.mrf.mxu0
        %v2893 = vadd.f32 %v676, %v2892
        %v2894 = vpop.f32.mrf.mxu0
        %v2895 = vadd.f32 %v676, %v2894
        %2896 = vdwg.mxu0
        %2897 = vmatpush.bf16.msra.mxu0 0
        %2898 = vmatpush.bf16.msra.mxu0 0
        %2899 = vmatpush.bf16.msra.mxu0 0
        %2900 = vmatpush.bf16.msra.mxu0 0
        %2901 = vmatpush.bf16.msra.mxu0 0
        %2902 = vmatpush.bf16.msra.mxu0 0
        %2903 = vmatpush.bf16.msra.mxu0 0
        %2904 = vmatpush.bf16.msra.mxu0 %v1434
        %2905 = vmatmul.bf16.gmra.mxu0 %v1367
        %v2906 = vpop.f32.mrf.mxu0
        %v2907 = vadd.f32 %v2838, %v2906
        %v2908 = vpop.f32.mrf.mxu0
        %v2909 = vadd.f32 %v2840, %v2908
        %2910 = vmatmul.bf16.gmra.mxu0 %v1370
        %v2911 = vpop.f32.mrf.mxu0
        %v2912 = vadd.f32 %v2843, %v2911
        %v2913 = vpop.f32.mrf.mxu0
        %v2914 = vadd.f32 %v2845, %v2913
        %2915 = vmatmul.bf16.gmra.mxu0 %v1373
        %v2916 = vpop.f32.mrf.mxu0
        %v2917 = vadd.f32 %v2848, %v2916
        %v2918 = vpop.f32.mrf.mxu0
        %v2919 = vadd.f32 %v2850, %v2918
        %2920 = vmatmul.bf16.gmra.mxu0 %v1376
        %v2921 = vpop.f32.mrf.mxu0
        %v2922 = vadd.f32 %v2853, %v2921
        %v2923 = vpop.f32.mrf.mxu0
        %v2924 = vadd.f32 %v2855, %v2923
        %2925 = vmatmul.bf16.gmra.mxu0 %v1379
        %v2926 = vpop.f32.mrf.mxu0
        %v2927 = vadd.f32 %v2858, %v2926
        %v2928 = vpop.f32.mrf.mxu0
        %v2929 = vadd.f32 %v2860, %v2928
        %2930 = vmatmul.bf16.gmra.mxu0 %v1382
        %v2931 = vpop.f32.mrf.mxu0
        %v2932 = vadd.f32 %v2863, %v2931
        %v2933 = vpop.f32.mrf.mxu0
        %v2934 = vadd.f32 %v2865, %v2933
        %2935 = vmatmul.bf16.gmra.mxu0 %v1385
        %v2936 = vpop.f32.mrf.mxu0
        %v2937 = vadd.f32 %v2868, %v2936
        %v2938 = vpop.f32.mrf.mxu0
        %v2939 = vadd.f32 %v2870, %v2938
        %2940 = vmatmul.bf16.gmra.mxu0 %v1388
        %v2941 = vpop.f32.mrf.mxu0
        %v2942 = vadd.f32 %v2873, %v2941
        %v2943 = vpop.f32.mrf.mxu0
        %v2944 = vadd.f32 %v2875, %v2943
        %2945 = vmatmul.bf16.gmra.mxu0 %v1391
        %v2946 = vpop.f32.mrf.mxu0
        %v2947 = vadd.f32 %v2878, %v2946
        %v2948 = vpop.f32.mrf.mxu0
        %v2949 = vadd.f32 %v2880, %v2948
        %2950 = vmatmul.bf16.gmra.mxu0 %v1394
        %v2951 = vpop.f32.mrf.mxu0
        %v2952 = vadd.f32 %v2883, %v2951
        %v2953 = vpop.f32.mrf.mxu0
        %v2954 = vadd.f32 %v2885, %v2953
        %2955 = vmatmul.bf16.gmra.mxu0 %v1397
        %v2956 = vpop.f32.mrf.mxu0
        %v2957 = vadd.f32 %v2888, %v2956
        %v2958 = vpop.f32.mrf.mxu0
        %v2959 = vadd.f32 %v2890, %v2958
        %2960 = vmatmul.bf16.gmra.mxu0 %v1400
        %v2961 = vpop.f32.mrf.mxu0
        %v2962 = vadd.f32 %v2893, %v2961
        %v2963 = vpop.f32.mrf.mxu0
        %v2964 = vadd.f32 %v2895, %v2963
        %2965 = vdwg.mxu0
        %2966 = vmatpush.bf16.msra.mxu0 %v1226
        %2967 = vmatpush.bf16.msra.mxu0 %v1211
        %2968 = vmatpush.bf16.msra.mxu0 %v1196
        %2969 = vmatpush.bf16.msra.mxu0 %v1181
        %2970 = vmatpush.bf16.msra.mxu0 %v1166
        %2971 = vmatpush.bf16.msra.mxu0 %v1151
        %2972 = vmatpush.bf16.msra.mxu0 %v1136
        %2973 = vmatpush.bf16.msra.mxu0 %v1121
        %2974 = vmatmul.bf16.gmra.mxu0 %v494
        %v2975 = vpop.f32.mrf.mxu0
        %v2976 = vadd.f32 %v677, %v2975
        %v2977 = vpop.f32.mrf.mxu0
        %v2978 = vadd.f32 %v677, %v2977
        %2979 = vmatmul.bf16.gmra.mxu0 %v496
        %v2980 = vpop.f32.mrf.mxu0
        %v2981 = vadd.f32 %v677, %v2980
        %v2982 = vpop.f32.mrf.mxu0
        %v2983 = vadd.f32 %v677, %v2982
        %2984 = vmatmul.bf16.gmra.mxu0 %v498
        %v2985 = vpop.f32.mrf.mxu0
        %v2986 = vadd.f32 %v677, %v2985
        %v2987 = vpop.f32.mrf.mxu0
        %v2988 = vadd.f32 %v677, %v2987
        %2989 = vmatmul.bf16.gmra.mxu0 %v500
        %v2990 = vpop.f32.mrf.mxu0
        %v2991 = vadd.f32 %v677, %v2990
        %v2992 = vpop.f32.mrf.mxu0
        %v2993 = vadd.f32 %v677, %v2992
        %2994 = vmatmul.bf16.gmra.mxu0 %v502
        %v2995 = vpop.f32.mrf.mxu0
        %v2996 = vadd.f32 %v677, %v2995
        %v2997 = vpop.f32.mrf.mxu0
        %v2998 = vadd.f32 %v677, %v2997
        %2999 = vmatmul.bf16.gmra.mxu0 %v504
        %v3000 = vpop.f32.mrf.mxu0
        %v3001 = vadd.f32 %v677, %v3000
        %v3002 = vpop.f32.mrf.mxu0
        %v3003 = vadd.f32 %v677, %v3002
        %3004 = vmatmul.bf16.gmra.mxu0 %v506
        %v3005 = vpop.f32.mrf.mxu0
        %v3006 = vadd.f32 %v677, %v3005
        %v3007 = vpop.f32.mrf.mxu0
        %v3008 = vadd.f32 %v677, %v3007
        %3009 = vmatmul.bf16.gmra.mxu0 %v508
        %v3010 = vpop.f32.mrf.mxu0
        %v3011 = vadd.f32 %v677, %v3010
        %v3012 = vpop.f32.mrf.mxu0
        %v3013 = vadd.f32 %v677, %v3012
        %3014 = vmatmul.bf16.gmra.mxu0 %v510
        %v3015 = vpop.f32.mrf.mxu0
        %v3016 = vadd.f32 %v677, %v3015
        %v3017 = vpop.f32.mrf.mxu0
        %v3018 = vadd.f32 %v677, %v3017
        %3019 = vmatmul.bf16.gmra.mxu0 %v512
        %v3020 = vpop.f32.mrf.mxu0
        %v3021 = vadd.f32 %v677, %v3020
        %v3022 = vpop.f32.mrf.mxu0
        %v3023 = vadd.f32 %v677, %v3022
        %3024 = vmatmul.bf16.gmra.mxu0 %v514
        %v3025 = vpop.f32.mrf.mxu0
        %v3026 = vadd.f32 %v677, %v3025
        %v3027 = vpop.f32.mrf.mxu0
        %v3028 = vadd.f32 %v677, %v3027
        %3029 = vmatmul.bf16.gmra.mxu0 %v516
        %v3030 = vpop.f32.mrf.mxu0
        %v3031 = vadd.f32 %v677, %v3030
        %v3032 = vpop.f32.mrf.mxu0
        %v3033 = vadd.f32 %v677, %v3032
        %3034 = vdwg.mxu0
        %3035 = vmatpush.bf16.msra.mxu0 0
        %3036 = vmatpush.bf16.msra.mxu0 0
        %3037 = vmatpush.bf16.msra.mxu0 0
        %3038 = vmatpush.bf16.msra.mxu0 0
        %3039 = vmatpush.bf16.msra.mxu0 0
        %3040 = vmatpush.bf16.msra.mxu0 0
        %3041 = vmatpush.bf16.msra.mxu0 0
        %3042 = vmatpush.bf16.msra.mxu0 %v1437
        %3043 = vmatmul.bf16.gmra.mxu0 %v1367
        %v3044 = vpop.f32.mrf.mxu0
        %v3045 = vadd.f32 %v2976, %v3044
        %v3046 = vpop.f32.mrf.mxu0
        %v3047 = vadd.f32 %v2978, %v3046
        %3048 = vmatmul.bf16.gmra.mxu0 %v1370
        %v3049 = vpop.f32.mrf.mxu0
        %v3050 = vadd.f32 %v2981, %v3049
        %v3051 = vpop.f32.mrf.mxu0
        %v3052 = vadd.f32 %v2983, %v3051
        %3053 = vmatmul.bf16.gmra.mxu0 %v1373
        %v3054 = vpop.f32.mrf.mxu0
        %v3055 = vadd.f32 %v2986, %v3054
        %v3056 = vpop.f32.mrf.mxu0
        %v3057 = vadd.f32 %v2988, %v3056
        %3058 = vmatmul.bf16.gmra.mxu0 %v1376
        %v3059 = vpop.f32.mrf.mxu0
        %v3060 = vadd.f32 %v2991, %v3059
        %v3061 = vpop.f32.mrf.mxu0
        %v3062 = vadd.f32 %v2993, %v3061
        %3063 = vmatmul.bf16.gmra.mxu0 %v1379
        %v3064 = vpop.f32.mrf.mxu0
        %v3065 = vadd.f32 %v2996, %v3064
        %v3066 = vpop.f32.mrf.mxu0
        %v3067 = vadd.f32 %v2998, %v3066
        %3068 = vmatmul.bf16.gmra.mxu0 %v1382
        %v3069 = vpop.f32.mrf.mxu0
        %v3070 = vadd.f32 %v3001, %v3069
        %v3071 = vpop.f32.mrf.mxu0
        %v3072 = vadd.f32 %v3003, %v3071
        %3073 = vmatmul.bf16.gmra.mxu0 %v1385
        %v3074 = vpop.f32.mrf.mxu0
        %v3075 = vadd.f32 %v3006, %v3074
        %v3076 = vpop.f32.mrf.mxu0
        %v3077 = vadd.f32 %v3008, %v3076
        %3078 = vmatmul.bf16.gmra.mxu0 %v1388
        %v3079 = vpop.f32.mrf.mxu0
        %v3080 = vadd.f32 %v3011, %v3079
        %v3081 = vpop.f32.mrf.mxu0
        %v3082 = vadd.f32 %v3013, %v3081
        %3083 = vmatmul.bf16.gmra.mxu0 %v1391
        %v3084 = vpop.f32.mrf.mxu0
        %v3085 = vadd.f32 %v3016, %v3084
        %v3086 = vpop.f32.mrf.mxu0
        %v3087 = vadd.f32 %v3018, %v3086
        %3088 = vmatmul.bf16.gmra.mxu0 %v1394
        %v3089 = vpop.f32.mrf.mxu0
        %v3090 = vadd.f32 %v3021, %v3089
        %v3091 = vpop.f32.mrf.mxu0
        %v3092 = vadd.f32 %v3023, %v3091
        %3093 = vmatmul.bf16.gmra.mxu0 %v1397
        %v3094 = vpop.f32.mrf.mxu0
        %v3095 = vadd.f32 %v3026, %v3094
        %v3096 = vpop.f32.mrf.mxu0
        %v3097 = vadd.f32 %v3028, %v3096
        %3098 = vmatmul.bf16.gmra.mxu0 %v1400
        %v3099 = vpop.f32.mrf.mxu0
        %v3100 = vadd.f32 %v3031, %v3099
        %v3101 = vpop.f32.mrf.mxu0
        %v3102 = vadd.f32 %v3033, %v3101
        %3103 = vdwg.mxu0
        %3104 = vmatpush.bf16.msra.mxu0 %v1227
        %3105 = vmatpush.bf16.msra.mxu0 %v1212
        %3106 = vmatpush.bf16.msra.mxu0 %v1197
        %3107 = vmatpush.bf16.msra.mxu0 %v1182
        %3108 = vmatpush.bf16.msra.mxu0 %v1167
        %3109 = vmatpush.bf16.msra.mxu0 %v1152
        %3110 = vmatpush.bf16.msra.mxu0 %v1137
        %3111 = vmatpush.bf16.msra.mxu0 %v1122
        %3112 = vmatmul.bf16.gmra.mxu0 %v494
        %v3113 = vpop.f32.mrf.mxu0
        %v3114 = vadd.f32 %v678, %v3113
        %v3115 = vpop.f32.mrf.mxu0
        %v3116 = vadd.f32 %v678, %v3115
        %3117 = vmatmul.bf16.gmra.mxu0 %v496
        %v3118 = vpop.f32.mrf.mxu0
        %v3119 = vadd.f32 %v678, %v3118
        %v3120 = vpop.f32.mrf.mxu0
        %v3121 = vadd.f32 %v678, %v3120
        %3122 = vmatmul.bf16.gmra.mxu0 %v498
        %v3123 = vpop.f32.mrf.mxu0
        %v3124 = vadd.f32 %v678, %v3123
        %v3125 = vpop.f32.mrf.mxu0
        %v3126 = vadd.f32 %v678, %v3125
        %3127 = vmatmul.bf16.gmra.mxu0 %v500
        %v3128 = vpop.f32.mrf.mxu0
        %v3129 = vadd.f32 %v678, %v3128
        %v3130 = vpop.f32.mrf.mxu0
        %v3131 = vadd.f32 %v678, %v3130
        %3132 = vmatmul.bf16.gmra.mxu0 %v502
        %v3133 = vpop.f32.mrf.mxu0
        %v3134 = vadd.f32 %v678, %v3133
        %v3135 = vpop.f32.mrf.mxu0
        %v3136 = vadd.f32 %v678, %v3135
        %3137 = vmatmul.bf16.gmra.mxu0 %v504
        %v3138 = vpop.f32.mrf.mxu0
        %v3139 = vadd.f32 %v678, %v3138
        %v3140 = vpop.f32.mrf.mxu0
        %v3141 = vadd.f32 %v678, %v3140
        %3142 = vmatmul.bf16.gmra.mxu0 %v506
        %v3143 = vpop.f32.mrf.mxu0
        %v3144 = vadd.f32 %v678, %v3143
        %v3145 = vpop.f32.mrf.mxu0
        %v3146 = vadd.f32 %v678, %v3145
        %3147 = vmatmul.bf16.gmra.mxu0 %v508
        %v3148 = vpop.f32.mrf.mxu0
        %v3149 = vadd.f32 %v678, %v3148
        %v3150 = vpop.f32.mrf.mxu0
        %v3151 = vadd.f32 %v678, %v3150
        %3152 = vmatmul.bf16.gmra.mxu0 %v510
        %v3153 = vpop.f32.mrf.mxu0
        %v3154 = vadd.f32 %v678, %v3153
        %v3155 = vpop.f32.mrf.mxu0
        %v3156 = vadd.f32 %v678, %v3155
        %3157 = vmatmul.bf16.gmra.mxu0 %v512
        %v3158 = vpop.f32.mrf.mxu0
        %v3159 = vadd.f32 %v678, %v3158
        %v3160 = vpop.f32.mrf.mxu0
        %v3161 = vadd.f32 %v678, %v3160
        %3162 = vmatmul.bf16.gmra.mxu0 %v514
        %v3163 = vpop.f32.mrf.mxu0
        %v3164 = vadd.f32 %v678, %v3163
        %v3165 = vpop.f32.mrf.mxu0
        %v3166 = vadd.f32 %v678, %v3165
        %3167 = vmatmul.bf16.gmra.mxu0 %v516
        %v3168 = vpop.f32.mrf.mxu0
        %v3169 = vadd.f32 %v678, %v3168
        %v3170 = vpop.f32.mrf.mxu0
        %v3171 = vadd.f32 %v678, %v3170
        %3172 = vdwg.mxu0
        %3173 = vmatpush.bf16.msra.mxu0 0
        %3174 = vmatpush.bf16.msra.mxu0 0
        %3175 = vmatpush.bf16.msra.mxu0 0
        %3176 = vmatpush.bf16.msra.mxu0 0
        %3177 = vmatpush.bf16.msra.mxu0 0
        %3178 = vmatpush.bf16.msra.mxu0 0
        %3179 = vmatpush.bf16.msra.mxu0 0
        %3180 = vmatpush.bf16.msra.mxu0 %v1440
        %3181 = vmatmul.bf16.gmra.mxu0 %v1367
        %v3182 = vpop.f32.mrf.mxu0
        %v3183 = vadd.f32 %v3114, %v3182
        %v3184 = vpop.f32.mrf.mxu0
        %v3185 = vadd.f32 %v3116, %v3184
        %3186 = vmatmul.bf16.gmra.mxu0 %v1370
        %v3187 = vpop.f32.mrf.mxu0
        %v3188 = vadd.f32 %v3119, %v3187
        %v3189 = vpop.f32.mrf.mxu0
        %v3190 = vadd.f32 %v3121, %v3189
        %3191 = vmatmul.bf16.gmra.mxu0 %v1373
        %v3192 = vpop.f32.mrf.mxu0
        %v3193 = vadd.f32 %v3124, %v3192
        %v3194 = vpop.f32.mrf.mxu0
        %v3195 = vadd.f32 %v3126, %v3194
        %3196 = vmatmul.bf16.gmra.mxu0 %v1376
        %v3197 = vpop.f32.mrf.mxu0
        %v3198 = vadd.f32 %v3129, %v3197
        %v3199 = vpop.f32.mrf.mxu0
        %v3200 = vadd.f32 %v3131, %v3199
        %3201 = vmatmul.bf16.gmra.mxu0 %v1379
        %v3202 = vpop.f32.mrf.mxu0
        %v3203 = vadd.f32 %v3134, %v3202
        %v3204 = vpop.f32.mrf.mxu0
        %v3205 = vadd.f32 %v3136, %v3204
        %3206 = vmatmul.bf16.gmra.mxu0 %v1382
        %v3207 = vpop.f32.mrf.mxu0
        %v3208 = vadd.f32 %v3139, %v3207
        %v3209 = vpop.f32.mrf.mxu0
        %v3210 = vadd.f32 %v3141, %v3209
        %3211 = vmatmul.bf16.gmra.mxu0 %v1385
        %v3212 = vpop.f32.mrf.mxu0
        %v3213 = vadd.f32 %v3144, %v3212
        %v3214 = vpop.f32.mrf.mxu0
        %v3215 = vadd.f32 %v3146, %v3214
        %3216 = vmatmul.bf16.gmra.mxu0 %v1388
        %v3217 = vpop.f32.mrf.mxu0
        %v3218 = vadd.f32 %v3149, %v3217
        %v3219 = vpop.f32.mrf.mxu0
        %v3220 = vadd.f32 %v3151, %v3219
        %3221 = vmatmul.bf16.gmra.mxu0 %v1391
        %v3222 = vpop.f32.mrf.mxu0
        %v3223 = vadd.f32 %v3154, %v3222
        %v3224 = vpop.f32.mrf.mxu0
        %v3225 = vadd.f32 %v3156, %v3224
        %3226 = vmatmul.bf16.gmra.mxu0 %v1394
        %v3227 = vpop.f32.mrf.mxu0
        %v3228 = vadd.f32 %v3159, %v3227
        %v3229 = vpop.f32.mrf.mxu0
        %v3230 = vadd.f32 %v3161, %v3229
        %3231 = vmatmul.bf16.gmra.mxu0 %v1397
        %v3232 = vpop.f32.mrf.mxu0
        %v3233 = vadd.f32 %v3164, %v3232
        %v3234 = vpop.f32.mrf.mxu0
        %v3235 = vadd.f32 %v3166, %v3234
        %3236 = vmatmul.bf16.gmra.mxu0 %v1400
        %v3237 = vpop.f32.mrf.mxu0
        %v3238 = vadd.f32 %v3169, %v3237
        %v3239 = vpop.f32.mrf.mxu0
        %v3240 = vadd.f32 %v3171, %v3239
        %3241 = vdwg.mxu0
        %3242 = vmatpush.bf16.msra.mxu0 %v1228
        %3243 = vmatpush.bf16.msra.mxu0 %v1213
        %3244 = vmatpush.bf16.msra.mxu0 %v1198
        %3245 = vmatpush.bf16.msra.mxu0 %v1183
        %3246 = vmatpush.bf16.msra.mxu0 %v1168
        %3247 = vmatpush.bf16.msra.mxu0 %v1153
        %3248 = vmatpush.bf16.msra.mxu0 %v1138
        %3249 = vmatpush.bf16.msra.mxu0 %v1123
        %3250 = vmatmul.bf16.gmra.mxu0 %v494
        %v3251 = vpop.f32.mrf.mxu0
        %v3252 = vadd.f32 %v679, %v3251
        %v3253 = vpop.f32.mrf.mxu0
        %v3254 = vadd.f32 %v679, %v3253
        %3255 = vmatmul.bf16.gmra.mxu0 %v496
        %v3256 = vpop.f32.mrf.mxu0
        %v3257 = vadd.f32 %v679, %v3256
        %v3258 = vpop.f32.mrf.mxu0
        %v3259 = vadd.f32 %v679, %v3258
        %3260 = vmatmul.bf16.gmra.mxu0 %v498
        %v3261 = vpop.f32.mrf.mxu0
        %v3262 = vadd.f32 %v679, %v3261
        %v3263 = vpop.f32.mrf.mxu0
        %v3264 = vadd.f32 %v679, %v3263
        %3265 = vmatmul.bf16.gmra.mxu0 %v500
        %v3266 = vpop.f32.mrf.mxu0
        %v3267 = vadd.f32 %v679, %v3266
        %v3268 = vpop.f32.mrf.mxu0
        %v3269 = vadd.f32 %v679, %v3268
        %3270 = vmatmul.bf16.gmra.mxu0 %v502
        %v3271 = vpop.f32.mrf.mxu0
        %v3272 = vadd.f32 %v679, %v3271
        %v3273 = vpop.f32.mrf.mxu0
        %v3274 = vadd.f32 %v679, %v3273
        %3275 = vmatmul.bf16.gmra.mxu0 %v504
        %v3276 = vpop.f32.mrf.mxu0
        %v3277 = vadd.f32 %v679, %v3276
        %v3278 = vpop.f32.mrf.mxu0
        %v3279 = vadd.f32 %v679, %v3278
        %3280 = vmatmul.bf16.gmra.mxu0 %v506
        %v3281 = vpop.f32.mrf.mxu0
        %v3282 = vadd.f32 %v679, %v3281
        %v3283 = vpop.f32.mrf.mxu0
        %v3284 = vadd.f32 %v679, %v3283
        %3285 = vmatmul.bf16.gmra.mxu0 %v508
        %v3286 = vpop.f32.mrf.mxu0
        %v3287 = vadd.f32 %v679, %v3286
        %v3288 = vpop.f32.mrf.mxu0
        %v3289 = vadd.f32 %v679, %v3288
        %3290 = vmatmul.bf16.gmra.mxu0 %v510
        %v3291 = vpop.f32.mrf.mxu0
        %v3292 = vadd.f32 %v679, %v3291
        %v3293 = vpop.f32.mrf.mxu0
        %v3294 = vadd.f32 %v679, %v3293
        %3295 = vmatmul.bf16.gmra.mxu0 %v512
        %v3296 = vpop.f32.mrf.mxu0
        %v3297 = vadd.f32 %v679, %v3296
        %v3298 = vpop.f32.mrf.mxu0
        %v3299 = vadd.f32 %v679, %v3298
        %3300 = vmatmul.bf16.gmra.mxu0 %v514
        %v3301 = vpop.f32.mrf.mxu0
        %v3302 = vadd.f32 %v679, %v3301
        %v3303 = vpop.f32.mrf.mxu0
        %v3304 = vadd.f32 %v679, %v3303
        %3305 = vmatmul.bf16.gmra.mxu0 %v516
        %v3306 = vpop.f32.mrf.mxu0
        %v3307 = vadd.f32 %v679, %v3306
        %v3308 = vpop.f32.mrf.mxu0
        %v3309 = vadd.f32 %v679, %v3308
        %3310 = vdwg.mxu0
        %3311 = vmatpush.bf16.msra.mxu0 0
        %3312 = vmatpush.bf16.msra.mxu0 0
        %3313 = vmatpush.bf16.msra.mxu0 0
        %3314 = vmatpush.bf16.msra.mxu0 0
        %3315 = vmatpush.bf16.msra.mxu0 0
        %3316 = vmatpush.bf16.msra.mxu0 0
        %3317 = vmatpush.bf16.msra.mxu0 0
        %3318 = vmatpush.bf16.msra.mxu0 %v1443
        %3319 = vmatmul.bf16.gmra.mxu0 %v1367
        %v3320 = vpop.f32.mrf.mxu0
        %v3321 = vadd.f32 %v3252, %v3320
        %v3322 = vpop.f32.mrf.mxu0
        %v3323 = vadd.f32 %v3254, %v3322
        %3324 = vmatmul.bf16.gmra.mxu0 %v1370
        %v3325 = vpop.f32.mrf.mxu0
        %v3326 = vadd.f32 %v3257, %v3325
        %v3327 = vpop.f32.mrf.mxu0
        %v3328 = vadd.f32 %v3259, %v3327
        %3329 = vmatmul.bf16.gmra.mxu0 %v1373
        %v3330 = vpop.f32.mrf.mxu0
        %v3331 = vadd.f32 %v3262, %v3330
        %v3332 = vpop.f32.mrf.mxu0
        %v3333 = vadd.f32 %v3264, %v3332
        %3334 = vmatmul.bf16.gmra.mxu0 %v1376
        %v3335 = vpop.f32.mrf.mxu0
        %v3336 = vadd.f32 %v3267, %v3335
        %v3337 = vpop.f32.mrf.mxu0
        %v3338 = vadd.f32 %v3269, %v3337
        %3339 = vmatmul.bf16.gmra.mxu0 %v1379
        %v3340 = vpop.f32.mrf.mxu0
        %v3341 = vadd.f32 %v3272, %v3340
        %v3342 = vpop.f32.mrf.mxu0
        %v3343 = vadd.f32 %v3274, %v3342
        %3344 = vmatmul.bf16.gmra.mxu0 %v1382
        %v3345 = vpop.f32.mrf.mxu0
        %v3346 = vadd.f32 %v3277, %v3345
        %v3347 = vpop.f32.mrf.mxu0
        %v3348 = vadd.f32 %v3279, %v3347
        %3349 = vmatmul.bf16.gmra.mxu0 %v1385
        %v3350 = vpop.f32.mrf.mxu0
        %v3351 = vadd.f32 %v3282, %v3350
        %v3352 = vpop.f32.mrf.mxu0
        %v3353 = vadd.f32 %v3284, %v3352
        %3354 = vmatmul.bf16.gmra.mxu0 %v1388
        %v3355 = vpop.f32.mrf.mxu0
        %v3356 = vadd.f32 %v3287, %v3355
        %v3357 = vpop.f32.mrf.mxu0
        %v3358 = vadd.f32 %v3289, %v3357
        %3359 = vmatmul.bf16.gmra.mxu0 %v1391
        %v3360 = vpop.f32.mrf.mxu0
        %v3361 = vadd.f32 %v3292, %v3360
        %v3362 = vpop.f32.mrf.mxu0
        %v3363 = vadd.f32 %v3294, %v3362
        %3364 = vmatmul.bf16.gmra.mxu0 %v1394
        %v3365 = vpop.f32.mrf.mxu0
        %v3366 = vadd.f32 %v3297, %v3365
        %v3367 = vpop.f32.mrf.mxu0
        %v3368 = vadd.f32 %v3299, %v3367
        %3369 = vmatmul.bf16.gmra.mxu0 %v1397
        %v3370 = vpop.f32.mrf.mxu0
        %v3371 = vadd.f32 %v3302, %v3370
        %v3372 = vpop.f32.mrf.mxu0
        %v3373 = vadd.f32 %v3304, %v3372
        %3374 = vmatmul.bf16.gmra.mxu0 %v1400
        %v3375 = vpop.f32.mrf.mxu0
        %v3376 = vadd.f32 %v3307, %v3375
        %v3377 = vpop.f32.mrf.mxu0
        %v3378 = vadd.f32 %v3309, %v3377
        %3379 = vdwg.mxu0
        %3380 = vmatpush.bf16.msra.mxu0 %v1229
        %3381 = vmatpush.bf16.msra.mxu0 %v1214
        %3382 = vmatpush.bf16.msra.mxu0 %v1199
        %3383 = vmatpush.bf16.msra.mxu0 %v1184
        %3384 = vmatpush.bf16.msra.mxu0 %v1169
        %3385 = vmatpush.bf16.msra.mxu0 %v1154
        %3386 = vmatpush.bf16.msra.mxu0 %v1139
        %3387 = vmatpush.bf16.msra.mxu0 %v1124
        %3388 = vmatmul.bf16.gmra.mxu0 %v494
        %v3389 = vpop.f32.mrf.mxu0
        %v3390 = vadd.f32 %v680, %v3389
        %v3391 = vpop.f32.mrf.mxu0
        %v3392 = vadd.f32 %v680, %v3391
        %3393 = vmatmul.bf16.gmra.mxu0 %v496
        %v3394 = vpop.f32.mrf.mxu0
        %v3395 = vadd.f32 %v680, %v3394
        %v3396 = vpop.f32.mrf.mxu0
        %v3397 = vadd.f32 %v680, %v3396
        %3398 = vmatmul.bf16.gmra.mxu0 %v498
        %v3399 = vpop.f32.mrf.mxu0
        %v3400 = vadd.f32 %v680, %v3399
        %v3401 = vpop.f32.mrf.mxu0
        %v3402 = vadd.f32 %v680, %v3401
        %3403 = vmatmul.bf16.gmra.mxu0 %v500
        %v3404 = vpop.f32.mrf.mxu0
        %v3405 = vadd.f32 %v680, %v3404
        %v3406 = vpop.f32.mrf.mxu0
        %v3407 = vadd.f32 %v680, %v3406
        %3408 = vmatmul.bf16.gmra.mxu0 %v502
        %v3409 = vpop.f32.mrf.mxu0
        %v3410 = vadd.f32 %v680, %v3409
        %v3411 = vpop.f32.mrf.mxu0
        %v3412 = vadd.f32 %v680, %v3411
        %3413 = vmatmul.bf16.gmra.mxu0 %v504
        %v3414 = vpop.f32.mrf.mxu0
        %v3415 = vadd.f32 %v680, %v3414
        %v3416 = vpop.f32.mrf.mxu0
        %v3417 = vadd.f32 %v680, %v3416
        %3418 = vmatmul.bf16.gmra.mxu0 %v506
        %v3419 = vpop.f32.mrf.mxu0
        %v3420 = vadd.f32 %v680, %v3419
        %v3421 = vpop.f32.mrf.mxu0
        %v3422 = vadd.f32 %v680, %v3421
        %3423 = vmatmul.bf16.gmra.mxu0 %v508
        %v3424 = vpop.f32.mrf.mxu0
        %v3425 = vadd.f32 %v680, %v3424
        %v3426 = vpop.f32.mrf.mxu0
        %v3427 = vadd.f32 %v680, %v3426
        %3428 = vmatmul.bf16.gmra.mxu0 %v510
        %v3429 = vpop.f32.mrf.mxu0
        %v3430 = vadd.f32 %v680, %v3429
        %v3431 = vpop.f32.mrf.mxu0
        %v3432 = vadd.f32 %v680, %v3431
        %3433 = vmatmul.bf16.gmra.mxu0 %v512
        %v3434 = vpop.f32.mrf.mxu0
        %v3435 = vadd.f32 %v680, %v3434
        %v3436 = vpop.f32.mrf.mxu0
        %v3437 = vadd.f32 %v680, %v3436
        %3438 = vmatmul.bf16.gmra.mxu0 %v514
        %v3439 = vpop.f32.mrf.mxu0
        %v3440 = vadd.f32 %v680, %v3439
        %v3441 = vpop.f32.mrf.mxu0
        %v3442 = vadd.f32 %v680, %v3441
        %3443 = vmatmul.bf16.gmra.mxu0 %v516
        %v3444 = vpop.f32.mrf.mxu0
        %v3445 = vadd.f32 %v680, %v3444
        %v3446 = vpop.f32.mrf.mxu0
        %v3447 = vadd.f32 %v680, %v3446
        %3448 = vdwg.mxu0
        %3449 = vmatpush.bf16.msra.mxu0 0
        %3450 = vmatpush.bf16.msra.mxu0 0
        %3451 = vmatpush.bf16.msra.mxu0 0
        %3452 = vmatpush.bf16.msra.mxu0 0
        %3453 = vmatpush.bf16.msra.mxu0 0
        %3454 = vmatpush.bf16.msra.mxu0 0
        %3455 = vmatpush.bf16.msra.mxu0 0
        %3456 = vmatpush.bf16.msra.mxu0 %v1446
        %3457 = vmatmul.bf16.gmra.mxu0 %v1367
        %v3458 = vpop.f32.mrf.mxu0
        %v3459 = vadd.f32 %v3390, %v3458
        %v3460 = vpop.f32.mrf.mxu0
        %v3461 = vadd.f32 %v3392, %v3460
        %3462 = vmatmul.bf16.gmra.mxu0 %v1370
        %v3463 = vpop.f32.mrf.mxu0
        %v3464 = vadd.f32 %v3395, %v3463
        %v3465 = vpop.f32.mrf.mxu0
        %v3466 = vadd.f32 %v3397, %v3465
        %3467 = vmatmul.bf16.gmra.mxu0 %v1373
        %v3468 = vpop.f32.mrf.mxu0
        %v3469 = vadd.f32 %v3400, %v3468
        %v3470 = vpop.f32.mrf.mxu0
        %v3471 = vadd.f32 %v3402, %v3470
        %3472 = vmatmul.bf16.gmra.mxu0 %v1376
        %v3473 = vpop.f32.mrf.mxu0
        %v3474 = vadd.f32 %v3405, %v3473
        %v3475 = vpop.f32.mrf.mxu0
        %v3476 = vadd.f32 %v3407, %v3475
        %3477 = vmatmul.bf16.gmra.mxu0 %v1379
        %v3478 = vpop.f32.mrf.mxu0
        %v3479 = vadd.f32 %v3410, %v3478
        %v3480 = vpop.f32.mrf.mxu0
        %v3481 = vadd.f32 %v3412, %v3480
        %3482 = vmatmul.bf16.gmra.mxu0 %v1382
        %v3483 = vpop.f32.mrf.mxu0
        %v3484 = vadd.f32 %v3415, %v3483
        %v3485 = vpop.f32.mrf.mxu0
        %v3486 = vadd.f32 %v3417, %v3485
        %3487 = vmatmul.bf16.gmra.mxu0 %v1385
        %v3488 = vpop.f32.mrf.mxu0
        %v3489 = vadd.f32 %v3420, %v3488
        %v3490 = vpop.f32.mrf.mxu0
        %v3491 = vadd.f32 %v3422, %v3490
        %3492 = vmatmul.bf16.gmra.mxu0 %v1388
        %v3493 = vpop.f32.mrf.mxu0
        %v3494 = vadd.f32 %v3425, %v3493
        %v3495 = vpop.f32.mrf.mxu0
        %v3496 = vadd.f32 %v3427, %v3495
        %3497 = vmatmul.bf16.gmra.mxu0 %v1391
        %v3498 = vpop.f32.mrf.mxu0
        %v3499 = vadd.f32 %v3430, %v3498
        %v3500 = vpop.f32.mrf.mxu0
        %v3501 = vadd.f32 %v3432, %v3500
        %3502 = vmatmul.bf16.gmra.mxu0 %v1394
        %v3503 = vpop.f32.mrf.mxu0
        %v3504 = vadd.f32 %v3435, %v3503
        %v3505 = vpop.f32.mrf.mxu0
        %v3506 = vadd.f32 %v3437, %v3505
        %3507 = vmatmul.bf16.gmra.mxu0 %v1397
        %v3508 = vpop.f32.mrf.mxu0
        %v3509 = vadd.f32 %v3440, %v3508
        %v3510 = vpop.f32.mrf.mxu0
        %v3511 = vadd.f32 %v3442, %v3510
        %3512 = vmatmul.bf16.gmra.mxu0 %v1400
        %v3513 = vpop.f32.mrf.mxu0
        %v3514 = vadd.f32 %v3445, %v3513
        %v3515 = vpop.f32.mrf.mxu0
        %v3516 = vadd.f32 %v3447, %v3515
        %3517 = vdwg.mxu0
        %v3518 = vmax.f32 %v1527, 0.0
        %v3519 = vmax.f32 %v1665, 0.0
        %v3520 = vmax.f32 %v1803, 0.0
        %v3521 = vmax.f32 %v1941, 0.0
        %v3522 = vmax.f32 %v2079, 0.0
        %v3523 = vmax.f32 %v2217, 0.0
        %v3524 = vmax.f32 %v2355, 0.0
        %v3525 = vmax.f32 %v2493, 0.0
        %v3526 = vmax.f32 %v2631, 0.0
        %v3527 = vmax.f32 %v2769, 0.0
        %v3528 = vmax.f32 %v2907, 0.0
        %v3529 = vmax.f32 %v3045, 0.0
        %v3530 = vmax.f32 %v3183, 0.0
        %v3531 = vmax.f32 %v3321, 0.0
        %v3532 = vmax.f32 %v3459, 0.0
        %v3533 = vmax.f32 %v1529, 0.0
        %v3534 = vmax.f32 %v1667, 0.0
        %v3535 = vmax.f32 %v1805, 0.0
        %v3536 = vmax.f32 %v1943, 0.0
        %v3537 = vmax.f32 %v2081, 0.0
        %v3538 = vmax.f32 %v2219, 0.0
        %v3539 = vmax.f32 %v2357, 0.0
        %v3540 = vmax.f32 %v2495, 0.0
        %v3541 = vmax.f32 %v2633, 0.0
        %v3542 = vmax.f32 %v2771, 0.0
        %v3543 = vmax.f32 %v2909, 0.0
        %v3544 = vmax.f32 %v3047, 0.0
        %v3545 = vmax.f32 %v3185, 0.0
        %v3546 = vmax.f32 %v3323, 0.0
        %v3547 = vmax.f32 %v3461, 0.0
        %v3548 = vmax.f32 %v1532, 0.0
        %v3549 = vmax.f32 %v1670, 0.0
        %v3550 = vmax.f32 %v1808, 0.0
        %v3551 = vmax.f32 %v1946, 0.0
        %v3552 = vmax.f32 %v2084, 0.0
        %v3553 = vmax.f32 %v2222, 0.0
        %v3554 = vmax.f32 %v2360, 0.0
        %v3555 = vmax.f32 %v2498, 0.0
        %v3556 = vmax.f32 %v2636, 0.0
        %v3557 = vmax.f32 %v2774, 0.0
        %v3558 = vmax.f32 %v2912, 0.0
        %v3559 = vmax.f32 %v3050, 0.0
        %v3560 = vmax.f32 %v3188, 0.0
        %v3561 = vmax.f32 %v3326, 0.0
        %v3562 = vmax.f32 %v3464, 0.0
        %v3563 = vmax.f32 %v1534, 0.0
        %v3564 = vmax.f32 %v1672, 0.0
        %v3565 = vmax.f32 %v1810, 0.0
        %v3566 = vmax.f32 %v1948, 0.0
        %v3567 = vmax.f32 %v2086, 0.0
        %v3568 = vmax.f32 %v2224, 0.0
        %v3569 = vmax.f32 %v2362, 0.0
        %v3570 = vmax.f32 %v2500, 0.0
        %v3571 = vmax.f32 %v2638, 0.0
        %v3572 = vmax.f32 %v2776, 0.0
        %v3573 = vmax.f32 %v2914, 0.0
        %v3574 = vmax.f32 %v3052, 0.0
        %v3575 = vmax.f32 %v3190, 0.0
        %v3576 = vmax.f32 %v3328, 0.0
        %v3577 = vmax.f32 %v3466, 0.0
        %v3578 = vmax.f32 %v1537, 0.0
        %v3579 = vmax.f32 %v1675, 0.0
        %v3580 = vmax.f32 %v1813, 0.0
        %v3581 = vmax.f32 %v1951, 0.0
        %v3582 = vmax.f32 %v2089, 0.0
        %v3583 = vmax.f32 %v2227, 0.0
        %v3584 = vmax.f32 %v2365, 0.0
        %v3585 = vmax.f32 %v2503, 0.0
        %v3586 = vmax.f32 %v2641, 0.0
        %v3587 = vmax.f32 %v2779, 0.0
        %v3588 = vmax.f32 %v2917, 0.0
        %v3589 = vmax.f32 %v3055, 0.0
        %v3590 = vmax.f32 %v3193, 0.0
        %v3591 = vmax.f32 %v3331, 0.0
        %v3592 = vmax.f32 %v3469, 0.0
        %v3593 = vmax.f32 %v1539, 0.0
        %v3594 = vmax.f32 %v1677, 0.0
        %v3595 = vmax.f32 %v1815, 0.0
        %v3596 = vmax.f32 %v1953, 0.0
        %v3597 = vmax.f32 %v2091, 0.0
        %v3598 = vmax.f32 %v2229, 0.0
        %v3599 = vmax.f32 %v2367, 0.0
        %v3600 = vmax.f32 %v2505, 0.0
        %v3601 = vmax.f32 %v2643, 0.0
        %v3602 = vmax.f32 %v2781, 0.0
        %v3603 = vmax.f32 %v2919, 0.0
        %v3604 = vmax.f32 %v3057, 0.0
        %v3605 = vmax.f32 %v3195, 0.0
        %v3606 = vmax.f32 %v3333, 0.0
        %v3607 = vmax.f32 %v3471, 0.0
        %v3608 = vmax.f32 %v1542, 0.0
        %v3609 = vmax.f32 %v1680, 0.0
        %v3610 = vmax.f32 %v1818, 0.0
        %v3611 = vmax.f32 %v1956, 0.0
        %v3612 = vmax.f32 %v2094, 0.0
        %v3613 = vmax.f32 %v2232, 0.0
        %v3614 = vmax.f32 %v2370, 0.0
        %v3615 = vmax.f32 %v2508, 0.0
        %v3616 = vmax.f32 %v2646, 0.0
        %v3617 = vmax.f32 %v2784, 0.0
        %v3618 = vmax.f32 %v2922, 0.0
        %v3619 = vmax.f32 %v3060, 0.0
        %v3620 = vmax.f32 %v3198, 0.0
        %v3621 = vmax.f32 %v3336, 0.0
        %v3622 = vmax.f32 %v3474, 0.0
        %v3623 = vmax.f32 %v1544, 0.0
        %v3624 = vmax.f32 %v1682, 0.0
        %v3625 = vmax.f32 %v1820, 0.0
        %v3626 = vmax.f32 %v1958, 0.0
        %v3627 = vmax.f32 %v2096, 0.0
        %v3628 = vmax.f32 %v2234, 0.0
        %v3629 = vmax.f32 %v2372, 0.0
        %v3630 = vmax.f32 %v2510, 0.0
        %v3631 = vmax.f32 %v2648, 0.0
        %v3632 = vmax.f32 %v2786, 0.0
        %v3633 = vmax.f32 %v2924, 0.0
        %v3634 = vmax.f32 %v3062, 0.0
        %v3635 = vmax.f32 %v3200, 0.0
        %v3636 = vmax.f32 %v3338, 0.0
        %v3637 = vmax.f32 %v3476, 0.0
        %v3638 = vmax.f32 %v1547, 0.0
        %v3639 = vmax.f32 %v1685, 0.0
        %v3640 = vmax.f32 %v1823, 0.0
        %v3641 = vmax.f32 %v1961, 0.0
        %v3642 = vmax.f32 %v2099, 0.0
        %v3643 = vmax.f32 %v2237, 0.0
        %v3644 = vmax.f32 %v2375, 0.0
        %v3645 = vmax.f32 %v2513, 0.0
        %v3646 = vmax.f32 %v2651, 0.0
        %v3647 = vmax.f32 %v2789, 0.0
        %v3648 = vmax.f32 %v2927, 0.0
        %v3649 = vmax.f32 %v3065, 0.0
        %v3650 = vmax.f32 %v3203, 0.0
        %v3651 = vmax.f32 %v3341, 0.0
        %v3652 = vmax.f32 %v3479, 0.0
        %v3653 = vmax.f32 %v1549, 0.0
        %v3654 = vmax.f32 %v1687, 0.0
        %v3655 = vmax.f32 %v1825, 0.0
        %v3656 = vmax.f32 %v1963, 0.0
        %v3657 = vmax.f32 %v2101, 0.0
        %v3658 = vmax.f32 %v2239, 0.0
        %v3659 = vmax.f32 %v2377, 0.0
        %v3660 = vmax.f32 %v2515, 0.0
        %v3661 = vmax.f32 %v2653, 0.0
        %v3662 = vmax.f32 %v2791, 0.0
        %v3663 = vmax.f32 %v2929, 0.0
        %v3664 = vmax.f32 %v3067, 0.0
        %v3665 = vmax.f32 %v3205, 0.0
        %v3666 = vmax.f32 %v3343, 0.0
        %v3667 = vmax.f32 %v3481, 0.0
        %v3668 = vmax.f32 %v1552, 0.0
        %v3669 = vmax.f32 %v1690, 0.0
        %v3670 = vmax.f32 %v1828, 0.0
        %v3671 = vmax.f32 %v1966, 0.0
        %v3672 = vmax.f32 %v2104, 0.0
        %v3673 = vmax.f32 %v2242, 0.0
        %v3674 = vmax.f32 %v2380, 0.0
        %v3675 = vmax.f32 %v2518, 0.0
        %v3676 = vmax.f32 %v2656, 0.0
        %v3677 = vmax.f32 %v2794, 0.0
        %v3678 = vmax.f32 %v2932, 0.0
        %v3679 = vmax.f32 %v3070, 0.0
        %v3680 = vmax.f32 %v3208, 0.0
        %v3681 = vmax.f32 %v3346, 0.0
        %v3682 = vmax.f32 %v3484, 0.0
        %v3683 = vmax.f32 %v1554, 0.0
        %v3684 = vmax.f32 %v1692, 0.0
        %v3685 = vmax.f32 %v1830, 0.0
        %v3686 = vmax.f32 %v1968, 0.0
        %v3687 = vmax.f32 %v2106, 0.0
        %v3688 = vmax.f32 %v2244, 0.0
        %v3689 = vmax.f32 %v2382, 0.0
        %v3690 = vmax.f32 %v2520, 0.0
        %v3691 = vmax.f32 %v2658, 0.0
        %v3692 = vmax.f32 %v2796, 0.0
        %v3693 = vmax.f32 %v2934, 0.0
        %v3694 = vmax.f32 %v3072, 0.0
        %v3695 = vmax.f32 %v3210, 0.0
        %v3696 = vmax.f32 %v3348, 0.0
        %v3697 = vmax.f32 %v3486, 0.0
        %v3698 = vmax.f32 %v1557, 0.0
        %v3699 = vmax.f32 %v1695, 0.0
        %v3700 = vmax.f32 %v1833, 0.0
        %v3701 = vmax.f32 %v1971, 0.0
        %v3702 = vmax.f32 %v2109, 0.0
        %v3703 = vmax.f32 %v2247, 0.0
        %v3704 = vmax.f32 %v2385, 0.0
        %v3705 = vmax.f32 %v2523, 0.0
        %v3706 = vmax.f32 %v2661, 0.0
        %v3707 = vmax.f32 %v2799, 0.0
        %v3708 = vmax.f32 %v2937, 0.0
        %v3709 = vmax.f32 %v3075, 0.0
        %v3710 = vmax.f32 %v3213, 0.0
        %v3711 = vmax.f32 %v3351, 0.0
        %v3712 = vmax.f32 %v3489, 0.0
        %v3713 = vmax.f32 %v1559, 0.0
        %v3714 = vmax.f32 %v1697, 0.0
        %v3715 = vmax.f32 %v1835, 0.0
        %v3716 = vmax.f32 %v1973, 0.0
        %v3717 = vmax.f32 %v2111, 0.0
        %v3718 = vmax.f32 %v2249, 0.0
        %v3719 = vmax.f32 %v2387, 0.0
        %v3720 = vmax.f32 %v2525, 0.0
        %v3721 = vmax.f32 %v2663, 0.0
        %v3722 = vmax.f32 %v2801, 0.0
        %v3723 = vmax.f32 %v2939, 0.0
        %v3724 = vmax.f32 %v3077, 0.0
        %v3725 = vmax.f32 %v3215, 0.0
        %v3726 = vmax.f32 %v3353, 0.0
        %v3727 = vmax.f32 %v3491, 0.0
        %v3728 = vmax.f32 %v1562, 0.0
        %v3729 = vmax.f32 %v1700, 0.0
        %v3730 = vmax.f32 %v1838, 0.0
        %v3731 = vmax.f32 %v1976, 0.0
        %v3732 = vmax.f32 %v2114, 0.0
        %v3733 = vmax.f32 %v2252, 0.0
        %v3734 = vmax.f32 %v2390, 0.0
        %v3735 = vmax.f32 %v2528, 0.0
        %v3736 = vmax.f32 %v2666, 0.0
        %v3737 = vmax.f32 %v2804, 0.0
        %v3738 = vmax.f32 %v2942, 0.0
        %v3739 = vmax.f32 %v3080, 0.0
        %v3740 = vmax.f32 %v3218, 0.0
        %v3741 = vmax.f32 %v3356, 0.0
        %v3742 = vmax.f32 %v3494, 0.0
        %v3743 = vmax.f32 %v1564, 0.0
        %v3744 = vmax.f32 %v1702, 0.0
        %v3745 = vmax.f32 %v1840, 0.0
        %v3746 = vmax.f32 %v1978, 0.0
        %v3747 = vmax.f32 %v2116, 0.0
        %v3748 = vmax.f32 %v2254, 0.0
        %v3749 = vmax.f32 %v2392, 0.0
        %v3750 = vmax.f32 %v2530, 0.0
        %v3751 = vmax.f32 %v2668, 0.0
        %v3752 = vmax.f32 %v2806, 0.0
        %v3753 = vmax.f32 %v2944, 0.0
        %v3754 = vmax.f32 %v3082, 0.0
        %v3755 = vmax.f32 %v3220, 0.0
        %v3756 = vmax.f32 %v3358, 0.0
        %v3757 = vmax.f32 %v3496, 0.0
        %v3758 = vmax.f32 %v1567, 0.0
        %v3759 = vmax.f32 %v1705, 0.0
        %v3760 = vmax.f32 %v1843, 0.0
        %v3761 = vmax.f32 %v1981, 0.0
        %v3762 = vmax.f32 %v2119, 0.0
        %v3763 = vmax.f32 %v2257, 0.0
        %v3764 = vmax.f32 %v2395, 0.0
        %v3765 = vmax.f32 %v2533, 0.0
        %v3766 = vmax.f32 %v2671, 0.0
        %v3767 = vmax.f32 %v2809, 0.0
        %v3768 = vmax.f32 %v2947, 0.0
        %v3769 = vmax.f32 %v3085, 0.0
        %v3770 = vmax.f32 %v3223, 0.0
        %v3771 = vmax.f32 %v3361, 0.0
        %v3772 = vmax.f32 %v3499, 0.0
        %v3773 = vmax.f32 %v1569, 0.0
        %v3774 = vmax.f32 %v1707, 0.0
        %v3775 = vmax.f32 %v1845, 0.0
        %v3776 = vmax.f32 %v1983, 0.0
        %v3777 = vmax.f32 %v2121, 0.0
        %v3778 = vmax.f32 %v2259, 0.0
        %v3779 = vmax.f32 %v2397, 0.0
        %v3780 = vmax.f32 %v2535, 0.0
        %v3781 = vmax.f32 %v2673, 0.0
        %v3782 = vmax.f32 %v2811, 0.0
        %v3783 = vmax.f32 %v2949, 0.0
        %v3784 = vmax.f32 %v3087, 0.0
        %v3785 = vmax.f32 %v3225, 0.0
        %v3786 = vmax.f32 %v3363, 0.0
        %v3787 = vmax.f32 %v3501, 0.0
        %v3788 = vmax.f32 %v1572, 0.0
        %v3789 = vmax.f32 %v1710, 0.0
        %v3790 = vmax.f32 %v1848, 0.0
        %v3791 = vmax.f32 %v1986, 0.0
        %v3792 = vmax.f32 %v2124, 0.0
        %v3793 = vmax.f32 %v2262, 0.0
        %v3794 = vmax.f32 %v2400, 0.0
        %v3795 = vmax.f32 %v2538, 0.0
        %v3796 = vmax.f32 %v2676, 0.0
        %v3797 = vmax.f32 %v2814, 0.0
        %v3798 = vmax.f32 %v2952, 0.0
        %v3799 = vmax.f32 %v3090, 0.0
        %v3800 = vmax.f32 %v3228, 0.0
        %v3801 = vmax.f32 %v3366, 0.0
        %v3802 = vmax.f32 %v3504, 0.0
        %v3803 = vmax.f32 %v1574, 0.0
        %v3804 = vmax.f32 %v1712, 0.0
        %v3805 = vmax.f32 %v1850, 0.0
        %v3806 = vmax.f32 %v1988, 0.0
        %v3807 = vmax.f32 %v2126, 0.0
        %v3808 = vmax.f32 %v2264, 0.0
        %v3809 = vmax.f32 %v2402, 0.0
        %v3810 = vmax.f32 %v2540, 0.0
        %v3811 = vmax.f32 %v2678, 0.0
        %v3812 = vmax.f32 %v2816, 0.0
        %v3813 = vmax.f32 %v2954, 0.0
        %v3814 = vmax.f32 %v3092, 0.0
        %v3815 = vmax.f32 %v3230, 0.0
        %v3816 = vmax.f32 %v3368, 0.0
        %v3817 = vmax.f32 %v3506, 0.0
        %v3818 = vmax.f32 %v1577, 0.0
        %v3819 = vmax.f32 %v1715, 0.0
        %v3820 = vmax.f32 %v1853, 0.0
        %v3821 = vmax.f32 %v1991, 0.0
        %v3822 = vmax.f32 %v2129, 0.0
        %v3823 = vmax.f32 %v2267, 0.0
        %v3824 = vmax.f32 %v2405, 0.0
        %v3825 = vmax.f32 %v2543, 0.0
        %v3826 = vmax.f32 %v2681, 0.0
        %v3827 = vmax.f32 %v2819, 0.0
        %v3828 = vmax.f32 %v2957, 0.0
        %v3829 = vmax.f32 %v3095, 0.0
        %v3830 = vmax.f32 %v3233, 0.0
        %v3831 = vmax.f32 %v3371, 0.0
        %v3832 = vmax.f32 %v3509, 0.0
        %v3833 = vmax.f32 %v1579, 0.0
        %v3834 = vmax.f32 %v1717, 0.0
        %v3835 = vmax.f32 %v1855, 0.0
        %v3836 = vmax.f32 %v1993, 0.0
        %v3837 = vmax.f32 %v2131, 0.0
        %v3838 = vmax.f32 %v2269, 0.0
        %v3839 = vmax.f32 %v2407, 0.0
        %v3840 = vmax.f32 %v2545, 0.0
        %v3841 = vmax.f32 %v2683, 0.0
        %v3842 = vmax.f32 %v2821, 0.0
        %v3843 = vmax.f32 %v2959, 0.0
        %v3844 = vmax.f32 %v3097, 0.0
        %v3845 = vmax.f32 %v3235, 0.0
        %v3846 = vmax.f32 %v3373, 0.0
        %v3847 = vmax.f32 %v3511, 0.0
        %v3848 = vmax.f32 %v1582, 0.0
        %v3849 = vmax.f32 %v1720, 0.0
        %v3850 = vmax.f32 %v1858, 0.0
        %v3851 = vmax.f32 %v1996, 0.0
        %v3852 = vmax.f32 %v2134, 0.0
        %v3853 = vmax.f32 %v2272, 0.0
        %v3854 = vmax.f32 %v2410, 0.0
        %v3855 = vmax.f32 %v2548, 0.0
        %v3856 = vmax.f32 %v2686, 0.0
        %v3857 = vmax.f32 %v2824, 0.0
        %v3858 = vmax.f32 %v2962, 0.0
        %v3859 = vmax.f32 %v3100, 0.0
        %v3860 = vmax.f32 %v3238, 0.0
        %v3861 = vmax.f32 %v3376, 0.0
        %v3862 = vmax.f32 %v3514, 0.0
        %v3863 = vmax.f32 %v1584, 0.0
        %v3864 = vmax.f32 %v1722, 0.0
        %v3865 = vmax.f32 %v1860, 0.0
        %v3866 = vmax.f32 %v1998, 0.0
        %v3867 = vmax.f32 %v2136, 0.0
        %v3868 = vmax.f32 %v2274, 0.0
        %v3869 = vmax.f32 %v2412, 0.0
        %v3870 = vmax.f32 %v2550, 0.0
        %v3871 = vmax.f32 %v2688, 0.0
        %v3872 = vmax.f32 %v2826, 0.0
        %v3873 = vmax.f32 %v2964, 0.0
        %v3874 = vmax.f32 %v3102, 0.0
        %v3875 = vmax.f32 %v3240, 0.0
        %v3876 = vmax.f32 %v3378, 0.0
        %v3877 = vmax.f32 %v3516, 0.0
        %v3878 = vmax.f32 %v3518, %v3521
        %v3879 = vmax.f32 %v3519, %v3522
        %v3880 = vmax.f32 %v3520, %v3523
        %v3881 = vmax.f32 %v3533, %v3536
        %v3882 = vmax.f32 %v3534, %v3537
        %v3883 = vmax.f32 %v3535, %v3538
        %v3884 = vmax.f32 %v3548, %v3551
        %v3885 = vmax.f32 %v3549, %v3552
        %v3886 = vmax.f32 %v3550, %v3553
        %v3887 = vmax.f32 %v3563, %v3566
        %v3888 = vmax.f32 %v3564, %v3567
        %v3889 = vmax.f32 %v3565, %v3568
        %v3890 = vmax.f32 %v3578, %v3581
        %v3891 = vmax.f32 %v3579, %v3582
        %v3892 = vmax.f32 %v3580, %v3583
        %v3893 = vmax.f32 %v3593, %v3596
        %v3894 = vmax.f32 %v3594, %v3597
        %v3895 = vmax.f32 %v3595, %v3598
        %v3896 = vmax.f32 %v3608, %v3611
        %v3897 = vmax.f32 %v3609, %v3612
        %v3898 = vmax.f32 %v3610, %v3613
        %v3899 = vmax.f32 %v3623, %v3626
        %v3900 = vmax.f32 %v3624, %v3627
        %v3901 = vmax.f32 %v3625, %v3628
        %v3902 = vmax.f32 %v3638, %v3641
        %v3903 = vmax.f32 %v3639, %v3642
        %v3904 = vmax.f32 %v3640, %v3643
        %v3905 = vmax.f32 %v3653, %v3656
        %v3906 = vmax.f32 %v3654, %v3657
        %v3907 = vmax.f32 %v3655, %v3658
        %v3908 = vmax.f32 %v3668, %v3671
        %v3909 = vmax.f32 %v3669, %v3672
        %v3910 = vmax.f32 %v3670, %v3673
        %v3911 = vmax.f32 %v3683, %v3686
        %v3912 = vmax.f32 %v3684, %v3687
        %v3913 = vmax.f32 %v3685, %v3688
        %v3914 = vmax.f32 %v3698, %v3701
        %v3915 = vmax.f32 %v3699, %v3702
        %v3916 = vmax.f32 %v3700, %v3703
        %v3917 = vmax.f32 %v3713, %v3716
        %v3918 = vmax.f32 %v3714, %v3717
        %v3919 = vmax.f32 %v3715, %v3718
        %v3920 = vmax.f32 %v3728, %v3731
        %v3921 = vmax.f32 %v3729, %v3732
        %v3922 = vmax.f32 %v3730, %v3733
        %v3923 = vmax.f32 %v3743, %v3746
        %v3924 = vmax.f32 %v3744, %v3747
        %v3925 = vmax.f32 %v3745, %v3748
        %v3926 = vmax.f32 %v3758, %v3761
        %v3927 = vmax.f32 %v3759, %v3762
        %v3928 = vmax.f32 %v3760, %v3763
        %v3929 = vmax.f32 %v3773, %v3776
        %v3930 = vmax.f32 %v3774, %v3777
        %v3931 = vmax.f32 %v3775, %v3778
        %v3932 = vmax.f32 %v3788, %v3791
        %v3933 = vmax.f32 %v3789, %v3792
        %v3934 = vmax.f32 %v3790, %v3793
        %v3935 = vmax.f32 %v3803, %v3806
        %v3936 = vmax.f32 %v3804, %v3807
        %v3937 = vmax.f32 %v3805, %v3808
        %v3938 = vmax.f32 %v3818, %v3821
        %v3939 = vmax.f32 %v3819, %v3822
        %v3940 = vmax.f32 %v3820, %v3823
        %v3941 = vmax.f32 %v3833, %v3836
        %v3942 = vmax.f32 %v3834, %v3837
        %v3943 = vmax.f32 %v3835, %v3838
        %v3944 = vmax.f32 %v3848, %v3851
        %v3945 = vmax.f32 %v3849, %v3852
        %v3946 = vmax.f32 %v3850, %v3853
        %v3947 = vmax.f32 %v3863, %v3866
        %v3948 = vmax.f32 %v3864, %v3867
        %v3949 = vmax.f32 %v3865, %v3868
        %v3950 = vmax.f32 %v3878, %v3524
        %v3951 = vmax.f32 %v3879, %v3525
        %v3952 = vmax.f32 %v3880, %v3526
        %v3953 = vmax.f32 %v3881, %v3539
        %v3954 = vmax.f32 %v3882, %v3540
        %v3955 = vmax.f32 %v3883, %v3541
        %v3956 = vmax.f32 %v3884, %v3554
        %v3957 = vmax.f32 %v3885, %v3555
        %v3958 = vmax.f32 %v3886, %v3556
        %v3959 = vmax.f32 %v3887, %v3569
        %v3960 = vmax.f32 %v3888, %v3570
        %v3961 = vmax.f32 %v3889, %v3571
        %v3962 = vmax.f32 %v3890, %v3584
        %v3963 = vmax.f32 %v3891, %v3585
        %v3964 = vmax.f32 %v3892, %v3586
        %v3965 = vmax.f32 %v3893, %v3599
        %v3966 = vmax.f32 %v3894, %v3600
        %v3967 = vmax.f32 %v3895, %v3601
        %v3968 = vmax.f32 %v3896, %v3614
        %v3969 = vmax.f32 %v3897, %v3615
        %v3970 = vmax.f32 %v3898, %v3616
        %v3971 = vmax.f32 %v3899, %v3629
        %v3972 = vmax.f32 %v3900, %v3630
        %v3973 = vmax.f32 %v3901, %v3631
        %v3974 = vmax.f32 %v3902, %v3644
        %v3975 = vmax.f32 %v3903, %v3645
        %v3976 = vmax.f32 %v3904, %v3646
        %v3977 = vmax.f32 %v3905, %v3659
        %v3978 = vmax.f32 %v3906, %v3660
        %v3979 = vmax.f32 %v3907, %v3661
        %v3980 = vmax.f32 %v3908, %v3674
        %v3981 = vmax.f32 %v3909, %v3675
        %v3982 = vmax.f32 %v3910, %v3676
        %v3983 = vmax.f32 %v3911, %v3689
        %v3984 = vmax.f32 %v3912, %v3690
        %v3985 = vmax.f32 %v3913, %v3691
        %v3986 = vmax.f32 %v3914, %v3704
        %v3987 = vmax.f32 %v3915, %v3705
        %v3988 = vmax.f32 %v3916, %v3706
        %v3989 = vmax.f32 %v3917, %v3719
        %v3990 = vmax.f32 %v3918, %v3720
        %v3991 = vmax.f32 %v3919, %v3721
        %v3992 = vmax.f32 %v3920, %v3734
        %v3993 = vmax.f32 %v3921, %v3735
        %v3994 = vmax.f32 %v3922, %v3736
        %v3995 = vmax.f32 %v3923, %v3749
        %v3996 = vmax.f32 %v3924, %v3750
        %v3997 = vmax.f32 %v3925, %v3751
        %v3998 = vmax.f32 %v3926, %v3764
        %v3999 = vmax.f32 %v3927, %v3765
        %v4000 = vmax.f32 %v3928, %v3766
        %v4001 = vmax.f32 %v3929, %v3779
        %v4002 = vmax.f32 %v3930, %v3780
        %v4003 = vmax.f32 %v3931, %v3781
        %v4004 = vmax.f32 %v3932, %v3794
        %v4005 = vmax.f32 %v3933, %v3795
        %v4006 = vmax.f32 %v3934, %v3796
        %v4007 = vmax.f32 %v3935, %v3809
        %v4008 = vmax.f32 %v3936, %v3810
        %v4009 = vmax.f32 %v3937, %v3811
        %v4010 = vmax.f32 %v3938, %v3824
        %v4011 = vmax.f32 %v3939, %v3825
        %v4012 = vmax.f32 %v3940, %v3826
        %v4013 = vmax.f32 %v3941, %v3839
        %v4014 = vmax.f32 %v3942, %v3840
        %v4015 = vmax.f32 %v3943, %v3841
        %v4016 = vmax.f32 %v3944, %v3854
        %v4017 = vmax.f32 %v3945, %v3855
        %v4018 = vmax.f32 %v3946, %v3856
        %v4019 = vmax.f32 %v3947, %v3869
        %v4020 = vmax.f32 %v3948, %v3870
        %v4021 = vmax.f32 %v3949, %v3871
        %v4022 = vmax.f32 %v3950, %v3527
        %v4023 = vmax.f32 %v3951, %v3528
        %v4024 = vmax.f32 %v3952, %v3529
        %v4025 = vmax.f32 %v3953, %v3542
        %v4026 = vmax.f32 %v3954, %v3543
        %v4027 = vmax.f32 %v3955, %v3544
        %v4028 = vmax.f32 %v3956, %v3557
        %v4029 = vmax.f32 %v3957, %v3558
        %v4030 = vmax.f32 %v3958, %v3559
        %v4031 = vmax.f32 %v3959, %v3572
        %v4032 = vmax.f32 %v3960, %v3573
        %v4033 = vmax.f32 %v3961, %v3574
        %v4034 = vmax.f32 %v3962, %v3587
        %v4035 = vmax.f32 %v3963, %v3588
        %v4036 = vmax.f32 %v3964, %v3589
        %v4037 = vmax.f32 %v3965, %v3602
        %v4038 = vmax.f32 %v3966, %v3603
        %v4039 = vmax.f32 %v3967, %v3604
        %v4040 = vmax.f32 %v3968, %v3617
        %v4041 = vmax.f32 %v3969, %v3618
        %v4042 = vmax.f32 %v3970, %v3619
        %v4043 = vmax.f32 %v3971, %v3632
        %v4044 = vmax.f32 %v3972, %v3633
        %v4045 = vmax.f32 %v3973, %v3634
        %v4046 = vmax.f32 %v3974, %v3647
        %v4047 = vmax.f32 %v3975, %v3648
        %v4048 = vmax.f32 %v3976, %v3649
        %v4049 = vmax.f32 %v3977, %v3662
        %v4050 = vmax.f32 %v3978, %v3663
        %v4051 = vmax.f32 %v3979, %v3664
        %v4052 = vmax.f32 %v3980, %v3677
        %v4053 = vmax.f32 %v3981, %v3678
        %v4054 = vmax.f32 %v3982, %v3679
        %v4055 = vmax.f32 %v3983, %v3692
        %v4056 = vmax.f32 %v3984, %v3693
        %v4057 = vmax.f32 %v3985, %v3694
        %v4058 = vmax.f32 %v3986, %v3707
        %v4059 = vmax.f32 %v3987, %v3708
        %v4060 = vmax.f32 %v3988, %v3709
        %v4061 = vmax.f32 %v3989, %v3722
        %v4062 = vmax.f32 %v3990, %v3723
        %v4063 = vmax.f32 %v3991, %v3724
        %v4064 = vmax.f32 %v3992, %v3737
        %v4065 = vmax.f32 %v3993, %v3738
        %v4066 = vmax.f32 %v3994, %v3739
        %v4067 = vmax.f32 %v3995, %v3752
        %v4068 = vmax.f32 %v3996, %v3753
        %v4069 = vmax.f32 %v3997, %v3754
        %v4070 = vmax.f32 %v3998, %v3767
        %v4071 = vmax.f32 %v3999, %v3768
        %v4072 = vmax.f32 %v4000, %v3769
        %v4073 = vmax.f32 %v4001, %v3782
        %v4074 = vmax.f32 %v4002, %v3783
        %v4075 = vmax.f32 %v4003, %v3784
        %v4076 = vmax.f32 %v4004, %v3797
        %v4077 = vmax.f32 %v4005, %v3798
        %v4078 = vmax.f32 %v4006, %v3799
        %v4079 = vmax.f32 %v4007, %v3812
        %v4080 = vmax.f32 %v4008, %v3813
        %v4081 = vmax.f32 %v4009, %v3814
        %v4082 = vmax.f32 %v4010, %v3827
        %v4083 = vmax.f32 %v4011, %v3828
        %v4084 = vmax.f32 %v4012, %v3829
        %v4085 = vmax.f32 %v4013, %v3842
        %v4086 = vmax.f32 %v4014, %v3843
        %v4087 = vmax.f32 %v4015, %v3844
        %v4088 = vmax.f32 %v4016, %v3857
        %v4089 = vmax.f32 %v4017, %v3858
        %v4090 = vmax.f32 %v4018, %v3859
        %v4091 = vmax.f32 %v4019, %v3872
        %v4092 = vmax.f32 %v4020, %v3873
        %v4093 = vmax.f32 %v4021, %v3874
        %v4094 = vmax.f32 %v4022, %v3530
        %v4095 = vmax.f32 %v4023, %v3531
        %v4096 = vmax.f32 %v4024, %v3532
        %v4097 = vmax.f32 %v4025, %v3545
        %v4098 = vmax.f32 %v4026, %v3546
        %v4099 = vmax.f32 %v4027, %v3547
        %v4100 = vmax.f32 %v4028, %v3560
        %v4101 = vmax.f32 %v4029, %v3561
        %v4102 = vmax.f32 %v4030, %v3562
        %v4103 = vmax.f32 %v4031, %v3575
        %v4104 = vmax.f32 %v4032, %v3576
        %v4105 = vmax.f32 %v4033, %v3577
        %v4106 = vmax.f32 %v4034, %v3590
        %v4107 = vmax.f32 %v4035, %v3591
        %v4108 = vmax.f32 %v4036, %v3592
        %v4109 = vmax.f32 %v4037, %v3605
        %v4110 = vmax.f32 %v4038, %v3606
        %v4111 = vmax.f32 %v4039, %v3607
        %v4112 = vmax.f32 %v4040, %v3620
        %v4113 = vmax.f32 %v4041, %v3621
        %v4114 = vmax.f32 %v4042, %v3622
        %v4115 = vmax.f32 %v4043, %v3635
        %v4116 = vmax.f32 %v4044, %v3636
        %v4117 = vmax.f32 %v4045, %v3637
        %v4118 = vmax.f32 %v4046, %v3650
        %v4119 = vmax.f32 %v4047, %v3651
        %v4120 = vmax.f32 %v4048, %v3652
        %v4121 = vmax.f32 %v4049, %v3665
        %v4122 = vmax.f32 %v4050, %v3666
        %v4123 = vmax.f32 %v4051, %v3667
        %v4124 = vmax.f32 %v4052, %v3680
        %v4125 = vmax.f32 %v4053, %v3681
        %v4126 = vmax.f32 %v4054, %v3682
        %v4127 = vmax.f32 %v4055, %v3695
        %v4128 = vmax.f32 %v4056, %v3696
        %v4129 = vmax.f32 %v4057, %v3697
        %v4130 = vmax.f32 %v4058, %v3710
        %v4131 = vmax.f32 %v4059, %v3711
        %v4132 = vmax.f32 %v4060, %v3712
        %v4133 = vmax.f32 %v4061, %v3725
        %v4134 = vmax.f32 %v4062, %v3726
        %v4135 = vmax.f32 %v4063, %v3727
        %v4136 = vmax.f32 %v4064, %v3740
        %v4137 = vmax.f32 %v4065, %v3741
        %v4138 = vmax.f32 %v4066, %v3742
        %v4139 = vmax.f32 %v4067, %v3755
        %v4140 = vmax.f32 %v4068, %v3756
        %v4141 = vmax.f32 %v4069, %v3757
        %v4142 = vmax.f32 %v4070, %v3770
        %v4143 = vmax.f32 %v4071, %v3771
        %v4144 = vmax.f32 %v4072, %v3772
        %v4145 = vmax.f32 %v4073, %v3785
        %v4146 = vmax.f32 %v4074, %v3786
        %v4147 = vmax.f32 %v4075, %v3787
        %v4148 = vmax.f32 %v4076, %v3800
        %v4149 = vmax.f32 %v4077, %v3801
        %v4150 = vmax.f32 %v4078, %v3802
        %v4151 = vmax.f32 %v4079, %v3815
        %v4152 = vmax.f32 %v4080, %v3816
        %v4153 = vmax.f32 %v4081, %v3817
        %v4154 = vmax.f32 %v4082, %v3830
        %v4155 = vmax.f32 %v4083, %v3831
        %v4156 = vmax.f32 %v4084, %v3832
        %v4157 = vmax.f32 %v4085, %v3845
        %v4158 = vmax.f32 %v4086, %v3846
        %v4159 = vmax.f32 %v4087, %v3847
        %v4160 = vmax.f32 %v4088, %v3860
        %v4161 = vmax.f32 %v4089, %v3861
        %v4162 = vmax.f32 %v4090, %v3862
        %v4163 = vmax.f32 %v4091, %v3875
        %v4164 = vmax.f32 %v4092, %v3876
        %v4165 = vmax.f32 %v4093, %v3877
        %v4166 = vmax.f32 %v4094, %v4097
        %v4167 = vmax.f32 %v4095, %v4098
        %v4168 = vmax.f32 %v4096, %v4099
        %v4169 = vmax.f32 %v4100, %v4103
        %v4170 = vmax.f32 %v4101, %v4104
        %v4171 = vmax.f32 %v4102, %v4105
        %v4172 = vmax.f32 %v4106, %v4109
        %v4173 = vmax.f32 %v4107, %v4110
        %v4174 = vmax.f32 %v4108, %v4111
        %v4175 = vmax.f32 %v4112, %v4115
        %v4176 = vmax.f32 %v4113, %v4116
        %v4177 = vmax.f32 %v4114, %v4117
        %v4178 = vmax.f32 %v4118, %v4121
        %v4179 = vmax.f32 %v4119, %v4122
        %v4180 = vmax.f32 %v4120, %v4123
        %v4181 = vmax.f32 %v4124, %v4127
        %v4182 = vmax.f32 %v4125, %v4128
        %v4183 = vmax.f32 %v4126, %v4129
        %v4184 = vmax.f32 %v4130, %v4133
        %v4185 = vmax.f32 %v4131, %v4134
        %v4186 = vmax.f32 %v4132, %v4135
        %v4187 = vmax.f32 %v4136, %v4139
        %v4188 = vmax.f32 %v4137, %v4140
        %v4189 = vmax.f32 %v4138, %v4141
        %v4190 = vmax.f32 %v4142, %v4145
        %v4191 = vmax.f32 %v4143, %v4146
        %v4192 = vmax.f32 %v4144, %v4147
        %v4193 = vmax.f32 %v4148, %v4151
        %v4194 = vmax.f32 %v4149, %v4152
        %v4195 = vmax.f32 %v4150, %v4153
        %v4196 = vmax.f32 %v4154, %v4157
        %v4197 = vmax.f32 %v4155, %v4158
        %v4198 = vmax.f32 %v4156, %v4159
        %v4199 = vmax.f32 %v4160, %v4163
        %v4200 = vmax.f32 %v4161, %v4164
        %v4201 = vmax.f32 %v4162, %v4165
        %v4202 = vmax.f32 %v4169, %v4166
        %v4203 = vmax.f32 %v4170, %v4167
        %v4204 = vmax.f32 %v4171, %v4168
        %v4205 = vmax.f32 %v4172, %v4169
        %v4206 = vmax.f32 %v4173, %v4170
        %v4207 = vmax.f32 %v4174, %v4171
        %v4208 = vmax.f32 %v4175, %v4172
        %v4209 = vmax.f32 %v4176, %v4173
        %v4210 = vmax.f32 %v4177, %v4174
        %v4211 = vmax.f32 %v4178, %v4175
        %v4212 = vmax.f32 %v4179, %v4176
        %v4213 = vmax.f32 %v4180, %v4177
        %v4214 = vmax.f32 %v4181, %v4178
        %v4215 = vmax.f32 %v4182, %v4179
        %v4216 = vmax.f32 %v4183, %v4180
        %v4217 = vmax.f32 %v4184, %v4181
        %v4218 = vmax.f32 %v4185, %v4182
        %v4219 = vmax.f32 %v4186, %v4183
        %v4220 = vmax.f32 %v4187, %v4184
        %v4221 = vmax.f32 %v4188, %v4185
        %v4222 = vmax.f32 %v4189, %v4186
        %v4223 = vmax.f32 %v4190, %v4187
        %v4224 = vmax.f32 %v4191, %v4188
        %v4225 = vmax.f32 %v4192, %v4189
        %v4226 = vmax.f32 %v4193, %v4190
        %v4227 = vmax.f32 %v4194, %v4191
        %v4228 = vmax.f32 %v4195, %v4192
        %v4229 = vmax.f32 %v4196, %v4193
        %v4230 = vmax.f32 %v4197, %v4194
        %v4231 = vmax.f32 %v4198, %v4195
        %v4232 = vmax.f32 %v4202, %v4106
        %v4233 = vmax.f32 %v4203, %v4107
        %v4234 = vmax.f32 %v4204, %v4108
        %v4235 = vmax.f32 %v4205, %v4112
        %v4236 = vmax.f32 %v4206, %v4113
        %v4237 = vmax.f32 %v4207, %v4114
        %v4238 = vmax.f32 %v4208, %v4118
        %v4239 = vmax.f32 %v4209, %v4119
        %v4240 = vmax.f32 %v4210, %v4120
        %v4241 = vmax.f32 %v4211, %v4124
        %v4242 = vmax.f32 %v4212, %v4125
        %v4243 = vmax.f32 %v4213, %v4126
        %v4244 = vmax.f32 %v4214, %v4130
        %v4245 = vmax.f32 %v4215, %v4131
        %v4246 = vmax.f32 %v4216, %v4132
        %v4247 = vmax.f32 %v4217, %v4136
        %v4248 = vmax.f32 %v4218, %v4137
        %v4249 = vmax.f32 %v4219, %v4138
        %v4250 = vmax.f32 %v4220, %v4142
        %v4251 = vmax.f32 %v4221, %v4143
        %v4252 = vmax.f32 %v4222, %v4144
        %v4253 = vmax.f32 %v4223, %v4148
        %v4254 = vmax.f32 %v4224, %v4149
        %v4255 = vmax.f32 %v4225, %v4150
        %v4256 = vmax.f32 %v4226, %v4154
        %v4257 = vmax.f32 %v4227, %v4155
        %v4258 = vmax.f32 %v4228, %v4156
        %v4259 = vmax.f32 %v4229, %v4160
        %v4260 = vmax.f32 %v4230, %v4161
        %v4261 = vmax.f32 %v4231, %v4162
        %v4262 = vmax.f32 %v4166, %v4100
        %v4263 = vmax.f32 %v4167, %v4101
        %v4264 = vmax.f32 %v4168, %v4102
        %v4265 = vmax.f32 %v4196, %v4199
        %v4266 = vmax.f32 %v4197, %v4200
        %v4267 = vmax.f32 %v4198, %v4201
        %v4268 = vpack.c.bf16 %v4232, %v4262
        %v4269 = vpack.c.bf16 %v4233, %v4263
        %v4270 = vpack.c.bf16 %v4234, %v4264
        %v4271 = vpack.c.bf16 %v4235, %v4232
        %v4272 = vpack.c.bf16 %v4236, %v4233
        %v4273 = vpack.c.bf16 %v4237, %v4234
        %v4274 = vpack.c.bf16 %v4238, %v4235
        %v4275 = vpack.c.bf16 %v4239, %v4236
        %v4276 = vpack.c.bf16 %v4240, %v4237
        %v4277 = vpack.c.bf16 %v4241, %v4238
        %v4278 = vpack.c.bf16 %v4242, %v4239
        %v4279 = vpack.c.bf16 %v4243, %v4240
        %v4280 = vpack.c.bf16 %v4244, %v4241
        %v4281 = vpack.c.bf16 %v4245, %v4242
        %v4282 = vpack.c.bf16 %v4246, %v4243
        %v4283 = vpack.c.bf16 %v4247, %v4244
        %v4284 = vpack.c.bf16 %v4248, %v4245
        %v4285 = vpack.c.bf16 %v4249, %v4246
        %v4286 = vpack.c.bf16 %v4250, %v4247
        %v4287 = vpack.c.bf16 %v4251, %v4248
        %v4288 = vpack.c.bf16 %v4252, %v4249
        %v4289 = vpack.c.bf16 %v4253, %v4250
        %v4290 = vpack.c.bf16 %v4254, %v4251
        %v4291 = vpack.c.bf16 %v4255, %v4252
        %v4292 = vpack.c.bf16 %v4256, %v4253
        %v4293 = vpack.c.bf16 %v4257, %v4254
        %v4294 = vpack.c.bf16 %v4258, %v4255
        %v4295 = vpack.c.bf16 %v4259, %v4256
        %v4296 = vpack.c.bf16 %v4260, %v4257
        %v4297 = vpack.c.bf16 %v4261, %v4258
        %v4298 = vpack.c.bf16 %v4265, %v4259
        %v4299 = vpack.c.bf16 %v4266, %v4260
        %v4300 = vpack.c.bf16 %v4267, %v4261
        %v4301 = vld [vmem:[%s3] sm:$0xff]
        %v4302 = vld [vmem:[%s3 + $0x8] sm:$0xff]
        %v4303 = vld [vmem:[%s3 + $0x10] sm:$0xff]
        %v4304 = vld [vmem:[%s3 + $0x18] sm:$0xff]
        %v4305 = vld [vmem:[%s3 + $0x20] sm:$0xff]
        %v4306 = vld [vmem:[%s3 + $0x28] sm:$0xff]
        %v4307 = vld [vmem:[%s3 + $0x30] sm:$0xff]
        %v4308 = vld [vmem:[%s3 + $0x38] sm:$0xff]
        %v4309 = vld [vmem:[%s3 + $0x40] sm:$0xff]
        %v4310 = vld [vmem:[%s3 + $0x48] sm:$0xff]
        %v4311 = vld [vmem:[%s3 + $0x50] sm:$0xff]
        %v4312 = vld [vmem:[%s3 + $0x58] sm:$0xff]
        %v4313 = vld [vmem:[%s3 + $0x60] sm:$0xff]
        %v4314 = vld [vmem:[%s3 + $0x68] sm:$0xff]
        %v4315 = vld [vmem:[%s3 + $0x70] sm:$0xff]
        %v4316 = vld [vmem:[%s3 + $0x78] sm:$0xff]
        %v4317 = vld [vmem:[%s3 + $0x80] sm:$0xff]
        %v4318 = vld [vmem:[%s3 + $0x88] sm:$0xff]
        %v4319 = vld [vmem:[%s3 + $0x90] sm:$0xff]
        %v4320 = vld [vmem:[%s3 + $0x98] sm:$0xff]
        %v4321 = vld [vmem:[%s3 + $0xa0] sm:$0xff]
        %v4322 = vld [vmem:[%s3 + $0xa8] sm:$0xff]
        %v4323 = vld [vmem:[%s3 + $0xb0] sm:$0xff]
        %v4324 = vld [vmem:[%s3 + $0xb8] sm:$0xff]
        %v4325 = vld [vmem:[%s3 + $0xc0] sm:$0xff]
        %v4326 = vld [vmem:[%s3 + $0xc8] sm:$0xff]
        %v4327 = vld [vmem:[%s3 + $0xd0] sm:$0xff]
        %v4328 = vld [vmem:[%s3 + $0xd8] sm:$0xff]
        %v4329 = vld [vmem:[%s3 + $0xe0] sm:$0xff]
        %v4330 = vld [vmem:[%s3 + $0xe8] sm:$0xff]
        %v4331 = vld [vmem:[%s3 + $0xf0] sm:$0xff]
        %v4332 = vld [vmem:[%s3 + $0xf8] sm:$0xff]
        %v4333 = vld [vmem:[%s3 + $0x100] sm:$0xff]
        %v4334 = vld [vmem:[%s3 + $0x108] sm:$0xff]
        %v4335 = vld [vmem:[%s3 + $0x110] sm:$0xff]
        %v4336 = vld [vmem:[%s3 + $0x118] sm:$0xff]
        %v4337 = vld [vmem:[%s3 + $0x120] sm:$0xff]
        %v4338 = vld [vmem:[%s3 + $0x128] sm:$0xff]
        %v4339 = vld [vmem:[%s3 + $0x130] sm:$0xff]
        %v4340 = vld [vmem:[%s3 + $0x138] sm:$0xff]
        %v4341 = vld [vmem:[%s3 + $0x140] sm:$0xff]
        %v4342 = vld [vmem:[%s3 + $0x148] sm:$0xff]
        %v4343 = vld [vmem:[%s3 + $0x150] sm:$0xff]
        %v4344 = vld [vmem:[%s3 + $0x158] sm:$0xff]
        %v4345 = vld [vmem:[%s3 + $0x160] sm:$0xff]
        %v4346 = vld [vmem:[%s3 + $0x168] sm:$0xff]
        %v4347 = vld [vmem:[%s3 + $0x170] sm:$0xff]
        %v4348 = vld [vmem:[%s3 + $0x178] sm:$0xff]
        %v4349 = vld [vmem:[%s3 + $0x180] sm:$0xff]
        %v4350 = vld [vmem:[%s3 + $0x188] sm:$0xff]
        %v4351 = vld [vmem:[%s3 + $0x190] sm:$0xff]
        %v4352 = vld [vmem:[%s3 + $0x198] sm:$0xff]
        %v4353 = vld [vmem:[%s3 + $0x1a0] sm:$0xff]
        %v4354 = vld [vmem:[%s3 + $0x1a8] sm:$0xff]
        %v4355 = vld [vmem:[%s3 + $0x1b0] sm:$0xff]
        %v4356 = vld [vmem:[%s3 + $0x1b8] sm:$0xff]
        %v4357 = vld [vmem:[%s3 + $0x1c0] sm:$0xff]
        %v4358 = vld [vmem:[%s3 + $0x1c8] sm:$0xff]
        %v4359 = vld [vmem:[%s3 + $0x1d0] sm:$0xff]
        %v4360 = vld [vmem:[%s3 + $0x1d8] sm:$0xff]
        %v4361 = vld [vmem:[%s3 + $0x1e0] sm:$0xff]
        %v4362 = vld [vmem:[%s3 + $0x1e8] sm:$0xff]
        %v4363 = vld [vmem:[%s3 + $0x1f0] sm:$0xff]
        %v4364 = vld [vmem:[%s3 + $0x1f8] sm:$0xff]
        %v4365 = vld [vmem:[%s3 + $0x200] sm:$0xff]
        %v4366 = vld [vmem:[%s3 + $0x208] sm:$0xff]
        %v4367 = vld [vmem:[%s3 + $0x210] sm:$0xff]
        %v4368 = vld [vmem:[%s3 + $0x218] sm:$0xff]
        %v4369 = vld [vmem:[%s3 + $0x220] sm:$0xff]
        %v4370 = vld [vmem:[%s3 + $0x228] sm:$0xff]
        %v4371 = vld [vmem:[%s3 + $0x230] sm:$0xff]
        %v4372 = vld [vmem:[%s3 + $0x238] sm:$0xff]
        %v4373 = vld [vmem:[%s3 + $0x240] sm:$0xff]
        %v4374 = vld [vmem:[%s3 + $0x248] sm:$0xff]
        %v4375 = vld [vmem:[%s3 + $0x250] sm:$0xff]
        %v4376 = vld [vmem:[%s3 + $0x258] sm:$0xff]
        %v4377 = vld [vmem:[%s3 + $0x260] sm:$0xff]
        %v4378 = vld [vmem:[%s3 + $0x268] sm:$0xff]
        %v4379 = vld [vmem:[%s3 + $0x270] sm:$0xff]
        %v4380 = vld [vmem:[%s3 + $0x278] sm:$0xff]
        %v4381 = vld [vmem:[%s3 + $0x280] sm:$0xff]
        %v4382 = vld [vmem:[%s3 + $0x288] sm:$0xff]
        %v4383 = vld [vmem:[%s3 + $0x290] sm:$0xff]
        %v4384 = vld [vmem:[%s3 + $0x298] sm:$0xff]
        %v4385 = vld [vmem:[%s3 + $0x2a0] sm:$0xff]
        %v4386 = vld [vmem:[%s3 + $0x2a8] sm:$0xff]
        %v4387 = vld [vmem:[%s3 + $0x2b0] sm:$0xff]
        %v4388 = vld [vmem:[%s3 + $0x2b8] sm:$0xff]
        %v4389 = vld [vmem:[%s3 + $0x2c0] sm:$0xff]
        %v4390 = vld [vmem:[%s3 + $0x2c8] sm:$0xff]
        %v4391 = vld [vmem:[%s3 + $0x2d0] sm:$0xff]
        %v4392 = vld [vmem:[%s3 + $0x2d8] sm:$0xff]
        %v4393 = vld [vmem:[%s3 + $0x2e0] sm:$0xff]
        %v4394 = vld [vmem:[%s3 + $0x2e8] sm:$0xff]
        %v4395 = vld [vmem:[%s3 + $0x2f0] sm:$0xff]
        %v4396 = vld [vmem:[%s3 + $0x2f8] sm:$0xff]
        %v4397 = vld [vmem:[%s3 + $0x300] sm:$0xff]
        %v4398 = vld [vmem:[%s3 + $0x308] sm:$0xff]
        %v4399 = vld [vmem:[%s3 + $0x310] sm:$0xff]
        %v4400 = vld [vmem:[%s3 + $0x318] sm:$0xff]
        %v4401 = vld [vmem:[%s3 + $0x320] sm:$0xff]
        %v4402 = vld [vmem:[%s3 + $0x328] sm:$0xff]
        %v4403 = vld [vmem:[%s3 + $0x330] sm:$0xff]
        %v4404 = vld [vmem:[%s3 + $0x338] sm:$0xff]
        %v4405 = vld [vmem:[%s3 + $0x340] sm:$0xff]
        %v4406 = vld [vmem:[%s3 + $0x348] sm:$0xff]
        %v4407 = vld [vmem:[%s3 + $0x350] sm:$0xff]
        %v4408 = vld [vmem:[%s3 + $0x358] sm:$0xff]
        %v4409 = vld [vmem:[%s3 + $0x360] sm:$0xff]
        %v4410 = vld [vmem:[%s3 + $0x368] sm:$0xff]
        %v4411 = vld [vmem:[%s3 + $0x370] sm:$0xff]
        %v4412 = vld [vmem:[%s3 + $0x378] sm:$0xff]
        %v4413 = vld [vmem:[%s3 + $0x380] sm:$0xff]
        %v4414 = vld [vmem:[%s3 + $0x388] sm:$0xff]
        %v4415 = vld [vmem:[%s3 + $0x390] sm:$0xff]
        %v4416 = vld [vmem:[%s3 + $0x398] sm:$0xff]
        %v4417 = vld [vmem:[%s3 + $0x3a0] sm:$0xff]
        %v4418 = vld [vmem:[%s3 + $0x3a8] sm:$0xff]
        %v4419 = vld [vmem:[%s3 + $0x3b0] sm:$0xff]
        %v4420 = vld [vmem:[%s3 + $0x3b8] sm:$0xff]
        %v4421 = vld [vmem:[%s3 + $0x3c0] sm:$0xff]
        %v4422 = vld [vmem:[%s3 + $0x3c8] sm:$0xff]
        %v4423 = vld [vmem:[%s3 + $0x3d0] sm:$0xff]
        %v4424 = vld [vmem:[%s3 + $0x3d8] sm:$0xff]
        %v4425 = vld [vmem:[%s3 + $0x3e0] sm:$0xff]
        %v4426 = vld [vmem:[%s3 + $0x3e8] sm:$0xff]
        %v4427 = vld [vmem:[%s3 + $0x3f0] sm:$0xff]
        %v4428 = vld [vmem:[%s3 + $0x3f8] sm:$0xff]
        %v4429 = vld [vmem:[%s3 + $0x400] sm:$0xff]
        %v4430 = vld [vmem:[%s3 + $0x408] sm:$0xff]
        %v4431 = vld [vmem:[%s3 + $0x410] sm:$0xff]
        %v4432 = vld [vmem:[%s3 + $0x418] sm:$0xff]
        %v4433 = vld [vmem:[%s3 + $0x420] sm:$0xff]
        %v4434 = vld [vmem:[%s3 + $0x428] sm:$0xff]
        %v4435 = vld [vmem:[%s3 + $0x430] sm:$0xff]
        %v4436 = vld [vmem:[%s3 + $0x438] sm:$0xff]
        %v4437 = vld [vmem:[%s3 + $0x440] sm:$0xff]
        %v4438 = vld [vmem:[%s3 + $0x448] sm:$0xff]
        %v4439 = vld [vmem:[%s3 + $0x450] sm:$0xff]
        %v4440 = vld [vmem:[%s3 + $0x458] sm:$0xff]
        %v4441 = vld [vmem:[%s3 + $0x460] sm:$0xff]
        %v4442 = vld [vmem:[%s3 + $0x468] sm:$0xff]
        %v4443 = vld [vmem:[%s3 + $0x470] sm:$0xff]
        %v4444 = vld [vmem:[%s3 + $0x478] sm:$0xff]
        %v4445 = vld [vmem:[%s3 + $0x480] sm:$0xff]
        %v4446 = vld [vmem:[%s3 + $0x488] sm:$0xff]
        %v4447 = vld [vmem:[%s3 + $0x490] sm:$0xff]
        %v4448 = vld [vmem:[%s3 + $0x498] sm:$0xff]
        %v4449 = vld [vmem:[%s3 + $0x4a0] sm:$0xff]
        %v4450 = vld [vmem:[%s3 + $0x4a8] sm:$0xff]
        %v4451 = vld [vmem:[%s3 + $0x4b0] sm:$0xff]
        %v4452 = vld [vmem:[%s3 + $0x4b8] sm:$0xff]
        %v4453 = vld [vmem:[%s3 + $0x4c0] sm:$0xff]
        %v4454 = vld [vmem:[%s3 + $0x4c8] sm:$0xff]
        %v4455 = vld [vmem:[%s3 + $0x4d0] sm:$0xff]
        %v4456 = vld [vmem:[%s3 + $0x4d8] sm:$0xff]
        %v4457 = vld [vmem:[%s3 + $0x4e0] sm:$0xff]
        %v4458 = vld [vmem:[%s3 + $0x4e8] sm:$0xff]
        %v4459 = vld [vmem:[%s3 + $0x4f0] sm:$0xff]
        %v4460 = vld [vmem:[%s3 + $0x4f8] sm:$0xff]
        %v4461 = vld [vmem:[%s3 + $0x500] sm:$0xff]
        %v4462 = vld [vmem:[%s3 + $0x508] sm:$0xff]
        %v4463 = vld [vmem:[%s3 + $0x510] sm:$0xff]
        %v4464 = vld [vmem:[%s3 + $0x518] sm:$0xff]
        %v4465 = vld [vmem:[%s3 + $0x520] sm:$0xff]
        %v4466 = vld [vmem:[%s3 + $0x528] sm:$0xff]
        %v4467 = vld [vmem:[%s3 + $0x530] sm:$0xff]
        %v4468 = vld [vmem:[%s3 + $0x538] sm:$0xff]
        %v4469 = vld [vmem:[%s3 + $0x540] sm:$0xff]
        %v4470 = vld [vmem:[%s3 + $0x548] sm:$0xff]
        %v4471 = vld [vmem:[%s3 + $0x550] sm:$0xff]
        %v4472 = vld [vmem:[%s3 + $0x558] sm:$0xff]
        %v4473 = vld [vmem:[%s3 + $0x560] sm:$0xff]
        %v4474 = vld [vmem:[%s3 + $0x568] sm:$0xff]
        %v4475 = vld [vmem:[%s3 + $0x570] sm:$0xff]
        %v4476 = vld [vmem:[%s3 + $0x578] sm:$0xff]
        %v4477 = vld [vmem:[%s3 + $0x580] sm:$0xff]
        %v4478 = vld [vmem:[%s3 + $0x588] sm:$0xff]
        %v4479 = vld [vmem:[%s3 + $0x590] sm:$0xff]
        %v4480 = vld [vmem:[%s3 + $0x598] sm:$0xff]
        %v4481 = vld [vmem:[%s3 + $0x5a0] sm:$0xff]
        %v4482 = vld [vmem:[%s3 + $0x5a8] sm:$0xff]
        %v4483 = vld [vmem:[%s3 + $0x5b0] sm:$0xff]
        %v4484 = vld [vmem:[%s3 + $0x5b8] sm:$0xff]
        %v4485 = vld [vmem:[%s3 + $0x5c0] sm:$0xff]
        %v4486 = vld [vmem:[%s3 + $0x5c8] sm:$0xff]
        %v4487 = vld [vmem:[%s3 + $0x5d0] sm:$0xff]
        %v4488 = vld [vmem:[%s3 + $0x5d8] sm:$0xff]
        %v4489 = vld [vmem:[%s3 + $0x5e0] sm:$0xff]
        %v4490 = vld [vmem:[%s3 + $0x5e8] sm:$0xff]
        %v4491 = vld [vmem:[%s3 + $0x5f0] sm:$0xff]
        %v4492 = vld [vmem:[%s3 + $0x5f8] sm:$0xff]
        %v4493 = vld [vmem:[%s3 + $0x600] sm:$0xff]
        %v4494 = vld [vmem:[%s3 + $0x608] sm:$0xff]
        %v4495 = vld [vmem:[%s3 + $0x610] sm:$0xff]
        %v4496 = vld [vmem:[%s3 + $0x618] sm:$0xff]
        %v4497 = vld [vmem:[%s3 + $0x620] sm:$0xff]
        %v4498 = vld [vmem:[%s3 + $0x628] sm:$0xff]
        %v4499 = vld [vmem:[%s3 + $0x630] sm:$0xff]
        %v4500 = vld [vmem:[%s3 + $0x638] sm:$0xff]
        %v4501 = vld [vmem:[%s3 + $0x640] sm:$0xff]
        %v4502 = vld [vmem:[%s3 + $0x648] sm:$0xff]
        %v4503 = vld [vmem:[%s3 + $0x650] sm:$0xff]
        %v4504 = vld [vmem:[%s3 + $0x658] sm:$0xff]
        %v4505 = vld [vmem:[%s3 + $0x660] sm:$0xff]
        %v4506 = vld [vmem:[%s3 + $0x668] sm:$0xff]
        %v4507 = vld [vmem:[%s3 + $0x670] sm:$0xff]
        %v4508 = vld [vmem:[%s3 + $0x678] sm:$0xff]
        %v4509 = vld [vmem:[%s3 + $0x680] sm:$0xff]
        %v4510 = vld [vmem:[%s3 + $0x688] sm:$0xff]
        %v4511 = vld [vmem:[%s3 + $0x690] sm:$0xff]
        %v4512 = vld [vmem:[%s3 + $0x698] sm:$0xff]
        %v4513 = vld [vmem:[%s3 + $0x6a0] sm:$0xff]
        %v4514 = vld [vmem:[%s3 + $0x6a8] sm:$0xff]
        %v4515 = vld [vmem:[%s3 + $0x6b0] sm:$0xff]
        %v4516 = vld [vmem:[%s3 + $0x6b8] sm:$0xff]
        %v4517 = vld [vmem:[%s3 + $0x6c0] sm:$0xff]
        %v4518 = vld [vmem:[%s3 + $0x6c8] sm:$0xff]
        %v4519 = vld [vmem:[%s3 + $0x6d0] sm:$0xff]
        %v4520 = vld [vmem:[%s3 + $0x6d8] sm:$0xff]
        %v4521 = vld [vmem:[%s3 + $0x6e0] sm:$0xff]
        %v4522 = vld [vmem:[%s3 + $0x6e8] sm:$0xff]
        %v4523 = vld [vmem:[%s3 + $0x6f0] sm:$0xff]
        %v4524 = vld [vmem:[%s3 + $0x6f8] sm:$0xff]
        %v4525 = vld [vmem:[%s3 + $0x700] sm:$0xff]
        %v4526 = vld [vmem:[%s3 + $0x708] sm:$0xff]
        %v4527 = vld [vmem:[%s3 + $0x710] sm:$0xff]
        %v4528 = vld [vmem:[%s3 + $0x718] sm:$0xff]
        %v4529 = vld [vmem:[%s3 + $0x720] sm:$0xff]
        %v4530 = vld [vmem:[%s3 + $0x728] sm:$0xff]
        %v4531 = vld [vmem:[%s3 + $0x730] sm:$0xff]
        %v4532 = vld [vmem:[%s3 + $0x738] sm:$0xff]
        %v4533 = vld [vmem:[%s3 + $0x740] sm:$0xff]
        %v4534 = vld [vmem:[%s3 + $0x748] sm:$0xff]
        %v4535 = vld [vmem:[%s3 + $0x750] sm:$0xff]
        %v4536 = vld [vmem:[%s3 + $0x758] sm:$0xff]
        %v4537 = vld [vmem:[%s3 + $0x760] sm:$0xff]
        %v4538 = vld [vmem:[%s3 + $0x768] sm:$0xff]
        %v4539 = vld [vmem:[%s3 + $0x770] sm:$0xff]
        %v4540 = vld [vmem:[%s3 + $0x778] sm:$0xff]
        %v4541 = vld [vmem:[%s3 + $0x780] sm:$0xff]
        %v4542 = vld [vmem:[%s3 + $0x788] sm:$0xff]
        %v4543 = vld [vmem:[%s3 + $0x790] sm:$0xff]
        %v4544 = vld [vmem:[%s3 + $0x798] sm:$0xff]
        %v4545 = vld [vmem:[%s3 + $0x7a0] sm:$0xff]
        %v4546 = vld [vmem:[%s3 + $0x7a8] sm:$0xff]
        %v4547 = vld [vmem:[%s3 + $0x7b0] sm:$0xff]
        %v4548 = vld [vmem:[%s3 + $0x7b8] sm:$0xff]
        %v4549 = vld [vmem:[%s3 + $0x7c0] sm:$0xff]
        %v4550 = vld [vmem:[%s3 + $0x7c8] sm:$0xff]
        %v4551 = vld [vmem:[%s3 + $0x7d0] sm:$0xff]
        %v4552 = vld [vmem:[%s3 + $0x7d8] sm:$0xff]
        %v4553 = vld [vmem:[%s3 + $0x7e0] sm:$0xff]
        %v4554 = vld [vmem:[%s3 + $0x7e8] sm:$0xff]
        %v4555 = vld [vmem:[%s3 + $0x7f0] sm:$0xff]
        %v4556 = vld [vmem:[%s3 + $0x7f8] sm:$0xff]
        %v4557 = vld [vmem:[%s3 + $0x800] sm:$0xff]
        %v4558 = vld [vmem:[%s3 + $0x808] sm:$0xff]
        %v4559 = vld [vmem:[%s3 + $0x810] sm:$0xff]
        %v4560 = vld [vmem:[%s3 + $0x818] sm:$0xff]
        %v4561 = vld [vmem:[%s3 + $0x820] sm:$0xff]
        %v4562 = vld [vmem:[%s3 + $0x828] sm:$0xff]
        %v4563 = vld [vmem:[%s3 + $0x830] sm:$0xff]
        %v4564 = vld [vmem:[%s3 + $0x838] sm:$0xff]
        %v4565 = vld [vmem:[%s3 + $0x840] sm:$0xff]
        %v4566 = vld [vmem:[%s3 + $0x848] sm:$0xff]
        %v4567 = vld [vmem:[%s3 + $0x850] sm:$0xff]
        %v4568 = vld [vmem:[%s3 + $0x858] sm:$0xff]
        %v4569 = vld [vmem:[%s3 + $0x860] sm:$0xff]
        %v4570 = vld [vmem:[%s3 + $0x868] sm:$0xff]
        %v4571 = vld [vmem:[%s3 + $0x870] sm:$0xff]
        %v4572 = vld [vmem:[%s3 + $0x878] sm:$0xff]
        %v4573 = vld [vmem:[%s3 + $0x880] sm:$0xff]
        %v4574 = vld [vmem:[%s3 + $0x888] sm:$0xff]
        %v4575 = vld [vmem:[%s3 + $0x890] sm:$0xff]
        %v4576 = vld [vmem:[%s3 + $0x898] sm:$0xff]
        %v4577 = vld [vmem:[%s3 + $0x8a0] sm:$0xff]
        %v4578 = vld [vmem:[%s3 + $0x8a8] sm:$0xff]
        %v4579 = vld [vmem:[%s3 + $0x8b0] sm:$0xff]
        %v4580 = vld [vmem:[%s3 + $0x8b8] sm:$0xff]
        %v4581 = vld [vmem:[%s3 + $0x8c0] sm:$0xff]
        %v4582 = vld [vmem:[%s3 + $0x8c8] sm:$0xff]
        %v4583 = vld [vmem:[%s3 + $0x8d0] sm:$0xff]
        %v4584 = vld [vmem:[%s3 + $0x8d8] sm:$0xff]
        %v4585 = vld [vmem:[%s3 + $0x8e0] sm:$0xff]
        %v4586 = vld [vmem:[%s3 + $0x8e8] sm:$0xff]
        %v4587 = vld [vmem:[%s3 + $0x8f0] sm:$0xff]
        %v4588 = vld [vmem:[%s3 + $0x8f8] sm:$0xff]
        %v4589 = vld [vmem:[%s3 + $0x900] sm:$0xff]
        %v4590 = vld [vmem:[%s3 + $0x908] sm:$0xff]
        %v4591 = vld [vmem:[%s3 + $0x910] sm:$0xff]
        %v4592 = vld [vmem:[%s3 + $0x918] sm:$0xff]
        %v4593 = vld [vmem:[%s3 + $0x920] sm:$0xff]
        %v4594 = vld [vmem:[%s3 + $0x928] sm:$0xff]
        %v4595 = vld [vmem:[%s3 + $0x930] sm:$0xff]
        %v4596 = vld [vmem:[%s3 + $0x938] sm:$0xff]
        %v4597 = vld [vmem:[%s3 + $0x940] sm:$0xff]
        %v4598 = vld [vmem:[%s3 + $0x948] sm:$0xff]
        %v4599 = vld [vmem:[%s3 + $0x950] sm:$0xff]
        %v4600 = vld [vmem:[%s3 + $0x958] sm:$0xff]
        %v4601 = vld [vmem:[%s3 + $0x960] sm:$0xff]
        %v4602 = vld [vmem:[%s3 + $0x968] sm:$0xff]
        %v4603 = vld [vmem:[%s3 + $0x970] sm:$0xff]
        %v4604 = vld [vmem:[%s3 + $0x978] sm:$0xff]
        %v4605 = vld [vmem:[%s3 + $0x980] sm:$0xff]
        %v4606 = vld [vmem:[%s3 + $0x988] sm:$0xff]
        %v4607 = vld [vmem:[%s3 + $0x990] sm:$0xff]
        %v4608 = vld [vmem:[%s3 + $0x998] sm:$0xff]
        %v4609 = vld [vmem:[%s3 + $0x9a0] sm:$0xff]
        %v4610 = vld [vmem:[%s3 + $0x9a8] sm:$0xff]
        %v4611 = vld [vmem:[%s3 + $0x9b0] sm:$0xff]
        %v4612 = vld [vmem:[%s3 + $0x9b8] sm:$0xff]
        %v4613 = vld [vmem:[%s3 + $0x9c0] sm:$0xff]
        %v4614 = vld [vmem:[%s3 + $0x9c8] sm:$0xff]
        %v4615 = vld [vmem:[%s3 + $0x9d0] sm:$0xff]
        %v4616 = vld [vmem:[%s3 + $0x9d8] sm:$0xff]
        %v4617 = vld [vmem:[%s3 + $0x9e0] sm:$0xff]
        %v4618 = vld [vmem:[%s3 + $0x9e8] sm:$0xff]
        %v4619 = vld [vmem:[%s3 + $0x9f0] sm:$0xff]
        %v4620 = vld [vmem:[%s3 + $0x9f8] sm:$0xff]
        %v4621 = vld [vmem:[%s3 + $0xa00] sm:$0xff]
        %v4622 = vld [vmem:[%s3 + $0xa08] sm:$0xff]
        %v4623 = vld [vmem:[%s3 + $0xa10] sm:$0xff]
        %v4624 = vld [vmem:[%s3 + $0xa18] sm:$0xff]
        %v4625 = vld [vmem:[%s3 + $0xa20] sm:$0xff]
        %v4626 = vld [vmem:[%s3 + $0xa28] sm:$0xff]
        %v4627 = vld [vmem:[%s3 + $0xa30] sm:$0xff]
        %v4628 = vld [vmem:[%s3 + $0xa38] sm:$0xff]
        %v4629 = vld [vmem:[%s3 + $0xa40] sm:$0xff]
        %v4630 = vld [vmem:[%s3 + $0xa48] sm:$0xff]
        %v4631 = vld [vmem:[%s3 + $0xa50] sm:$0xff]
        %v4632 = vld [vmem:[%s3 + $0xa58] sm:$0xff]
        %v4633 = vld [vmem:[%s3 + $0xa60] sm:$0xff]
        %v4634 = vld [vmem:[%s3 + $0xa68] sm:$0xff]
        %v4635 = vld [vmem:[%s3 + $0xa70] sm:$0xff]
        %v4636 = vld [vmem:[%s3 + $0xa78] sm:$0xff]
        %v4637 = vld [vmem:[%s3 + $0xa80] sm:$0xff]
        %v4638 = vld [vmem:[%s3 + $0xa88] sm:$0xff]
        %v4639 = vld [vmem:[%s3 + $0xa90] sm:$0xff]
        %v4640 = vld [vmem:[%s3 + $0xa98] sm:$0xff]
        %v4641 = vld [vmem:[%s3 + $0xaa0] sm:$0xff]
        %v4642 = vld [vmem:[%s3 + $0xaa8] sm:$0xff]
        %v4643 = vld [vmem:[%s3 + $0xab0] sm:$0xff]
        %v4644 = vld [vmem:[%s3 + $0xab8] sm:$0xff]
        %v4645 = vld [vmem:[%s3 + $0xac0] sm:$0xff]
        %v4646 = vld [vmem:[%s3 + $0xac8] sm:$0xff]
        %v4647 = vld [vmem:[%s3 + $0xad0] sm:$0xff]
        %v4648 = vld [vmem:[%s3 + $0xad8] sm:$0xff]
        %v4649 = vld [vmem:[%s3 + $0xae0] sm:$0xff]
        %v4650 = vld [vmem:[%s3 + $0xae8] sm:$0xff]
        %v4651 = vld [vmem:[%s3 + $0xaf0] sm:$0xff]
        %v4652 = vld [vmem:[%s3 + $0xaf8] sm:$0xff]
        %v4653 = vld [vmem:[%s3 + $0xb00] sm:$0xff]
        %v4654 = vld [vmem:[%s3 + $0xb08] sm:$0xff]
        %v4655 = vld [vmem:[%s3 + $0xb10] sm:$0xff]
        %v4656 = vld [vmem:[%s3 + $0xb18] sm:$0xff]
        %v4657 = vld [vmem:[%s3 + $0xb20] sm:$0xff]
        %v4658 = vld [vmem:[%s3 + $0xb28] sm:$0xff]
        %v4659 = vld [vmem:[%s3 + $0xb30] sm:$0xff]
        %v4660 = vld [vmem:[%s3 + $0xb38] sm:$0xff]
        %v4661 = vld [vmem:[%s3 + $0xb40] sm:$0xff]
        %v4662 = vld [vmem:[%s3 + $0xb48] sm:$0xff]
        %v4663 = vld [vmem:[%s3 + $0xb50] sm:$0xff]
        %v4664 = vld [vmem:[%s3 + $0xb58] sm:$0xff]
        %v4665 = vld [vmem:[%s3 + $0xb60] sm:$0xff]
        %v4666 = vld [vmem:[%s3 + $0xb68] sm:$0xff]
        %v4667 = vld [vmem:[%s3 + $0xb70] sm:$0xff]
        %v4668 = vld [vmem:[%s3 + $0xb78] sm:$0xff]
        %v4669 = vld [vmem:[%s3 + $0xb80] sm:$0xff]
        %v4670 = vld [vmem:[%s3 + $0xb88] sm:$0xff]
        %v4671 = vld [vmem:[%s3 + $0xb90] sm:$0xff]
        %v4672 = vld [vmem:[%s3 + $0xb98] sm:$0xff]
        %v4673 = vld [vmem:[%s3 + $0xba0] sm:$0xff]
        %v4674 = vld [vmem:[%s3 + $0xba8] sm:$0xff]
        %v4675 = vld [vmem:[%s3 + $0xbb0] sm:$0xff]
        %v4676 = vld [vmem:[%s3 + $0xbb8] sm:$0xff]
        %v4677 = vld [vmem:[%s3 + $0xbc0] sm:$0xff]
        %v4678 = vld [vmem:[%s3 + $0xbc8] sm:$0xff]
        %v4679 = vld [vmem:[%s3 + $0xbd0] sm:$0xff]
        %v4680 = vld [vmem:[%s3 + $0xbd8] sm:$0xff]
        %v4681 = vld [vmem:[%s3 + $0xbe0] sm:$0xff]
        %v4682 = vld [vmem:[%s3 + $0xbe8] sm:$0xff]
        %v4683 = vld [vmem:[%s3 + $0xbf0] sm:$0xff]
        %v4684 = vld [vmem:[%s3 + $0xbf8] sm:$0xff]
        %v4685 = vld [vmem:[%s3 + $0xc00] sm:$0xff]
        %v4686 = vld [vmem:[%s3 + $0xc08] sm:$0xff]
        %v4687 = vld [vmem:[%s3 + $0xc10] sm:$0xff]
        %v4688 = vld [vmem:[%s3 + $0xc18] sm:$0xff]
        %v4689 = vld [vmem:[%s3 + $0xc20] sm:$0xff]
        %v4690 = vld [vmem:[%s3 + $0xc28] sm:$0xff]
        %v4691 = vld [vmem:[%s3 + $0xc30] sm:$0xff]
        %v4692 = vld [vmem:[%s3 + $0xc38] sm:$0xff]
        %v4693 = vld [vmem:[%s3 + $0xc40] sm:$0xff]
        %v4694 = vld [vmem:[%s3 + $0xc48] sm:$0xff]
        %v4695 = vld [vmem:[%s3 + $0xc50] sm:$0xff]
        %v4696 = vld [vmem:[%s3 + $0xc58] sm:$0xff]
        %v4697 = vld [vmem:[%s3 + $0xc60] sm:$0xff]
        %v4698 = vld [vmem:[%s3 + $0xc68] sm:$0xff]
        %v4699 = vld [vmem:[%s3 + $0xc70] sm:$0xff]
        %v4700 = vld [vmem:[%s3 + $0xc78] sm:$0xff]
        %v4701 = vld [vmem:[%s3 + $0xc80] sm:$0xff]
        %v4702 = vld [vmem:[%s3 + $0xc88] sm:$0xff]
        %v4703 = vld [vmem:[%s3 + $0xc90] sm:$0xff]
        %v4704 = vld [vmem:[%s3 + $0xc98] sm:$0xff]
        %v4705 = vld [vmem:[%s3 + $0xca0] sm:$0xff]
        %v4706 = vld [vmem:[%s3 + $0xca8] sm:$0xff]
        %v4707 = vld [vmem:[%s3 + $0xcb0] sm:$0xff]
        %v4708 = vld [vmem:[%s3 + $0xcb8] sm:$0xff]
        %v4709 = vld [vmem:[%s3 + $0xcc0] sm:$0xff]
        %v4710 = vld [vmem:[%s3 + $0xcc8] sm:$0xff]
        %v4711 = vld [vmem:[%s3 + $0xcd0] sm:$0xff]
        %v4712 = vld [vmem:[%s3 + $0xcd8] sm:$0xff]
        %v4713 = vld [vmem:[%s3 + $0xce0] sm:$0xff]
        %v4714 = vld [vmem:[%s3 + $0xce8] sm:$0xff]
        %v4715 = vld [vmem:[%s3 + $0xcf0] sm:$0xff]
        %v4716 = vld [vmem:[%s3 + $0xcf8] sm:$0xff]
        %v4717 = vld [vmem:[%s3 + $0xd00] sm:$0xff]
        %v4718 = vld [vmem:[%s3 + $0xd08] sm:$0xff]
        %v4719 = vld [vmem:[%s3 + $0xd10] sm:$0xff]
        %v4720 = vld [vmem:[%s3 + $0xd18] sm:$0xff]
        %v4721 = vld [vmem:[%s3 + $0xd20] sm:$0xff]
        %v4722 = vld [vmem:[%s3 + $0xd28] sm:$0xff]
        %v4723 = vld [vmem:[%s3 + $0xd30] sm:$0xff]
        %v4724 = vld [vmem:[%s3 + $0xd38] sm:$0xff]
        %v4725 = vld [vmem:[%s3 + $0xd40] sm:$0xff]
        %v4726 = vld [vmem:[%s3 + $0xd48] sm:$0xff]
        %v4727 = vld [vmem:[%s3 + $0xd50] sm:$0xff]
        %v4728 = vld [vmem:[%s3 + $0xd58] sm:$0xff]
        %v4729 = vld [vmem:[%s3 + $0xd60] sm:$0xff]
        %v4730 = vld [vmem:[%s3 + $0xd68] sm:$0xff]
        %v4731 = vld [vmem:[%s3 + $0xd70] sm:$0xff]
        %v4732 = vld [vmem:[%s3 + $0xd78] sm:$0xff]
        %v4733 = vld [vmem:[%s3 + $0xd80] sm:$0xff]
        %v4734 = vld [vmem:[%s3 + $0xd88] sm:$0xff]
        %v4735 = vld [vmem:[%s3 + $0xd90] sm:$0xff]
        %v4736 = vld [vmem:[%s3 + $0xd98] sm:$0xff]
        %v4737 = vld [vmem:[%s3 + $0xda0] sm:$0xff]
        %v4738 = vld [vmem:[%s3 + $0xda8] sm:$0xff]
        %v4739 = vld [vmem:[%s3 + $0xdb0] sm:$0xff]
        %v4740 = vld [vmem:[%s3 + $0xdb8] sm:$0xff]
        %v4741 = vld [vmem:[%s3 + $0xdc0] sm:$0xff]
        %v4742 = vld [vmem:[%s3 + $0xdc8] sm:$0xff]
        %v4743 = vld [vmem:[%s3 + $0xdd0] sm:$0xff]
        %v4744 = vld [vmem:[%s3 + $0xdd8] sm:$0xff]
        %v4745 = vld [vmem:[%s3 + $0xde0] sm:$0xff]
        %v4746 = vld [vmem:[%s3 + $0xde8] sm:$0xff]
        %v4747 = vld [vmem:[%s3 + $0xdf0] sm:$0xff]
        %v4748 = vld [vmem:[%s3 + $0xdf8] sm:$0xff]
        %v4749 = vld [vmem:[%s3 + $0xe00] sm:$0xff]
        %v4750 = vld [vmem:[%s3 + $0xe08] sm:$0xff]
        %v4751 = vld [vmem:[%s3 + $0xe10] sm:$0xff]
        %v4752 = vld [vmem:[%s3 + $0xe18] sm:$0xff]
        %v4753 = vld [vmem:[%s3 + $0xe20] sm:$0xff]
        %v4754 = vld [vmem:[%s3 + $0xe28] sm:$0xff]
        %v4755 = vld [vmem:[%s3 + $0xe30] sm:$0xff]
        %v4756 = vld [vmem:[%s3 + $0xe38] sm:$0xff]
        %v4757 = vld [vmem:[%s3 + $0xe40] sm:$0xff]
        %v4758 = vld [vmem:[%s3 + $0xe48] sm:$0xff]
        %v4759 = vld [vmem:[%s3 + $0xe50] sm:$0xff]
        %v4760 = vld [vmem:[%s3 + $0xe58] sm:$0xff]
        %v4761 = vld [vmem:[%s3 + $0xe60] sm:$0xff]
        %v4762 = vld [vmem:[%s3 + $0xe68] sm:$0xff]
        %v4763 = vld [vmem:[%s3 + $0xe70] sm:$0xff]
        %v4764 = vld [vmem:[%s3 + $0xe78] sm:$0xff]
        %v4765 = vld [vmem:[%s3 + $0xe80] sm:$0xff]
        %v4766 = vld [vmem:[%s3 + $0xe88] sm:$0xff]
        %v4767 = vld [vmem:[%s3 + $0xe90] sm:$0xff]
        %v4768 = vld [vmem:[%s3 + $0xe98] sm:$0xff]
        %v4769 = vld [vmem:[%s3 + $0xea0] sm:$0xff]
        %v4770 = vld [vmem:[%s3 + $0xea8] sm:$0xff]
        %v4771 = vld [vmem:[%s3 + $0xeb0] sm:$0xff]
        %v4772 = vld [vmem:[%s3 + $0xeb8] sm:$0xff]
        %v4773 = vld [vmem:[%s3 + $0xec0] sm:$0xff]
        %v4774 = vld [vmem:[%s3 + $0xec8] sm:$0xff]
        %v4775 = vld [vmem:[%s3 + $0xed0] sm:$0xff]
        %v4776 = vld [vmem:[%s3 + $0xed8] sm:$0xff]
        %v4777 = vld [vmem:[%s3 + $0xee0] sm:$0xff]
        %v4778 = vld [vmem:[%s3 + $0xee8] sm:$0xff]
        %v4779 = vld [vmem:[%s3 + $0xef0] sm:$0xff]
        %v4780 = vld [vmem:[%s3 + $0xef8] sm:$0xff]
        %v4781 = vld [vmem:[%s4] sm:$0xf]
        %v4783 = vperm.slane %v4781, 0
        %v4784 = vperm.slane %v4781, 1
        %v4785 = vperm.slane %v4781, 2
        %v4786 = vperm.slane %v4781, 3
        %v5271 = vunpack.c.l.b16 %v4301
        %v5272 = vunpack.c.h.b16 %v4301
        %v5273 = vunpack.c.l.b16 %v4302
        %v5274 = vunpack.c.h.b16 %v4302
        %v5275 = vunpack.c.l.b16 %v4303
        %v5276 = vunpack.c.h.b16 %v4303
        %v5277 = vunpack.c.l.b16 %v4304
        %v5278 = vunpack.c.h.b16 %v4304
        %v5279 = vunpack.c.l.b16 %v4305
        %v5280 = vunpack.c.h.b16 %v4305
        %v5281 = vunpack.c.l.b16 %v4306
        %v5282 = vunpack.c.h.b16 %v4306
        %v5283 = vunpack.c.l.b16 %v4307
        %v5284 = vunpack.c.h.b16 %v4307
        %v5285 = vunpack.c.l.b16 %v4308
        %v5286 = vunpack.c.h.b16 %v4308
        %v5287 = vunpack.c.l.b16 %v4309
        %v5288 = vunpack.c.h.b16 %v4309
        %v5289 = vunpack.c.l.b16 %v4310
        %v5290 = vunpack.c.h.b16 %v4310
        %v5291 = vunpack.c.l.b16 %v4311
        %v5292 = vunpack.c.h.b16 %v4311
        %v5293 = vunpack.c.l.b16 %v4312
        %v5294 = vunpack.c.h.b16 %v4312
        %v5295 = vunpack.c.l.b16 %v4313
        %v5296 = vunpack.c.h.b16 %v4313
        %v5297 = vunpack.c.l.b16 %v4314
        %v5298 = vunpack.c.h.b16 %v4314
        %v5299 = vunpack.c.l.b16 %v4315
        %v5300 = vunpack.c.h.b16 %v4315
        %v5301 = vunpack.c.l.b16 %v4316
        %v5302 = vunpack.c.h.b16 %v4316
        %v5303 = vunpack.c.l.b16 %v4317
        %v5304 = vunpack.c.h.b16 %v4317
        %v5305 = vunpack.c.l.b16 %v4318
        %v5306 = vunpack.c.h.b16 %v4318
        %v5307 = vunpack.c.l.b16 %v4319
        %v5308 = vunpack.c.h.b16 %v4319
        %v5309 = vunpack.c.l.b16 %v4320
        %v5310 = vunpack.c.h.b16 %v4320
        %v5311 = vunpack.c.l.b16 %v4321
        %v5312 = vunpack.c.h.b16 %v4321
        %v5313 = vunpack.c.l.b16 %v4322
        %v5314 = vunpack.c.h.b16 %v4322
        %v5315 = vunpack.c.l.b16 %v4323
        %v5316 = vunpack.c.h.b16 %v4323
        %v5317 = vunpack.c.l.b16 %v4324
        %v5318 = vunpack.c.h.b16 %v4324
        %v5319 = vunpack.c.l.b16 %v4325
        %v5320 = vunpack.c.h.b16 %v4325
        %v5321 = vunpack.c.l.b16 %v4326
        %v5322 = vunpack.c.h.b16 %v4326
        %v5323 = vunpack.c.l.b16 %v4327
        %v5324 = vunpack.c.h.b16 %v4327
        %v5325 = vunpack.c.l.b16 %v4328
        %v5326 = vunpack.c.h.b16 %v4328
        %v5327 = vunpack.c.l.b16 %v4329
        %v5328 = vunpack.c.h.b16 %v4329
        %v5329 = vunpack.c.l.b16 %v4330
        %v5330 = vunpack.c.h.b16 %v4330
        %v5331 = vunpack.c.l.b16 %v4331
        %v5332 = vunpack.c.h.b16 %v4331
        %v5333 = vunpack.c.l.b16 %v4332
        %v5334 = vunpack.c.h.b16 %v4332
        %v5335 = vunpack.c.l.b16 %v4333
        %v5336 = vunpack.c.h.b16 %v4333
        %v5337 = vunpack.c.l.b16 %v4334
        %v5338 = vunpack.c.h.b16 %v4334
        %v5339 = vunpack.c.l.b16 %v4335
        %v5340 = vunpack.c.h.b16 %v4335
        %v5341 = vunpack.c.l.b16 %v4336
        %v5342 = vunpack.c.h.b16 %v4336
        %v5343 = vunpack.c.l.b16 %v4337
        %v5344 = vunpack.c.h.b16 %v4337
        %v5345 = vunpack.c.l.b16 %v4338
        %v5346 = vunpack.c.h.b16 %v4338
        %v5347 = vunpack.c.l.b16 %v4339
        %v5348 = vunpack.c.h.b16 %v4339
        %v5349 = vunpack.c.l.b16 %v4340
        %v5350 = vunpack.c.h.b16 %v4340
        %v5351 = vunpack.c.l.b16 %v4341
        %v5352 = vunpack.c.h.b16 %v4341
        %v5353 = vunpack.c.l.b16 %v4342
        %v5354 = vunpack.c.h.b16 %v4342
        %v5355 = vunpack.c.l.b16 %v4343
        %v5356 = vunpack.c.h.b16 %v4343
        %v5357 = vunpack.c.l.b16 %v4344
        %v5358 = vunpack.c.h.b16 %v4344
        %v5359 = vunpack.c.l.b16 %v4345
        %v5360 = vunpack.c.h.b16 %v4345
        %v5361 = vunpack.c.l.b16 %v4346
        %v5362 = vunpack.c.h.b16 %v4346
        %v5363 = vunpack.c.l.b16 %v4347
        %v5364 = vunpack.c.h.b16 %v4347
        %v5365 = vunpack.c.l.b16 %v4348
        %v5366 = vunpack.c.h.b16 %v4348
        %v5367 = vunpack.c.l.b16 %v4349
        %v5368 = vunpack.c.h.b16 %v4349
        %v5369 = vunpack.c.l.b16 %v4350
        %v5370 = vunpack.c.h.b16 %v4350
        %v5371 = vunpack.c.l.b16 %v4351
        %v5372 = vunpack.c.h.b16 %v4351
        %v5373 = vunpack.c.l.b16 %v4352
        %v5374 = vunpack.c.h.b16 %v4352
        %v5375 = vunpack.c.l.b16 %v4353
        %v5376 = vunpack.c.h.b16 %v4353
        %v5377 = vunpack.c.l.b16 %v4354
        %v5378 = vunpack.c.h.b16 %v4354
        %v5379 = vunpack.c.l.b16 %v4355
        %v5380 = vunpack.c.h.b16 %v4355
        %v5381 = vunpack.c.l.b16 %v4356
        %v5382 = vunpack.c.h.b16 %v4356
        %v5383 = vunpack.c.l.b16 %v4357
        %v5384 = vunpack.c.h.b16 %v4357
        %v5385 = vunpack.c.l.b16 %v4358
        %v5386 = vunpack.c.h.b16 %v4358
        %v5387 = vunpack.c.l.b16 %v4359
        %v5388 = vunpack.c.h.b16 %v4359
        %v5389 = vunpack.c.l.b16 %v4360
        %v5390 = vunpack.c.h.b16 %v4360
        %v5391 = vunpack.c.l.b16 %v4361
        %v5392 = vunpack.c.h.b16 %v4361
        %v5393 = vunpack.c.l.b16 %v4362
        %v5394 = vunpack.c.h.b16 %v4362
        %v5395 = vunpack.c.l.b16 %v4363
        %v5396 = vunpack.c.h.b16 %v4363
        %v5397 = vunpack.c.l.b16 %v4364
        %v5398 = vunpack.c.h.b16 %v4364
        %v5399 = vunpack.c.l.b16 %v4365
        %v5400 = vunpack.c.h.b16 %v4365
        %v5401 = vunpack.c.l.b16 %v4366
        %v5402 = vunpack.c.h.b16 %v4366
        %v5403 = vunpack.c.l.b16 %v4367
        %v5404 = vunpack.c.h.b16 %v4367
        %v5405 = vunpack.c.l.b16 %v4368
        %v5406 = vunpack.c.h.b16 %v4368
        %v5407 = vunpack.c.l.b16 %v4369
        %v5408 = vunpack.c.h.b16 %v4369
        %v5409 = vunpack.c.l.b16 %v4370
        %v5410 = vunpack.c.h.b16 %v4370
        %v5411 = vunpack.c.l.b16 %v4371
        %v5412 = vunpack.c.h.b16 %v4371
        %v5413 = vunpack.c.l.b16 %v4372
        %v5414 = vunpack.c.h.b16 %v4372
        %v5415 = vunpack.c.l.b16 %v4373
        %v5416 = vunpack.c.h.b16 %v4373
        %v5417 = vunpack.c.l.b16 %v4374
        %v5418 = vunpack.c.h.b16 %v4374
        %v5419 = vunpack.c.l.b16 %v4375
        %v5420 = vunpack.c.h.b16 %v4375
        %v5421 = vunpack.c.l.b16 %v4376
        %v5422 = vunpack.c.h.b16 %v4376
        %v5423 = vunpack.c.l.b16 %v4377
        %v5424 = vunpack.c.h.b16 %v4377
        %v5425 = vunpack.c.l.b16 %v4378
        %v5426 = vunpack.c.h.b16 %v4378
        %v5427 = vunpack.c.l.b16 %v4379
        %v5428 = vunpack.c.h.b16 %v4379
        %v5429 = vunpack.c.l.b16 %v4380
        %v5430 = vunpack.c.h.b16 %v4380
        %v5431 = vunpack.c.l.b16 %v4381
        %v5432 = vunpack.c.h.b16 %v4381
        %v5433 = vunpack.c.l.b16 %v4382
        %v5434 = vunpack.c.h.b16 %v4382
        %v5435 = vunpack.c.l.b16 %v4383
        %v5436 = vunpack.c.h.b16 %v4383
        %v5437 = vunpack.c.l.b16 %v4384
        %v5438 = vunpack.c.h.b16 %v4384
        %v5439 = vunpack.c.l.b16 %v4385
        %v5440 = vunpack.c.h.b16 %v4385
        %v5441 = vunpack.c.l.b16 %v4386
        %v5442 = vunpack.c.h.b16 %v4386
        %v5443 = vunpack.c.l.b16 %v4387
        %v5444 = vunpack.c.h.b16 %v4387
        %v5445 = vunpack.c.l.b16 %v4388
        %v5446 = vunpack.c.h.b16 %v4388
        %v5447 = vunpack.c.l.b16 %v4389
        %v5448 = vunpack.c.h.b16 %v4389
        %v5449 = vunpack.c.l.b16 %v4390
        %v5450 = vunpack.c.h.b16 %v4390
        %v5451 = vunpack.c.l.b16 %v4391
        %v5452 = vunpack.c.h.b16 %v4391
        %v5453 = vunpack.c.l.b16 %v4392
        %v5454 = vunpack.c.h.b16 %v4392
        %v5455 = vunpack.c.l.b16 %v4393
        %v5456 = vunpack.c.h.b16 %v4393
        %v5457 = vunpack.c.l.b16 %v4394
        %v5458 = vunpack.c.h.b16 %v4394
        %v5459 = vunpack.c.l.b16 %v4395
        %v5460 = vunpack.c.h.b16 %v4395
        %v5461 = vunpack.c.l.b16 %v4396
        %v5462 = vunpack.c.h.b16 %v4396
        %v5463 = vunpack.c.l.b16 %v4397
        %v5464 = vunpack.c.h.b16 %v4397
        %v5465 = vunpack.c.l.b16 %v4398
        %v5466 = vunpack.c.h.b16 %v4398
        %v5467 = vunpack.c.l.b16 %v4399
        %v5468 = vunpack.c.h.b16 %v4399
        %v5469 = vunpack.c.l.b16 %v4400
        %v5470 = vunpack.c.h.b16 %v4400
        %v5471 = vunpack.c.l.b16 %v4401
        %v5472 = vunpack.c.h.b16 %v4401
        %v5473 = vunpack.c.l.b16 %v4402
        %v5474 = vunpack.c.h.b16 %v4402
        %v5475 = vunpack.c.l.b16 %v4403
        %v5476 = vunpack.c.h.b16 %v4403
        %v5477 = vunpack.c.l.b16 %v4404
        %v5478 = vunpack.c.h.b16 %v4404
        %v5479 = vunpack.c.l.b16 %v4405
        %v5480 = vunpack.c.h.b16 %v4405
        %v5481 = vunpack.c.l.b16 %v4406
        %v5482 = vunpack.c.h.b16 %v4406
        %v5483 = vunpack.c.l.b16 %v4407
        %v5484 = vunpack.c.h.b16 %v4407
        %v5485 = vunpack.c.l.b16 %v4408
        %v5486 = vunpack.c.h.b16 %v4408
        %v5487 = vunpack.c.l.b16 %v4409
        %v5488 = vunpack.c.h.b16 %v4409
        %v5489 = vunpack.c.l.b16 %v4410
        %v5490 = vunpack.c.h.b16 %v4410
        %v5491 = vunpack.c.l.b16 %v4411
        %v5492 = vunpack.c.h.b16 %v4411
        %v5493 = vunpack.c.l.b16 %v4412
        %v5494 = vunpack.c.h.b16 %v4412
        %v5495 = vunpack.c.l.b16 %v4413
        %v5496 = vunpack.c.h.b16 %v4413
        %v5497 = vunpack.c.l.b16 %v4414
        %v5498 = vunpack.c.h.b16 %v4414
        %v5499 = vunpack.c.l.b16 %v4415
        %v5500 = vunpack.c.h.b16 %v4415
        %v5501 = vunpack.c.l.b16 %v4416
        %v5502 = vunpack.c.h.b16 %v4416
        %v5503 = vunpack.c.l.b16 %v4417
        %v5504 = vunpack.c.h.b16 %v4417
        %v5505 = vunpack.c.l.b16 %v4418
        %v5506 = vunpack.c.h.b16 %v4418
        %v5507 = vunpack.c.l.b16 %v4419
        %v5508 = vunpack.c.h.b16 %v4419
        %v5509 = vunpack.c.l.b16 %v4420
        %v5510 = vunpack.c.h.b16 %v4420
        %v5511 = vunpack.c.l.b16 %v4421
        %v5512 = vunpack.c.h.b16 %v4421
        %v5513 = vunpack.c.l.b16 %v4422
        %v5514 = vunpack.c.h.b16 %v4422
        %v5515 = vunpack.c.l.b16 %v4423
        %v5516 = vunpack.c.h.b16 %v4423
        %v5517 = vunpack.c.l.b16 %v4424
        %v5518 = vunpack.c.h.b16 %v4424
        %v5519 = vunpack.c.l.b16 %v4425
        %v5520 = vunpack.c.h.b16 %v4425
        %v5521 = vunpack.c.l.b16 %v4426
        %v5522 = vunpack.c.h.b16 %v4426
        %v5523 = vunpack.c.l.b16 %v4427
        %v5524 = vunpack.c.h.b16 %v4427
        %v5525 = vunpack.c.l.b16 %v4428
        %v5526 = vunpack.c.h.b16 %v4428
        %v5527 = vunpack.c.l.b16 %v4429
        %v5528 = vunpack.c.h.b16 %v4429
        %v5529 = vunpack.c.l.b16 %v4430
        %v5530 = vunpack.c.h.b16 %v4430
        %v5531 = vunpack.c.l.b16 %v4431
        %v5532 = vunpack.c.h.b16 %v4431
        %v5533 = vunpack.c.l.b16 %v4432
        %v5534 = vunpack.c.h.b16 %v4432
        %v5535 = vunpack.c.l.b16 %v4433
        %v5536 = vunpack.c.h.b16 %v4433
        %v5537 = vunpack.c.l.b16 %v4434
        %v5538 = vunpack.c.h.b16 %v4434
        %v5539 = vunpack.c.l.b16 %v4435
        %v5540 = vunpack.c.h.b16 %v4435
        %v5541 = vunpack.c.l.b16 %v4436
        %v5542 = vunpack.c.h.b16 %v4436
        %v5543 = vunpack.c.l.b16 %v4437
        %v5544 = vunpack.c.h.b16 %v4437
        %v5545 = vunpack.c.l.b16 %v4438
        %v5546 = vunpack.c.h.b16 %v4438
        %v5547 = vunpack.c.l.b16 %v4439
        %v5548 = vunpack.c.h.b16 %v4439
        %v5549 = vunpack.c.l.b16 %v4440
        %v5550 = vunpack.c.h.b16 %v4440
        %v5551 = vunpack.c.l.b16 %v4441
        %v5552 = vunpack.c.h.b16 %v4441
        %v5553 = vunpack.c.l.b16 %v4442
        %v5554 = vunpack.c.h.b16 %v4442
        %v5555 = vunpack.c.l.b16 %v4443
        %v5556 = vunpack.c.h.b16 %v4443
        %v5557 = vunpack.c.l.b16 %v4444
        %v5558 = vunpack.c.h.b16 %v4444
        %v5559 = vunpack.c.l.b16 %v4445
        %v5560 = vunpack.c.h.b16 %v4445
        %v5561 = vunpack.c.l.b16 %v4446
        %v5562 = vunpack.c.h.b16 %v4446
        %v5563 = vunpack.c.l.b16 %v4447
        %v5564 = vunpack.c.h.b16 %v4447
        %v5565 = vunpack.c.l.b16 %v4448
        %v5566 = vunpack.c.h.b16 %v4448
        %v5567 = vunpack.c.l.b16 %v4449
        %v5568 = vunpack.c.h.b16 %v4449
        %v5569 = vunpack.c.l.b16 %v4450
        %v5570 = vunpack.c.h.b16 %v4450
        %v5571 = vunpack.c.l.b16 %v4451
        %v5572 = vunpack.c.h.b16 %v4451
        %v5573 = vunpack.c.l.b16 %v4452
        %v5574 = vunpack.c.h.b16 %v4452
        %v5575 = vunpack.c.l.b16 %v4453
        %v5576 = vunpack.c.h.b16 %v4453
        %v5577 = vunpack.c.l.b16 %v4454
        %v5578 = vunpack.c.h.b16 %v4454
        %v5579 = vunpack.c.l.b16 %v4455
        %v5580 = vunpack.c.h.b16 %v4455
        %v5581 = vunpack.c.l.b16 %v4456
        %v5582 = vunpack.c.h.b16 %v4456
        %v5583 = vunpack.c.l.b16 %v4457
        %v5584 = vunpack.c.h.b16 %v4457
        %v5585 = vunpack.c.l.b16 %v4458
        %v5586 = vunpack.c.h.b16 %v4458
        %v5587 = vunpack.c.l.b16 %v4459
        %v5588 = vunpack.c.h.b16 %v4459
        %v5589 = vunpack.c.l.b16 %v4460
        %v5590 = vunpack.c.h.b16 %v4460
        %v5591 = vunpack.c.l.b16 %v4461
        %v5592 = vunpack.c.h.b16 %v4461
        %v5593 = vunpack.c.l.b16 %v4462
        %v5594 = vunpack.c.h.b16 %v4462
        %v5595 = vunpack.c.l.b16 %v4463
        %v5596 = vunpack.c.h.b16 %v4463
        %v5597 = vunpack.c.l.b16 %v4464
        %v5598 = vunpack.c.h.b16 %v4464
        %v5599 = vunpack.c.l.b16 %v4465
        %v5600 = vunpack.c.h.b16 %v4465
        %v5601 = vunpack.c.l.b16 %v4466
        %v5602 = vunpack.c.h.b16 %v4466
        %v5603 = vunpack.c.l.b16 %v4467
        %v5604 = vunpack.c.h.b16 %v4467
        %v5605 = vunpack.c.l.b16 %v4468
        %v5606 = vunpack.c.h.b16 %v4468
        %v5607 = vunpack.c.l.b16 %v4469
        %v5608 = vunpack.c.h.b16 %v4469
        %v5609 = vunpack.c.l.b16 %v4470
        %v5610 = vunpack.c.h.b16 %v4470
        %v5611 = vunpack.c.l.b16 %v4471
        %v5612 = vunpack.c.h.b16 %v4471
        %v5613 = vunpack.c.l.b16 %v4472
        %v5614 = vunpack.c.h.b16 %v4472
        %v5615 = vunpack.c.l.b16 %v4473
        %v5616 = vunpack.c.h.b16 %v4473
        %v5617 = vunpack.c.l.b16 %v4474
        %v5618 = vunpack.c.h.b16 %v4474
        %v5619 = vunpack.c.l.b16 %v4475
        %v5620 = vunpack.c.h.b16 %v4475
        %v5621 = vunpack.c.l.b16 %v4476
        %v5622 = vunpack.c.h.b16 %v4476
        %v5623 = vunpack.c.l.b16 %v4477
        %v5624 = vunpack.c.h.b16 %v4477
        %v5625 = vunpack.c.l.b16 %v4478
        %v5626 = vunpack.c.h.b16 %v4478
        %v5627 = vunpack.c.l.b16 %v4479
        %v5628 = vunpack.c.h.b16 %v4479
        %v5629 = vunpack.c.l.b16 %v4480
        %v5630 = vunpack.c.h.b16 %v4480
        %v5631 = vunpack.c.l.b16 %v4481
        %v5632 = vunpack.c.h.b16 %v4481
        %v5633 = vunpack.c.l.b16 %v4482
        %v5634 = vunpack.c.h.b16 %v4482
        %v5635 = vunpack.c.l.b16 %v4483
        %v5636 = vunpack.c.h.b16 %v4483
        %v5637 = vunpack.c.l.b16 %v4484
        %v5638 = vunpack.c.h.b16 %v4484
        %v5639 = vunpack.c.l.b16 %v4485
        %v5640 = vunpack.c.h.b16 %v4485
        %v5641 = vunpack.c.l.b16 %v4486
        %v5642 = vunpack.c.h.b16 %v4486
        %v5643 = vunpack.c.l.b16 %v4487
        %v5644 = vunpack.c.h.b16 %v4487
        %v5645 = vunpack.c.l.b16 %v4488
        %v5646 = vunpack.c.h.b16 %v4488
        %v5647 = vunpack.c.l.b16 %v4489
        %v5648 = vunpack.c.h.b16 %v4489
        %v5649 = vunpack.c.l.b16 %v4490
        %v5650 = vunpack.c.h.b16 %v4490
        %v5651 = vunpack.c.l.b16 %v4491
        %v5652 = vunpack.c.h.b16 %v4491
        %v5653 = vunpack.c.l.b16 %v4492
        %v5654 = vunpack.c.h.b16 %v4492
        %v5655 = vunpack.c.l.b16 %v4493
        %v5656 = vunpack.c.h.b16 %v4493
        %v5657 = vunpack.c.l.b16 %v4494
        %v5658 = vunpack.c.h.b16 %v4494
        %v5659 = vunpack.c.l.b16 %v4495
        %v5660 = vunpack.c.h.b16 %v4495
        %v5661 = vunpack.c.l.b16 %v4496
        %v5662 = vunpack.c.h.b16 %v4496
        %v5663 = vunpack.c.l.b16 %v4497
        %v5664 = vunpack.c.h.b16 %v4497
        %v5665 = vunpack.c.l.b16 %v4498
        %v5666 = vunpack.c.h.b16 %v4498
        %v5667 = vunpack.c.l.b16 %v4499
        %v5668 = vunpack.c.h.b16 %v4499
        %v5669 = vunpack.c.l.b16 %v4500
        %v5670 = vunpack.c.h.b16 %v4500
        %v5671 = vunpack.c.l.b16 %v4501
        %v5672 = vunpack.c.h.b16 %v4501
        %v5673 = vunpack.c.l.b16 %v4502
        %v5674 = vunpack.c.h.b16 %v4502
        %v5675 = vunpack.c.l.b16 %v4503
        %v5676 = vunpack.c.h.b16 %v4503
        %v5677 = vunpack.c.l.b16 %v4504
        %v5678 = vunpack.c.h.b16 %v4504
        %v5679 = vunpack.c.l.b16 %v4505
        %v5680 = vunpack.c.h.b16 %v4505
        %v5681 = vunpack.c.l.b16 %v4506
        %v5682 = vunpack.c.h.b16 %v4506
        %v5683 = vunpack.c.l.b16 %v4507
        %v5684 = vunpack.c.h.b16 %v4507
        %v5685 = vunpack.c.l.b16 %v4508
        %v5686 = vunpack.c.h.b16 %v4508
        %v5687 = vunpack.c.l.b16 %v4509
        %v5688 = vunpack.c.h.b16 %v4509
        %v5689 = vunpack.c.l.b16 %v4510
        %v5690 = vunpack.c.h.b16 %v4510
        %v5691 = vunpack.c.l.b16 %v4511
        %v5692 = vunpack.c.h.b16 %v4511
        %v5693 = vunpack.c.l.b16 %v4512
        %v5694 = vunpack.c.h.b16 %v4512
        %v5695 = vunpack.c.l.b16 %v4513
        %v5696 = vunpack.c.h.b16 %v4513
        %v5697 = vunpack.c.l.b16 %v4514
        %v5698 = vunpack.c.h.b16 %v4514
        %v5699 = vunpack.c.l.b16 %v4515
        %v5700 = vunpack.c.h.b16 %v4515
        %v5701 = vunpack.c.l.b16 %v4516
        %v5702 = vunpack.c.h.b16 %v4516
        %v5703 = vunpack.c.l.b16 %v4517
        %v5704 = vunpack.c.h.b16 %v4517
        %v5705 = vunpack.c.l.b16 %v4518
        %v5706 = vunpack.c.h.b16 %v4518
        %v5707 = vunpack.c.l.b16 %v4519
        %v5708 = vunpack.c.h.b16 %v4519
        %v5709 = vunpack.c.l.b16 %v4520
        %v5710 = vunpack.c.h.b16 %v4520
        %v5711 = vunpack.c.l.b16 %v4521
        %v5712 = vunpack.c.h.b16 %v4521
        %v5713 = vunpack.c.l.b16 %v4522
        %v5714 = vunpack.c.h.b16 %v4522
        %v5715 = vunpack.c.l.b16 %v4523
        %v5716 = vunpack.c.h.b16 %v4523
        %v5717 = vunpack.c.l.b16 %v4524
        %v5718 = vunpack.c.h.b16 %v4524
        %v5719 = vunpack.c.l.b16 %v4525
        %v5720 = vunpack.c.h.b16 %v4525
        %v5721 = vunpack.c.l.b16 %v4526
        %v5722 = vunpack.c.h.b16 %v4526
        %v5723 = vunpack.c.l.b16 %v4527
        %v5724 = vunpack.c.h.b16 %v4527
        %v5725 = vunpack.c.l.b16 %v4528
        %v5726 = vunpack.c.h.b16 %v4528
        %v5727 = vunpack.c.l.b16 %v4529
        %v5728 = vunpack.c.h.b16 %v4529
        %v5729 = vunpack.c.l.b16 %v4530
        %v5730 = vunpack.c.h.b16 %v4530
        %v5731 = vunpack.c.l.b16 %v4531
        %v5732 = vunpack.c.h.b16 %v4531
        %v5733 = vunpack.c.l.b16 %v4532
        %v5734 = vunpack.c.h.b16 %v4532
        %v5735 = vunpack.c.l.b16 %v4533
        %v5736 = vunpack.c.h.b16 %v4533
        %v5737 = vunpack.c.l.b16 %v4534
        %v5738 = vunpack.c.h.b16 %v4534
        %v5739 = vunpack.c.l.b16 %v4535
        %v5740 = vunpack.c.h.b16 %v4535
        %v5741 = vunpack.c.l.b16 %v4536
        %v5742 = vunpack.c.h.b16 %v4536
        %v5743 = vunpack.c.l.b16 %v4537
        %v5744 = vunpack.c.h.b16 %v4537
        %v5745 = vunpack.c.l.b16 %v4538
        %v5746 = vunpack.c.h.b16 %v4538
        %v5747 = vunpack.c.l.b16 %v4539
        %v5748 = vunpack.c.h.b16 %v4539
        %v5749 = vunpack.c.l.b16 %v4540
        %v5750 = vunpack.c.h.b16 %v4540
        %v5751 = vunpack.c.l.b16 %v4541
        %v5752 = vunpack.c.h.b16 %v4541
        %v5753 = vunpack.c.l.b16 %v4542
        %v5754 = vunpack.c.h.b16 %v4542
        %v5755 = vunpack.c.l.b16 %v4543
        %v5756 = vunpack.c.h.b16 %v4543
        %v5757 = vunpack.c.l.b16 %v4544
        %v5758 = vunpack.c.h.b16 %v4544
        %v5759 = vunpack.c.l.b16 %v4545
        %v5760 = vunpack.c.h.b16 %v4545
        %v5761 = vunpack.c.l.b16 %v4546
        %v5762 = vunpack.c.h.b16 %v4546
        %v5763 = vunpack.c.l.b16 %v4547
        %v5764 = vunpack.c.h.b16 %v4547
        %v5765 = vunpack.c.l.b16 %v4548
        %v5766 = vunpack.c.h.b16 %v4548
        %v5767 = vunpack.c.l.b16 %v4549
        %v5768 = vunpack.c.h.b16 %v4549
        %v5769 = vunpack.c.l.b16 %v4550
        %v5770 = vunpack.c.h.b16 %v4550
        %v5771 = vunpack.c.l.b16 %v4551
        %v5772 = vunpack.c.h.b16 %v4551
        %v5773 = vunpack.c.l.b16 %v4552
        %v5774 = vunpack.c.h.b16 %v4552
        %v5775 = vunpack.c.l.b16 %v4553
        %v5776 = vunpack.c.h.b16 %v4553
        %v5777 = vunpack.c.l.b16 %v4554
        %v5778 = vunpack.c.h.b16 %v4554
        %v5779 = vunpack.c.l.b16 %v4555
        %v5780 = vunpack.c.h.b16 %v4555
        %v5781 = vunpack.c.l.b16 %v4556
        %v5782 = vunpack.c.h.b16 %v4556
        %v5783 = vunpack.c.l.b16 %v4557
        %v5784 = vunpack.c.h.b16 %v4557
        %v5785 = vunpack.c.l.b16 %v4558
        %v5786 = vunpack.c.h.b16 %v4558
        %v5787 = vunpack.c.l.b16 %v4559
        %v5788 = vunpack.c.h.b16 %v4559
        %v5789 = vunpack.c.l.b16 %v4560
        %v5790 = vunpack.c.h.b16 %v4560
        %v5791 = vunpack.c.l.b16 %v4561
        %v5792 = vunpack.c.h.b16 %v4561
        %v5793 = vunpack.c.l.b16 %v4562
        %v5794 = vunpack.c.h.b16 %v4562
        %v5795 = vunpack.c.l.b16 %v4563
        %v5796 = vunpack.c.h.b16 %v4563
        %v5797 = vunpack.c.l.b16 %v4564
        %v5798 = vunpack.c.h.b16 %v4564
        %v5799 = vunpack.c.l.b16 %v4565
        %v5800 = vunpack.c.h.b16 %v4565
        %v5801 = vunpack.c.l.b16 %v4566
        %v5802 = vunpack.c.h.b16 %v4566
        %v5803 = vunpack.c.l.b16 %v4567
        %v5804 = vunpack.c.h.b16 %v4567
        %v5805 = vunpack.c.l.b16 %v4568
        %v5806 = vunpack.c.h.b16 %v4568
        %v5807 = vunpack.c.l.b16 %v4569
        %v5808 = vunpack.c.h.b16 %v4569
        %v5809 = vunpack.c.l.b16 %v4570
        %v5810 = vunpack.c.h.b16 %v4570
        %v5811 = vunpack.c.l.b16 %v4571
        %v5812 = vunpack.c.h.b16 %v4571
        %v5813 = vunpack.c.l.b16 %v4572
        %v5814 = vunpack.c.h.b16 %v4572
        %v5815 = vunpack.c.l.b16 %v4573
        %v5816 = vunpack.c.h.b16 %v4573
        %v5817 = vunpack.c.l.b16 %v4574
        %v5818 = vunpack.c.h.b16 %v4574
        %v5819 = vunpack.c.l.b16 %v4575
        %v5820 = vunpack.c.h.b16 %v4575
        %v5821 = vunpack.c.l.b16 %v4576
        %v5822 = vunpack.c.h.b16 %v4576
        %v5823 = vunpack.c.l.b16 %v4577
        %v5824 = vunpack.c.h.b16 %v4577
        %v5825 = vunpack.c.l.b16 %v4578
        %v5826 = vunpack.c.h.b16 %v4578
        %v5827 = vunpack.c.l.b16 %v4579
        %v5828 = vunpack.c.h.b16 %v4579
        %v5829 = vunpack.c.l.b16 %v4580
        %v5830 = vunpack.c.h.b16 %v4580
        %v5831 = vunpack.c.l.b16 %v4581
        %v5832 = vunpack.c.h.b16 %v4581
        %v5833 = vunpack.c.l.b16 %v4582
        %v5834 = vunpack.c.h.b16 %v4582
        %v5835 = vunpack.c.l.b16 %v4583
        %v5836 = vunpack.c.h.b16 %v4583
        %v5837 = vunpack.c.l.b16 %v4584
        %v5838 = vunpack.c.h.b16 %v4584
        %v5839 = vunpack.c.l.b16 %v4585
        %v5840 = vunpack.c.h.b16 %v4585
        %v5841 = vunpack.c.l.b16 %v4586
        %v5842 = vunpack.c.h.b16 %v4586
        %v5843 = vunpack.c.l.b16 %v4587
        %v5844 = vunpack.c.h.b16 %v4587
        %v5845 = vunpack.c.l.b16 %v4588
        %v5846 = vunpack.c.h.b16 %v4588
        %v5847 = vunpack.c.l.b16 %v4589
        %v5848 = vunpack.c.h.b16 %v4589
        %v5849 = vunpack.c.l.b16 %v4590
        %v5850 = vunpack.c.h.b16 %v4590
        %v5851 = vunpack.c.l.b16 %v4591
        %v5852 = vunpack.c.h.b16 %v4591
        %v5853 = vunpack.c.l.b16 %v4592
        %v5854 = vunpack.c.h.b16 %v4592
        %v5855 = vunpack.c.l.b16 %v4593
        %v5856 = vunpack.c.h.b16 %v4593
        %v5857 = vunpack.c.l.b16 %v4594
        %v5858 = vunpack.c.h.b16 %v4594
        %v5859 = vunpack.c.l.b16 %v4595
        %v5860 = vunpack.c.h.b16 %v4595
        %v5861 = vunpack.c.l.b16 %v4596
        %v5862 = vunpack.c.h.b16 %v4596
        %v5863 = vunpack.c.l.b16 %v4597
        %v5864 = vunpack.c.h.b16 %v4597
        %v5865 = vunpack.c.l.b16 %v4598
        %v5866 = vunpack.c.h.b16 %v4598
        %v5867 = vunpack.c.l.b16 %v4599
        %v5868 = vunpack.c.h.b16 %v4599
        %v5869 = vunpack.c.l.b16 %v4600
        %v5870 = vunpack.c.h.b16 %v4600
        %v5871 = vunpack.c.l.b16 %v4601
        %v5872 = vunpack.c.h.b16 %v4601
        %v5873 = vunpack.c.l.b16 %v4602
        %v5874 = vunpack.c.h.b16 %v4602
        %v5875 = vunpack.c.l.b16 %v4603
        %v5876 = vunpack.c.h.b16 %v4603
        %v5877 = vunpack.c.l.b16 %v4604
        %v5878 = vunpack.c.h.b16 %v4604
        %v5879 = vunpack.c.l.b16 %v4605
        %v5880 = vunpack.c.h.b16 %v4605
        %v5881 = vunpack.c.l.b16 %v4606
        %v5882 = vunpack.c.h.b16 %v4606
        %v5883 = vunpack.c.l.b16 %v4607
        %v5884 = vunpack.c.h.b16 %v4607
        %v5885 = vunpack.c.l.b16 %v4608
        %v5886 = vunpack.c.h.b16 %v4608
        %v5887 = vunpack.c.l.b16 %v4609
        %v5888 = vunpack.c.h.b16 %v4609
        %v5889 = vunpack.c.l.b16 %v4610
        %v5890 = vunpack.c.h.b16 %v4610
        %v5891 = vunpack.c.l.b16 %v4611
        %v5892 = vunpack.c.h.b16 %v4611
        %v5893 = vunpack.c.l.b16 %v4612
        %v5894 = vunpack.c.h.b16 %v4612
        %v5895 = vunpack.c.l.b16 %v4613
        %v5896 = vunpack.c.h.b16 %v4613
        %v5897 = vunpack.c.l.b16 %v4614
        %v5898 = vunpack.c.h.b16 %v4614
        %v5899 = vunpack.c.l.b16 %v4615
        %v5900 = vunpack.c.h.b16 %v4615
        %v5901 = vunpack.c.l.b16 %v4616
        %v5902 = vunpack.c.h.b16 %v4616
        %v5903 = vunpack.c.l.b16 %v4617
        %v5904 = vunpack.c.h.b16 %v4617
        %v5905 = vunpack.c.l.b16 %v4618
        %v5906 = vunpack.c.h.b16 %v4618
        %v5907 = vunpack.c.l.b16 %v4619
        %v5908 = vunpack.c.h.b16 %v4619
        %v5909 = vunpack.c.l.b16 %v4620
        %v5910 = vunpack.c.h.b16 %v4620
        %v5911 = vunpack.c.l.b16 %v4621
        %v5912 = vunpack.c.h.b16 %v4621
        %v5913 = vunpack.c.l.b16 %v4622
        %v5914 = vunpack.c.h.b16 %v4622
        %v5915 = vunpack.c.l.b16 %v4623
        %v5916 = vunpack.c.h.b16 %v4623
        %v5917 = vunpack.c.l.b16 %v4624
        %v5918 = vunpack.c.h.b16 %v4624
        %v5919 = vunpack.c.l.b16 %v4625
        %v5920 = vunpack.c.h.b16 %v4625
        %v5921 = vunpack.c.l.b16 %v4626
        %v5922 = vunpack.c.h.b16 %v4626
        %v5923 = vunpack.c.l.b16 %v4627
        %v5924 = vunpack.c.h.b16 %v4627
        %v5925 = vunpack.c.l.b16 %v4628
        %v5926 = vunpack.c.h.b16 %v4628
        %v5927 = vunpack.c.l.b16 %v4629
        %v5928 = vunpack.c.h.b16 %v4629
        %v5929 = vunpack.c.l.b16 %v4630
        %v5930 = vunpack.c.h.b16 %v4630
        %v5931 = vunpack.c.l.b16 %v4631
        %v5932 = vunpack.c.h.b16 %v4631
        %v5933 = vunpack.c.l.b16 %v4632
        %v5934 = vunpack.c.h.b16 %v4632
        %v5935 = vunpack.c.l.b16 %v4633
        %v5936 = vunpack.c.h.b16 %v4633
        %v5937 = vunpack.c.l.b16 %v4634
        %v5938 = vunpack.c.h.b16 %v4634
        %v5939 = vunpack.c.l.b16 %v4635
        %v5940 = vunpack.c.h.b16 %v4635
        %v5941 = vunpack.c.l.b16 %v4636
        %v5942 = vunpack.c.h.b16 %v4636
        %v5943 = vunpack.c.l.b16 %v4637
        %v5944 = vunpack.c.h.b16 %v4637
        %v5945 = vunpack.c.l.b16 %v4638
        %v5946 = vunpack.c.h.b16 %v4638
        %v5947 = vunpack.c.l.b16 %v4639
        %v5948 = vunpack.c.h.b16 %v4639
        %v5949 = vunpack.c.l.b16 %v4640
        %v5950 = vunpack.c.h.b16 %v4640
        %v5951 = vunpack.c.l.b16 %v4641
        %v5952 = vunpack.c.h.b16 %v4641
        %v5953 = vunpack.c.l.b16 %v4642
        %v5954 = vunpack.c.h.b16 %v4642
        %v5955 = vunpack.c.l.b16 %v4643
        %v5956 = vunpack.c.h.b16 %v4643
        %v5957 = vunpack.c.l.b16 %v4644
        %v5958 = vunpack.c.h.b16 %v4644
        %v5959 = vunpack.c.l.b16 %v4645
        %v5960 = vunpack.c.h.b16 %v4645
        %v5961 = vunpack.c.l.b16 %v4646
        %v5962 = vunpack.c.h.b16 %v4646
        %v5963 = vunpack.c.l.b16 %v4647
        %v5964 = vunpack.c.h.b16 %v4647
        %v5965 = vunpack.c.l.b16 %v4648
        %v5966 = vunpack.c.h.b16 %v4648
        %v5967 = vunpack.c.l.b16 %v4649
        %v5968 = vunpack.c.h.b16 %v4649
        %v5969 = vunpack.c.l.b16 %v4650
        %v5970 = vunpack.c.h.b16 %v4650
        %v5971 = vunpack.c.l.b16 %v4651
        %v5972 = vunpack.c.h.b16 %v4651
        %v5973 = vunpack.c.l.b16 %v4652
        %v5974 = vunpack.c.h.b16 %v4652
        %v5975 = vunpack.c.l.b16 %v4653
        %v5976 = vunpack.c.h.b16 %v4653
        %v5977 = vunpack.c.l.b16 %v4654
        %v5978 = vunpack.c.h.b16 %v4654
        %v5979 = vunpack.c.l.b16 %v4655
        %v5980 = vunpack.c.h.b16 %v4655
        %v5981 = vunpack.c.l.b16 %v4656
        %v5982 = vunpack.c.h.b16 %v4656
        %v5983 = vunpack.c.l.b16 %v4657
        %v5984 = vunpack.c.h.b16 %v4657
        %v5985 = vunpack.c.l.b16 %v4658
        %v5986 = vunpack.c.h.b16 %v4658
        %v5987 = vunpack.c.l.b16 %v4659
        %v5988 = vunpack.c.h.b16 %v4659
        %v5989 = vunpack.c.l.b16 %v4660
        %v5990 = vunpack.c.h.b16 %v4660
        %v5991 = vunpack.c.l.b16 %v4661
        %v5992 = vunpack.c.h.b16 %v4661
        %v5993 = vunpack.c.l.b16 %v4662
        %v5994 = vunpack.c.h.b16 %v4662
        %v5995 = vunpack.c.l.b16 %v4663
        %v5996 = vunpack.c.h.b16 %v4663
        %v5997 = vunpack.c.l.b16 %v4664
        %v5998 = vunpack.c.h.b16 %v4664
        %v5999 = vunpack.c.l.b16 %v4665
        %v6000 = vunpack.c.h.b16 %v4665
        %v6001 = vunpack.c.l.b16 %v4666
        %v6002 = vunpack.c.h.b16 %v4666
        %v6003 = vunpack.c.l.b16 %v4667
        %v6004 = vunpack.c.h.b16 %v4667
        %v6005 = vunpack.c.l.b16 %v4668
        %v6006 = vunpack.c.h.b16 %v4668
        %v6007 = vunpack.c.l.b16 %v4669
        %v6008 = vunpack.c.h.b16 %v4669
        %v6009 = vunpack.c.l.b16 %v4670
        %v6010 = vunpack.c.h.b16 %v4670
        %v6011 = vunpack.c.l.b16 %v4671
        %v6012 = vunpack.c.h.b16 %v4671
        %v6013 = vunpack.c.l.b16 %v4672
        %v6014 = vunpack.c.h.b16 %v4672
        %v6015 = vunpack.c.l.b16 %v4673
        %v6016 = vunpack.c.h.b16 %v4673
        %v6017 = vunpack.c.l.b16 %v4674
        %v6018 = vunpack.c.h.b16 %v4674
        %v6019 = vunpack.c.l.b16 %v4675
        %v6020 = vunpack.c.h.b16 %v4675
        %v6021 = vunpack.c.l.b16 %v4676
        %v6022 = vunpack.c.h.b16 %v4676
        %v6023 = vunpack.c.l.b16 %v4677
        %v6024 = vunpack.c.h.b16 %v4677
        %v6025 = vunpack.c.l.b16 %v4678
        %v6026 = vunpack.c.h.b16 %v4678
        %v6027 = vunpack.c.l.b16 %v4679
        %v6028 = vunpack.c.h.b16 %v4679
        %v6029 = vunpack.c.l.b16 %v4680
        %v6030 = vunpack.c.h.b16 %v4680
        %v6031 = vunpack.c.l.b16 %v4681
        %v6032 = vunpack.c.h.b16 %v4681
        %v6033 = vunpack.c.l.b16 %v4682
        %v6034 = vunpack.c.h.b16 %v4682
        %v6035 = vunpack.c.l.b16 %v4683
        %v6036 = vunpack.c.h.b16 %v4683
        %v6037 = vunpack.c.l.b16 %v4684
        %v6038 = vunpack.c.h.b16 %v4684
        %v6039 = vunpack.c.l.b16 %v4685
        %v6040 = vunpack.c.h.b16 %v4685
        %v6041 = vunpack.c.l.b16 %v4686
        %v6042 = vunpack.c.h.b16 %v4686
        %v6043 = vunpack.c.l.b16 %v4687
        %v6044 = vunpack.c.h.b16 %v4687
        %v6045 = vunpack.c.l.b16 %v4688
        %v6046 = vunpack.c.h.b16 %v4688
        %v6047 = vunpack.c.l.b16 %v4689
        %v6048 = vunpack.c.h.b16 %v4689
        %v6049 = vunpack.c.l.b16 %v4690
        %v6050 = vunpack.c.h.b16 %v4690
        %v6051 = vunpack.c.l.b16 %v4691
        %v6052 = vunpack.c.h.b16 %v4691
        %v6053 = vunpack.c.l.b16 %v4692
        %v6054 = vunpack.c.h.b16 %v4692
        %v6055 = vunpack.c.l.b16 %v4693
        %v6056 = vunpack.c.h.b16 %v4693
        %v6057 = vunpack.c.l.b16 %v4694
        %v6058 = vunpack.c.h.b16 %v4694
        %v6059 = vunpack.c.l.b16 %v4695
        %v6060 = vunpack.c.h.b16 %v4695
        %v6061 = vunpack.c.l.b16 %v4696
        %v6062 = vunpack.c.h.b16 %v4696
        %v6063 = vunpack.c.l.b16 %v4697
        %v6064 = vunpack.c.h.b16 %v4697
        %v6065 = vunpack.c.l.b16 %v4698
        %v6066 = vunpack.c.h.b16 %v4698
        %v6067 = vunpack.c.l.b16 %v4699
        %v6068 = vunpack.c.h.b16 %v4699
        %v6069 = vunpack.c.l.b16 %v4700
        %v6070 = vunpack.c.h.b16 %v4700
        %v6071 = vunpack.c.l.b16 %v4701
        %v6072 = vunpack.c.h.b16 %v4701
        %v6073 = vunpack.c.l.b16 %v4702
        %v6074 = vunpack.c.h.b16 %v4702
        %v6075 = vunpack.c.l.b16 %v4703
        %v6076 = vunpack.c.h.b16 %v4703
        %v6077 = vunpack.c.l.b16 %v4704
        %v6078 = vunpack.c.h.b16 %v4704
        %v6079 = vunpack.c.l.b16 %v4705
        %v6080 = vunpack.c.h.b16 %v4705
        %v6081 = vunpack.c.l.b16 %v4706
        %v6082 = vunpack.c.h.b16 %v4706
        %v6083 = vunpack.c.l.b16 %v4707
        %v6084 = vunpack.c.h.b16 %v4707
        %v6085 = vunpack.c.l.b16 %v4708
        %v6086 = vunpack.c.h.b16 %v4708
        %v6087 = vunpack.c.l.b16 %v4709
        %v6088 = vunpack.c.h.b16 %v4709
        %v6089 = vunpack.c.l.b16 %v4710
        %v6090 = vunpack.c.h.b16 %v4710
        %v6091 = vunpack.c.l.b16 %v4711
        %v6092 = vunpack.c.h.b16 %v4711
        %v6093 = vunpack.c.l.b16 %v4712
        %v6094 = vunpack.c.h.b16 %v4712
        %v6095 = vunpack.c.l.b16 %v4713
        %v6096 = vunpack.c.h.b16 %v4713
        %v6097 = vunpack.c.l.b16 %v4714
        %v6098 = vunpack.c.h.b16 %v4714
        %v6099 = vunpack.c.l.b16 %v4715
        %v6100 = vunpack.c.h.b16 %v4715
        %v6101 = vunpack.c.l.b16 %v4716
        %v6102 = vunpack.c.h.b16 %v4716
        %v6103 = vunpack.c.l.b16 %v4717
        %v6104 = vunpack.c.h.b16 %v4717
        %v6105 = vunpack.c.l.b16 %v4718
        %v6106 = vunpack.c.h.b16 %v4718
        %v6107 = vunpack.c.l.b16 %v4719
        %v6108 = vunpack.c.h.b16 %v4719
        %v6109 = vunpack.c.l.b16 %v4720
        %v6110 = vunpack.c.h.b16 %v4720
        %v6111 = vunpack.c.l.b16 %v4721
        %v6112 = vunpack.c.h.b16 %v4721
        %v6113 = vunpack.c.l.b16 %v4722
        %v6114 = vunpack.c.h.b16 %v4722
        %v6115 = vunpack.c.l.b16 %v4723
        %v6116 = vunpack.c.h.b16 %v4723
        %v6117 = vunpack.c.l.b16 %v4724
        %v6118 = vunpack.c.h.b16 %v4724
        %v6119 = vunpack.c.l.b16 %v4725
        %v6120 = vunpack.c.h.b16 %v4725
        %v6121 = vunpack.c.l.b16 %v4726
        %v6122 = vunpack.c.h.b16 %v4726
        %v6123 = vunpack.c.l.b16 %v4727
        %v6124 = vunpack.c.h.b16 %v4727
        %v6125 = vunpack.c.l.b16 %v4728
        %v6126 = vunpack.c.h.b16 %v4728
        %v6127 = vunpack.c.l.b16 %v4729
        %v6128 = vunpack.c.h.b16 %v4729
        %v6129 = vunpack.c.l.b16 %v4730
        %v6130 = vunpack.c.h.b16 %v4730
        %v6131 = vunpack.c.l.b16 %v4731
        %v6132 = vunpack.c.h.b16 %v4731
        %v6133 = vunpack.c.l.b16 %v4732
        %v6134 = vunpack.c.h.b16 %v4732
        %v6135 = vunpack.c.l.b16 %v4733
        %v6136 = vunpack.c.h.b16 %v4733
        %v6137 = vunpack.c.l.b16 %v4734
        %v6138 = vunpack.c.h.b16 %v4734
        %v6139 = vunpack.c.l.b16 %v4735
        %v6140 = vunpack.c.h.b16 %v4735
        %v6141 = vunpack.c.l.b16 %v4736
        %v6142 = vunpack.c.h.b16 %v4736
        %v6143 = vunpack.c.l.b16 %v4737
        %v6144 = vunpack.c.h.b16 %v4737
        %v6145 = vunpack.c.l.b16 %v4738
        %v6146 = vunpack.c.h.b16 %v4738
        %v6147 = vunpack.c.l.b16 %v4739
        %v6148 = vunpack.c.h.b16 %v4739
        %v6149 = vunpack.c.l.b16 %v4740
        %v6150 = vunpack.c.h.b16 %v4740
        %v6151 = vunpack.c.l.b16 %v4741
        %v6152 = vunpack.c.h.b16 %v4741
        %v6153 = vunpack.c.l.b16 %v4742
        %v6154 = vunpack.c.h.b16 %v4742
        %v6155 = vunpack.c.l.b16 %v4743
        %v6156 = vunpack.c.h.b16 %v4743
        %v6157 = vunpack.c.l.b16 %v4744
        %v6158 = vunpack.c.h.b16 %v4744
        %v6159 = vunpack.c.l.b16 %v4745
        %v6160 = vunpack.c.h.b16 %v4745
        %v6161 = vunpack.c.l.b16 %v4746
        %v6162 = vunpack.c.h.b16 %v4746
        %v6163 = vunpack.c.l.b16 %v4747
        %v6164 = vunpack.c.h.b16 %v4747
        %v6165 = vunpack.c.l.b16 %v4748
        %v6166 = vunpack.c.h.b16 %v4748
        %v6167 = vunpack.c.l.b16 %v4749
        %v6168 = vunpack.c.h.b16 %v4749
        %v6169 = vunpack.c.l.b16 %v4750
        %v6170 = vunpack.c.h.b16 %v4750
        %v6171 = vunpack.c.l.b16 %v4751
        %v6172 = vunpack.c.h.b16 %v4751
        %v6173 = vunpack.c.l.b16 %v4752
        %v6174 = vunpack.c.h.b16 %v4752
        %v6175 = vunpack.c.l.b16 %v4753
        %v6176 = vunpack.c.h.b16 %v4753
        %v6177 = vunpack.c.l.b16 %v4754
        %v6178 = vunpack.c.h.b16 %v4754
        %v6179 = vunpack.c.l.b16 %v4755
        %v6180 = vunpack.c.h.b16 %v4755
        %v6181 = vunpack.c.l.b16 %v4756
        %v6182 = vunpack.c.h.b16 %v4756
        %v6183 = vunpack.c.l.b16 %v4757
        %v6184 = vunpack.c.h.b16 %v4757
        %v6185 = vunpack.c.l.b16 %v4758
        %v6186 = vunpack.c.h.b16 %v4758
        %v6187 = vunpack.c.l.b16 %v4759
        %v6188 = vunpack.c.h.b16 %v4759
        %v6189 = vunpack.c.l.b16 %v4760
        %v6190 = vunpack.c.h.b16 %v4760
        %v6191 = vunpack.c.l.b16 %v4761
        %v6192 = vunpack.c.h.b16 %v4761
        %v6193 = vunpack.c.l.b16 %v4762
        %v6194 = vunpack.c.h.b16 %v4762
        %v6195 = vunpack.c.l.b16 %v4763
        %v6196 = vunpack.c.h.b16 %v4763
        %v6197 = vunpack.c.l.b16 %v4764
        %v6198 = vunpack.c.h.b16 %v4764
        %v6199 = vunpack.c.l.b16 %v4765
        %v6200 = vunpack.c.h.b16 %v4765
        %v6201 = vunpack.c.l.b16 %v4766
        %v6202 = vunpack.c.h.b16 %v4766
        %v6203 = vunpack.c.l.b16 %v4767
        %v6204 = vunpack.c.h.b16 %v4767
        %v6205 = vunpack.c.l.b16 %v4768
        %v6206 = vunpack.c.h.b16 %v4768
        %v6207 = vunpack.c.l.b16 %v4769
        %v6208 = vunpack.c.h.b16 %v4769
        %v6209 = vunpack.c.l.b16 %v4770
        %v6210 = vunpack.c.h.b16 %v4770
        %v6211 = vunpack.c.l.b16 %v4771
        %v6212 = vunpack.c.h.b16 %v4771
        %v6213 = vunpack.c.l.b16 %v4772
        %v6214 = vunpack.c.h.b16 %v4772
        %v6215 = vunpack.c.l.b16 %v4773
        %v6216 = vunpack.c.h.b16 %v4773
        %v6217 = vunpack.c.l.b16 %v4774
        %v6218 = vunpack.c.h.b16 %v4774
        %v6219 = vunpack.c.l.b16 %v4775
        %v6220 = vunpack.c.h.b16 %v4775
        %v6221 = vunpack.c.l.b16 %v4776
        %v6222 = vunpack.c.h.b16 %v4776
        %v6223 = vunpack.c.l.b16 %v4777
        %v6224 = vunpack.c.h.b16 %v4777
        %v6225 = vunpack.c.l.b16 %v4778
        %v6226 = vunpack.c.h.b16 %v4778
        %v6227 = vunpack.c.l.b16 %v4779
        %v6228 = vunpack.c.h.b16 %v4779
        %v6229 = vunpack.c.l.b16 %v4780
        %v6230 = vunpack.c.h.b16 %v4780
        %v6231 = vpack.c.b16 %v5275, %v5271
        %v6232 = vpack.c.b16 %v5276, %v5272
        %v6233 = vpack.c.b16 %v5277, %v5273
        %v6234 = vpack.c.b16 %v5278, %v5274
        %v6235 = vpack.c.b16 %v5283, %v5279
        %v6236 = vpack.c.b16 %v5284, %v5280
        %v6237 = vpack.c.b16 %v5285, %v5281
        %v6238 = vpack.c.b16 %v5286, %v5282
        %v6239 = vpack.c.b16 %v5291, %v5287
        %v6240 = vpack.c.b16 %v5292, %v5288
        %v6241 = vpack.c.b16 %v5293, %v5289
        %v6242 = vpack.c.b16 %v5294, %v5290
        %v6243 = vpack.c.b16 %v5299, %v5295
        %v6244 = vpack.c.b16 %v5300, %v5296
        %v6245 = vpack.c.b16 %v5301, %v5297
        %v6246 = vpack.c.b16 %v5302, %v5298
        %v6247 = vpack.c.b16 %v5307, %v5303
        %v6248 = vpack.c.b16 %v5308, %v5304
        %v6249 = vpack.c.b16 %v5309, %v5305
        %v6250 = vpack.c.b16 %v5310, %v5306
        %v6251 = vpack.c.b16 %v5315, %v5311
        %v6252 = vpack.c.b16 %v5316, %v5312
        %v6253 = vpack.c.b16 %v5317, %v5313
        %v6254 = vpack.c.b16 %v5318, %v5314
        %v6255 = vpack.c.b16 %v5323, %v5319
        %v6256 = vpack.c.b16 %v5324, %v5320
        %v6257 = vpack.c.b16 %v5325, %v5321
        %v6258 = vpack.c.b16 %v5326, %v5322
        %v6259 = vpack.c.b16 %v5331, %v5327
        %v6260 = vpack.c.b16 %v5332, %v5328
        %v6261 = vpack.c.b16 %v5333, %v5329
        %v6262 = vpack.c.b16 %v5334, %v5330
        %v6263 = vpack.c.b16 %v5339, %v5335
        %v6264 = vpack.c.b16 %v5340, %v5336
        %v6265 = vpack.c.b16 %v5341, %v5337
        %v6266 = vpack.c.b16 %v5342, %v5338
        %v6267 = vpack.c.b16 %v5347, %v5343
        %v6268 = vpack.c.b16 %v5348, %v5344
        %v6269 = vpack.c.b16 %v5349, %v5345
        %v6270 = vpack.c.b16 %v5350, %v5346
        %v6271 = vpack.c.b16 %v5355, %v5351
        %v6272 = vpack.c.b16 %v5356, %v5352
        %v6273 = vpack.c.b16 %v5357, %v5353
        %v6274 = vpack.c.b16 %v5358, %v5354
        %v6275 = vpack.c.b16 %v5363, %v5359
        %v6276 = vpack.c.b16 %v5364, %v5360
        %v6277 = vpack.c.b16 %v5365, %v5361
        %v6278 = vpack.c.b16 %v5366, %v5362
        %v6279 = vpack.c.b16 %v5371, %v5367
        %v6280 = vpack.c.b16 %v5372, %v5368
        %v6281 = vpack.c.b16 %v5373, %v5369
        %v6282 = vpack.c.b16 %v5374, %v5370
        %v6283 = vpack.c.b16 %v5379, %v5375
        %v6284 = vpack.c.b16 %v5380, %v5376
        %v6285 = vpack.c.b16 %v5381, %v5377
        %v6286 = vpack.c.b16 %v5382, %v5378
        %v6287 = vpack.c.b16 %v5387, %v5383
        %v6288 = vpack.c.b16 %v5388, %v5384
        %v6289 = vpack.c.b16 %v5389, %v5385
        %v6290 = vpack.c.b16 %v5390, %v5386
        %v6291 = vpack.c.b16 %v5395, %v5391
        %v6292 = vpack.c.b16 %v5396, %v5392
        %v6293 = vpack.c.b16 %v5397, %v5393
        %v6294 = vpack.c.b16 %v5398, %v5394
        %v6295 = vpack.c.b16 %v5403, %v5399
        %v6296 = vpack.c.b16 %v5404, %v5400
        %v6297 = vpack.c.b16 %v5405, %v5401
        %v6298 = vpack.c.b16 %v5406, %v5402
        %v6299 = vpack.c.b16 %v5411, %v5407
        %v6300 = vpack.c.b16 %v5412, %v5408
        %v6301 = vpack.c.b16 %v5413, %v5409
        %v6302 = vpack.c.b16 %v5414, %v5410
        %v6303 = vpack.c.b16 %v5419, %v5415
        %v6304 = vpack.c.b16 %v5420, %v5416
        %v6305 = vpack.c.b16 %v5421, %v5417
        %v6306 = vpack.c.b16 %v5422, %v5418
        %v6307 = vpack.c.b16 %v5427, %v5423
        %v6308 = vpack.c.b16 %v5428, %v5424
        %v6309 = vpack.c.b16 %v5429, %v5425
        %v6310 = vpack.c.b16 %v5430, %v5426
        %v6311 = vpack.c.b16 %v5435, %v5431
        %v6312 = vpack.c.b16 %v5436, %v5432
        %v6313 = vpack.c.b16 %v5437, %v5433
        %v6314 = vpack.c.b16 %v5438, %v5434
        %v6315 = vpack.c.b16 %v5443, %v5439
        %v6316 = vpack.c.b16 %v5444, %v5440
        %v6317 = vpack.c.b16 %v5445, %v5441
        %v6318 = vpack.c.b16 %v5446, %v5442
        %v6319 = vpack.c.b16 %v5451, %v5447
        %v6320 = vpack.c.b16 %v5452, %v5448
        %v6321 = vpack.c.b16 %v5453, %v5449
        %v6322 = vpack.c.b16 %v5454, %v5450
        %v6323 = vpack.c.b16 %v5459, %v5455
        %v6324 = vpack.c.b16 %v5460, %v5456
        %v6325 = vpack.c.b16 %v5461, %v5457
        %v6326 = vpack.c.b16 %v5462, %v5458
        %v6327 = vpack.c.b16 %v5467, %v5463
        %v6328 = vpack.c.b16 %v5468, %v5464
        %v6329 = vpack.c.b16 %v5469, %v5465
        %v6330 = vpack.c.b16 %v5470, %v5466
        %v6331 = vpack.c.b16 %v5475, %v5471
        %v6332 = vpack.c.b16 %v5476, %v5472
        %v6333 = vpack.c.b16 %v5477, %v5473
        %v6334 = vpack.c.b16 %v5478, %v5474
        %v6335 = vpack.c.b16 %v5483, %v5479
        %v6336 = vpack.c.b16 %v5484, %v5480
        %v6337 = vpack.c.b16 %v5485, %v5481
        %v6338 = vpack.c.b16 %v5486, %v5482
        %v6339 = vpack.c.b16 %v5491, %v5487
        %v6340 = vpack.c.b16 %v5492, %v5488
        %v6341 = vpack.c.b16 %v5493, %v5489
        %v6342 = vpack.c.b16 %v5494, %v5490
        %v6343 = vpack.c.b16 %v5499, %v5495
        %v6344 = vpack.c.b16 %v5500, %v5496
        %v6345 = vpack.c.b16 %v5501, %v5497
        %v6346 = vpack.c.b16 %v5502, %v5498
        %v6347 = vpack.c.b16 %v5507, %v5503
        %v6348 = vpack.c.b16 %v5508, %v5504
        %v6349 = vpack.c.b16 %v5509, %v5505
        %v6350 = vpack.c.b16 %v5510, %v5506
        %v6351 = vpack.c.b16 %v5515, %v5511
        %v6352 = vpack.c.b16 %v5516, %v5512
        %v6353 = vpack.c.b16 %v5517, %v5513
        %v6354 = vpack.c.b16 %v5518, %v5514
        %v6355 = vpack.c.b16 %v5523, %v5519
        %v6356 = vpack.c.b16 %v5524, %v5520
        %v6357 = vpack.c.b16 %v5525, %v5521
        %v6358 = vpack.c.b16 %v5526, %v5522
        %v6359 = vpack.c.b16 %v5531, %v5527
        %v6360 = vpack.c.b16 %v5532, %v5528
        %v6361 = vpack.c.b16 %v5533, %v5529
        %v6362 = vpack.c.b16 %v5534, %v5530
        %v6363 = vpack.c.b16 %v5539, %v5535
        %v6364 = vpack.c.b16 %v5540, %v5536
        %v6365 = vpack.c.b16 %v5541, %v5537
        %v6366 = vpack.c.b16 %v5542, %v5538
        %v6367 = vpack.c.b16 %v5547, %v5543
        %v6368 = vpack.c.b16 %v5548, %v5544
        %v6369 = vpack.c.b16 %v5549, %v5545
        %v6370 = vpack.c.b16 %v5550, %v5546
        %v6371 = vpack.c.b16 %v5555, %v5551
        %v6372 = vpack.c.b16 %v5556, %v5552
        %v6373 = vpack.c.b16 %v5557, %v5553
        %v6374 = vpack.c.b16 %v5558, %v5554
        %v6375 = vpack.c.b16 %v5563, %v5559
        %v6376 = vpack.c.b16 %v5564, %v5560
        %v6377 = vpack.c.b16 %v5565, %v5561
        %v6378 = vpack.c.b16 %v5566, %v5562
        %v6379 = vpack.c.b16 %v5571, %v5567
        %v6380 = vpack.c.b16 %v5572, %v5568
        %v6381 = vpack.c.b16 %v5573, %v5569
        %v6382 = vpack.c.b16 %v5574, %v5570
        %v6383 = vpack.c.b16 %v5579, %v5575
        %v6384 = vpack.c.b16 %v5580, %v5576
        %v6385 = vpack.c.b16 %v5581, %v5577
        %v6386 = vpack.c.b16 %v5582, %v5578
        %v6387 = vpack.c.b16 %v5587, %v5583
        %v6388 = vpack.c.b16 %v5588, %v5584
        %v6389 = vpack.c.b16 %v5589, %v5585
        %v6390 = vpack.c.b16 %v5590, %v5586
        %v6391 = vpack.c.b16 %v5595, %v5591
        %v6392 = vpack.c.b16 %v5596, %v5592
        %v6393 = vpack.c.b16 %v5597, %v5593
        %v6394 = vpack.c.b16 %v5598, %v5594
        %v6395 = vpack.c.b16 %v5603, %v5599
        %v6396 = vpack.c.b16 %v5604, %v5600
        %v6397 = vpack.c.b16 %v5605, %v5601
        %v6398 = vpack.c.b16 %v5606, %v5602
        %v6399 = vpack.c.b16 %v5611, %v5607
        %v6400 = vpack.c.b16 %v5612, %v5608
        %v6401 = vpack.c.b16 %v5613, %v5609
        %v6402 = vpack.c.b16 %v5614, %v5610
        %v6403 = vpack.c.b16 %v5619, %v5615
        %v6404 = vpack.c.b16 %v5620, %v5616
        %v6405 = vpack.c.b16 %v5621, %v5617
        %v6406 = vpack.c.b16 %v5622, %v5618
        %v6407 = vpack.c.b16 %v5627, %v5623
        %v6408 = vpack.c.b16 %v5628, %v5624
        %v6409 = vpack.c.b16 %v5629, %v5625
        %v6410 = vpack.c.b16 %v5630, %v5626
        %v6411 = vpack.c.b16 %v5635, %v5631
        %v6412 = vpack.c.b16 %v5636, %v5632
        %v6413 = vpack.c.b16 %v5637, %v5633
        %v6414 = vpack.c.b16 %v5638, %v5634
        %v6415 = vpack.c.b16 %v5643, %v5639
        %v6416 = vpack.c.b16 %v5644, %v5640
        %v6417 = vpack.c.b16 %v5645, %v5641
        %v6418 = vpack.c.b16 %v5646, %v5642
        %v6419 = vpack.c.b16 %v5651, %v5647
        %v6420 = vpack.c.b16 %v5652, %v5648
        %v6421 = vpack.c.b16 %v5653, %v5649
        %v6422 = vpack.c.b16 %v5654, %v5650
        %v6423 = vpack.c.b16 %v5659, %v5655
        %v6424 = vpack.c.b16 %v5660, %v5656
        %v6425 = vpack.c.b16 %v5661, %v5657
        %v6426 = vpack.c.b16 %v5662, %v5658
        %v6427 = vpack.c.b16 %v5667, %v5663
        %v6428 = vpack.c.b16 %v5668, %v5664
        %v6429 = vpack.c.b16 %v5669, %v5665
        %v6430 = vpack.c.b16 %v5670, %v5666
        %v6431 = vpack.c.b16 %v5675, %v5671
        %v6432 = vpack.c.b16 %v5676, %v5672
        %v6433 = vpack.c.b16 %v5677, %v5673
        %v6434 = vpack.c.b16 %v5678, %v5674
        %v6435 = vpack.c.b16 %v5683, %v5679
        %v6436 = vpack.c.b16 %v5684, %v5680
        %v6437 = vpack.c.b16 %v5685, %v5681
        %v6438 = vpack.c.b16 %v5686, %v5682
        %v6439 = vpack.c.b16 %v5691, %v5687
        %v6440 = vpack.c.b16 %v5692, %v5688
        %v6441 = vpack.c.b16 %v5693, %v5689
        %v6442 = vpack.c.b16 %v5694, %v5690
        %v6443 = vpack.c.b16 %v5699, %v5695
        %v6444 = vpack.c.b16 %v5700, %v5696
        %v6445 = vpack.c.b16 %v5701, %v5697
        %v6446 = vpack.c.b16 %v5702, %v5698
        %v6447 = vpack.c.b16 %v5707, %v5703
        %v6448 = vpack.c.b16 %v5708, %v5704
        %v6449 = vpack.c.b16 %v5709, %v5705
        %v6450 = vpack.c.b16 %v5710, %v5706
        %v6451 = vpack.c.b16 %v5715, %v5711
        %v6452 = vpack.c.b16 %v5716, %v5712
        %v6453 = vpack.c.b16 %v5717, %v5713
        %v6454 = vpack.c.b16 %v5718, %v5714
        %v6455 = vpack.c.b16 %v5723, %v5719
        %v6456 = vpack.c.b16 %v5724, %v5720
        %v6457 = vpack.c.b16 %v5725, %v5721
        %v6458 = vpack.c.b16 %v5726, %v5722
        %v6459 = vpack.c.b16 %v5731, %v5727
        %v6460 = vpack.c.b16 %v5732, %v5728
        %v6461 = vpack.c.b16 %v5733, %v5729
        %v6462 = vpack.c.b16 %v5734, %v5730
        %v6463 = vpack.c.b16 %v5739, %v5735
        %v6464 = vpack.c.b16 %v5740, %v5736
        %v6465 = vpack.c.b16 %v5741, %v5737
        %v6466 = vpack.c.b16 %v5742, %v5738
        %v6467 = vpack.c.b16 %v5747, %v5743
        %v6468 = vpack.c.b16 %v5748, %v5744
        %v6469 = vpack.c.b16 %v5749, %v5745
        %v6470 = vpack.c.b16 %v5750, %v5746
        %v6471 = vpack.c.b16 %v5755, %v5751
        %v6472 = vpack.c.b16 %v5756, %v5752
        %v6473 = vpack.c.b16 %v5757, %v5753
        %v6474 = vpack.c.b16 %v5758, %v5754
        %v6475 = vpack.c.b16 %v5763, %v5759
        %v6476 = vpack.c.b16 %v5764, %v5760
        %v6477 = vpack.c.b16 %v5765, %v5761
        %v6478 = vpack.c.b16 %v5766, %v5762
        %v6479 = vpack.c.b16 %v5771, %v5767
        %v6480 = vpack.c.b16 %v5772, %v5768
        %v6481 = vpack.c.b16 %v5773, %v5769
        %v6482 = vpack.c.b16 %v5774, %v5770
        %v6483 = vpack.c.b16 %v5779, %v5775
        %v6484 = vpack.c.b16 %v5780, %v5776
        %v6485 = vpack.c.b16 %v5781, %v5777
        %v6486 = vpack.c.b16 %v5782, %v5778
        %v6487 = vpack.c.b16 %v5787, %v5783
        %v6488 = vpack.c.b16 %v5788, %v5784
        %v6489 = vpack.c.b16 %v5789, %v5785
        %v6490 = vpack.c.b16 %v5790, %v5786
        %v6491 = vpack.c.b16 %v5795, %v5791
        %v6492 = vpack.c.b16 %v5796, %v5792
        %v6493 = vpack.c.b16 %v5797, %v5793
        %v6494 = vpack.c.b16 %v5798, %v5794
        %v6495 = vpack.c.b16 %v5803, %v5799
        %v6496 = vpack.c.b16 %v5804, %v5800
        %v6497 = vpack.c.b16 %v5805, %v5801
        %v6498 = vpack.c.b16 %v5806, %v5802
        %v6499 = vpack.c.b16 %v5811, %v5807
        %v6500 = vpack.c.b16 %v5812, %v5808
        %v6501 = vpack.c.b16 %v5813, %v5809
        %v6502 = vpack.c.b16 %v5814, %v5810
        %v6503 = vpack.c.b16 %v5819, %v5815
        %v6504 = vpack.c.b16 %v5820, %v5816
        %v6505 = vpack.c.b16 %v5821, %v5817
        %v6506 = vpack.c.b16 %v5822, %v5818
        %v6507 = vpack.c.b16 %v5827, %v5823
        %v6508 = vpack.c.b16 %v5828, %v5824
        %v6509 = vpack.c.b16 %v5829, %v5825
        %v6510 = vpack.c.b16 %v5830, %v5826
        %v6511 = vpack.c.b16 %v5835, %v5831
        %v6512 = vpack.c.b16 %v5836, %v5832
        %v6513 = vpack.c.b16 %v5837, %v5833
        %v6514 = vpack.c.b16 %v5838, %v5834
        %v6515 = vpack.c.b16 %v5843, %v5839
        %v6516 = vpack.c.b16 %v5844, %v5840
        %v6517 = vpack.c.b16 %v5845, %v5841
        %v6518 = vpack.c.b16 %v5846, %v5842
        %v6519 = vpack.c.b16 %v5851, %v5847
        %v6520 = vpack.c.b16 %v5852, %v5848
        %v6521 = vpack.c.b16 %v5853, %v5849
        %v6522 = vpack.c.b16 %v5854, %v5850
        %v6523 = vpack.c.b16 %v5859, %v5855
        %v6524 = vpack.c.b16 %v5860, %v5856
        %v6525 = vpack.c.b16 %v5861, %v5857
        %v6526 = vpack.c.b16 %v5862, %v5858
        %v6527 = vpack.c.b16 %v5867, %v5863
        %v6528 = vpack.c.b16 %v5868, %v5864
        %v6529 = vpack.c.b16 %v5869, %v5865
        %v6530 = vpack.c.b16 %v5870, %v5866
        %v6531 = vpack.c.b16 %v5875, %v5871
        %v6532 = vpack.c.b16 %v5876, %v5872
        %v6533 = vpack.c.b16 %v5877, %v5873
        %v6534 = vpack.c.b16 %v5878, %v5874
        %v6535 = vpack.c.b16 %v5883, %v5879
        %v6536 = vpack.c.b16 %v5884, %v5880
        %v6537 = vpack.c.b16 %v5885, %v5881
        %v6538 = vpack.c.b16 %v5886, %v5882
        %v6539 = vpack.c.b16 %v5891, %v5887
        %v6540 = vpack.c.b16 %v5892, %v5888
        %v6541 = vpack.c.b16 %v5893, %v5889
        %v6542 = vpack.c.b16 %v5894, %v5890
        %v6543 = vpack.c.b16 %v5899, %v5895
        %v6544 = vpack.c.b16 %v5900, %v5896
        %v6545 = vpack.c.b16 %v5901, %v5897
        %v6546 = vpack.c.b16 %v5902, %v5898
        %v6547 = vpack.c.b16 %v5907, %v5903
        %v6548 = vpack.c.b16 %v5908, %v5904
        %v6549 = vpack.c.b16 %v5909, %v5905
        %v6550 = vpack.c.b16 %v5910, %v5906
        %v6551 = vpack.c.b16 %v5915, %v5911
        %v6552 = vpack.c.b16 %v5916, %v5912
        %v6553 = vpack.c.b16 %v5917, %v5913
        %v6554 = vpack.c.b16 %v5918, %v5914
        %v6555 = vpack.c.b16 %v5923, %v5919
        %v6556 = vpack.c.b16 %v5924, %v5920
        %v6557 = vpack.c.b16 %v5925, %v5921
        %v6558 = vpack.c.b16 %v5926, %v5922
        %v6559 = vpack.c.b16 %v5931, %v5927
        %v6560 = vpack.c.b16 %v5932, %v5928
        %v6561 = vpack.c.b16 %v5933, %v5929
        %v6562 = vpack.c.b16 %v5934, %v5930
        %v6563 = vpack.c.b16 %v5939, %v5935
        %v6564 = vpack.c.b16 %v5940, %v5936
        %v6565 = vpack.c.b16 %v5941, %v5937
        %v6566 = vpack.c.b16 %v5942, %v5938
        %v6567 = vpack.c.b16 %v5947, %v5943
        %v6568 = vpack.c.b16 %v5948, %v5944
        %v6569 = vpack.c.b16 %v5949, %v5945
        %v6570 = vpack.c.b16 %v5950, %v5946
        %v6571 = vpack.c.b16 %v5955, %v5951
        %v6572 = vpack.c.b16 %v5956, %v5952
        %v6573 = vpack.c.b16 %v5957, %v5953
        %v6574 = vpack.c.b16 %v5958, %v5954
        %v6575 = vpack.c.b16 %v5963, %v5959
        %v6576 = vpack.c.b16 %v5964, %v5960
        %v6577 = vpack.c.b16 %v5965, %v5961
        %v6578 = vpack.c.b16 %v5966, %v5962
        %v6579 = vpack.c.b16 %v5971, %v5967
        %v6580 = vpack.c.b16 %v5972, %v5968
        %v6581 = vpack.c.b16 %v5973, %v5969
        %v6582 = vpack.c.b16 %v5974, %v5970
        %v6583 = vpack.c.b16 %v5979, %v5975
        %v6584 = vpack.c.b16 %v5980, %v5976
        %v6585 = vpack.c.b16 %v5981, %v5977
        %v6586 = vpack.c.b16 %v5982, %v5978
        %v6587 = vpack.c.b16 %v5987, %v5983
        %v6588 = vpack.c.b16 %v5988, %v5984
        %v6589 = vpack.c.b16 %v5989, %v5985
        %v6590 = vpack.c.b16 %v5990, %v5986
        %v6591 = vpack.c.b16 %v5995, %v5991
        %v6592 = vpack.c.b16 %v5996, %v5992
        %v6593 = vpack.c.b16 %v5997, %v5993
        %v6594 = vpack.c.b16 %v5998, %v5994
        %v6595 = vpack.c.b16 %v6003, %v5999
        %v6596 = vpack.c.b16 %v6004, %v6000
        %v6597 = vpack.c.b16 %v6005, %v6001
        %v6598 = vpack.c.b16 %v6006, %v6002
        %v6599 = vpack.c.b16 %v6011, %v6007
        %v6600 = vpack.c.b16 %v6012, %v6008
        %v6601 = vpack.c.b16 %v6013, %v6009
        %v6602 = vpack.c.b16 %v6014, %v6010
        %v6603 = vpack.c.b16 %v6019, %v6015
        %v6604 = vpack.c.b16 %v6020, %v6016
        %v6605 = vpack.c.b16 %v6021, %v6017
        %v6606 = vpack.c.b16 %v6022, %v6018
        %v6607 = vpack.c.b16 %v6027, %v6023
        %v6608 = vpack.c.b16 %v6028, %v6024
        %v6609 = vpack.c.b16 %v6029, %v6025
        %v6610 = vpack.c.b16 %v6030, %v6026
        %v6611 = vpack.c.b16 %v6035, %v6031
        %v6612 = vpack.c.b16 %v6036, %v6032
        %v6613 = vpack.c.b16 %v6037, %v6033
        %v6614 = vpack.c.b16 %v6038, %v6034
        %v6615 = vpack.c.b16 %v6043, %v6039
        %v6616 = vpack.c.b16 %v6044, %v6040
        %v6617 = vpack.c.b16 %v6045, %v6041
        %v6618 = vpack.c.b16 %v6046, %v6042
        %v6619 = vpack.c.b16 %v6051, %v6047
        %v6620 = vpack.c.b16 %v6052, %v6048
        %v6621 = vpack.c.b16 %v6053, %v6049
        %v6622 = vpack.c.b16 %v6054, %v6050
        %v6623 = vpack.c.b16 %v6059, %v6055
        %v6624 = vpack.c.b16 %v6060, %v6056
        %v6625 = vpack.c.b16 %v6061, %v6057
        %v6626 = vpack.c.b16 %v6062, %v6058
        %v6627 = vpack.c.b16 %v6067, %v6063
        %v6628 = vpack.c.b16 %v6068, %v6064
        %v6629 = vpack.c.b16 %v6069, %v6065
        %v6630 = vpack.c.b16 %v6070, %v6066
        %v6631 = vpack.c.b16 %v6075, %v6071
        %v6632 = vpack.c.b16 %v6076, %v6072
        %v6633 = vpack.c.b16 %v6077, %v6073
        %v6634 = vpack.c.b16 %v6078, %v6074
        %v6635 = vpack.c.b16 %v6083, %v6079
        %v6636 = vpack.c.b16 %v6084, %v6080
        %v6637 = vpack.c.b16 %v6085, %v6081
        %v6638 = vpack.c.b16 %v6086, %v6082
        %v6639 = vpack.c.b16 %v6091, %v6087
        %v6640 = vpack.c.b16 %v6092, %v6088
        %v6641 = vpack.c.b16 %v6093, %v6089
        %v6642 = vpack.c.b16 %v6094, %v6090
        %v6643 = vpack.c.b16 %v6099, %v6095
        %v6644 = vpack.c.b16 %v6100, %v6096
        %v6645 = vpack.c.b16 %v6101, %v6097
        %v6646 = vpack.c.b16 %v6102, %v6098
        %v6647 = vpack.c.b16 %v6107, %v6103
        %v6648 = vpack.c.b16 %v6108, %v6104
        %v6649 = vpack.c.b16 %v6109, %v6105
        %v6650 = vpack.c.b16 %v6110, %v6106
        %v6651 = vpack.c.b16 %v6115, %v6111
        %v6652 = vpack.c.b16 %v6116, %v6112
        %v6653 = vpack.c.b16 %v6117, %v6113
        %v6654 = vpack.c.b16 %v6118, %v6114
        %v6655 = vpack.c.b16 %v6123, %v6119
        %v6656 = vpack.c.b16 %v6124, %v6120
        %v6657 = vpack.c.b16 %v6125, %v6121
        %v6658 = vpack.c.b16 %v6126, %v6122
        %v6659 = vpack.c.b16 %v6131, %v6127
        %v6660 = vpack.c.b16 %v6132, %v6128
        %v6661 = vpack.c.b16 %v6133, %v6129
        %v6662 = vpack.c.b16 %v6134, %v6130
        %v6663 = vpack.c.b16 %v6139, %v6135
        %v6664 = vpack.c.b16 %v6140, %v6136
        %v6665 = vpack.c.b16 %v6141, %v6137
        %v6666 = vpack.c.b16 %v6142, %v6138
        %v6667 = vpack.c.b16 %v6147, %v6143
        %v6668 = vpack.c.b16 %v6148, %v6144
        %v6669 = vpack.c.b16 %v6149, %v6145
        %v6670 = vpack.c.b16 %v6150, %v6146
        %v6671 = vpack.c.b16 %v6155, %v6151
        %v6672 = vpack.c.b16 %v6156, %v6152
        %v6673 = vpack.c.b16 %v6157, %v6153
        %v6674 = vpack.c.b16 %v6158, %v6154
        %v6675 = vpack.c.b16 %v6163, %v6159
        %v6676 = vpack.c.b16 %v6164, %v6160
        %v6677 = vpack.c.b16 %v6165, %v6161
        %v6678 = vpack.c.b16 %v6166, %v6162
        %v6679 = vpack.c.b16 %v6171, %v6167
        %v6680 = vpack.c.b16 %v6172, %v6168
        %v6681 = vpack.c.b16 %v6173, %v6169
        %v6682 = vpack.c.b16 %v6174, %v6170
        %v6683 = vpack.c.b16 %v6179, %v6175
        %v6684 = vpack.c.b16 %v6180, %v6176
        %v6685 = vpack.c.b16 %v6181, %v6177
        %v6686 = vpack.c.b16 %v6182, %v6178
        %v6687 = vpack.c.b16 %v6187, %v6183
        %v6688 = vpack.c.b16 %v6188, %v6184
        %v6689 = vpack.c.b16 %v6189, %v6185
        %v6690 = vpack.c.b16 %v6190, %v6186
        %v6691 = vpack.c.b16 %v6195, %v6191
        %v6692 = vpack.c.b16 %v6196, %v6192
        %v6693 = vpack.c.b16 %v6197, %v6193
        %v6694 = vpack.c.b16 %v6198, %v6194
        %v6695 = vpack.c.b16 %v6203, %v6199
        %v6696 = vpack.c.b16 %v6204, %v6200
        %v6697 = vpack.c.b16 %v6205, %v6201
        %v6698 = vpack.c.b16 %v6206, %v6202
        %v6699 = vpack.c.b16 %v6211, %v6207
        %v6700 = vpack.c.b16 %v6212, %v6208
        %v6701 = vpack.c.b16 %v6213, %v6209
        %v6702 = vpack.c.b16 %v6214, %v6210
        %v6703 = vpack.c.b16 %v6219, %v6215
        %v6704 = vpack.c.b16 %v6220, %v6216
        %v6705 = vpack.c.b16 %v6221, %v6217
        %v6706 = vpack.c.b16 %v6222, %v6218
        %v6707 = vpack.c.b16 %v6227, %v6223
        %v6708 = vpack.c.b16 %v6228, %v6224
        %v6709 = vpack.c.b16 %v6229, %v6225
        %v6710 = vpack.c.b16 %v6230, %v6226
        %7191 = vmatpush.bf16.msra.mxu0 %v6259
        %7192 = vmatpush.bf16.msra.mxu0 %v6255
        %7193 = vmatpush.bf16.msra.mxu0 %v6251
        %7194 = vmatpush.bf16.msra.mxu0 %v6247
        %7195 = vmatpush.bf16.msra.mxu0 %v6243
        %7196 = vmatpush.bf16.msra.mxu0 %v6239
        %7197 = vmatpush.bf16.msra.mxu0 %v6235
        %7198 = vmatpush.bf16.msra.mxu0 %v6231
        %7199 = vmatmul.bf16.gmra.mxu0 %v4268
        %v7200 = vpop.f32.mrf.mxu0
        %v7201 = vadd.f32 %v4783, %v7200
        %v7202 = vpop.f32.mrf.mxu0
        %v7203 = vadd.f32 %v4783, %v7202
        %7204 = vmatmul.bf16.gmra.mxu0 %v4274
        %v7205 = vpop.f32.mrf.mxu0
        %v7206 = vadd.f32 %v4783, %v7205
        %v7207 = vpop.f32.mrf.mxu0
        %v7208 = vadd.f32 %v4783, %v7207
        %7209 = vmatmul.bf16.gmra.mxu0 %v4280
        %v7210 = vpop.f32.mrf.mxu0
        %v7211 = vadd.f32 %v4783, %v7210
        %v7212 = vpop.f32.mrf.mxu0
        %v7213 = vadd.f32 %v4783, %v7212
        %7214 = vmatmul.bf16.gmra.mxu0 %v4286
        %v7215 = vpop.f32.mrf.mxu0
        %v7216 = vadd.f32 %v4783, %v7215
        %v7217 = vpop.f32.mrf.mxu0
        %v7218 = vadd.f32 %v4783, %v7217
        %7219 = vdwg.mxu0
        %7220 = vmatpush.bf16.msra.mxu0 %v6291
        %7221 = vmatpush.bf16.msra.mxu0 %v6287
        %7222 = vmatpush.bf16.msra.mxu0 %v6283
        %7223 = vmatpush.bf16.msra.mxu0 %v6279
        %7224 = vmatpush.bf16.msra.mxu0 %v6275
        %7225 = vmatpush.bf16.msra.mxu0 %v6271
        %7226 = vmatpush.bf16.msra.mxu0 %v6267
        %7227 = vmatpush.bf16.msra.mxu0 %v6263
        %7228 = vmatmul.bf16.gmra.mxu0 %v4269
        %v7229 = vpop.f32.mrf.mxu0
        %v7230 = vadd.f32 %v7201, %v7229
        %v7231 = vpop.f32.mrf.mxu0
        %v7232 = vadd.f32 %v7203, %v7231
        %7233 = vmatmul.bf16.gmra.mxu0 %v4275
        %v7234 = vpop.f32.mrf.mxu0
        %v7235 = vadd.f32 %v7206, %v7234
        %v7236 = vpop.f32.mrf.mxu0
        %v7237 = vadd.f32 %v7208, %v7236
        %7238 = vmatmul.bf16.gmra.mxu0 %v4281
        %v7239 = vpop.f32.mrf.mxu0
        %v7240 = vadd.f32 %v7211, %v7239
        %v7241 = vpop.f32.mrf.mxu0
        %v7242 = vadd.f32 %v7213, %v7241
        %7243 = vmatmul.bf16.gmra.mxu0 %v4287
        %v7244 = vpop.f32.mrf.mxu0
        %v7245 = vadd.f32 %v7216, %v7244
        %v7246 = vpop.f32.mrf.mxu0
        %v7247 = vadd.f32 %v7218, %v7246
        %7248 = vdwg.mxu0
        %7249 = vmatpush.bf16.msra.mxu0 %v6323
        %7250 = vmatpush.bf16.msra.mxu0 %v6319
        %7251 = vmatpush.bf16.msra.mxu0 %v6315
        %7252 = vmatpush.bf16.msra.mxu0 %v6311
        %7253 = vmatpush.bf16.msra.mxu0 %v6307
        %7254 = vmatpush.bf16.msra.mxu0 %v6303
        %7255 = vmatpush.bf16.msra.mxu0 %v6299
        %7256 = vmatpush.bf16.msra.mxu0 %v6295
        %7257 = vmatmul.bf16.gmra.mxu0 %v4270
        %v7258 = vpop.f32.mrf.mxu0
        %v7259 = vadd.f32 %v7230, %v7258
        %v7260 = vpop.f32.mrf.mxu0
        %v7261 = vadd.f32 %v7232, %v7260
        %7262 = vmatmul.bf16.gmra.mxu0 %v4276
        %v7263 = vpop.f32.mrf.mxu0
        %v7264 = vadd.f32 %v7235, %v7263
        %v7265 = vpop.f32.mrf.mxu0
        %v7266 = vadd.f32 %v7237, %v7265
        %7267 = vmatmul.bf16.gmra.mxu0 %v4282
        %v7268 = vpop.f32.mrf.mxu0
        %v7269 = vadd.f32 %v7240, %v7268
        %v7270 = vpop.f32.mrf.mxu0
        %v7271 = vadd.f32 %v7242, %v7270
        %7272 = vmatmul.bf16.gmra.mxu0 %v4288
        %v7273 = vpop.f32.mrf.mxu0
        %v7274 = vadd.f32 %v7245, %v7273
        %v7275 = vpop.f32.mrf.mxu0
        %v7276 = vadd.f32 %v7247, %v7275
        %7277 = vdwg.mxu0
        %7278 = vmatpush.bf16.msra.mxu0 %v6355
        %7279 = vmatpush.bf16.msra.mxu0 %v6351
        %7280 = vmatpush.bf16.msra.mxu0 %v6347
        %7281 = vmatpush.bf16.msra.mxu0 %v6343
        %7282 = vmatpush.bf16.msra.mxu0 %v6339
        %7283 = vmatpush.bf16.msra.mxu0 %v6335
        %7284 = vmatpush.bf16.msra.mxu0 %v6331
        %7285 = vmatpush.bf16.msra.mxu0 %v6327
        %7286 = vmatmul.bf16.gmra.mxu0 %v4271
        %v7287 = vpop.f32.mrf.mxu0
        %v7288 = vadd.f32 %v7259, %v7287
        %v7289 = vpop.f32.mrf.mxu0
        %v7290 = vadd.f32 %v7261, %v7289
        %7291 = vmatmul.bf16.gmra.mxu0 %v4277
        %v7292 = vpop.f32.mrf.mxu0
        %v7293 = vadd.f32 %v7264, %v7292
        %v7294 = vpop.f32.mrf.mxu0
        %v7295 = vadd.f32 %v7266, %v7294
        %7296 = vmatmul.bf16.gmra.mxu0 %v4283
        %v7297 = vpop.f32.mrf.mxu0
        %v7298 = vadd.f32 %v7269, %v7297
        %v7299 = vpop.f32.mrf.mxu0
        %v7300 = vadd.f32 %v7271, %v7299
        %7301 = vmatmul.bf16.gmra.mxu0 %v4289
        %v7302 = vpop.f32.mrf.mxu0
        %v7303 = vadd.f32 %v7274, %v7302
        %v7304 = vpop.f32.mrf.mxu0
        %v7305 = vadd.f32 %v7276, %v7304
        %7306 = vdwg.mxu0
        %7307 = vmatpush.bf16.msra.mxu0 %v6387
        %7308 = vmatpush.bf16.msra.mxu0 %v6383
        %7309 = vmatpush.bf16.msra.mxu0 %v6379
        %7310 = vmatpush.bf16.msra.mxu0 %v6375
        %7311 = vmatpush.bf16.msra.mxu0 %v6371
        %7312 = vmatpush.bf16.msra.mxu0 %v6367
        %7313 = vmatpush.bf16.msra.mxu0 %v6363
        %7314 = vmatpush.bf16.msra.mxu0 %v6359
        %7315 = vmatmul.bf16.gmra.mxu0 %v4272
        %v7316 = vpop.f32.mrf.mxu0
        %v7317 = vadd.f32 %v7288, %v7316
        %v7318 = vpop.f32.mrf.mxu0
        %v7319 = vadd.f32 %v7290, %v7318
        %7320 = vmatmul.bf16.gmra.mxu0 %v4278
        %v7321 = vpop.f32.mrf.mxu0
        %v7322 = vadd.f32 %v7293, %v7321
        %v7323 = vpop.f32.mrf.mxu0
        %v7324 = vadd.f32 %v7295, %v7323
        %7325 = vmatmul.bf16.gmra.mxu0 %v4284
        %v7326 = vpop.f32.mrf.mxu0
        %v7327 = vadd.f32 %v7298, %v7326
        %v7328 = vpop.f32.mrf.mxu0
        %v7329 = vadd.f32 %v7300, %v7328
        %7330 = vmatmul.bf16.gmra.mxu0 %v4290
        %v7331 = vpop.f32.mrf.mxu0
        %v7332 = vadd.f32 %v7303, %v7331
        %v7333 = vpop.f32.mrf.mxu0
        %v7334 = vadd.f32 %v7305, %v7333
        %7335 = vdwg.mxu0
        %7336 = vmatpush.bf16.msra.mxu0 %v6419
        %7337 = vmatpush.bf16.msra.mxu0 %v6415
        %7338 = vmatpush.bf16.msra.mxu0 %v6411
        %7339 = vmatpush.bf16.msra.mxu0 %v6407
        %7340 = vmatpush.bf16.msra.mxu0 %v6403
        %7341 = vmatpush.bf16.msra.mxu0 %v6399
        %7342 = vmatpush.bf16.msra.mxu0 %v6395
        %7343 = vmatpush.bf16.msra.mxu0 %v6391
        %7344 = vmatmul.bf16.gmra.mxu0 %v4273
        %v7345 = vpop.f32.mrf.mxu0
        %v7346 = vadd.f32 %v7317, %v7345
        %v7347 = vpop.f32.mrf.mxu0
        %v7348 = vadd.f32 %v7319, %v7347
        %7349 = vmatmul.bf16.gmra.mxu0 %v4279
        %v7350 = vpop.f32.mrf.mxu0
        %v7351 = vadd.f32 %v7322, %v7350
        %v7352 = vpop.f32.mrf.mxu0
        %v7353 = vadd.f32 %v7324, %v7352
        %7354 = vmatmul.bf16.gmra.mxu0 %v4285
        %v7355 = vpop.f32.mrf.mxu0
        %v7356 = vadd.f32 %v7327, %v7355
        %v7357 = vpop.f32.mrf.mxu0
        %v7358 = vadd.f32 %v7329, %v7357
        %7359 = vmatmul.bf16.gmra.mxu0 %v4291
        %v7360 = vpop.f32.mrf.mxu0
        %v7361 = vadd.f32 %v7332, %v7360
        %v7362 = vpop.f32.mrf.mxu0
        %v7363 = vadd.f32 %v7334, %v7362
        %7364 = vdwg.mxu0
        %7365 = vmatpush.bf16.msra.mxu0 %v6451
        %7366 = vmatpush.bf16.msra.mxu0 %v6447
        %7367 = vmatpush.bf16.msra.mxu0 %v6443
        %7368 = vmatpush.bf16.msra.mxu0 %v6439
        %7369 = vmatpush.bf16.msra.mxu0 %v6435
        %7370 = vmatpush.bf16.msra.mxu0 %v6431
        %7371 = vmatpush.bf16.msra.mxu0 %v6427
        %7372 = vmatpush.bf16.msra.mxu0 %v6423
        %7373 = vmatmul.bf16.gmra.mxu0 %v4274
        %v7374 = vpop.f32.mrf.mxu0
        %v7375 = vadd.f32 %v7346, %v7374
        %v7376 = vpop.f32.mrf.mxu0
        %v7377 = vadd.f32 %v7348, %v7376
        %7378 = vmatmul.bf16.gmra.mxu0 %v4280
        %v7379 = vpop.f32.mrf.mxu0
        %v7380 = vadd.f32 %v7351, %v7379
        %v7381 = vpop.f32.mrf.mxu0
        %v7382 = vadd.f32 %v7353, %v7381
        %7383 = vmatmul.bf16.gmra.mxu0 %v4286
        %v7384 = vpop.f32.mrf.mxu0
        %v7385 = vadd.f32 %v7356, %v7384
        %v7386 = vpop.f32.mrf.mxu0
        %v7387 = vadd.f32 %v7358, %v7386
        %7388 = vmatmul.bf16.gmra.mxu0 %v4292
        %v7389 = vpop.f32.mrf.mxu0
        %v7390 = vadd.f32 %v7361, %v7389
        %v7391 = vpop.f32.mrf.mxu0
        %v7392 = vadd.f32 %v7363, %v7391
        %7393 = vdwg.mxu0
        %7394 = vmatpush.bf16.msra.mxu0 %v6483
        %7395 = vmatpush.bf16.msra.mxu0 %v6479
        %7396 = vmatpush.bf16.msra.mxu0 %v6475
        %7397 = vmatpush.bf16.msra.mxu0 %v6471
        %7398 = vmatpush.bf16.msra.mxu0 %v6467
        %7399 = vmatpush.bf16.msra.mxu0 %v6463
        %7400 = vmatpush.bf16.msra.mxu0 %v6459
        %7401 = vmatpush.bf16.msra.mxu0 %v6455
        %7402 = vmatmul.bf16.gmra.mxu0 %v4275
        %v7403 = vpop.f32.mrf.mxu0
        %v7404 = vadd.f32 %v7375, %v7403
        %v7405 = vpop.f32.mrf.mxu0
        %v7406 = vadd.f32 %v7377, %v7405
        %7407 = vmatmul.bf16.gmra.mxu0 %v4281
        %v7408 = vpop.f32.mrf.mxu0
        %v7409 = vadd.f32 %v7380, %v7408
        %v7410 = vpop.f32.mrf.mxu0
        %v7411 = vadd.f32 %v7382, %v7410
        %7412 = vmatmul.bf16.gmra.mxu0 %v4287
        %v7413 = vpop.f32.mrf.mxu0
        %v7414 = vadd.f32 %v7385, %v7413
        %v7415 = vpop.f32.mrf.mxu0
        %v7416 = vadd.f32 %v7387, %v7415
        %7417 = vmatmul.bf16.gmra.mxu0 %v4293
        %v7418 = vpop.f32.mrf.mxu0
        %v7419 = vadd.f32 %v7390, %v7418
        %v7420 = vpop.f32.mrf.mxu0
        %v7421 = vadd.f32 %v7392, %v7420
        %7422 = vdwg.mxu0
        %7423 = vmatpush.bf16.msra.mxu0 %v6515
        %7424 = vmatpush.bf16.msra.mxu0 %v6511
        %7425 = vmatpush.bf16.msra.mxu0 %v6507
        %7426 = vmatpush.bf16.msra.mxu0 %v6503
        %7427 = vmatpush.bf16.msra.mxu0 %v6499
        %7428 = vmatpush.bf16.msra.mxu0 %v6495
        %7429 = vmatpush.bf16.msra.mxu0 %v6491
        %7430 = vmatpush.bf16.msra.mxu0 %v6487
        %7431 = vmatmul.bf16.gmra.mxu0 %v4276
        %v7432 = vpop.f32.mrf.mxu0
        %v7433 = vadd.f32 %v7404, %v7432
        %v7434 = vpop.f32.mrf.mxu0
        %v7435 = vadd.f32 %v7406, %v7434
        %7436 = vmatmul.bf16.gmra.mxu0 %v4282
        %v7437 = vpop.f32.mrf.mxu0
        %v7438 = vadd.f32 %v7409, %v7437
        %v7439 = vpop.f32.mrf.mxu0
        %v7440 = vadd.f32 %v7411, %v7439
        %7441 = vmatmul.bf16.gmra.mxu0 %v4288
        %v7442 = vpop.f32.mrf.mxu0
        %v7443 = vadd.f32 %v7414, %v7442
        %v7444 = vpop.f32.mrf.mxu0
        %v7445 = vadd.f32 %v7416, %v7444
        %7446 = vmatmul.bf16.gmra.mxu0 %v4294
        %v7447 = vpop.f32.mrf.mxu0
        %v7448 = vadd.f32 %v7419, %v7447
        %v7449 = vpop.f32.mrf.mxu0
        %v7450 = vadd.f32 %v7421, %v7449
        %7451 = vdwg.mxu0
        %7452 = vmatpush.bf16.msra.mxu0 %v6547
        %7453 = vmatpush.bf16.msra.mxu0 %v6543
        %7454 = vmatpush.bf16.msra.mxu0 %v6539
        %7455 = vmatpush.bf16.msra.mxu0 %v6535
        %7456 = vmatpush.bf16.msra.mxu0 %v6531
        %7457 = vmatpush.bf16.msra.mxu0 %v6527
        %7458 = vmatpush.bf16.msra.mxu0 %v6523
        %7459 = vmatpush.bf16.msra.mxu0 %v6519
        %7460 = vmatmul.bf16.gmra.mxu0 %v4277
        %v7461 = vpop.f32.mrf.mxu0
        %v7462 = vadd.f32 %v7433, %v7461
        %v7463 = vpop.f32.mrf.mxu0
        %v7464 = vadd.f32 %v7435, %v7463
        %7465 = vmatmul.bf16.gmra.mxu0 %v4283
        %v7466 = vpop.f32.mrf.mxu0
        %v7467 = vadd.f32 %v7438, %v7466
        %v7468 = vpop.f32.mrf.mxu0
        %v7469 = vadd.f32 %v7440, %v7468
        %7470 = vmatmul.bf16.gmra.mxu0 %v4289
        %v7471 = vpop.f32.mrf.mxu0
        %v7472 = vadd.f32 %v7443, %v7471
        %v7473 = vpop.f32.mrf.mxu0
        %v7474 = vadd.f32 %v7445, %v7473
        %7475 = vmatmul.bf16.gmra.mxu0 %v4295
        %v7476 = vpop.f32.mrf.mxu0
        %v7477 = vadd.f32 %v7448, %v7476
        %v7478 = vpop.f32.mrf.mxu0
        %v7479 = vadd.f32 %v7450, %v7478
        %7480 = vdwg.mxu0
        %7481 = vmatpush.bf16.msra.mxu0 %v6579
        %7482 = vmatpush.bf16.msra.mxu0 %v6575
        %7483 = vmatpush.bf16.msra.mxu0 %v6571
        %7484 = vmatpush.bf16.msra.mxu0 %v6567
        %7485 = vmatpush.bf16.msra.mxu0 %v6563
        %7486 = vmatpush.bf16.msra.mxu0 %v6559
        %7487 = vmatpush.bf16.msra.mxu0 %v6555
        %7488 = vmatpush.bf16.msra.mxu0 %v6551
        %7489 = vmatmul.bf16.gmra.mxu0 %v4278
        %v7490 = vpop.f32.mrf.mxu0
        %v7491 = vadd.f32 %v7462, %v7490
        %v7492 = vpop.f32.mrf.mxu0
        %v7493 = vadd.f32 %v7464, %v7492
        %7494 = vmatmul.bf16.gmra.mxu0 %v4284
        %v7495 = vpop.f32.mrf.mxu0
        %v7496 = vadd.f32 %v7467, %v7495
        %v7497 = vpop.f32.mrf.mxu0
        %v7498 = vadd.f32 %v7469, %v7497
        %7499 = vmatmul.bf16.gmra.mxu0 %v4290
        %v7500 = vpop.f32.mrf.mxu0
        %v7501 = vadd.f32 %v7472, %v7500
        %v7502 = vpop.f32.mrf.mxu0
        %v7503 = vadd.f32 %v7474, %v7502
        %7504 = vmatmul.bf16.gmra.mxu0 %v4296
        %v7505 = vpop.f32.mrf.mxu0
        %v7506 = vadd.f32 %v7477, %v7505
        %v7507 = vpop.f32.mrf.mxu0
        %v7508 = vadd.f32 %v7479, %v7507
        %7509 = vdwg.mxu0
        %7510 = vmatpush.bf16.msra.mxu0 %v6611
        %7511 = vmatpush.bf16.msra.mxu0 %v6607
        %7512 = vmatpush.bf16.msra.mxu0 %v6603
        %7513 = vmatpush.bf16.msra.mxu0 %v6599
        %7514 = vmatpush.bf16.msra.mxu0 %v6595
        %7515 = vmatpush.bf16.msra.mxu0 %v6591
        %7516 = vmatpush.bf16.msra.mxu0 %v6587
        %7517 = vmatpush.bf16.msra.mxu0 %v6583
        %7518 = vmatmul.bf16.gmra.mxu0 %v4279
        %v7519 = vpop.f32.mrf.mxu0
        %v7520 = vadd.f32 %v7491, %v7519
        %v7521 = vpop.f32.mrf.mxu0
        %v7522 = vadd.f32 %v7493, %v7521
        %7523 = vmatmul.bf16.gmra.mxu0 %v4285
        %v7524 = vpop.f32.mrf.mxu0
        %v7525 = vadd.f32 %v7496, %v7524
        %v7526 = vpop.f32.mrf.mxu0
        %v7527 = vadd.f32 %v7498, %v7526
        %7528 = vmatmul.bf16.gmra.mxu0 %v4291
        %v7529 = vpop.f32.mrf.mxu0
        %v7530 = vadd.f32 %v7501, %v7529
        %v7531 = vpop.f32.mrf.mxu0
        %v7532 = vadd.f32 %v7503, %v7531
        %7533 = vmatmul.bf16.gmra.mxu0 %v4297
        %v7534 = vpop.f32.mrf.mxu0
        %v7535 = vadd.f32 %v7506, %v7534
        %v7536 = vpop.f32.mrf.mxu0
        %v7537 = vadd.f32 %v7508, %v7536
        %7538 = vdwg.mxu0
        %7539 = vmatpush.bf16.msra.mxu0 %v6643
        %7540 = vmatpush.bf16.msra.mxu0 %v6639
        %7541 = vmatpush.bf16.msra.mxu0 %v6635
        %7542 = vmatpush.bf16.msra.mxu0 %v6631
        %7543 = vmatpush.bf16.msra.mxu0 %v6627
        %7544 = vmatpush.bf16.msra.mxu0 %v6623
        %7545 = vmatpush.bf16.msra.mxu0 %v6619
        %7546 = vmatpush.bf16.msra.mxu0 %v6615
        %7547 = vmatmul.bf16.gmra.mxu0 %v4280
        %v7548 = vpop.f32.mrf.mxu0
        %v7549 = vadd.f32 %v7520, %v7548
        %v7550 = vpop.f32.mrf.mxu0
        %v7551 = vadd.f32 %v7522, %v7550
        %7552 = vmatmul.bf16.gmra.mxu0 %v4286
        %v7553 = vpop.f32.mrf.mxu0
        %v7554 = vadd.f32 %v7525, %v7553
        %v7555 = vpop.f32.mrf.mxu0
        %v7556 = vadd.f32 %v7527, %v7555
        %7557 = vmatmul.bf16.gmra.mxu0 %v4292
        %v7558 = vpop.f32.mrf.mxu0
        %v7559 = vadd.f32 %v7530, %v7558
        %v7560 = vpop.f32.mrf.mxu0
        %v7561 = vadd.f32 %v7532, %v7560
        %7562 = vmatmul.bf16.gmra.mxu0 %v4298
        %v7563 = vpop.f32.mrf.mxu0
        %v7564 = vadd.f32 %v7535, %v7563
        %v7565 = vpop.f32.mrf.mxu0
        %v7566 = vadd.f32 %v7537, %v7565
        %7567 = vdwg.mxu0
        %7568 = vmatpush.bf16.msra.mxu0 %v6675
        %7569 = vmatpush.bf16.msra.mxu0 %v6671
        %7570 = vmatpush.bf16.msra.mxu0 %v6667
        %7571 = vmatpush.bf16.msra.mxu0 %v6663
        %7572 = vmatpush.bf16.msra.mxu0 %v6659
        %7573 = vmatpush.bf16.msra.mxu0 %v6655
        %7574 = vmatpush.bf16.msra.mxu0 %v6651
        %7575 = vmatpush.bf16.msra.mxu0 %v6647
        %7576 = vmatmul.bf16.gmra.mxu0 %v4281
        %v7577 = vpop.f32.mrf.mxu0
        %v7578 = vadd.f32 %v7549, %v7577
        %v7579 = vpop.f32.mrf.mxu0
        %v7580 = vadd.f32 %v7551, %v7579
        %7581 = vmatmul.bf16.gmra.mxu0 %v4287
        %v7582 = vpop.f32.mrf.mxu0
        %v7583 = vadd.f32 %v7554, %v7582
        %v7584 = vpop.f32.mrf.mxu0
        %v7585 = vadd.f32 %v7556, %v7584
        %7586 = vmatmul.bf16.gmra.mxu0 %v4293
        %v7587 = vpop.f32.mrf.mxu0
        %v7588 = vadd.f32 %v7559, %v7587
        %v7589 = vpop.f32.mrf.mxu0
        %v7590 = vadd.f32 %v7561, %v7589
        %7591 = vmatmul.bf16.gmra.mxu0 %v4299
        %v7592 = vpop.f32.mrf.mxu0
        %v7593 = vadd.f32 %v7564, %v7592
        %v7594 = vpop.f32.mrf.mxu0
        %v7595 = vadd.f32 %v7566, %v7594
        %7596 = vdwg.mxu0
        %7597 = vmatpush.bf16.msra.mxu0 %v6707
        %7598 = vmatpush.bf16.msra.mxu0 %v6703
        %7599 = vmatpush.bf16.msra.mxu0 %v6699
        %7600 = vmatpush.bf16.msra.mxu0 %v6695
        %7601 = vmatpush.bf16.msra.mxu0 %v6691
        %7602 = vmatpush.bf16.msra.mxu0 %v6687
        %7603 = vmatpush.bf16.msra.mxu0 %v6683
        %7604 = vmatpush.bf16.msra.mxu0 %v6679
        %7605 = vmatmul.bf16.gmra.mxu0 %v4282
        %v7606 = vpop.f32.mrf.mxu0
        %v7607 = vadd.f32 %v7578, %v7606
        %v7608 = vpop.f32.mrf.mxu0
        %v7609 = vadd.f32 %v7580, %v7608
        %7610 = vmatmul.bf16.gmra.mxu0 %v4288
        %v7611 = vpop.f32.mrf.mxu0
        %v7612 = vadd.f32 %v7583, %v7611
        %v7613 = vpop.f32.mrf.mxu0
        %v7614 = vadd.f32 %v7585, %v7613
        %7615 = vmatmul.bf16.gmra.mxu0 %v4294
        %v7616 = vpop.f32.mrf.mxu0
        %v7617 = vadd.f32 %v7588, %v7616
        %v7618 = vpop.f32.mrf.mxu0
        %v7619 = vadd.f32 %v7590, %v7618
        %7620 = vmatmul.bf16.gmra.mxu0 %v4300
        %v7621 = vpop.f32.mrf.mxu0
        %v7622 = vadd.f32 %v7593, %v7621
        %v7623 = vpop.f32.mrf.mxu0
        %v7624 = vadd.f32 %v7595, %v7623
        %7625 = vdwg.mxu0
        %7626 = vmatpush.bf16.msra.mxu0 %v6260
        %7627 = vmatpush.bf16.msra.mxu0 %v6256
        %7628 = vmatpush.bf16.msra.mxu0 %v6252
        %7629 = vmatpush.bf16.msra.mxu0 %v6248
        %7630 = vmatpush.bf16.msra.mxu0 %v6244
        %7631 = vmatpush.bf16.msra.mxu0 %v6240
        %7632 = vmatpush.bf16.msra.mxu0 %v6236
        %7633 = vmatpush.bf16.msra.mxu0 %v6232
        %7634 = vmatmul.bf16.gmra.mxu0 %v4268
        %v7635 = vpop.f32.mrf.mxu0
        %v7636 = vadd.f32 %v4784, %v7635
        %v7637 = vpop.f32.mrf.mxu0
        %v7638 = vadd.f32 %v4784, %v7637
        %7639 = vmatmul.bf16.gmra.mxu0 %v4274
        %v7640 = vpop.f32.mrf.mxu0
        %v7641 = vadd.f32 %v4784, %v7640
        %v7642 = vpop.f32.mrf.mxu0
        %v7643 = vadd.f32 %v4784, %v7642
        %7644 = vmatmul.bf16.gmra.mxu0 %v4280
        %v7645 = vpop.f32.mrf.mxu0
        %v7646 = vadd.f32 %v4784, %v7645
        %v7647 = vpop.f32.mrf.mxu0
        %v7648 = vadd.f32 %v4784, %v7647
        %7649 = vmatmul.bf16.gmra.mxu0 %v4286
        %v7650 = vpop.f32.mrf.mxu0
        %v7651 = vadd.f32 %v4784, %v7650
        %v7652 = vpop.f32.mrf.mxu0
        %v7653 = vadd.f32 %v4784, %v7652
        %7654 = vdwg.mxu0
        %7655 = vmatpush.bf16.msra.mxu0 %v6292
        %7656 = vmatpush.bf16.msra.mxu0 %v6288
        %7657 = vmatpush.bf16.msra.mxu0 %v6284
        %7658 = vmatpush.bf16.msra.mxu0 %v6280
        %7659 = vmatpush.bf16.msra.mxu0 %v6276
        %7660 = vmatpush.bf16.msra.mxu0 %v6272
        %7661 = vmatpush.bf16.msra.mxu0 %v6268
        %7662 = vmatpush.bf16.msra.mxu0 %v6264
        %7663 = vmatmul.bf16.gmra.mxu0 %v4269
        %v7664 = vpop.f32.mrf.mxu0
        %v7665 = vadd.f32 %v7636, %v7664
        %v7666 = vpop.f32.mrf.mxu0
        %v7667 = vadd.f32 %v7638, %v7666
        %7668 = vmatmul.bf16.gmra.mxu0 %v4275
        %v7669 = vpop.f32.mrf.mxu0
        %v7670 = vadd.f32 %v7641, %v7669
        %v7671 = vpop.f32.mrf.mxu0
        %v7672 = vadd.f32 %v7643, %v7671
        %7673 = vmatmul.bf16.gmra.mxu0 %v4281
        %v7674 = vpop.f32.mrf.mxu0
        %v7675 = vadd.f32 %v7646, %v7674
        %v7676 = vpop.f32.mrf.mxu0
        %v7677 = vadd.f32 %v7648, %v7676
        %7678 = vmatmul.bf16.gmra.mxu0 %v4287
        %v7679 = vpop.f32.mrf.mxu0
        %v7680 = vadd.f32 %v7651, %v7679
        %v7681 = vpop.f32.mrf.mxu0
        %v7682 = vadd.f32 %v7653, %v7681
        %7683 = vdwg.mxu0
        %7684 = vmatpush.bf16.msra.mxu0 %v6324
        %7685 = vmatpush.bf16.msra.mxu0 %v6320
        %7686 = vmatpush.bf16.msra.mxu0 %v6316
        %7687 = vmatpush.bf16.msra.mxu0 %v6312
        %7688 = vmatpush.bf16.msra.mxu0 %v6308
        %7689 = vmatpush.bf16.msra.mxu0 %v6304
        %7690 = vmatpush.bf16.msra.mxu0 %v6300
        %7691 = vmatpush.bf16.msra.mxu0 %v6296
        %7692 = vmatmul.bf16.gmra.mxu0 %v4270
        %v7693 = vpop.f32.mrf.mxu0
        %v7694 = vadd.f32 %v7665, %v7693
        %v7695 = vpop.f32.mrf.mxu0
        %v7696 = vadd.f32 %v7667, %v7695
        %7697 = vmatmul.bf16.gmra.mxu0 %v4276
        %v7698 = vpop.f32.mrf.mxu0
        %v7699 = vadd.f32 %v7670, %v7698
        %v7700 = vpop.f32.mrf.mxu0
        %v7701 = vadd.f32 %v7672, %v7700
        %7702 = vmatmul.bf16.gmra.mxu0 %v4282
        %v7703 = vpop.f32.mrf.mxu0
        %v7704 = vadd.f32 %v7675, %v7703
        %v7705 = vpop.f32.mrf.mxu0
        %v7706 = vadd.f32 %v7677, %v7705
        %7707 = vmatmul.bf16.gmra.mxu0 %v4288
        %v7708 = vpop.f32.mrf.mxu0
        %v7709 = vadd.f32 %v7680, %v7708
        %v7710 = vpop.f32.mrf.mxu0
        %v7711 = vadd.f32 %v7682, %v7710
        %7712 = vdwg.mxu0
        %7713 = vmatpush.bf16.msra.mxu0 %v6356
        %7714 = vmatpush.bf16.msra.mxu0 %v6352
        %7715 = vmatpush.bf16.msra.mxu0 %v6348
        %7716 = vmatpush.bf16.msra.mxu0 %v6344
        %7717 = vmatpush.bf16.msra.mxu0 %v6340
        %7718 = vmatpush.bf16.msra.mxu0 %v6336
        %7719 = vmatpush.bf16.msra.mxu0 %v6332
        %7720 = vmatpush.bf16.msra.mxu0 %v6328
        %7721 = vmatmul.bf16.gmra.mxu0 %v4271
        %v7722 = vpop.f32.mrf.mxu0
        %v7723 = vadd.f32 %v7694, %v7722
        %v7724 = vpop.f32.mrf.mxu0
        %v7725 = vadd.f32 %v7696, %v7724
        %7726 = vmatmul.bf16.gmra.mxu0 %v4277
        %v7727 = vpop.f32.mrf.mxu0
        %v7728 = vadd.f32 %v7699, %v7727
        %v7729 = vpop.f32.mrf.mxu0
        %v7730 = vadd.f32 %v7701, %v7729
        %7731 = vmatmul.bf16.gmra.mxu0 %v4283
        %v7732 = vpop.f32.mrf.mxu0
        %v7733 = vadd.f32 %v7704, %v7732
        %v7734 = vpop.f32.mrf.mxu0
        %v7735 = vadd.f32 %v7706, %v7734
        %7736 = vmatmul.bf16.gmra.mxu0 %v4289
        %v7737 = vpop.f32.mrf.mxu0
        %v7738 = vadd.f32 %v7709, %v7737
        %v7739 = vpop.f32.mrf.mxu0
        %v7740 = vadd.f32 %v7711, %v7739
        %7741 = vdwg.mxu0
        %7742 = vmatpush.bf16.msra.mxu0 %v6388
        %7743 = vmatpush.bf16.msra.mxu0 %v6384
        %7744 = vmatpush.bf16.msra.mxu0 %v6380
        %7745 = vmatpush.bf16.msra.mxu0 %v6376
        %7746 = vmatpush.bf16.msra.mxu0 %v6372
        %7747 = vmatpush.bf16.msra.mxu0 %v6368
        %7748 = vmatpush.bf16.msra.mxu0 %v6364
        %7749 = vmatpush.bf16.msra.mxu0 %v6360
        %7750 = vmatmul.bf16.gmra.mxu0 %v4272
        %v7751 = vpop.f32.mrf.mxu0
        %v7752 = vadd.f32 %v7723, %v7751
        %v7753 = vpop.f32.mrf.mxu0
        %v7754 = vadd.f32 %v7725, %v7753
        %7755 = vmatmul.bf16.gmra.mxu0 %v4278
        %v7756 = vpop.f32.mrf.mxu0
        %v7757 = vadd.f32 %v7728, %v7756
        %v7758 = vpop.f32.mrf.mxu0
        %v7759 = vadd.f32 %v7730, %v7758
        %7760 = vmatmul.bf16.gmra.mxu0 %v4284
        %v7761 = vpop.f32.mrf.mxu0
        %v7762 = vadd.f32 %v7733, %v7761
        %v7763 = vpop.f32.mrf.mxu0
        %v7764 = vadd.f32 %v7735, %v7763
        %7765 = vmatmul.bf16.gmra.mxu0 %v4290
        %v7766 = vpop.f32.mrf.mxu0
        %v7767 = vadd.f32 %v7738, %v7766
        %v7768 = vpop.f32.mrf.mxu0
        %v7769 = vadd.f32 %v7740, %v7768
        %7770 = vdwg.mxu0
        %7771 = vmatpush.bf16.msra.mxu0 %v6420
        %7772 = vmatpush.bf16.msra.mxu0 %v6416
        %7773 = vmatpush.bf16.msra.mxu0 %v6412
        %7774 = vmatpush.bf16.msra.mxu0 %v6408
        %7775 = vmatpush.bf16.msra.mxu0 %v6404
        %7776 = vmatpush.bf16.msra.mxu0 %v6400
        %7777 = vmatpush.bf16.msra.mxu0 %v6396
        %7778 = vmatpush.bf16.msra.mxu0 %v6392
        %7779 = vmatmul.bf16.gmra.mxu0 %v4273
        %v7780 = vpop.f32.mrf.mxu0
        %v7781 = vadd.f32 %v7752, %v7780
        %v7782 = vpop.f32.mrf.mxu0
        %v7783 = vadd.f32 %v7754, %v7782
        %7784 = vmatmul.bf16.gmra.mxu0 %v4279
        %v7785 = vpop.f32.mrf.mxu0
        %v7786 = vadd.f32 %v7757, %v7785
        %v7787 = vpop.f32.mrf.mxu0
        %v7788 = vadd.f32 %v7759, %v7787
        %7789 = vmatmul.bf16.gmra.mxu0 %v4285
        %v7790 = vpop.f32.mrf.mxu0
        %v7791 = vadd.f32 %v7762, %v7790
        %v7792 = vpop.f32.mrf.mxu0
        %v7793 = vadd.f32 %v7764, %v7792
        %7794 = vmatmul.bf16.gmra.mxu0 %v4291
        %v7795 = vpop.f32.mrf.mxu0
        %v7796 = vadd.f32 %v7767, %v7795
        %v7797 = vpop.f32.mrf.mxu0
        %v7798 = vadd.f32 %v7769, %v7797
        %7799 = vdwg.mxu0
        %7800 = vmatpush.bf16.msra.mxu0 %v6452
        %7801 = vmatpush.bf16.msra.mxu0 %v6448
        %7802 = vmatpush.bf16.msra.mxu0 %v6444
        %7803 = vmatpush.bf16.msra.mxu0 %v6440
        %7804 = vmatpush.bf16.msra.mxu0 %v6436
        %7805 = vmatpush.bf16.msra.mxu0 %v6432
        %7806 = vmatpush.bf16.msra.mxu0 %v6428
        %7807 = vmatpush.bf16.msra.mxu0 %v6424
        %7808 = vmatmul.bf16.gmra.mxu0 %v4274
        %v7809 = vpop.f32.mrf.mxu0
        %v7810 = vadd.f32 %v7781, %v7809
        %v7811 = vpop.f32.mrf.mxu0
        %v7812 = vadd.f32 %v7783, %v7811
        %7813 = vmatmul.bf16.gmra.mxu0 %v4280
        %v7814 = vpop.f32.mrf.mxu0
        %v7815 = vadd.f32 %v7786, %v7814
        %v7816 = vpop.f32.mrf.mxu0
        %v7817 = vadd.f32 %v7788, %v7816
        %7818 = vmatmul.bf16.gmra.mxu0 %v4286
        %v7819 = vpop.f32.mrf.mxu0
        %v7820 = vadd.f32 %v7791, %v7819
        %v7821 = vpop.f32.mrf.mxu0
        %v7822 = vadd.f32 %v7793, %v7821
        %7823 = vmatmul.bf16.gmra.mxu0 %v4292
        %v7824 = vpop.f32.mrf.mxu0
        %v7825 = vadd.f32 %v7796, %v7824
        %v7826 = vpop.f32.mrf.mxu0
        %v7827 = vadd.f32 %v7798, %v7826
        %7828 = vdwg.mxu0
        %7829 = vmatpush.bf16.msra.mxu0 %v6484
        %7830 = vmatpush.bf16.msra.mxu0 %v6480
        %7831 = vmatpush.bf16.msra.mxu0 %v6476
        %7832 = vmatpush.bf16.msra.mxu0 %v6472
        %7833 = vmatpush.bf16.msra.mxu0 %v6468
        %7834 = vmatpush.bf16.msra.mxu0 %v6464
        %7835 = vmatpush.bf16.msra.mxu0 %v6460
        %7836 = vmatpush.bf16.msra.mxu0 %v6456
        %7837 = vmatmul.bf16.gmra.mxu0 %v4275
        %v7838 = vpop.f32.mrf.mxu0
        %v7839 = vadd.f32 %v7810, %v7838
        %v7840 = vpop.f32.mrf.mxu0
        %v7841 = vadd.f32 %v7812, %v7840
        %7842 = vmatmul.bf16.gmra.mxu0 %v4281
        %v7843 = vpop.f32.mrf.mxu0
        %v7844 = vadd.f32 %v7815, %v7843
        %v7845 = vpop.f32.mrf.mxu0
        %v7846 = vadd.f32 %v7817, %v7845
        %7847 = vmatmul.bf16.gmra.mxu0 %v4287
        %v7848 = vpop.f32.mrf.mxu0
        %v7849 = vadd.f32 %v7820, %v7848
        %v7850 = vpop.f32.mrf.mxu0
        %v7851 = vadd.f32 %v7822, %v7850
        %7852 = vmatmul.bf16.gmra.mxu0 %v4293
        %v7853 = vpop.f32.mrf.mxu0
        %v7854 = vadd.f32 %v7825, %v7853
        %v7855 = vpop.f32.mrf.mxu0
        %v7856 = vadd.f32 %v7827, %v7855
        %7857 = vdwg.mxu0
        %7858 = vmatpush.bf16.msra.mxu0 %v6516
        %7859 = vmatpush.bf16.msra.mxu0 %v6512
        %7860 = vmatpush.bf16.msra.mxu0 %v6508
        %7861 = vmatpush.bf16.msra.mxu0 %v6504
        %7862 = vmatpush.bf16.msra.mxu0 %v6500
        %7863 = vmatpush.bf16.msra.mxu0 %v6496
        %7864 = vmatpush.bf16.msra.mxu0 %v6492
        %7865 = vmatpush.bf16.msra.mxu0 %v6488
        %7866 = vmatmul.bf16.gmra.mxu0 %v4276
        %v7867 = vpop.f32.mrf.mxu0
        %v7868 = vadd.f32 %v7839, %v7867
        %v7869 = vpop.f32.mrf.mxu0
        %v7870 = vadd.f32 %v7841, %v7869
        %7871 = vmatmul.bf16.gmra.mxu0 %v4282
        %v7872 = vpop.f32.mrf.mxu0
        %v7873 = vadd.f32 %v7844, %v7872
        %v7874 = vpop.f32.mrf.mxu0
        %v7875 = vadd.f32 %v7846, %v7874
        %7876 = vmatmul.bf16.gmra.mxu0 %v4288
        %v7877 = vpop.f32.mrf.mxu0
        %v7878 = vadd.f32 %v7849, %v7877
        %v7879 = vpop.f32.mrf.mxu0
        %v7880 = vadd.f32 %v7851, %v7879
        %7881 = vmatmul.bf16.gmra.mxu0 %v4294
        %v7882 = vpop.f32.mrf.mxu0
        %v7883 = vadd.f32 %v7854, %v7882
        %v7884 = vpop.f32.mrf.mxu0
        %v7885 = vadd.f32 %v7856, %v7884
        %7886 = vdwg.mxu0
        %7887 = vmatpush.bf16.msra.mxu0 %v6548
        %7888 = vmatpush.bf16.msra.mxu0 %v6544
        %7889 = vmatpush.bf16.msra.mxu0 %v6540
        %7890 = vmatpush.bf16.msra.mxu0 %v6536
        %7891 = vmatpush.bf16.msra.mxu0 %v6532
        %7892 = vmatpush.bf16.msra.mxu0 %v6528
        %7893 = vmatpush.bf16.msra.mxu0 %v6524
        %7894 = vmatpush.bf16.msra.mxu0 %v6520
        %7895 = vmatmul.bf16.gmra.mxu0 %v4277
        %v7896 = vpop.f32.mrf.mxu0
        %v7897 = vadd.f32 %v7868, %v7896
        %v7898 = vpop.f32.mrf.mxu0
        %v7899 = vadd.f32 %v7870, %v7898
        %7900 = vmatmul.bf16.gmra.mxu0 %v4283
        %v7901 = vpop.f32.mrf.mxu0
        %v7902 = vadd.f32 %v7873, %v7901
        %v7903 = vpop.f32.mrf.mxu0
        %v7904 = vadd.f32 %v7875, %v7903
        %7905 = vmatmul.bf16.gmra.mxu0 %v4289
        %v7906 = vpop.f32.mrf.mxu0
        %v7907 = vadd.f32 %v7878, %v7906
        %v7908 = vpop.f32.mrf.mxu0
        %v7909 = vadd.f32 %v7880, %v7908
        %7910 = vmatmul.bf16.gmra.mxu0 %v4295
        %v7911 = vpop.f32.mrf.mxu0
        %v7912 = vadd.f32 %v7883, %v7911
        %v7913 = vpop.f32.mrf.mxu0
        %v7914 = vadd.f32 %v7885, %v7913
        %7915 = vdwg.mxu0
        %7916 = vmatpush.bf16.msra.mxu0 %v6580
        %7917 = vmatpush.bf16.msra.mxu0 %v6576
        %7918 = vmatpush.bf16.msra.mxu0 %v6572
        %7919 = vmatpush.bf16.msra.mxu0 %v6568
        %7920 = vmatpush.bf16.msra.mxu0 %v6564
        %7921 = vmatpush.bf16.msra.mxu0 %v6560
        %7922 = vmatpush.bf16.msra.mxu0 %v6556
        %7923 = vmatpush.bf16.msra.mxu0 %v6552
        %7924 = vmatmul.bf16.gmra.mxu0 %v4278
        %v7925 = vpop.f32.mrf.mxu0
        %v7926 = vadd.f32 %v7897, %v7925
        %v7927 = vpop.f32.mrf.mxu0
        %v7928 = vadd.f32 %v7899, %v7927
        %7929 = vmatmul.bf16.gmra.mxu0 %v4284
        %v7930 = vpop.f32.mrf.mxu0
        %v7931 = vadd.f32 %v7902, %v7930
        %v7932 = vpop.f32.mrf.mxu0
        %v7933 = vadd.f32 %v7904, %v7932
        %7934 = vmatmul.bf16.gmra.mxu0 %v4290
        %v7935 = vpop.f32.mrf.mxu0
        %v7936 = vadd.f32 %v7907, %v7935
        %v7937 = vpop.f32.mrf.mxu0
        %v7938 = vadd.f32 %v7909, %v7937
        %7939 = vmatmul.bf16.gmra.mxu0 %v4296
        %v7940 = vpop.f32.mrf.mxu0
        %v7941 = vadd.f32 %v7912, %v7940
        %v7942 = vpop.f32.mrf.mxu0
        %v7943 = vadd.f32 %v7914, %v7942
        %7944 = vdwg.mxu0
        %7945 = vmatpush.bf16.msra.mxu0 %v6612
        %7946 = vmatpush.bf16.msra.mxu0 %v6608
        %7947 = vmatpush.bf16.msra.mxu0 %v6604
        %7948 = vmatpush.bf16.msra.mxu0 %v6600
        %7949 = vmatpush.bf16.msra.mxu0 %v6596
        %7950 = vmatpush.bf16.msra.mxu0 %v6592
        %7951 = vmatpush.bf16.msra.mxu0 %v6588
        %7952 = vmatpush.bf16.msra.mxu0 %v6584
        %7953 = vmatmul.bf16.gmra.mxu0 %v4279
        %v7954 = vpop.f32.mrf.mxu0
        %v7955 = vadd.f32 %v7926, %v7954
        %v7956 = vpop.f32.mrf.mxu0
        %v7957 = vadd.f32 %v7928, %v7956
        %7958 = vmatmul.bf16.gmra.mxu0 %v4285
        %v7959 = vpop.f32.mrf.mxu0
        %v7960 = vadd.f32 %v7931, %v7959
        %v7961 = vpop.f32.mrf.mxu0
        %v7962 = vadd.f32 %v7933, %v7961
        %7963 = vmatmul.bf16.gmra.mxu0 %v4291
        %v7964 = vpop.f32.mrf.mxu0
        %v7965 = vadd.f32 %v7936, %v7964
        %v7966 = vpop.f32.mrf.mxu0
        %v7967 = vadd.f32 %v7938, %v7966
        %7968 = vmatmul.bf16.gmra.mxu0 %v4297
        %v7969 = vpop.f32.mrf.mxu0
        %v7970 = vadd.f32 %v7941, %v7969
        %v7971 = vpop.f32.mrf.mxu0
        %v7972 = vadd.f32 %v7943, %v7971
        %7973 = vdwg.mxu0
        %7974 = vmatpush.bf16.msra.mxu0 %v6644
        %7975 = vmatpush.bf16.msra.mxu0 %v6640
        %7976 = vmatpush.bf16.msra.mxu0 %v6636
        %7977 = vmatpush.bf16.msra.mxu0 %v6632
        %7978 = vmatpush.bf16.msra.mxu0 %v6628
        %7979 = vmatpush.bf16.msra.mxu0 %v6624
        %7980 = vmatpush.bf16.msra.mxu0 %v6620
        %7981 = vmatpush.bf16.msra.mxu0 %v6616
        %7982 = vmatmul.bf16.gmra.mxu0 %v4280
        %v7983 = vpop.f32.mrf.mxu0
        %v7984 = vadd.f32 %v7955, %v7983
        %v7985 = vpop.f32.mrf.mxu0
        %v7986 = vadd.f32 %v7957, %v7985
        %7987 = vmatmul.bf16.gmra.mxu0 %v4286
        %v7988 = vpop.f32.mrf.mxu0
        %v7989 = vadd.f32 %v7960, %v7988
        %v7990 = vpop.f32.mrf.mxu0
        %v7991 = vadd.f32 %v7962, %v7990
        %7992 = vmatmul.bf16.gmra.mxu0 %v4292
        %v7993 = vpop.f32.mrf.mxu0
        %v7994 = vadd.f32 %v7965, %v7993
        %v7995 = vpop.f32.mrf.mxu0
        %v7996 = vadd.f32 %v7967, %v7995
        %7997 = vmatmul.bf16.gmra.mxu0 %v4298
        %v7998 = vpop.f32.mrf.mxu0
        %v7999 = vadd.f32 %v7970, %v7998
        %v8000 = vpop.f32.mrf.mxu0
        %v8001 = vadd.f32 %v7972, %v8000
        %8002 = vdwg.mxu0
        %8003 = vmatpush.bf16.msra.mxu0 %v6676
        %8004 = vmatpush.bf16.msra.mxu0 %v6672
        %8005 = vmatpush.bf16.msra.mxu0 %v6668
        %8006 = vmatpush.bf16.msra.mxu0 %v6664
        %8007 = vmatpush.bf16.msra.mxu0 %v6660
        %8008 = vmatpush.bf16.msra.mxu0 %v6656
        %8009 = vmatpush.bf16.msra.mxu0 %v6652
        %8010 = vmatpush.bf16.msra.mxu0 %v6648
        %8011 = vmatmul.bf16.gmra.mxu0 %v4281
        %v8012 = vpop.f32.mrf.mxu0
        %v8013 = vadd.f32 %v7984, %v8012
        %v8014 = vpop.f32.mrf.mxu0
        %v8015 = vadd.f32 %v7986, %v8014
        %8016 = vmatmul.bf16.gmra.mxu0 %v4287
        %v8017 = vpop.f32.mrf.mxu0
        %v8018 = vadd.f32 %v7989, %v8017
        %v8019 = vpop.f32.mrf.mxu0
        %v8020 = vadd.f32 %v7991, %v8019
        %8021 = vmatmul.bf16.gmra.mxu0 %v4293
        %v8022 = vpop.f32.mrf.mxu0
        %v8023 = vadd.f32 %v7994, %v8022
        %v8024 = vpop.f32.mrf.mxu0
        %v8025 = vadd.f32 %v7996, %v8024
        %8026 = vmatmul.bf16.gmra.mxu0 %v4299
        %v8027 = vpop.f32.mrf.mxu0
        %v8028 = vadd.f32 %v7999, %v8027
        %v8029 = vpop.f32.mrf.mxu0
        %v8030 = vadd.f32 %v8001, %v8029
        %8031 = vdwg.mxu0
        %8032 = vmatpush.bf16.msra.mxu0 %v6708
        %8033 = vmatpush.bf16.msra.mxu0 %v6704
        %8034 = vmatpush.bf16.msra.mxu0 %v6700
        %8035 = vmatpush.bf16.msra.mxu0 %v6696
        %8036 = vmatpush.bf16.msra.mxu0 %v6692
        %8037 = vmatpush.bf16.msra.mxu0 %v6688
        %8038 = vmatpush.bf16.msra.mxu0 %v6684
        %8039 = vmatpush.bf16.msra.mxu0 %v6680
        %8040 = vmatmul.bf16.gmra.mxu0 %v4282
        %v8041 = vpop.f32.mrf.mxu0
        %v8042 = vadd.f32 %v8013, %v8041
        %v8043 = vpop.f32.mrf.mxu0
        %v8044 = vadd.f32 %v8015, %v8043
        %8045 = vmatmul.bf16.gmra.mxu0 %v4288
        %v8046 = vpop.f32.mrf.mxu0
        %v8047 = vadd.f32 %v8018, %v8046
        %v8048 = vpop.f32.mrf.mxu0
        %v8049 = vadd.f32 %v8020, %v8048
        %8050 = vmatmul.bf16.gmra.mxu0 %v4294
        %v8051 = vpop.f32.mrf.mxu0
        %v8052 = vadd.f32 %v8023, %v8051
        %v8053 = vpop.f32.mrf.mxu0
        %v8054 = vadd.f32 %v8025, %v8053
        %8055 = vmatmul.bf16.gmra.mxu0 %v4300
        %v8056 = vpop.f32.mrf.mxu0
        %v8057 = vadd.f32 %v8028, %v8056
        %v8058 = vpop.f32.mrf.mxu0
        %v8059 = vadd.f32 %v8030, %v8058
        %8060 = vdwg.mxu0
        %8061 = vmatpush.bf16.msra.mxu0 %v6261
        %8062 = vmatpush.bf16.msra.mxu0 %v6257
        %8063 = vmatpush.bf16.msra.mxu0 %v6253
        %8064 = vmatpush.bf16.msra.mxu0 %v6249
        %8065 = vmatpush.bf16.msra.mxu0 %v6245
        %8066 = vmatpush.bf16.msra.mxu0 %v6241
        %8067 = vmatpush.bf16.msra.mxu0 %v6237
        %8068 = vmatpush.bf16.msra.mxu0 %v6233
        %8069 = vmatmul.bf16.gmra.mxu0 %v4268
        %v8070 = vpop.f32.mrf.mxu0
        %v8071 = vadd.f32 %v4785, %v8070
        %v8072 = vpop.f32.mrf.mxu0
        %v8073 = vadd.f32 %v4785, %v8072
        %8074 = vmatmul.bf16.gmra.mxu0 %v4274
        %v8075 = vpop.f32.mrf.mxu0
        %v8076 = vadd.f32 %v4785, %v8075
        %v8077 = vpop.f32.mrf.mxu0
        %v8078 = vadd.f32 %v4785, %v8077
        %8079 = vmatmul.bf16.gmra.mxu0 %v4280
        %v8080 = vpop.f32.mrf.mxu0
        %v8081 = vadd.f32 %v4785, %v8080
        %v8082 = vpop.f32.mrf.mxu0
        %v8083 = vadd.f32 %v4785, %v8082
        %8084 = vmatmul.bf16.gmra.mxu0 %v4286
        %v8085 = vpop.f32.mrf.mxu0
        %v8086 = vadd.f32 %v4785, %v8085
        %v8087 = vpop.f32.mrf.mxu0
        %v8088 = vadd.f32 %v4785, %v8087
        %8089 = vdwg.mxu0
        %8090 = vmatpush.bf16.msra.mxu0 %v6293
        %8091 = vmatpush.bf16.msra.mxu0 %v6289
        %8092 = vmatpush.bf16.msra.mxu0 %v6285
        %8093 = vmatpush.bf16.msra.mxu0 %v6281
        %8094 = vmatpush.bf16.msra.mxu0 %v6277
        %8095 = vmatpush.bf16.msra.mxu0 %v6273
        %8096 = vmatpush.bf16.msra.mxu0 %v6269
        %8097 = vmatpush.bf16.msra.mxu0 %v6265
        %8098 = vmatmul.bf16.gmra.mxu0 %v4269
        %v8099 = vpop.f32.mrf.mxu0
        %v8100 = vadd.f32 %v8071, %v8099
        %v8101 = vpop.f32.mrf.mxu0
        %v8102 = vadd.f32 %v8073, %v8101
        %8103 = vmatmul.bf16.gmra.mxu0 %v4275
        %v8104 = vpop.f32.mrf.mxu0
        %v8105 = vadd.f32 %v8076, %v8104
        %v8106 = vpop.f32.mrf.mxu0
        %v8107 = vadd.f32 %v8078, %v8106
        %8108 = vmatmul.bf16.gmra.mxu0 %v4281
        %v8109 = vpop.f32.mrf.mxu0
        %v8110 = vadd.f32 %v8081, %v8109
        %v8111 = vpop.f32.mrf.mxu0
        %v8112 = vadd.f32 %v8083, %v8111
        %8113 = vmatmul.bf16.gmra.mxu0 %v4287
        %v8114 = vpop.f32.mrf.mxu0
        %v8115 = vadd.f32 %v8086, %v8114
        %v8116 = vpop.f32.mrf.mxu0
        %v8117 = vadd.f32 %v8088, %v8116
        %8118 = vdwg.mxu0
        %8119 = vmatpush.bf16.msra.mxu0 %v6325
        %8120 = vmatpush.bf16.msra.mxu0 %v6321
        %8121 = vmatpush.bf16.msra.mxu0 %v6317
        %8122 = vmatpush.bf16.msra.mxu0 %v6313
        %8123 = vmatpush.bf16.msra.mxu0 %v6309
        %8124 = vmatpush.bf16.msra.mxu0 %v6305
        %8125 = vmatpush.bf16.msra.mxu0 %v6301
        %8126 = vmatpush.bf16.msra.mxu0 %v6297
        %8127 = vmatmul.bf16.gmra.mxu0 %v4270
        %v8128 = vpop.f32.mrf.mxu0
        %v8129 = vadd.f32 %v8100, %v8128
        %v8130 = vpop.f32.mrf.mxu0
        %v8131 = vadd.f32 %v8102, %v8130
        %8132 = vmatmul.bf16.gmra.mxu0 %v4276
        %v8133 = vpop.f32.mrf.mxu0
        %v8134 = vadd.f32 %v8105, %v8133
        %v8135 = vpop.f32.mrf.mxu0
        %v8136 = vadd.f32 %v8107, %v8135
        %8137 = vmatmul.bf16.gmra.mxu0 %v4282
        %v8138 = vpop.f32.mrf.mxu0
        %v8139 = vadd.f32 %v8110, %v8138
        %v8140 = vpop.f32.mrf.mxu0
        %v8141 = vadd.f32 %v8112, %v8140
        %8142 = vmatmul.bf16.gmra.mxu0 %v4288
        %v8143 = vpop.f32.mrf.mxu0
        %v8144 = vadd.f32 %v8115, %v8143
        %v8145 = vpop.f32.mrf.mxu0
        %v8146 = vadd.f32 %v8117, %v8145
        %8147 = vdwg.mxu0
        %8148 = vmatpush.bf16.msra.mxu0 %v6357
        %8149 = vmatpush.bf16.msra.mxu0 %v6353
        %8150 = vmatpush.bf16.msra.mxu0 %v6349
        %8151 = vmatpush.bf16.msra.mxu0 %v6345
        %8152 = vmatpush.bf16.msra.mxu0 %v6341
        %8153 = vmatpush.bf16.msra.mxu0 %v6337
        %8154 = vmatpush.bf16.msra.mxu0 %v6333
        %8155 = vmatpush.bf16.msra.mxu0 %v6329
        %8156 = vmatmul.bf16.gmra.mxu0 %v4271
        %v8157 = vpop.f32.mrf.mxu0
        %v8158 = vadd.f32 %v8129, %v8157
        %v8159 = vpop.f32.mrf.mxu0
        %v8160 = vadd.f32 %v8131, %v8159
        %8161 = vmatmul.bf16.gmra.mxu0 %v4277
        %v8162 = vpop.f32.mrf.mxu0
        %v8163 = vadd.f32 %v8134, %v8162
        %v8164 = vpop.f32.mrf.mxu0
        %v8165 = vadd.f32 %v8136, %v8164
        %8166 = vmatmul.bf16.gmra.mxu0 %v4283
        %v8167 = vpop.f32.mrf.mxu0
        %v8168 = vadd.f32 %v8139, %v8167
        %v8169 = vpop.f32.mrf.mxu0
        %v8170 = vadd.f32 %v8141, %v8169
        %8171 = vmatmul.bf16.gmra.mxu0 %v4289
        %v8172 = vpop.f32.mrf.mxu0
        %v8173 = vadd.f32 %v8144, %v8172
        %v8174 = vpop.f32.mrf.mxu0
        %v8175 = vadd.f32 %v8146, %v8174
        %8176 = vdwg.mxu0
        %8177 = vmatpush.bf16.msra.mxu0 %v6389
        %8178 = vmatpush.bf16.msra.mxu0 %v6385
        %8179 = vmatpush.bf16.msra.mxu0 %v6381
        %8180 = vmatpush.bf16.msra.mxu0 %v6377
        %8181 = vmatpush.bf16.msra.mxu0 %v6373
        %8182 = vmatpush.bf16.msra.mxu0 %v6369
        %8183 = vmatpush.bf16.msra.mxu0 %v6365
        %8184 = vmatpush.bf16.msra.mxu0 %v6361
        %8185 = vmatmul.bf16.gmra.mxu0 %v4272
        %v8186 = vpop.f32.mrf.mxu0
        %v8187 = vadd.f32 %v8158, %v8186
        %v8188 = vpop.f32.mrf.mxu0
        %v8189 = vadd.f32 %v8160, %v8188
        %8190 = vmatmul.bf16.gmra.mxu0 %v4278
        %v8191 = vpop.f32.mrf.mxu0
        %v8192 = vadd.f32 %v8163, %v8191
        %v8193 = vpop.f32.mrf.mxu0
        %v8194 = vadd.f32 %v8165, %v8193
        %8195 = vmatmul.bf16.gmra.mxu0 %v4284
        %v8196 = vpop.f32.mrf.mxu0
        %v8197 = vadd.f32 %v8168, %v8196
        %v8198 = vpop.f32.mrf.mxu0
        %v8199 = vadd.f32 %v8170, %v8198
        %8200 = vmatmul.bf16.gmra.mxu0 %v4290
        %v8201 = vpop.f32.mrf.mxu0
        %v8202 = vadd.f32 %v8173, %v8201
        %v8203 = vpop.f32.mrf.mxu0
        %v8204 = vadd.f32 %v8175, %v8203
        %8205 = vdwg.mxu0
        %8206 = vmatpush.bf16.msra.mxu0 %v6421
        %8207 = vmatpush.bf16.msra.mxu0 %v6417
        %8208 = vmatpush.bf16.msra.mxu0 %v6413
        %8209 = vmatpush.bf16.msra.mxu0 %v6409
        %8210 = vmatpush.bf16.msra.mxu0 %v6405
        %8211 = vmatpush.bf16.msra.mxu0 %v6401
        %8212 = vmatpush.bf16.msra.mxu0 %v6397
        %8213 = vmatpush.bf16.msra.mxu0 %v6393
        %8214 = vmatmul.bf16.gmra.mxu0 %v4273
        %v8215 = vpop.f32.mrf.mxu0
        %v8216 = vadd.f32 %v8187, %v8215
        %v8217 = vpop.f32.mrf.mxu0
        %v8218 = vadd.f32 %v8189, %v8217
        %8219 = vmatmul.bf16.gmra.mxu0 %v4279
        %v8220 = vpop.f32.mrf.mxu0
        %v8221 = vadd.f32 %v8192, %v8220
        %v8222 = vpop.f32.mrf.mxu0
        %v8223 = vadd.f32 %v8194, %v8222
        %8224 = vmatmul.bf16.gmra.mxu0 %v4285
        %v8225 = vpop.f32.mrf.mxu0
        %v8226 = vadd.f32 %v8197, %v8225
        %v8227 = vpop.f32.mrf.mxu0
        %v8228 = vadd.f32 %v8199, %v8227
        %8229 = vmatmul.bf16.gmra.mxu0 %v4291
        %v8230 = vpop.f32.mrf.mxu0
        %v8231 = vadd.f32 %v8202, %v8230
        %v8232 = vpop.f32.mrf.mxu0
        %v8233 = vadd.f32 %v8204, %v8232
        %8234 = vdwg.mxu0
        %8235 = vmatpush.bf16.msra.mxu0 %v6453
        %8236 = vmatpush.bf16.msra.mxu0 %v6449
        %8237 = vmatpush.bf16.msra.mxu0 %v6445
        %8238 = vmatpush.bf16.msra.mxu0 %v6441
        %8239 = vmatpush.bf16.msra.mxu0 %v6437
        %8240 = vmatpush.bf16.msra.mxu0 %v6433
        %8241 = vmatpush.bf16.msra.mxu0 %v6429
        %8242 = vmatpush.bf16.msra.mxu0 %v6425
        %8243 = vmatmul.bf16.gmra.mxu0 %v4274
        %v8244 = vpop.f32.mrf.mxu0
        %v8245 = vadd.f32 %v8216, %v8244
        %v8246 = vpop.f32.mrf.mxu0
        %v8247 = vadd.f32 %v8218, %v8246
        %8248 = vmatmul.bf16.gmra.mxu0 %v4280
        %v8249 = vpop.f32.mrf.mxu0
        %v8250 = vadd.f32 %v8221, %v8249
        %v8251 = vpop.f32.mrf.mxu0
        %v8252 = vadd.f32 %v8223, %v8251
        %8253 = vmatmul.bf16.gmra.mxu0 %v4286
        %v8254 = vpop.f32.mrf.mxu0
        %v8255 = vadd.f32 %v8226, %v8254
        %v8256 = vpop.f32.mrf.mxu0
        %v8257 = vadd.f32 %v8228, %v8256
        %8258 = vmatmul.bf16.gmra.mxu0 %v4292
        %v8259 = vpop.f32.mrf.mxu0
        %v8260 = vadd.f32 %v8231, %v8259
        %v8261 = vpop.f32.mrf.mxu0
        %v8262 = vadd.f32 %v8233, %v8261
        %8263 = vdwg.mxu0
        %8264 = vmatpush.bf16.msra.mxu0 %v6485
        %8265 = vmatpush.bf16.msra.mxu0 %v6481
        %8266 = vmatpush.bf16.msra.mxu0 %v6477
        %8267 = vmatpush.bf16.msra.mxu0 %v6473
        %8268 = vmatpush.bf16.msra.mxu0 %v6469
        %8269 = vmatpush.bf16.msra.mxu0 %v6465
        %8270 = vmatpush.bf16.msra.mxu0 %v6461
        %8271 = vmatpush.bf16.msra.mxu0 %v6457
        %8272 = vmatmul.bf16.gmra.mxu0 %v4275
        %v8273 = vpop.f32.mrf.mxu0
        %v8274 = vadd.f32 %v8245, %v8273
        %v8275 = vpop.f32.mrf.mxu0
        %v8276 = vadd.f32 %v8247, %v8275
        %8277 = vmatmul.bf16.gmra.mxu0 %v4281
        %v8278 = vpop.f32.mrf.mxu0
        %v8279 = vadd.f32 %v8250, %v8278
        %v8280 = vpop.f32.mrf.mxu0
        %v8281 = vadd.f32 %v8252, %v8280
        %8282 = vmatmul.bf16.gmra.mxu0 %v4287
        %v8283 = vpop.f32.mrf.mxu0
        %v8284 = vadd.f32 %v8255, %v8283
        %v8285 = vpop.f32.mrf.mxu0
        %v8286 = vadd.f32 %v8257, %v8285
        %8287 = vmatmul.bf16.gmra.mxu0 %v4293
        %v8288 = vpop.f32.mrf.mxu0
        %v8289 = vadd.f32 %v8260, %v8288
        %v8290 = vpop.f32.mrf.mxu0
        %v8291 = vadd.f32 %v8262, %v8290
        %8292 = vdwg.mxu0
        %8293 = vmatpush.bf16.msra.mxu0 %v6517
        %8294 = vmatpush.bf16.msra.mxu0 %v6513
        %8295 = vmatpush.bf16.msra.mxu0 %v6509
        %8296 = vmatpush.bf16.msra.mxu0 %v6505
        %8297 = vmatpush.bf16.msra.mxu0 %v6501
        %8298 = vmatpush.bf16.msra.mxu0 %v6497
        %8299 = vmatpush.bf16.msra.mxu0 %v6493
        %8300 = vmatpush.bf16.msra.mxu0 %v6489
        %8301 = vmatmul.bf16.gmra.mxu0 %v4276
        %v8302 = vpop.f32.mrf.mxu0
        %v8303 = vadd.f32 %v8274, %v8302
        %v8304 = vpop.f32.mrf.mxu0
        %v8305 = vadd.f32 %v8276, %v8304
        %8306 = vmatmul.bf16.gmra.mxu0 %v4282
        %v8307 = vpop.f32.mrf.mxu0
        %v8308 = vadd.f32 %v8279, %v8307
        %v8309 = vpop.f32.mrf.mxu0
        %v8310 = vadd.f32 %v8281, %v8309
        %8311 = vmatmul.bf16.gmra.mxu0 %v4288
        %v8312 = vpop.f32.mrf.mxu0
        %v8313 = vadd.f32 %v8284, %v8312
        %v8314 = vpop.f32.mrf.mxu0
        %v8315 = vadd.f32 %v8286, %v8314
        %8316 = vmatmul.bf16.gmra.mxu0 %v4294
        %v8317 = vpop.f32.mrf.mxu0
        %v8318 = vadd.f32 %v8289, %v8317
        %v8319 = vpop.f32.mrf.mxu0
        %v8320 = vadd.f32 %v8291, %v8319
        %8321 = vdwg.mxu0
        %8322 = vmatpush.bf16.msra.mxu0 %v6549
        %8323 = vmatpush.bf16.msra.mxu0 %v6545
        %8324 = vmatpush.bf16.msra.mxu0 %v6541
        %8325 = vmatpush.bf16.msra.mxu0 %v6537
        %8326 = vmatpush.bf16.msra.mxu0 %v6533
        %8327 = vmatpush.bf16.msra.mxu0 %v6529
        %8328 = vmatpush.bf16.msra.mxu0 %v6525
        %8329 = vmatpush.bf16.msra.mxu0 %v6521
        %8330 = vmatmul.bf16.gmra.mxu0 %v4277
        %v8331 = vpop.f32.mrf.mxu0
        %v8332 = vadd.f32 %v8303, %v8331
        %v8333 = vpop.f32.mrf.mxu0
        %v8334 = vadd.f32 %v8305, %v8333
        %8335 = vmatmul.bf16.gmra.mxu0 %v4283
        %v8336 = vpop.f32.mrf.mxu0
        %v8337 = vadd.f32 %v8308, %v8336
        %v8338 = vpop.f32.mrf.mxu0
        %v8339 = vadd.f32 %v8310, %v8338
        %8340 = vmatmul.bf16.gmra.mxu0 %v4289
        %v8341 = vpop.f32.mrf.mxu0
        %v8342 = vadd.f32 %v8313, %v8341
        %v8343 = vpop.f32.mrf.mxu0
        %v8344 = vadd.f32 %v8315, %v8343
        %8345 = vmatmul.bf16.gmra.mxu0 %v4295
        %v8346 = vpop.f32.mrf.mxu0
        %v8347 = vadd.f32 %v8318, %v8346
        %v8348 = vpop.f32.mrf.mxu0
        %v8349 = vadd.f32 %v8320, %v8348
        %8350 = vdwg.mxu0
        %8351 = vmatpush.bf16.msra.mxu0 %v6581
        %8352 = vmatpush.bf16.msra.mxu0 %v6577
        %8353 = vmatpush.bf16.msra.mxu0 %v6573
        %8354 = vmatpush.bf16.msra.mxu0 %v6569
        %8355 = vmatpush.bf16.msra.mxu0 %v6565
        %8356 = vmatpush.bf16.msra.mxu0 %v6561
        %8357 = vmatpush.bf16.msra.mxu0 %v6557
        %8358 = vmatpush.bf16.msra.mxu0 %v6553
        %8359 = vmatmul.bf16.gmra.mxu0 %v4278
        %v8360 = vpop.f32.mrf.mxu0
        %v8361 = vadd.f32 %v8332, %v8360
        %v8362 = vpop.f32.mrf.mxu0
        %v8363 = vadd.f32 %v8334, %v8362
        %8364 = vmatmul.bf16.gmra.mxu0 %v4284
        %v8365 = vpop.f32.mrf.mxu0
        %v8366 = vadd.f32 %v8337, %v8365
        %v8367 = vpop.f32.mrf.mxu0
        %v8368 = vadd.f32 %v8339, %v8367
        %8369 = vmatmul.bf16.gmra.mxu0 %v4290
        %v8370 = vpop.f32.mrf.mxu0
        %v8371 = vadd.f32 %v8342, %v8370
        %v8372 = vpop.f32.mrf.mxu0
        %v8373 = vadd.f32 %v8344, %v8372
        %8374 = vmatmul.bf16.gmra.mxu0 %v4296
        %v8375 = vpop.f32.mrf.mxu0
        %v8376 = vadd.f32 %v8347, %v8375
        %v8377 = vpop.f32.mrf.mxu0
        %v8378 = vadd.f32 %v8349, %v8377
        %8379 = vdwg.mxu0
        %8380 = vmatpush.bf16.msra.mxu0 %v6613
        %8381 = vmatpush.bf16.msra.mxu0 %v6609
        %8382 = vmatpush.bf16.msra.mxu0 %v6605
        %8383 = vmatpush.bf16.msra.mxu0 %v6601
        %8384 = vmatpush.bf16.msra.mxu0 %v6597
        %8385 = vmatpush.bf16.msra.mxu0 %v6593
        %8386 = vmatpush.bf16.msra.mxu0 %v6589
        %8387 = vmatpush.bf16.msra.mxu0 %v6585
        %8388 = vmatmul.bf16.gmra.mxu0 %v4279
        %v8389 = vpop.f32.mrf.mxu0
        %v8390 = vadd.f32 %v8361, %v8389
        %v8391 = vpop.f32.mrf.mxu0
        %v8392 = vadd.f32 %v8363, %v8391
        %8393 = vmatmul.bf16.gmra.mxu0 %v4285
        %v8394 = vpop.f32.mrf.mxu0
        %v8395 = vadd.f32 %v8366, %v8394
        %v8396 = vpop.f32.mrf.mxu0
        %v8397 = vadd.f32 %v8368, %v8396
        %8398 = vmatmul.bf16.gmra.mxu0 %v4291
        %v8399 = vpop.f32.mrf.mxu0
        %v8400 = vadd.f32 %v8371, %v8399
        %v8401 = vpop.f32.mrf.mxu0
        %v8402 = vadd.f32 %v8373, %v8401
        %8403 = vmatmul.bf16.gmra.mxu0 %v4297
        %v8404 = vpop.f32.mrf.mxu0
        %v8405 = vadd.f32 %v8376, %v8404
        %v8406 = vpop.f32.mrf.mxu0
        %v8407 = vadd.f32 %v8378, %v8406
        %8408 = vdwg.mxu0
        %8409 = vmatpush.bf16.msra.mxu0 %v6645
        %8410 = vmatpush.bf16.msra.mxu0 %v6641
        %8411 = vmatpush.bf16.msra.mxu0 %v6637
        %8412 = vmatpush.bf16.msra.mxu0 %v6633
        %8413 = vmatpush.bf16.msra.mxu0 %v6629
        %8414 = vmatpush.bf16.msra.mxu0 %v6625
        %8415 = vmatpush.bf16.msra.mxu0 %v6621
        %8416 = vmatpush.bf16.msra.mxu0 %v6617
        %8417 = vmatmul.bf16.gmra.mxu0 %v4280
        %v8418 = vpop.f32.mrf.mxu0
        %v8419 = vadd.f32 %v8390, %v8418
        %v8420 = vpop.f32.mrf.mxu0
        %v8421 = vadd.f32 %v8392, %v8420
        %8422 = vmatmul.bf16.gmra.mxu0 %v4286
        %v8423 = vpop.f32.mrf.mxu0
        %v8424 = vadd.f32 %v8395, %v8423
        %v8425 = vpop.f32.mrf.mxu0
        %v8426 = vadd.f32 %v8397, %v8425
        %8427 = vmatmul.bf16.gmra.mxu0 %v4292
        %v8428 = vpop.f32.mrf.mxu0
        %v8429 = vadd.f32 %v8400, %v8428
        %v8430 = vpop.f32.mrf.mxu0
        %v8431 = vadd.f32 %v8402, %v8430
        %8432 = vmatmul.bf16.gmra.mxu0 %v4298
        %v8433 = vpop.f32.mrf.mxu0
        %v8434 = vadd.f32 %v8405, %v8433
        %v8435 = vpop.f32.mrf.mxu0
        %v8436 = vadd.f32 %v8407, %v8435
        %8437 = vdwg.mxu0
        %8438 = vmatpush.bf16.msra.mxu0 %v6677
        %8439 = vmatpush.bf16.msra.mxu0 %v6673
        %8440 = vmatpush.bf16.msra.mxu0 %v6669
        %8441 = vmatpush.bf16.msra.mxu0 %v6665
        %8442 = vmatpush.bf16.msra.mxu0 %v6661
        %8443 = vmatpush.bf16.msra.mxu0 %v6657
        %8444 = vmatpush.bf16.msra.mxu0 %v6653
        %8445 = vmatpush.bf16.msra.mxu0 %v6649
        %8446 = vmatmul.bf16.gmra.mxu0 %v4281
        %v8447 = vpop.f32.mrf.mxu0
        %v8448 = vadd.f32 %v8419, %v8447
        %v8449 = vpop.f32.mrf.mxu0
        %v8450 = vadd.f32 %v8421, %v8449
        %8451 = vmatmul.bf16.gmra.mxu0 %v4287
        %v8452 = vpop.f32.mrf.mxu0
        %v8453 = vadd.f32 %v8424, %v8452
        %v8454 = vpop.f32.mrf.mxu0
        %v8455 = vadd.f32 %v8426, %v8454
        %8456 = vmatmul.bf16.gmra.mxu0 %v4293
        %v8457 = vpop.f32.mrf.mxu0
        %v8458 = vadd.f32 %v8429, %v8457
        %v8459 = vpop.f32.mrf.mxu0
        %v8460 = vadd.f32 %v8431, %v8459
        %8461 = vmatmul.bf16.gmra.mxu0 %v4299
        %v8462 = vpop.f32.mrf.mxu0
        %v8463 = vadd.f32 %v8434, %v8462
        %v8464 = vpop.f32.mrf.mxu0
        %v8465 = vadd.f32 %v8436, %v8464
        %8466 = vdwg.mxu0
        %8467 = vmatpush.bf16.msra.mxu0 %v6709
        %8468 = vmatpush.bf16.msra.mxu0 %v6705
        %8469 = vmatpush.bf16.msra.mxu0 %v6701
        %8470 = vmatpush.bf16.msra.mxu0 %v6697
        %8471 = vmatpush.bf16.msra.mxu0 %v6693
        %8472 = vmatpush.bf16.msra.mxu0 %v6689
        %8473 = vmatpush.bf16.msra.mxu0 %v6685
        %8474 = vmatpush.bf16.msra.mxu0 %v6681
        %8475 = vmatmul.bf16.gmra.mxu0 %v4282
        %v8476 = vpop.f32.mrf.mxu0
        %v8477 = vadd.f32 %v8448, %v8476
        %v8478 = vpop.f32.mrf.mxu0
        %v8479 = vadd.f32 %v8450, %v8478
        %8480 = vmatmul.bf16.gmra.mxu0 %v4288
        %v8481 = vpop.f32.mrf.mxu0
        %v8482 = vadd.f32 %v8453, %v8481
        %v8483 = vpop.f32.mrf.mxu0
        %v8484 = vadd.f32 %v8455, %v8483
        %8485 = vmatmul.bf16.gmra.mxu0 %v4294
        %v8486 = vpop.f32.mrf.mxu0
        %v8487 = vadd.f32 %v8458, %v8486
        %v8488 = vpop.f32.mrf.mxu0
        %v8489 = vadd.f32 %v8460, %v8488
        %8490 = vmatmul.bf16.gmra.mxu0 %v4300
        %v8491 = vpop.f32.mrf.mxu0
        %v8492 = vadd.f32 %v8463, %v8491
        %v8493 = vpop.f32.mrf.mxu0
        %v8494 = vadd.f32 %v8465, %v8493
        %8495 = vdwg.mxu0
        %8496 = vmatpush.bf16.msra.mxu0 %v6262
        %8497 = vmatpush.bf16.msra.mxu0 %v6258
        %8498 = vmatpush.bf16.msra.mxu0 %v6254
        %8499 = vmatpush.bf16.msra.mxu0 %v6250
        %8500 = vmatpush.bf16.msra.mxu0 %v6246
        %8501 = vmatpush.bf16.msra.mxu0 %v6242
        %8502 = vmatpush.bf16.msra.mxu0 %v6238
        %8503 = vmatpush.bf16.msra.mxu0 %v6234
        %8504 = vmatmul.bf16.gmra.mxu0 %v4268
        %v8505 = vpop.f32.mrf.mxu0
        %v8506 = vadd.f32 %v4786, %v8505
        %v8507 = vpop.f32.mrf.mxu0
        %v8508 = vadd.f32 %v4786, %v8507
        %8509 = vmatmul.bf16.gmra.mxu0 %v4274
        %v8510 = vpop.f32.mrf.mxu0
        %v8511 = vadd.f32 %v4786, %v8510
        %v8512 = vpop.f32.mrf.mxu0
        %v8513 = vadd.f32 %v4786, %v8512
        %8514 = vmatmul.bf16.gmra.mxu0 %v4280
        %v8515 = vpop.f32.mrf.mxu0
        %v8516 = vadd.f32 %v4786, %v8515
        %v8517 = vpop.f32.mrf.mxu0
        %v8518 = vadd.f32 %v4786, %v8517
        %8519 = vmatmul.bf16.gmra.mxu0 %v4286
        %v8520 = vpop.f32.mrf.mxu0
        %v8521 = vadd.f32 %v4786, %v8520
        %v8522 = vpop.f32.mrf.mxu0
        %v8523 = vadd.f32 %v4786, %v8522
        %8524 = vdwg.mxu0
        %8525 = vmatpush.bf16.msra.mxu0 %v6294
        %8526 = vmatpush.bf16.msra.mxu0 %v6290
        %8527 = vmatpush.bf16.msra.mxu0 %v6286
        %8528 = vmatpush.bf16.msra.mxu0 %v6282
        %8529 = vmatpush.bf16.msra.mxu0 %v6278
        %8530 = vmatpush.bf16.msra.mxu0 %v6274
        %8531 = vmatpush.bf16.msra.mxu0 %v6270
        %8532 = vmatpush.bf16.msra.mxu0 %v6266
        %8533 = vmatmul.bf16.gmra.mxu0 %v4269
        %v8534 = vpop.f32.mrf.mxu0
        %v8535 = vadd.f32 %v8506, %v8534
        %v8536 = vpop.f32.mrf.mxu0
        %v8537 = vadd.f32 %v8508, %v8536
        %8538 = vmatmul.bf16.gmra.mxu0 %v4275
        %v8539 = vpop.f32.mrf.mxu0
        %v8540 = vadd.f32 %v8511, %v8539
        %v8541 = vpop.f32.mrf.mxu0
        %v8542 = vadd.f32 %v8513, %v8541
        %8543 = vmatmul.bf16.gmra.mxu0 %v4281
        %v8544 = vpop.f32.mrf.mxu0
        %v8545 = vadd.f32 %v8516, %v8544
        %v8546 = vpop.f32.mrf.mxu0
        %v8547 = vadd.f32 %v8518, %v8546
        %8548 = vmatmul.bf16.gmra.mxu0 %v4287
        %v8549 = vpop.f32.mrf.mxu0
        %v8550 = vadd.f32 %v8521, %v8549
        %v8551 = vpop.f32.mrf.mxu0
        %v8552 = vadd.f32 %v8523, %v8551
        %8553 = vdwg.mxu0
        %8554 = vmatpush.bf16.msra.mxu0 %v6326
        %8555 = vmatpush.bf16.msra.mxu0 %v6322
        %8556 = vmatpush.bf16.msra.mxu0 %v6318
        %8557 = vmatpush.bf16.msra.mxu0 %v6314
        %8558 = vmatpush.bf16.msra.mxu0 %v6310
        %8559 = vmatpush.bf16.msra.mxu0 %v6306
        %8560 = vmatpush.bf16.msra.mxu0 %v6302
        %8561 = vmatpush.bf16.msra.mxu0 %v6298
        %8562 = vmatmul.bf16.gmra.mxu0 %v4270
        %v8563 = vpop.f32.mrf.mxu0
        %v8564 = vadd.f32 %v8535, %v8563
        %v8565 = vpop.f32.mrf.mxu0
        %v8566 = vadd.f32 %v8537, %v8565
        %8567 = vmatmul.bf16.gmra.mxu0 %v4276
        %v8568 = vpop.f32.mrf.mxu0
        %v8569 = vadd.f32 %v8540, %v8568
        %v8570 = vpop.f32.mrf.mxu0
        %v8571 = vadd.f32 %v8542, %v8570
        %8572 = vmatmul.bf16.gmra.mxu0 %v4282
        %v8573 = vpop.f32.mrf.mxu0
        %v8574 = vadd.f32 %v8545, %v8573
        %v8575 = vpop.f32.mrf.mxu0
        %v8576 = vadd.f32 %v8547, %v8575
        %8577 = vmatmul.bf16.gmra.mxu0 %v4288
        %v8578 = vpop.f32.mrf.mxu0
        %v8579 = vadd.f32 %v8550, %v8578
        %v8580 = vpop.f32.mrf.mxu0
        %v8581 = vadd.f32 %v8552, %v8580
        %8582 = vdwg.mxu0
        %8583 = vmatpush.bf16.msra.mxu0 %v6358
        %8584 = vmatpush.bf16.msra.mxu0 %v6354
        %8585 = vmatpush.bf16.msra.mxu0 %v6350
        %8586 = vmatpush.bf16.msra.mxu0 %v6346
        %8587 = vmatpush.bf16.msra.mxu0 %v6342
        %8588 = vmatpush.bf16.msra.mxu0 %v6338
        %8589 = vmatpush.bf16.msra.mxu0 %v6334
        %8590 = vmatpush.bf16.msra.mxu0 %v6330
        %8591 = vmatmul.bf16.gmra.mxu0 %v4271
        %v8592 = vpop.f32.mrf.mxu0
        %v8593 = vadd.f32 %v8564, %v8592
        %v8594 = vpop.f32.mrf.mxu0
        %v8595 = vadd.f32 %v8566, %v8594
        %8596 = vmatmul.bf16.gmra.mxu0 %v4277
        %v8597 = vpop.f32.mrf.mxu0
        %v8598 = vadd.f32 %v8569, %v8597
        %v8599 = vpop.f32.mrf.mxu0
        %v8600 = vadd.f32 %v8571, %v8599
        %8601 = vmatmul.bf16.gmra.mxu0 %v4283
        %v8602 = vpop.f32.mrf.mxu0
        %v8603 = vadd.f32 %v8574, %v8602
        %v8604 = vpop.f32.mrf.mxu0
        %v8605 = vadd.f32 %v8576, %v8604
        %8606 = vmatmul.bf16.gmra.mxu0 %v4289
        %v8607 = vpop.f32.mrf.mxu0
        %v8608 = vadd.f32 %v8579, %v8607
        %v8609 = vpop.f32.mrf.mxu0
        %v8610 = vadd.f32 %v8581, %v8609
        %8611 = vdwg.mxu0
        %8612 = vmatpush.bf16.msra.mxu0 %v6390
        %8613 = vmatpush.bf16.msra.mxu0 %v6386
        %8614 = vmatpush.bf16.msra.mxu0 %v6382
        %8615 = vmatpush.bf16.msra.mxu0 %v6378
        %8616 = vmatpush.bf16.msra.mxu0 %v6374
        %8617 = vmatpush.bf16.msra.mxu0 %v6370
        %8618 = vmatpush.bf16.msra.mxu0 %v6366
        %8619 = vmatpush.bf16.msra.mxu0 %v6362
        %8620 = vmatmul.bf16.gmra.mxu0 %v4272
        %v8621 = vpop.f32.mrf.mxu0
        %v8622 = vadd.f32 %v8593, %v8621
        %v8623 = vpop.f32.mrf.mxu0
        %v8624 = vadd.f32 %v8595, %v8623
        %8625 = vmatmul.bf16.gmra.mxu0 %v4278
        %v8626 = vpop.f32.mrf.mxu0
        %v8627 = vadd.f32 %v8598, %v8626
        %v8628 = vpop.f32.mrf.mxu0
        %v8629 = vadd.f32 %v8600, %v8628
        %8630 = vmatmul.bf16.gmra.mxu0 %v4284
        %v8631 = vpop.f32.mrf.mxu0
        %v8632 = vadd.f32 %v8603, %v8631
        %v8633 = vpop.f32.mrf.mxu0
        %v8634 = vadd.f32 %v8605, %v8633
        %8635 = vmatmul.bf16.gmra.mxu0 %v4290
        %v8636 = vpop.f32.mrf.mxu0
        %v8637 = vadd.f32 %v8608, %v8636
        %v8638 = vpop.f32.mrf.mxu0
        %v8639 = vadd.f32 %v8610, %v8638
        %8640 = vdwg.mxu0
        %8641 = vmatpush.bf16.msra.mxu0 %v6422
        %8642 = vmatpush.bf16.msra.mxu0 %v6418
        %8643 = vmatpush.bf16.msra.mxu0 %v6414
        %8644 = vmatpush.bf16.msra.mxu0 %v6410
        %8645 = vmatpush.bf16.msra.mxu0 %v6406
        %8646 = vmatpush.bf16.msra.mxu0 %v6402
        %8647 = vmatpush.bf16.msra.mxu0 %v6398
        %8648 = vmatpush.bf16.msra.mxu0 %v6394
        %8649 = vmatmul.bf16.gmra.mxu0 %v4273
        %v8650 = vpop.f32.mrf.mxu0
        %v8651 = vadd.f32 %v8622, %v8650
        %v8652 = vpop.f32.mrf.mxu0
        %v8653 = vadd.f32 %v8624, %v8652
        %8654 = vmatmul.bf16.gmra.mxu0 %v4279
        %v8655 = vpop.f32.mrf.mxu0
        %v8656 = vadd.f32 %v8627, %v8655
        %v8657 = vpop.f32.mrf.mxu0
        %v8658 = vadd.f32 %v8629, %v8657
        %8659 = vmatmul.bf16.gmra.mxu0 %v4285
        %v8660 = vpop.f32.mrf.mxu0
        %v8661 = vadd.f32 %v8632, %v8660
        %v8662 = vpop.f32.mrf.mxu0
        %v8663 = vadd.f32 %v8634, %v8662
        %8664 = vmatmul.bf16.gmra.mxu0 %v4291
        %v8665 = vpop.f32.mrf.mxu0
        %v8666 = vadd.f32 %v8637, %v8665
        %v8667 = vpop.f32.mrf.mxu0
        %v8668 = vadd.f32 %v8639, %v8667
        %8669 = vdwg.mxu0
        %8670 = vmatpush.bf16.msra.mxu0 %v6454
        %8671 = vmatpush.bf16.msra.mxu0 %v6450
        %8672 = vmatpush.bf16.msra.mxu0 %v6446
        %8673 = vmatpush.bf16.msra.mxu0 %v6442
        %8674 = vmatpush.bf16.msra.mxu0 %v6438
        %8675 = vmatpush.bf16.msra.mxu0 %v6434
        %8676 = vmatpush.bf16.msra.mxu0 %v6430
        %8677 = vmatpush.bf16.msra.mxu0 %v6426
        %8678 = vmatmul.bf16.gmra.mxu0 %v4274
        %v8679 = vpop.f32.mrf.mxu0
        %v8680 = vadd.f32 %v8651, %v8679
        %v8681 = vpop.f32.mrf.mxu0
        %v8682 = vadd.f32 %v8653, %v8681
        %8683 = vmatmul.bf16.gmra.mxu0 %v4280
        %v8684 = vpop.f32.mrf.mxu0
        %v8685 = vadd.f32 %v8656, %v8684
        %v8686 = vpop.f32.mrf.mxu0
        %v8687 = vadd.f32 %v8658, %v8686
        %8688 = vmatmul.bf16.gmra.mxu0 %v4286
        %v8689 = vpop.f32.mrf.mxu0
        %v8690 = vadd.f32 %v8661, %v8689
        %v8691 = vpop.f32.mrf.mxu0
        %v8692 = vadd.f32 %v8663, %v8691
        %8693 = vmatmul.bf16.gmra.mxu0 %v4292
        %v8694 = vpop.f32.mrf.mxu0
        %v8695 = vadd.f32 %v8666, %v8694
        %v8696 = vpop.f32.mrf.mxu0
        %v8697 = vadd.f32 %v8668, %v8696
        %8698 = vdwg.mxu0
        %8699 = vmatpush.bf16.msra.mxu0 %v6486
        %8700 = vmatpush.bf16.msra.mxu0 %v6482
        %8701 = vmatpush.bf16.msra.mxu0 %v6478
        %8702 = vmatpush.bf16.msra.mxu0 %v6474
        %8703 = vmatpush.bf16.msra.mxu0 %v6470
        %8704 = vmatpush.bf16.msra.mxu0 %v6466
        %8705 = vmatpush.bf16.msra.mxu0 %v6462
        %8706 = vmatpush.bf16.msra.mxu0 %v6458
        %8707 = vmatmul.bf16.gmra.mxu0 %v4275
        %v8708 = vpop.f32.mrf.mxu0
        %v8709 = vadd.f32 %v8680, %v8708
        %v8710 = vpop.f32.mrf.mxu0
        %v8711 = vadd.f32 %v8682, %v8710
        %8712 = vmatmul.bf16.gmra.mxu0 %v4281
        %v8713 = vpop.f32.mrf.mxu0
        %v8714 = vadd.f32 %v8685, %v8713
        %v8715 = vpop.f32.mrf.mxu0
        %v8716 = vadd.f32 %v8687, %v8715
        %8717 = vmatmul.bf16.gmra.mxu0 %v4287
        %v8718 = vpop.f32.mrf.mxu0
        %v8719 = vadd.f32 %v8690, %v8718
        %v8720 = vpop.f32.mrf.mxu0
        %v8721 = vadd.f32 %v8692, %v8720
        %8722 = vmatmul.bf16.gmra.mxu0 %v4293
        %v8723 = vpop.f32.mrf.mxu0
        %v8724 = vadd.f32 %v8695, %v8723
        %v8725 = vpop.f32.mrf.mxu0
        %v8726 = vadd.f32 %v8697, %v8725
        %8727 = vdwg.mxu0
        %8728 = vmatpush.bf16.msra.mxu0 %v6518
        %8729 = vmatpush.bf16.msra.mxu0 %v6514
        %8730 = vmatpush.bf16.msra.mxu0 %v6510
        %8731 = vmatpush.bf16.msra.mxu0 %v6506
        %8732 = vmatpush.bf16.msra.mxu0 %v6502
        %8733 = vmatpush.bf16.msra.mxu0 %v6498
        %8734 = vmatpush.bf16.msra.mxu0 %v6494
        %8735 = vmatpush.bf16.msra.mxu0 %v6490
        %8736 = vmatmul.bf16.gmra.mxu0 %v4276
        %v8737 = vpop.f32.mrf.mxu0
        %v8738 = vadd.f32 %v8709, %v8737
        %v8739 = vpop.f32.mrf.mxu0
        %v8740 = vadd.f32 %v8711, %v8739
        %8741 = vmatmul.bf16.gmra.mxu0 %v4282
        %v8742 = vpop.f32.mrf.mxu0
        %v8743 = vadd.f32 %v8714, %v8742
        %v8744 = vpop.f32.mrf.mxu0
        %v8745 = vadd.f32 %v8716, %v8744
        %8746 = vmatmul.bf16.gmra.mxu0 %v4288
        %v8747 = vpop.f32.mrf.mxu0
        %v8748 = vadd.f32 %v8719, %v8747
        %v8749 = vpop.f32.mrf.mxu0
        %v8750 = vadd.f32 %v8721, %v8749
        %8751 = vmatmul.bf16.gmra.mxu0 %v4294
        %v8752 = vpop.f32.mrf.mxu0
        %v8753 = vadd.f32 %v8724, %v8752
        %v8754 = vpop.f32.mrf.mxu0
        %v8755 = vadd.f32 %v8726, %v8754
        %8756 = vdwg.mxu0
        %8757 = vmatpush.bf16.msra.mxu0 %v6550
        %8758 = vmatpush.bf16.msra.mxu0 %v6546
        %8759 = vmatpush.bf16.msra.mxu0 %v6542
        %8760 = vmatpush.bf16.msra.mxu0 %v6538
        %8761 = vmatpush.bf16.msra.mxu0 %v6534
        %8762 = vmatpush.bf16.msra.mxu0 %v6530
        %8763 = vmatpush.bf16.msra.mxu0 %v6526
        %8764 = vmatpush.bf16.msra.mxu0 %v6522
        %8765 = vmatmul.bf16.gmra.mxu0 %v4277
        %v8766 = vpop.f32.mrf.mxu0
        %v8767 = vadd.f32 %v8738, %v8766
        %v8768 = vpop.f32.mrf.mxu0
        %v8769 = vadd.f32 %v8740, %v8768
        %8770 = vmatmul.bf16.gmra.mxu0 %v4283
        %v8771 = vpop.f32.mrf.mxu0
        %v8772 = vadd.f32 %v8743, %v8771
        %v8773 = vpop.f32.mrf.mxu0
        %v8774 = vadd.f32 %v8745, %v8773
        %8775 = vmatmul.bf16.gmra.mxu0 %v4289
        %v8776 = vpop.f32.mrf.mxu0
        %v8777 = vadd.f32 %v8748, %v8776
        %v8778 = vpop.f32.mrf.mxu0
        %v8779 = vadd.f32 %v8750, %v8778
        %8780 = vmatmul.bf16.gmra.mxu0 %v4295
        %v8781 = vpop.f32.mrf.mxu0
        %v8782 = vadd.f32 %v8753, %v8781
        %v8783 = vpop.f32.mrf.mxu0
        %v8784 = vadd.f32 %v8755, %v8783
        %8785 = vdwg.mxu0
        %8786 = vmatpush.bf16.msra.mxu0 %v6582
        %8787 = vmatpush.bf16.msra.mxu0 %v6578
        %8788 = vmatpush.bf16.msra.mxu0 %v6574
        %8789 = vmatpush.bf16.msra.mxu0 %v6570
        %8790 = vmatpush.bf16.msra.mxu0 %v6566
        %8791 = vmatpush.bf16.msra.mxu0 %v6562
        %8792 = vmatpush.bf16.msra.mxu0 %v6558
        %8793 = vmatpush.bf16.msra.mxu0 %v6554
        %8794 = vmatmul.bf16.gmra.mxu0 %v4278
        %v8795 = vpop.f32.mrf.mxu0
        %v8796 = vadd.f32 %v8767, %v8795
        %v8797 = vpop.f32.mrf.mxu0
        %v8798 = vadd.f32 %v8769, %v8797
        %8799 = vmatmul.bf16.gmra.mxu0 %v4284
        %v8800 = vpop.f32.mrf.mxu0
        %v8801 = vadd.f32 %v8772, %v8800
        %v8802 = vpop.f32.mrf.mxu0
        %v8803 = vadd.f32 %v8774, %v8802
        %8804 = vmatmul.bf16.gmra.mxu0 %v4290
        %v8805 = vpop.f32.mrf.mxu0
        %v8806 = vadd.f32 %v8777, %v8805
        %v8807 = vpop.f32.mrf.mxu0
        %v8808 = vadd.f32 %v8779, %v8807
        %8809 = vmatmul.bf16.gmra.mxu0 %v4296
        %v8810 = vpop.f32.mrf.mxu0
        %v8811 = vadd.f32 %v8782, %v8810
        %v8812 = vpop.f32.mrf.mxu0
        %v8813 = vadd.f32 %v8784, %v8812
        %8814 = vdwg.mxu0
        %8815 = vmatpush.bf16.msra.mxu0 %v6614
        %8816 = vmatpush.bf16.msra.mxu0 %v6610
        %8817 = vmatpush.bf16.msra.mxu0 %v6606
        %8818 = vmatpush.bf16.msra.mxu0 %v6602
        %8819 = vmatpush.bf16.msra.mxu0 %v6598
        %8820 = vmatpush.bf16.msra.mxu0 %v6594
        %8821 = vmatpush.bf16.msra.mxu0 %v6590
        %8822 = vmatpush.bf16.msra.mxu0 %v6586
        %8823 = vmatmul.bf16.gmra.mxu0 %v4279
        %v8824 = vpop.f32.mrf.mxu0
        %v8825 = vadd.f32 %v8796, %v8824
        %v8826 = vpop.f32.mrf.mxu0
        %v8827 = vadd.f32 %v8798, %v8826
        %8828 = vmatmul.bf16.gmra.mxu0 %v4285
        %v8829 = vpop.f32.mrf.mxu0
        %v8830 = vadd.f32 %v8801, %v8829
        %v8831 = vpop.f32.mrf.mxu0
        %v8832 = vadd.f32 %v8803, %v8831
        %8833 = vmatmul.bf16.gmra.mxu0 %v4291
        %v8834 = vpop.f32.mrf.mxu0
        %v8835 = vadd.f32 %v8806, %v8834
        %v8836 = vpop.f32.mrf.mxu0
        %v8837 = vadd.f32 %v8808, %v8836
        %8838 = vmatmul.bf16.gmra.mxu0 %v4297
        %v8839 = vpop.f32.mrf.mxu0
        %v8840 = vadd.f32 %v8811, %v8839
        %v8841 = vpop.f32.mrf.mxu0
        %v8842 = vadd.f32 %v8813, %v8841
        %8843 = vdwg.mxu0
        %8844 = vmatpush.bf16.msra.mxu0 %v6646
        %8845 = vmatpush.bf16.msra.mxu0 %v6642
        %8846 = vmatpush.bf16.msra.mxu0 %v6638
        %8847 = vmatpush.bf16.msra.mxu0 %v6634
        %8848 = vmatpush.bf16.msra.mxu0 %v6630
        %8849 = vmatpush.bf16.msra.mxu0 %v6626
        %8850 = vmatpush.bf16.msra.mxu0 %v6622
        %8851 = vmatpush.bf16.msra.mxu0 %v6618
        %8852 = vmatmul.bf16.gmra.mxu0 %v4280
        %v8853 = vpop.f32.mrf.mxu0
        %v8854 = vadd.f32 %v8825, %v8853
        %v8855 = vpop.f32.mrf.mxu0
        %v8856 = vadd.f32 %v8827, %v8855
        %8857 = vmatmul.bf16.gmra.mxu0 %v4286
        %v8858 = vpop.f32.mrf.mxu0
        %v8859 = vadd.f32 %v8830, %v8858
        %v8860 = vpop.f32.mrf.mxu0
        %v8861 = vadd.f32 %v8832, %v8860
        %8862 = vmatmul.bf16.gmra.mxu0 %v4292
        %v8863 = vpop.f32.mrf.mxu0
        %v8864 = vadd.f32 %v8835, %v8863
        %v8865 = vpop.f32.mrf.mxu0
        %v8866 = vadd.f32 %v8837, %v8865
        %8867 = vmatmul.bf16.gmra.mxu0 %v4298
        %v8868 = vpop.f32.mrf.mxu0
        %v8869 = vadd.f32 %v8840, %v8868
        %v8870 = vpop.f32.mrf.mxu0
        %v8871 = vadd.f32 %v8842, %v8870
        %8872 = vdwg.mxu0
        %8873 = vmatpush.bf16.msra.mxu0 %v6678
        %8874 = vmatpush.bf16.msra.mxu0 %v6674
        %8875 = vmatpush.bf16.msra.mxu0 %v6670
        %8876 = vmatpush.bf16.msra.mxu0 %v6666
        %8877 = vmatpush.bf16.msra.mxu0 %v6662
        %8878 = vmatpush.bf16.msra.mxu0 %v6658
        %8879 = vmatpush.bf16.msra.mxu0 %v6654
        %8880 = vmatpush.bf16.msra.mxu0 %v6650
        %8881 = vmatmul.bf16.gmra.mxu0 %v4281
        %v8882 = vpop.f32.mrf.mxu0
        %v8883 = vadd.f32 %v8854, %v8882
        %v8884 = vpop.f32.mrf.mxu0
        %v8885 = vadd.f32 %v8856, %v8884
        %8886 = vmatmul.bf16.gmra.mxu0 %v4287
        %v8887 = vpop.f32.mrf.mxu0
        %v8888 = vadd.f32 %v8859, %v8887
        %v8889 = vpop.f32.mrf.mxu0
        %v8890 = vadd.f32 %v8861, %v8889
        %8891 = vmatmul.bf16.gmra.mxu0 %v4293
        %v8892 = vpop.f32.mrf.mxu0
        %v8893 = vadd.f32 %v8864, %v8892
        %v8894 = vpop.f32.mrf.mxu0
        %v8895 = vadd.f32 %v8866, %v8894
        %8896 = vmatmul.bf16.gmra.mxu0 %v4299
        %v8897 = vpop.f32.mrf.mxu0
        %v8898 = vadd.f32 %v8869, %v8897
        %v8899 = vpop.f32.mrf.mxu0
        %v8900 = vadd.f32 %v8871, %v8899
        %8901 = vdwg.mxu0
        %8902 = vmatpush.bf16.msra.mxu0 %v6710
        %8903 = vmatpush.bf16.msra.mxu0 %v6706
        %8904 = vmatpush.bf16.msra.mxu0 %v6702
        %8905 = vmatpush.bf16.msra.mxu0 %v6698
        %8906 = vmatpush.bf16.msra.mxu0 %v6694
        %8907 = vmatpush.bf16.msra.mxu0 %v6690
        %8908 = vmatpush.bf16.msra.mxu0 %v6686
        %8909 = vmatpush.bf16.msra.mxu0 %v6682
        %8910 = vmatmul.bf16.gmra.mxu0 %v4282
        %v8911 = vpop.f32.mrf.mxu0
        %v8912 = vadd.f32 %v8883, %v8911
        %v8913 = vpop.f32.mrf.mxu0
        %v8914 = vadd.f32 %v8885, %v8913
        %8915 = vmatmul.bf16.gmra.mxu0 %v4288
        %v8916 = vpop.f32.mrf.mxu0
        %v8917 = vadd.f32 %v8888, %v8916
        %v8918 = vpop.f32.mrf.mxu0
        %v8919 = vadd.f32 %v8890, %v8918
        %8920 = vmatmul.bf16.gmra.mxu0 %v4294
        %v8921 = vpop.f32.mrf.mxu0
        %v8922 = vadd.f32 %v8893, %v8921
        %v8923 = vpop.f32.mrf.mxu0
        %v8924 = vadd.f32 %v8895, %v8923
        %8925 = vmatmul.bf16.gmra.mxu0 %v4300
        %v8926 = vpop.f32.mrf.mxu0
        %v8927 = vadd.f32 %v8898, %v8926
        %v8928 = vpop.f32.mrf.mxu0
        %v8929 = vadd.f32 %v8900, %v8928
        %8930 = vdwg.mxu0
        %v8931 = vmax.f32 %v7607, %v8477
        %v8932 = vmax.f32 %v8042, %v8912
        %v8933 = vmax.f32 %v7609, %v8479
        %v8934 = vmax.f32 %v8044, %v8914
        %v8935 = vmax.f32 %v7612, %v8482
        %v8936 = vmax.f32 %v8047, %v8917
        %v8937 = vmax.f32 %v7614, %v8484
        %v8938 = vmax.f32 %v8049, %v8919
        %v8939 = vmax.f32 %v7617, %v8487
        %v8940 = vmax.f32 %v8052, %v8922
        %v8941 = vmax.f32 %v7619, %v8489
        %v8942 = vmax.f32 %v8054, %v8924
        %v8943 = vmax.f32 %v7622, %v8492
        %v8944 = vmax.f32 %v8057, %v8927
        %v8945 = vmax.f32 %v7624, %v8494
        %v8946 = vmax.f32 %v8059, %v8929
        %v8947 = vmax.f32 %v8931, %v8933
        %v8948 = vmax.f32 %v8932, %v8934
        %v8949 = vmax.f32 %v8935, %v8937
        %v8950 = vmax.f32 %v8936, %v8938
        %v8951 = vmax.f32 %v8939, %v8941
        %v8952 = vmax.f32 %v8940, %v8942
        %v8953 = vmax.f32 %v8943, %v8945
        %v8954 = vmax.f32 %v8944, %v8946
        %v8955 = vmax.f32 %v8947, 0.0
        %v8956 = vmax.f32 %v8948, 0.0
        %v8957 = vmax.f32 %v8949, 0.0
        %v8958 = vmax.f32 %v8950, 0.0
        %v8959 = vmax.f32 %v8951, 0.0
        %v8960 = vmax.f32 %v8952, 0.0
        %v8961 = vmax.f32 %v8953, 0.0
        %v8962 = vmax.f32 %v8954, 0.0
        %v8963 = vpack.c.bf16 %v8955, %v8955
        %v8964 = vpack.c.bf16 %v8956, %v8956
        %v8965 = vpack.c.bf16 %v8957, %v8957
        %v8966 = vpack.c.bf16 %v8958, %v8958
        %v8967 = vpack.c.bf16 %v8959, %v8959
        %v8968 = vpack.c.bf16 %v8960, %v8960
        %v8969 = vpack.c.bf16 %v8961, %v8961
        %v8970 = vpack.c.bf16 %v8962, %v8962
        %v8971 = vld [vmem:[%s5] sm:$0xff]
        %v8972 = vld [vmem:[%s5 + $0x8] sm:$0xff]
        %v8973 = vld [vmem:[%s5 + $0x10] sm:$0xff]
        %v8974 = vld [vmem:[%s5 + $0x18] sm:$0xff]
        %v8975 = vld [vmem:[%s5 + $0x20] sm:$0xff]
        %v8976 = vld [vmem:[%s5 + $0x28] sm:$0xff]
        %v8977 = vld [vmem:[%s5 + $0x30] sm:$0xff]
        %v8978 = vld [vmem:[%s5 + $0x38] sm:$0xff]
        %v8979 = vld [vmem:[%s5 + $0x40] sm:$0xff]
        %v8980 = vld [vmem:[%s5 + $0x48] sm:$0xff]
        %v8981 = vld [vmem:[%s5 + $0x50] sm:$0xff]
        %v8982 = vld [vmem:[%s5 + $0x58] sm:$0xff]
        %v8983 = vld [vmem:[%s5 + $0x60] sm:$0xff]
        %v8984 = vld [vmem:[%s5 + $0x68] sm:$0xff]
        %v8985 = vld [vmem:[%s5 + $0x70] sm:$0xff]
        %v8986 = vld [vmem:[%s5 + $0x78] sm:$0xff]
        %v8987 = vld [vmem:[%s5 + $0x80] sm:$0xff]
        %v8988 = vld [vmem:[%s5 + $0x88] sm:$0xff]
        %v8989 = vld [vmem:[%s5 + $0x90] sm:$0xff]
        %v8990 = vld [vmem:[%s5 + $0x98] sm:$0xff]
        %v8991 = vld [vmem:[%s5 + $0xa0] sm:$0xff]
        %v8992 = vld [vmem:[%s5 + $0xa8] sm:$0xff]
        %v8993 = vld [vmem:[%s5 + $0xb0] sm:$0xff]
        %v8994 = vld [vmem:[%s5 + $0xb8] sm:$0xff]
        %v8995 = vld [vmem:[%s5 + $0xc0] sm:$0xff]
        %v8996 = vld [vmem:[%s5 + $0xc8] sm:$0xff]
        %v8997 = vld [vmem:[%s5 + $0xd0] sm:$0xff]
        %v8998 = vld [vmem:[%s5 + $0xd8] sm:$0xff]
        %v8999 = vld [vmem:[%s5 + $0xe0] sm:$0xff]
        %v9000 = vld [vmem:[%s5 + $0xe8] sm:$0xff]
        %v9001 = vld [vmem:[%s5 + $0xf0] sm:$0xff]
        %v9002 = vld [vmem:[%s5 + $0xf8] sm:$0xff]
        %v9003 = vld [vmem:[%s5 + $0x100] sm:$0xff]
        %v9004 = vld [vmem:[%s5 + $0x108] sm:$0xff]
        %v9005 = vld [vmem:[%s5 + $0x110] sm:$0xff]
        %v9006 = vld [vmem:[%s5 + $0x118] sm:$0xff]
        %v9007 = vld [vmem:[%s5 + $0x120] sm:$0xff]
        %v9008 = vld [vmem:[%s5 + $0x128] sm:$0xff]
        %v9009 = vld [vmem:[%s5 + $0x130] sm:$0xff]
        %v9010 = vld [vmem:[%s5 + $0x138] sm:$0xff]
        %v9011 = vld [vmem:[%s5 + $0x140] sm:$0xff]
        %v9012 = vld [vmem:[%s5 + $0x148] sm:$0xff]
        %v9013 = vld [vmem:[%s5 + $0x150] sm:$0xff]
        %v9014 = vld [vmem:[%s5 + $0x158] sm:$0xff]
        %v9015 = vld [vmem:[%s5 + $0x160] sm:$0xff]
        %v9016 = vld [vmem:[%s5 + $0x168] sm:$0xff]
        %v9017 = vld [vmem:[%s5 + $0x170] sm:$0xff]
        %v9018 = vld [vmem:[%s5 + $0x178] sm:$0xff]
        %v9019 = vld [vmem:[%s5 + $0x180] sm:$0xff]
        %v9020 = vld [vmem:[%s5 + $0x188] sm:$0xff]
        %v9021 = vld [vmem:[%s5 + $0x190] sm:$0xff]
        %v9022 = vld [vmem:[%s5 + $0x198] sm:$0xff]
        %v9023 = vld [vmem:[%s5 + $0x1a0] sm:$0xff]
        %v9024 = vld [vmem:[%s5 + $0x1a8] sm:$0xff]
        %v9025 = vld [vmem:[%s5 + $0x1b0] sm:$0xff]
        %v9026 = vld [vmem:[%s5 + $0x1b8] sm:$0xff]
        %v9027 = vld [vmem:[%s5 + $0x1c0] sm:$0xff]
        %v9028 = vld [vmem:[%s5 + $0x1c8] sm:$0xff]
        %v9029 = vld [vmem:[%s5 + $0x1d0] sm:$0xff]
        %v9030 = vld [vmem:[%s5 + $0x1d8] sm:$0xff]
        %v9031 = vld [vmem:[%s5 + $0x1e0] sm:$0xff]
        %v9032 = vld [vmem:[%s5 + $0x1e8] sm:$0xff]
        %v9033 = vld [vmem:[%s5 + $0x1f0] sm:$0xff]
        %v9034 = vld [vmem:[%s5 + $0x1f8] sm:$0xff]
        %v9035 = vld [vmem:[%s5 + $0x200] sm:$0xff]
        %v9036 = vld [vmem:[%s5 + $0x208] sm:$0xff]
        %v9037 = vld [vmem:[%s5 + $0x210] sm:$0xff]
        %v9038 = vld [vmem:[%s5 + $0x218] sm:$0xff]
        %v9039 = vld [vmem:[%s5 + $0x220] sm:$0xff]
        %v9040 = vld [vmem:[%s5 + $0x228] sm:$0xff]
        %v9041 = vld [vmem:[%s5 + $0x230] sm:$0xff]
        %v9042 = vld [vmem:[%s5 + $0x238] sm:$0xff]
        %v9043 = vld [vmem:[%s5 + $0x240] sm:$0xff]
        %v9044 = vld [vmem:[%s5 + $0x248] sm:$0xff]
        %v9045 = vld [vmem:[%s5 + $0x250] sm:$0xff]
        %v9046 = vld [vmem:[%s5 + $0x258] sm:$0xff]
        %v9047 = vld [vmem:[%s5 + $0x260] sm:$0xff]
        %v9048 = vld [vmem:[%s5 + $0x268] sm:$0xff]
        %v9049 = vld [vmem:[%s5 + $0x270] sm:$0xff]
        %v9050 = vld [vmem:[%s5 + $0x278] sm:$0xff]
        %v9051 = vld [vmem:[%s5 + $0x280] sm:$0xff]
        %v9052 = vld [vmem:[%s5 + $0x288] sm:$0xff]
        %v9053 = vld [vmem:[%s5 + $0x290] sm:$0xff]
        %v9054 = vld [vmem:[%s5 + $0x298] sm:$0xff]
        %v9055 = vld [vmem:[%s5 + $0x2a0] sm:$0xff]
        %v9056 = vld [vmem:[%s5 + $0x2a8] sm:$0xff]
        %v9057 = vld [vmem:[%s5 + $0x2b0] sm:$0xff]
        %v9058 = vld [vmem:[%s5 + $0x2b8] sm:$0xff]
        %v9059 = vld [vmem:[%s5 + $0x2c0] sm:$0xff]
        %v9060 = vld [vmem:[%s5 + $0x2c8] sm:$0xff]
        %v9061 = vld [vmem:[%s5 + $0x2d0] sm:$0xff]
        %v9062 = vld [vmem:[%s5 + $0x2d8] sm:$0xff]
        %v9063 = vld [vmem:[%s5 + $0x2e0] sm:$0xff]
        %v9064 = vld [vmem:[%s5 + $0x2e8] sm:$0xff]
        %v9065 = vld [vmem:[%s5 + $0x2f0] sm:$0xff]
        %v9066 = vld [vmem:[%s5 + $0x2f8] sm:$0xff]
        %v9067 = vld [vmem:[%s5 + $0x300] sm:$0xff]
        %v9068 = vld [vmem:[%s5 + $0x308] sm:$0xff]
        %v9069 = vld [vmem:[%s5 + $0x310] sm:$0xff]
        %v9070 = vld [vmem:[%s5 + $0x318] sm:$0xff]
        %v9071 = vld [vmem:[%s5 + $0x320] sm:$0xff]
        %v9072 = vld [vmem:[%s5 + $0x328] sm:$0xff]
        %v9073 = vld [vmem:[%s5 + $0x330] sm:$0xff]
        %v9074 = vld [vmem:[%s5 + $0x338] sm:$0xff]
        %v9075 = vld [vmem:[%s5 + $0x340] sm:$0xff]
        %v9076 = vld [vmem:[%s5 + $0x348] sm:$0xff]
        %v9077 = vld [vmem:[%s5 + $0x350] sm:$0xff]
        %v9078 = vld [vmem:[%s5 + $0x358] sm:$0xff]
        %v9079 = vld [vmem:[%s5 + $0x360] sm:$0xff]
        %v9080 = vld [vmem:[%s5 + $0x368] sm:$0xff]
        %v9081 = vld [vmem:[%s5 + $0x370] sm:$0xff]
        %v9082 = vld [vmem:[%s5 + $0x378] sm:$0xff]
        %v9083 = vld [vmem:[%s5 + $0x380] sm:$0xff]
        %v9084 = vld [vmem:[%s5 + $0x388] sm:$0xff]
        %v9085 = vld [vmem:[%s5 + $0x390] sm:$0xff]
        %v9086 = vld [vmem:[%s5 + $0x398] sm:$0xff]
        %v9087 = vld [vmem:[%s5 + $0x3a0] sm:$0xff]
        %v9088 = vld [vmem:[%s5 + $0x3a8] sm:$0xff]
        %v9089 = vld [vmem:[%s5 + $0x3b0] sm:$0xff]
        %v9090 = vld [vmem:[%s5 + $0x3b8] sm:$0xff]
        %v9091 = vld [vmem:[%s5 + $0x3c0] sm:$0xff]
        %v9092 = vld [vmem:[%s5 + $0x3c8] sm:$0xff]
        %v9093 = vld [vmem:[%s5 + $0x3d0] sm:$0xff]
        %v9094 = vld [vmem:[%s5 + $0x3d8] sm:$0xff]
        %v9095 = vld [vmem:[%s5 + $0x3e0] sm:$0xff]
        %v9096 = vld [vmem:[%s5 + $0x3e8] sm:$0xff]
        %v9097 = vld [vmem:[%s5 + $0x3f0] sm:$0xff]
        %v9098 = vld [vmem:[%s5 + $0x3f8] sm:$0xff]
        %v9099 = vld [vmem:[%s6] sm:$0x3]
        %v9101 = vperm.slane %v9099, 0
        %v9102 = vperm.slane %v9099, 1
        %v9233 = vunpack.c.l.b16 %v8971
        %v9234 = vunpack.c.h.b16 %v8971
        %v9235 = vunpack.c.l.b16 %v8972
        %v9236 = vunpack.c.h.b16 %v8972
        %v9237 = vunpack.c.l.b16 %v8973
        %v9238 = vunpack.c.h.b16 %v8973
        %v9239 = vunpack.c.l.b16 %v8974
        %v9240 = vunpack.c.h.b16 %v8974
        %v9241 = vunpack.c.l.b16 %v8975
        %v9242 = vunpack.c.h.b16 %v8975
        %v9243 = vunpack.c.l.b16 %v8976
        %v9244 = vunpack.c.h.b16 %v8976
        %v9245 = vunpack.c.l.b16 %v8977
        %v9246 = vunpack.c.h.b16 %v8977
        %v9247 = vunpack.c.l.b16 %v8978
        %v9248 = vunpack.c.h.b16 %v8978
        %v9249 = vunpack.c.l.b16 %v8979
        %v9250 = vunpack.c.h.b16 %v8979
        %v9251 = vunpack.c.l.b16 %v8980
        %v9252 = vunpack.c.h.b16 %v8980
        %v9253 = vunpack.c.l.b16 %v8981
        %v9254 = vunpack.c.h.b16 %v8981
        %v9255 = vunpack.c.l.b16 %v8982
        %v9256 = vunpack.c.h.b16 %v8982
        %v9257 = vunpack.c.l.b16 %v8983
        %v9258 = vunpack.c.h.b16 %v8983
        %v9259 = vunpack.c.l.b16 %v8984
        %v9260 = vunpack.c.h.b16 %v8984
        %v9261 = vunpack.c.l.b16 %v8985
        %v9262 = vunpack.c.h.b16 %v8985
        %v9263 = vunpack.c.l.b16 %v8986
        %v9264 = vunpack.c.h.b16 %v8986
        %v9265 = vunpack.c.l.b16 %v8987
        %v9266 = vunpack.c.h.b16 %v8987
        %v9267 = vunpack.c.l.b16 %v8988
        %v9268 = vunpack.c.h.b16 %v8988
        %v9269 = vunpack.c.l.b16 %v8989
        %v9270 = vunpack.c.h.b16 %v8989
        %v9271 = vunpack.c.l.b16 %v8990
        %v9272 = vunpack.c.h.b16 %v8990
        %v9273 = vunpack.c.l.b16 %v8991
        %v9274 = vunpack.c.h.b16 %v8991
        %v9275 = vunpack.c.l.b16 %v8992
        %v9276 = vunpack.c.h.b16 %v8992
        %v9277 = vunpack.c.l.b16 %v8993
        %v9278 = vunpack.c.h.b16 %v8993
        %v9279 = vunpack.c.l.b16 %v8994
        %v9280 = vunpack.c.h.b16 %v8994
        %v9281 = vunpack.c.l.b16 %v8995
        %v9282 = vunpack.c.h.b16 %v8995
        %v9283 = vunpack.c.l.b16 %v8996
        %v9284 = vunpack.c.h.b16 %v8996
        %v9285 = vunpack.c.l.b16 %v8997
        %v9286 = vunpack.c.h.b16 %v8997
        %v9287 = vunpack.c.l.b16 %v8998
        %v9288 = vunpack.c.h.b16 %v8998
        %v9289 = vunpack.c.l.b16 %v8999
        %v9290 = vunpack.c.h.b16 %v8999
        %v9291 = vunpack.c.l.b16 %v9000
        %v9292 = vunpack.c.h.b16 %v9000
        %v9293 = vunpack.c.l.b16 %v9001
        %v9294 = vunpack.c.h.b16 %v9001
        %v9295 = vunpack.c.l.b16 %v9002
        %v9296 = vunpack.c.h.b16 %v9002
        %v9297 = vunpack.c.l.b16 %v9003
        %v9298 = vunpack.c.h.b16 %v9003
        %v9299 = vunpack.c.l.b16 %v9004
        %v9300 = vunpack.c.h.b16 %v9004
        %v9301 = vunpack.c.l.b16 %v9005
        %v9302 = vunpack.c.h.b16 %v9005
        %v9303 = vunpack.c.l.b16 %v9006
        %v9304 = vunpack.c.h.b16 %v9006
        %v9305 = vunpack.c.l.b16 %v9007
        %v9306 = vunpack.c.h.b16 %v9007
        %v9307 = vunpack.c.l.b16 %v9008
        %v9308 = vunpack.c.h.b16 %v9008
        %v9309 = vunpack.c.l.b16 %v9009
        %v9310 = vunpack.c.h.b16 %v9009
        %v9311 = vunpack.c.l.b16 %v9010
        %v9312 = vunpack.c.h.b16 %v9010
        %v9313 = vunpack.c.l.b16 %v9011
        %v9314 = vunpack.c.h.b16 %v9011
        %v9315 = vunpack.c.l.b16 %v9012
        %v9316 = vunpack.c.h.b16 %v9012
        %v9317 = vunpack.c.l.b16 %v9013
        %v9318 = vunpack.c.h.b16 %v9013
        %v9319 = vunpack.c.l.b16 %v9014
        %v9320 = vunpack.c.h.b16 %v9014
        %v9321 = vunpack.c.l.b16 %v9015
        %v9322 = vunpack.c.h.b16 %v9015
        %v9323 = vunpack.c.l.b16 %v9016
        %v9324 = vunpack.c.h.b16 %v9016
        %v9325 = vunpack.c.l.b16 %v9017
        %v9326 = vunpack.c.h.b16 %v9017
        %v9327 = vunpack.c.l.b16 %v9018
        %v9328 = vunpack.c.h.b16 %v9018
        %v9329 = vunpack.c.l.b16 %v9019
        %v9330 = vunpack.c.h.b16 %v9019
        %v9331 = vunpack.c.l.b16 %v9020
        %v9332 = vunpack.c.h.b16 %v9020
        %v9333 = vunpack.c.l.b16 %v9021
        %v9334 = vunpack.c.h.b16 %v9021
        %v9335 = vunpack.c.l.b16 %v9022
        %v9336 = vunpack.c.h.b16 %v9022
        %v9337 = vunpack.c.l.b16 %v9023
        %v9338 = vunpack.c.h.b16 %v9023
        %v9339 = vunpack.c.l.b16 %v9024
        %v9340 = vunpack.c.h.b16 %v9024
        %v9341 = vunpack.c.l.b16 %v9025
        %v9342 = vunpack.c.h.b16 %v9025
        %v9343 = vunpack.c.l.b16 %v9026
        %v9344 = vunpack.c.h.b16 %v9026
        %v9345 = vunpack.c.l.b16 %v9027
        %v9346 = vunpack.c.h.b16 %v9027
        %v9347 = vunpack.c.l.b16 %v9028
        %v9348 = vunpack.c.h.b16 %v9028
        %v9349 = vunpack.c.l.b16 %v9029
        %v9350 = vunpack.c.h.b16 %v9029
        %v9351 = vunpack.c.l.b16 %v9030
        %v9352 = vunpack.c.h.b16 %v9030
        %v9353 = vunpack.c.l.b16 %v9031
        %v9354 = vunpack.c.h.b16 %v9031
        %v9355 = vunpack.c.l.b16 %v9032
        %v9356 = vunpack.c.h.b16 %v9032
        %v9357 = vunpack.c.l.b16 %v9033
        %v9358 = vunpack.c.h.b16 %v9033
        %v9359 = vunpack.c.l.b16 %v9034
        %v9360 = vunpack.c.h.b16 %v9034
        %v9361 = vunpack.c.l.b16 %v9035
        %v9362 = vunpack.c.h.b16 %v9035
        %v9363 = vunpack.c.l.b16 %v9036
        %v9364 = vunpack.c.h.b16 %v9036
        %v9365 = vunpack.c.l.b16 %v9037
        %v9366 = vunpack.c.h.b16 %v9037
        %v9367 = vunpack.c.l.b16 %v9038
        %v9368 = vunpack.c.h.b16 %v9038
        %v9369 = vunpack.c.l.b16 %v9039
        %v9370 = vunpack.c.h.b16 %v9039
        %v9371 = vunpack.c.l.b16 %v9040
        %v9372 = vunpack.c.h.b16 %v9040
        %v9373 = vunpack.c.l.b16 %v9041
        %v9374 = vunpack.c.h.b16 %v9041
        %v9375 = vunpack.c.l.b16 %v9042
        %v9376 = vunpack.c.h.b16 %v9042
        %v9377 = vunpack.c.l.b16 %v9043
        %v9378 = vunpack.c.h.b16 %v9043
        %v9379 = vunpack.c.l.b16 %v9044
        %v9380 = vunpack.c.h.b16 %v9044
        %v9381 = vunpack.c.l.b16 %v9045
        %v9382 = vunpack.c.h.b16 %v9045
        %v9383 = vunpack.c.l.b16 %v9046
        %v9384 = vunpack.c.h.b16 %v9046
        %v9385 = vunpack.c.l.b16 %v9047
        %v9386 = vunpack.c.h.b16 %v9047
        %v9387 = vunpack.c.l.b16 %v9048
        %v9388 = vunpack.c.h.b16 %v9048
        %v9389 = vunpack.c.l.b16 %v9049
        %v9390 = vunpack.c.h.b16 %v9049
        %v9391 = vunpack.c.l.b16 %v9050
        %v9392 = vunpack.c.h.b16 %v9050
        %v9393 = vunpack.c.l.b16 %v9051
        %v9394 = vunpack.c.h.b16 %v9051
        %v9395 = vunpack.c.l.b16 %v9052
        %v9396 = vunpack.c.h.b16 %v9052
        %v9397 = vunpack.c.l.b16 %v9053
        %v9398 = vunpack.c.h.b16 %v9053
        %v9399 = vunpack.c.l.b16 %v9054
        %v9400 = vunpack.c.h.b16 %v9054
        %v9401 = vunpack.c.l.b16 %v9055
        %v9402 = vunpack.c.h.b16 %v9055
        %v9403 = vunpack.c.l.b16 %v9056
        %v9404 = vunpack.c.h.b16 %v9056
        %v9405 = vunpack.c.l.b16 %v9057
        %v9406 = vunpack.c.h.b16 %v9057
        %v9407 = vunpack.c.l.b16 %v9058
        %v9408 = vunpack.c.h.b16 %v9058
        %v9409 = vunpack.c.l.b16 %v9059
        %v9410 = vunpack.c.h.b16 %v9059
        %v9411 = vunpack.c.l.b16 %v9060
        %v9412 = vunpack.c.h.b16 %v9060
        %v9413 = vunpack.c.l.b16 %v9061
        %v9414 = vunpack.c.h.b16 %v9061
        %v9415 = vunpack.c.l.b16 %v9062
        %v9416 = vunpack.c.h.b16 %v9062
        %v9417 = vunpack.c.l.b16 %v9063
        %v9418 = vunpack.c.h.b16 %v9063
        %v9419 = vunpack.c.l.b16 %v9064
        %v9420 = vunpack.c.h.b16 %v9064
        %v9421 = vunpack.c.l.b16 %v9065
        %v9422 = vunpack.c.h.b16 %v9065
        %v9423 = vunpack.c.l.b16 %v9066
        %v9424 = vunpack.c.h.b16 %v9066
        %v9425 = vunpack.c.l.b16 %v9067
        %v9426 = vunpack.c.h.b16 %v9067
        %v9427 = vunpack.c.l.b16 %v9068
        %v9428 = vunpack.c.h.b16 %v9068
        %v9429 = vunpack.c.l.b16 %v9069
        %v9430 = vunpack.c.h.b16 %v9069
        %v9431 = vunpack.c.l.b16 %v9070
        %v9432 = vunpack.c.h.b16 %v9070
        %v9433 = vunpack.c.l.b16 %v9071
        %v9434 = vunpack.c.h.b16 %v9071
        %v9435 = vunpack.c.l.b16 %v9072
        %v9436 = vunpack.c.h.b16 %v9072
        %v9437 = vunpack.c.l.b16 %v9073
        %v9438 = vunpack.c.h.b16 %v9073
        %v9439 = vunpack.c.l.b16 %v9074
        %v9440 = vunpack.c.h.b16 %v9074
        %v9441 = vunpack.c.l.b16 %v9075
        %v9442 = vunpack.c.h.b16 %v9075
        %v9443 = vunpack.c.l.b16 %v9076
        %v9444 = vunpack.c.h.b16 %v9076
        %v9445 = vunpack.c.l.b16 %v9077
        %v9446 = vunpack.c.h.b16 %v9077
        %v9447 = vunpack.c.l.b16 %v9078
        %v9448 = vunpack.c.h.b16 %v9078
        %v9449 = vunpack.c.l.b16 %v9079
        %v9450 = vunpack.c.h.b16 %v9079
        %v9451 = vunpack.c.l.b16 %v9080
        %v9452 = vunpack.c.h.b16 %v9080
        %v9453 = vunpack.c.l.b16 %v9081
        %v9454 = vunpack.c.h.b16 %v9081
        %v9455 = vunpack.c.l.b16 %v9082
        %v9456 = vunpack.c.h.b16 %v9082
        %v9457 = vunpack.c.l.b16 %v9083
        %v9458 = vunpack.c.h.b16 %v9083
        %v9459 = vunpack.c.l.b16 %v9084
        %v9460 = vunpack.c.h.b16 %v9084
        %v9461 = vunpack.c.l.b16 %v9085
        %v9462 = vunpack.c.h.b16 %v9085
        %v9463 = vunpack.c.l.b16 %v9086
        %v9464 = vunpack.c.h.b16 %v9086
        %v9465 = vunpack.c.l.b16 %v9087
        %v9466 = vunpack.c.h.b16 %v9087
        %v9467 = vunpack.c.l.b16 %v9088
        %v9468 = vunpack.c.h.b16 %v9088
        %v9469 = vunpack.c.l.b16 %v9089
        %v9470 = vunpack.c.h.b16 %v9089
        %v9471 = vunpack.c.l.b16 %v9090
        %v9472 = vunpack.c.h.b16 %v9090
        %v9473 = vunpack.c.l.b16 %v9091
        %v9474 = vunpack.c.h.b16 %v9091
        %v9475 = vunpack.c.l.b16 %v9092
        %v9476 = vunpack.c.h.b16 %v9092
        %v9477 = vunpack.c.l.b16 %v9093
        %v9478 = vunpack.c.h.b16 %v9093
        %v9479 = vunpack.c.l.b16 %v9094
        %v9480 = vunpack.c.h.b16 %v9094
        %v9481 = vunpack.c.l.b16 %v9095
        %v9482 = vunpack.c.h.b16 %v9095
        %v9483 = vunpack.c.l.b16 %v9096
        %v9484 = vunpack.c.h.b16 %v9096
        %v9485 = vunpack.c.l.b16 %v9097
        %v9486 = vunpack.c.h.b16 %v9097
        %v9487 = vunpack.c.l.b16 %v9098
        %v9488 = vunpack.c.h.b16 %v9098
        %v9489 = vpack.c.b16 %v9235, %v9233
        %v9490 = vpack.c.b16 %v9236, %v9234
        %v9491 = vpack.c.b16 %v9239, %v9237
        %v9492 = vpack.c.b16 %v9240, %v9238
        %v9493 = vpack.c.b16 %v9243, %v9241
        %v9494 = vpack.c.b16 %v9244, %v9242
        %v9495 = vpack.c.b16 %v9247, %v9245
        %v9496 = vpack.c.b16 %v9248, %v9246
        %v9497 = vpack.c.b16 %v9251, %v9249
        %v9498 = vpack.c.b16 %v9252, %v9250
        %v9499 = vpack.c.b16 %v9255, %v9253
        %v9500 = vpack.c.b16 %v9256, %v9254
        %v9501 = vpack.c.b16 %v9259, %v9257
        %v9502 = vpack.c.b16 %v9260, %v9258
        %v9503 = vpack.c.b16 %v9263, %v9261
        %v9504 = vpack.c.b16 %v9264, %v9262
        %v9505 = vpack.c.b16 %v9267, %v9265
        %v9506 = vpack.c.b16 %v9268, %v9266
        %v9507 = vpack.c.b16 %v9271, %v9269
        %v9508 = vpack.c.b16 %v9272, %v9270
        %v9509 = vpack.c.b16 %v9275, %v9273
        %v9510 = vpack.c.b16 %v9276, %v9274
        %v9511 = vpack.c.b16 %v9279, %v9277
        %v9512 = vpack.c.b16 %v9280, %v9278
        %v9513 = vpack.c.b16 %v9283, %v9281
        %v9514 = vpack.c.b16 %v9284, %v9282
        %v9515 = vpack.c.b16 %v9287, %v9285
        %v9516 = vpack.c.b16 %v9288, %v9286
        %v9517 = vpack.c.b16 %v9291, %v9289
        %v9518 = vpack.c.b16 %v9292, %v9290
        %v9519 = vpack.c.b16 %v9295, %v9293
        %v9520 = vpack.c.b16 %v9296, %v9294
        %v9521 = vpack.c.b16 %v9299, %v9297
        %v9522 = vpack.c.b16 %v9300, %v9298
        %v9523 = vpack.c.b16 %v9303, %v9301
        %v9524 = vpack.c.b16 %v9304, %v9302
        %v9525 = vpack.c.b16 %v9307, %v9305
        %v9526 = vpack.c.b16 %v9308, %v9306
        %v9527 = vpack.c.b16 %v9311, %v9309
        %v9528 = vpack.c.b16 %v9312, %v9310
        %v9529 = vpack.c.b16 %v9315, %v9313
        %v9530 = vpack.c.b16 %v9316, %v9314
        %v9531 = vpack.c.b16 %v9319, %v9317
        %v9532 = vpack.c.b16 %v9320, %v9318
        %v9533 = vpack.c.b16 %v9323, %v9321
        %v9534 = vpack.c.b16 %v9324, %v9322
        %v9535 = vpack.c.b16 %v9327, %v9325
        %v9536 = vpack.c.b16 %v9328, %v9326
        %v9537 = vpack.c.b16 %v9331, %v9329
        %v9538 = vpack.c.b16 %v9332, %v9330
        %v9539 = vpack.c.b16 %v9335, %v9333
        %v9540 = vpack.c.b16 %v9336, %v9334
        %v9541 = vpack.c.b16 %v9339, %v9337
        %v9542 = vpack.c.b16 %v9340, %v9338
        %v9543 = vpack.c.b16 %v9343, %v9341
        %v9544 = vpack.c.b16 %v9344, %v9342
        %v9545 = vpack.c.b16 %v9347, %v9345
        %v9546 = vpack.c.b16 %v9348, %v9346
        %v9547 = vpack.c.b16 %v9351, %v9349
        %v9548 = vpack.c.b16 %v9352, %v9350
        %v9549 = vpack.c.b16 %v9355, %v9353
        %v9550 = vpack.c.b16 %v9356, %v9354
        %v9551 = vpack.c.b16 %v9359, %v9357
        %v9552 = vpack.c.b16 %v9360, %v9358
        %v9553 = vpack.c.b16 %v9363, %v9361
        %v9554 = vpack.c.b16 %v9364, %v9362
        %v9555 = vpack.c.b16 %v9367, %v9365
        %v9556 = vpack.c.b16 %v9368, %v9366
        %v9557 = vpack.c.b16 %v9371, %v9369
        %v9558 = vpack.c.b16 %v9372, %v9370
        %v9559 = vpack.c.b16 %v9375, %v9373
        %v9560 = vpack.c.b16 %v9376, %v9374
        %v9561 = vpack.c.b16 %v9379, %v9377
        %v9562 = vpack.c.b16 %v9380, %v9378
        %v9563 = vpack.c.b16 %v9383, %v9381
        %v9564 = vpack.c.b16 %v9384, %v9382
        %v9565 = vpack.c.b16 %v9387, %v9385
        %v9566 = vpack.c.b16 %v9388, %v9386
        %v9567 = vpack.c.b16 %v9391, %v9389
        %v9568 = vpack.c.b16 %v9392, %v9390
        %v9569 = vpack.c.b16 %v9395, %v9393
        %v9570 = vpack.c.b16 %v9396, %v9394
        %v9571 = vpack.c.b16 %v9399, %v9397
        %v9572 = vpack.c.b16 %v9400, %v9398
        %v9573 = vpack.c.b16 %v9403, %v9401
        %v9574 = vpack.c.b16 %v9404, %v9402
        %v9575 = vpack.c.b16 %v9407, %v9405
        %v9576 = vpack.c.b16 %v9408, %v9406
        %v9577 = vpack.c.b16 %v9411, %v9409
        %v9578 = vpack.c.b16 %v9412, %v9410
        %v9579 = vpack.c.b16 %v9415, %v9413
        %v9580 = vpack.c.b16 %v9416, %v9414
        %v9581 = vpack.c.b16 %v9419, %v9417
        %v9582 = vpack.c.b16 %v9420, %v9418
        %v9583 = vpack.c.b16 %v9423, %v9421
        %v9584 = vpack.c.b16 %v9424, %v9422
        %v9585 = vpack.c.b16 %v9427, %v9425
        %v9586 = vpack.c.b16 %v9428, %v9426
        %v9587 = vpack.c.b16 %v9431, %v9429
        %v9588 = vpack.c.b16 %v9432, %v9430
        %v9589 = vpack.c.b16 %v9435, %v9433
        %v9590 = vpack.c.b16 %v9436, %v9434
        %v9591 = vpack.c.b16 %v9439, %v9437
        %v9592 = vpack.c.b16 %v9440, %v9438
        %v9593 = vpack.c.b16 %v9443, %v9441
        %v9594 = vpack.c.b16 %v9444, %v9442
        %v9595 = vpack.c.b16 %v9447, %v9445
        %v9596 = vpack.c.b16 %v9448, %v9446
        %v9597 = vpack.c.b16 %v9451, %v9449
        %v9598 = vpack.c.b16 %v9452, %v9450
        %v9599 = vpack.c.b16 %v9455, %v9453
        %v9600 = vpack.c.b16 %v9456, %v9454
        %v9601 = vpack.c.b16 %v9459, %v9457
        %v9602 = vpack.c.b16 %v9460, %v9458
        %v9603 = vpack.c.b16 %v9463, %v9461
        %v9604 = vpack.c.b16 %v9464, %v9462
        %v9605 = vpack.c.b16 %v9467, %v9465
        %v9606 = vpack.c.b16 %v9468, %v9466
        %v9607 = vpack.c.b16 %v9471, %v9469
        %v9608 = vpack.c.b16 %v9472, %v9470
        %v9609 = vpack.c.b16 %v9475, %v9473
        %v9610 = vpack.c.b16 %v9476, %v9474
        %v9611 = vpack.c.b16 %v9479, %v9477
        %v9612 = vpack.c.b16 %v9480, %v9478
        %v9613 = vpack.c.b16 %v9483, %v9481
        %v9614 = vpack.c.b16 %v9484, %v9482
        %v9615 = vpack.c.b16 %v9487, %v9485
        %v9616 = vpack.c.b16 %v9488, %v9486
        %9745 = vmatpush.bf16.msra.mxu0 %v9503
        %9746 = vmatpush.bf16.msra.mxu0 %v9501
        %9747 = vmatpush.bf16.msra.mxu0 %v9499
        %9748 = vmatpush.bf16.msra.mxu0 %v9497
        %9749 = vmatpush.bf16.msra.mxu0 %v9495
        %9750 = vmatpush.bf16.msra.mxu0 %v9493
        %9751 = vmatpush.bf16.msra.mxu0 %v9491
        %9752 = vmatpush.bf16.msra.mxu0 %v9489
        %9753 = vmatmul.bf16.gmra.mxu0 %v8963
        %v9754 = vpop.f32.mrf.mxu0
        %v9755 = vadd.f32 %v9101, %v9754
        %v9756 = vpop.f32.mrf.mxu0
        %9757 = vdwg.mxu0
        %9758 = vmatpush.bf16.msra.mxu0 %v9519
        %9759 = vmatpush.bf16.msra.mxu0 %v9517
        %9760 = vmatpush.bf16.msra.mxu0 %v9515
        %9761 = vmatpush.bf16.msra.mxu0 %v9513
        %9762 = vmatpush.bf16.msra.mxu0 %v9511
        %9763 = vmatpush.bf16.msra.mxu0 %v9509
        %9764 = vmatpush.bf16.msra.mxu0 %v9507
        %9765 = vmatpush.bf16.msra.mxu0 %v9505
        %9766 = vmatmul.bf16.gmra.mxu0 %v8964
        %v9767 = vpop.f32.mrf.mxu0
        %v9768 = vadd.f32 %v9755, %v9767
        %v9769 = vpop.f32.mrf.mxu0
        %9770 = vdwg.mxu0
        %9771 = vmatpush.bf16.msra.mxu0 %v9535
        %9772 = vmatpush.bf16.msra.mxu0 %v9533
        %9773 = vmatpush.bf16.msra.mxu0 %v9531
        %9774 = vmatpush.bf16.msra.mxu0 %v9529
        %9775 = vmatpush.bf16.msra.mxu0 %v9527
        %9776 = vmatpush.bf16.msra.mxu0 %v9525
        %9777 = vmatpush.bf16.msra.mxu0 %v9523
        %9778 = vmatpush.bf16.msra.mxu0 %v9521
        %9779 = vmatmul.bf16.gmra.mxu0 %v8965
        %v9780 = vpop.f32.mrf.mxu0
        %v9781 = vadd.f32 %v9768, %v9780
        %v9782 = vpop.f32.mrf.mxu0
        %9783 = vdwg.mxu0
        %9784 = vmatpush.bf16.msra.mxu0 %v9551
        %9785 = vmatpush.bf16.msra.mxu0 %v9549
        %9786 = vmatpush.bf16.msra.mxu0 %v9547
        %9787 = vmatpush.bf16.msra.mxu0 %v9545
        %9788 = vmatpush.bf16.msra.mxu0 %v9543
        %9789 = vmatpush.bf16.msra.mxu0 %v9541
        %9790 = vmatpush.bf16.msra.mxu0 %v9539
        %9791 = vmatpush.bf16.msra.mxu0 %v9537
        %9792 = vmatmul.bf16.gmra.mxu0 %v8966
        %v9793 = vpop.f32.mrf.mxu0
        %v9794 = vadd.f32 %v9781, %v9793
        %v9795 = vpop.f32.mrf.mxu0
        %9796 = vdwg.mxu0
        %9797 = vmatpush.bf16.msra.mxu0 %v9567
        %9798 = vmatpush.bf16.msra.mxu0 %v9565
        %9799 = vmatpush.bf16.msra.mxu0 %v9563
        %9800 = vmatpush.bf16.msra.mxu0 %v9561
        %9801 = vmatpush.bf16.msra.mxu0 %v9559
        %9802 = vmatpush.bf16.msra.mxu0 %v9557
        %9803 = vmatpush.bf16.msra.mxu0 %v9555
        %9804 = vmatpush.bf16.msra.mxu0 %v9553
        %9805 = vmatmul.bf16.gmra.mxu0 %v8967
        %v9806 = vpop.f32.mrf.mxu0
        %v9807 = vadd.f32 %v9794, %v9806
        %v9808 = vpop.f32.mrf.mxu0
        %9809 = vdwg.mxu0
        %9810 = vmatpush.bf16.msra.mxu0 %v9583
        %9811 = vmatpush.bf16.msra.mxu0 %v9581
        %9812 = vmatpush.bf16.msra.mxu0 %v9579
        %9813 = vmatpush.bf16.msra.mxu0 %v9577
        %9814 = vmatpush.bf16.msra.mxu0 %v9575
        %9815 = vmatpush.bf16.msra.mxu0 %v9573
        %9816 = vmatpush.bf16.msra.mxu0 %v9571
        %9817 = vmatpush.bf16.msra.mxu0 %v9569
        %9818 = vmatmul.bf16.gmra.mxu0 %v8968
        %v9819 = vpop.f32.mrf.mxu0
        %v9820 = vadd.f32 %v9807, %v9819
        %v9821 = vpop.f32.mrf.mxu0
        %9822 = vdwg.mxu0
        %9823 = vmatpush.bf16.msra.mxu0 %v9599
        %9824 = vmatpush.bf16.msra.mxu0 %v9597
        %9825 = vmatpush.bf16.msra.mxu0 %v9595
        %9826 = vmatpush.bf16.msra.mxu0 %v9593
        %9827 = vmatpush.bf16.msra.mxu0 %v9591
        %9828 = vmatpush.bf16.msra.mxu0 %v9589
        %9829 = vmatpush.bf16.msra.mxu0 %v9587
        %9830 = vmatpush.bf16.msra.mxu0 %v9585
        %9831 = vmatmul.bf16.gmra.mxu0 %v8969
        %v9832 = vpop.f32.mrf.mxu0
        %v9833 = vadd.f32 %v9820, %v9832
        %v9834 = vpop.f32.mrf.mxu0
        %9835 = vdwg.mxu0
        %9836 = vmatpush.bf16.msra.mxu0 %v9615
        %9837 = vmatpush.bf16.msra.mxu0 %v9613
        %9838 = vmatpush.bf16.msra.mxu0 %v9611
        %9839 = vmatpush.bf16.msra.mxu0 %v9609
        %9840 = vmatpush.bf16.msra.mxu0 %v9607
        %9841 = vmatpush.bf16.msra.mxu0 %v9605
        %9842 = vmatpush.bf16.msra.mxu0 %v9603
        %9843 = vmatpush.bf16.msra.mxu0 %v9601
        %9844 = vmatmul.bf16.gmra.mxu0 %v8970
        %v9845 = vpop.f32.mrf.mxu0
        %v9846 = vadd.f32 %v9833, %v9845
        %v9847 = vpop.f32.mrf.mxu0
        %9848 = vdwg.mxu0
        %9849 = vmatpush.bf16.msra.mxu0 %v9504
        %9850 = vmatpush.bf16.msra.mxu0 %v9502
        %9851 = vmatpush.bf16.msra.mxu0 %v9500
        %9852 = vmatpush.bf16.msra.mxu0 %v9498
        %9853 = vmatpush.bf16.msra.mxu0 %v9496
        %9854 = vmatpush.bf16.msra.mxu0 %v9494
        %9855 = vmatpush.bf16.msra.mxu0 %v9492
        %9856 = vmatpush.bf16.msra.mxu0 %v9490
        %9857 = vmatmul.bf16.gmra.mxu0 %v8963
        %v9858 = vpop.f32.mrf.mxu0
        %v9859 = vadd.f32 %v9102, %v9858
        %v9860 = vpop.f32.mrf.mxu0
        %9861 = vdwg.mxu0
        %9862 = vmatpush.bf16.msra.mxu0 %v9520
        %9863 = vmatpush.bf16.msra.mxu0 %v9518
        %9864 = vmatpush.bf16.msra.mxu0 %v9516
        %9865 = vmatpush.bf16.msra.mxu0 %v9514
        %9866 = vmatpush.bf16.msra.mxu0 %v9512
        %9867 = vmatpush.bf16.msra.mxu0 %v9510
        %9868 = vmatpush.bf16.msra.mxu0 %v9508
        %9869 = vmatpush.bf16.msra.mxu0 %v9506
        %9870 = vmatmul.bf16.gmra.mxu0 %v8964
        %v9871 = vpop.f32.mrf.mxu0
        %v9872 = vadd.f32 %v9859, %v9871
        %v9873 = vpop.f32.mrf.mxu0
        %9874 = vdwg.mxu0
        %9875 = vmatpush.bf16.msra.mxu0 %v9536
        %9876 = vmatpush.bf16.msra.mxu0 %v9534
        %9877 = vmatpush.bf16.msra.mxu0 %v9532
        %9878 = vmatpush.bf16.msra.mxu0 %v9530
        %9879 = vmatpush.bf16.msra.mxu0 %v9528
        %9880 = vmatpush.bf16.msra.mxu0 %v9526
        %9881 = vmatpush.bf16.msra.mxu0 %v9524
        %9882 = vmatpush.bf16.msra.mxu0 %v9522
        %9883 = vmatmul.bf16.gmra.mxu0 %v8965
        %v9884 = vpop.f32.mrf.mxu0
        %v9885 = vadd.f32 %v9872, %v9884
        %v9886 = vpop.f32.mrf.mxu0
        %9887 = vdwg.mxu0
        %9888 = vmatpush.bf16.msra.mxu0 %v9552
        %9889 = vmatpush.bf16.msra.mxu0 %v9550
        %9890 = vmatpush.bf16.msra.mxu0 %v9548
        %9891 = vmatpush.bf16.msra.mxu0 %v9546
        %9892 = vmatpush.bf16.msra.mxu0 %v9544
        %9893 = vmatpush.bf16.msra.mxu0 %v9542
        %9894 = vmatpush.bf16.msra.mxu0 %v9540
        %9895 = vmatpush.bf16.msra.mxu0 %v9538
        %9896 = vmatmul.bf16.gmra.mxu0 %v8966
        %v9897 = vpop.f32.mrf.mxu0
        %v9898 = vadd.f32 %v9885, %v9897
        %v9899 = vpop.f32.mrf.mxu0
        %9900 = vdwg.mxu0
        %9901 = vmatpush.bf16.msra.mxu0 %v9568
        %9902 = vmatpush.bf16.msra.mxu0 %v9566
        %9903 = vmatpush.bf16.msra.mxu0 %v9564
        %9904 = vmatpush.bf16.msra.mxu0 %v9562
        %9905 = vmatpush.bf16.msra.mxu0 %v9560
        %9906 = vmatpush.bf16.msra.mxu0 %v9558
        %9907 = vmatpush.bf16.msra.mxu0 %v9556
        %9908 = vmatpush.bf16.msra.mxu0 %v9554
        %9909 = vmatmul.bf16.gmra.mxu0 %v8967
        %v9910 = vpop.f32.mrf.mxu0
        %v9911 = vadd.f32 %v9898, %v9910
        %v9912 = vpop.f32.mrf.mxu0
        %9913 = vdwg.mxu0
        %9914 = vmatpush.bf16.msra.mxu0 %v9584
        %9915 = vmatpush.bf16.msra.mxu0 %v9582
        %9916 = vmatpush.bf16.msra.mxu0 %v9580
        %9917 = vmatpush.bf16.msra.mxu0 %v9578
        %9918 = vmatpush.bf16.msra.mxu0 %v9576
        %9919 = vmatpush.bf16.msra.mxu0 %v9574
        %9920 = vmatpush.bf16.msra.mxu0 %v9572
        %9921 = vmatpush.bf16.msra.mxu0 %v9570
        %9922 = vmatmul.bf16.gmra.mxu0 %v8968
        %v9923 = vpop.f32.mrf.mxu0
        %v9924 = vadd.f32 %v9911, %v9923
        %v9925 = vpop.f32.mrf.mxu0
        %9926 = vdwg.mxu0
        %9927 = vmatpush.bf16.msra.mxu0 %v9600
        %9928 = vmatpush.bf16.msra.mxu0 %v9598
        %9929 = vmatpush.bf16.msra.mxu0 %v9596
        %9930 = vmatpush.bf16.msra.mxu0 %v9594
        %9931 = vmatpush.bf16.msra.mxu0 %v9592
        %9932 = vmatpush.bf16.msra.mxu0 %v9590
        %9933 = vmatpush.bf16.msra.mxu0 %v9588
        %9934 = vmatpush.bf16.msra.mxu0 %v9586
        %9935 = vmatmul.bf16.gmra.mxu0 %v8969
        %v9936 = vpop.f32.mrf.mxu0
        %v9937 = vadd.f32 %v9924, %v9936
        %v9938 = vpop.f32.mrf.mxu0
        %9939 = vdwg.mxu0
        %9940 = vmatpush.bf16.msra.mxu0 %v9616
        %9941 = vmatpush.bf16.msra.mxu0 %v9614
        %9942 = vmatpush.bf16.msra.mxu0 %v9612
        %9943 = vmatpush.bf16.msra.mxu0 %v9610
        %9944 = vmatpush.bf16.msra.mxu0 %v9608
        %9945 = vmatpush.bf16.msra.mxu0 %v9606
        %9946 = vmatpush.bf16.msra.mxu0 %v9604
        %9947 = vmatpush.bf16.msra.mxu0 %v9602
        %9948 = vmatmul.bf16.gmra.mxu0 %v8970
        %v9949 = vpop.f32.mrf.mxu0
        %v9950 = vadd.f32 %v9937, %v9949
        %v9951 = vpop.f32.mrf.mxu0
        %9952 = vdwg.mxu0
        %v9953 = vmax.f32 %v9846, 0.0
        %v9954 = vmax.f32 %v9950, 0.0
        %v9955 = vpack.c.bf16 %v9953, %v9953
        %v9956 = vpack.c.bf16 %v9954, %v9954
        %v9957 = vld [vmem:[%s7] sm:$0xf]
        %v9958 = vld [vmem:[%s7 + $0x4] sm:$0xf]
        %v9959 = vld [vmem:[%s7 + $0x8] sm:$0xf]
        %v9960 = vld [vmem:[%s7 + $0xc] sm:$0xf]
        %v9961 = vld [vmem:[%s7 + $0x10] sm:$0xf]
        %v9962 = vld [vmem:[%s7 + $0x14] sm:$0xf]
        %v9963 = vld [vmem:[%s7 + $0x18] sm:$0xf]
        %v9964 = vld [vmem:[%s7 + $0x1c] sm:$0xf]
        %v9965 = vld [vmem:[%s7 + $0x20] sm:$0xf]
        %v9966 = vld [vmem:[%s7 + $0x24] sm:$0xf]
        %v9967 = vld [vmem:[%s7 + $0x28] sm:$0xf]
        %v9968 = vld [vmem:[%s7 + $0x2c] sm:$0xf]
        %v9969 = vld [vmem:[%s7 + $0x30] sm:$0xf]
        %v9970 = vld [vmem:[%s7 + $0x34] sm:$0xf]
        %v9971 = vld [vmem:[%s7 + $0x38] sm:$0xf]
        %v9972 = vld [vmem:[%s7 + $0x3c] sm:$0xf]
        %v9973 = vld [vmem:[%s7 + $0x40] sm:$0xf]
        %v9974 = vld [vmem:[%s7 + $0x44] sm:$0xf]
        %v9975 = vld [vmem:[%s7 + $0x48] sm:$0xf]
        %v9976 = vld [vmem:[%s7 + $0x4c] sm:$0xf]
        %v9977 = vld [vmem:[%s7 + $0x50] sm:$0xf]
        %v9978 = vld [vmem:[%s7 + $0x54] sm:$0xf]
        %v9979 = vld [vmem:[%s7 + $0x58] sm:$0xf]
        %v9980 = vld [vmem:[%s7 + $0x5c] sm:$0xf]
        %v9981 = vld [vmem:[%s7 + $0x60] sm:$0xf]
        %v9982 = vld [vmem:[%s7 + $0x64] sm:$0xf]
        %v9983 = vld [vmem:[%s7 + $0x68] sm:$0xf]
        %v9984 = vld [vmem:[%s7 + $0x6c] sm:$0xf]
        %v9985 = vld [vmem:[%s7 + $0x70] sm:$0xf]
        %v9986 = vld [vmem:[%s7 + $0x74] sm:$0xf]
        %v9987 = vld [vmem:[%s7 + $0x78] sm:$0xf]
        %v9988 = vld [vmem:[%s7 + $0x7c] sm:$0xf]
        %v9989 = vld [vmem:[%s8] sm:$0x1]
        %v9991 = vperm.slane %v9989, 0
        %v10025 = vunpack.c.l.b16 %v9957
        %v10026 = vunpack.c.l.b16 %v9958
        %v10027 = vunpack.c.l.b16 %v9959
        %v10028 = vunpack.c.l.b16 %v9960
        %v10029 = vunpack.c.l.b16 %v9961
        %v10030 = vunpack.c.l.b16 %v9962
        %v10031 = vunpack.c.l.b16 %v9963
        %v10032 = vunpack.c.l.b16 %v9964
        %v10033 = vunpack.c.l.b16 %v9965
        %v10034 = vunpack.c.l.b16 %v9966
        %v10035 = vunpack.c.l.b16 %v9967
        %v10036 = vunpack.c.l.b16 %v9968
        %v10037 = vunpack.c.l.b16 %v9969
        %v10038 = vunpack.c.l.b16 %v9970
        %v10039 = vunpack.c.l.b16 %v9971
        %v10040 = vunpack.c.l.b16 %v9972
        %v10041 = vunpack.c.l.b16 %v9973
        %v10042 = vunpack.c.l.b16 %v9974
        %v10043 = vunpack.c.l.b16 %v9975
        %v10044 = vunpack.c.l.b16 %v9976
        %v10045 = vunpack.c.l.b16 %v9977
        %v10046 = vunpack.c.l.b16 %v9978
        %v10047 = vunpack.c.l.b16 %v9979
        %v10048 = vunpack.c.l.b16 %v9980
        %v10049 = vunpack.c.l.b16 %v9981
        %v10050 = vunpack.c.l.b16 %v9982
        %v10051 = vunpack.c.l.b16 %v9983
        %v10052 = vunpack.c.l.b16 %v9984
        %v10053 = vunpack.c.l.b16 %v9985
        %v10054 = vunpack.c.l.b16 %v9986
        %v10055 = vunpack.c.l.b16 %v9987
        %v10056 = vunpack.c.l.b16 %v9988
        %v10057 = vpack.c.b16 %v10026, %v10025
        %v10058 = vpack.c.b16 %v10028, %v10027
        %v10059 = vpack.c.b16 %v10030, %v10029
        %v10060 = vpack.c.b16 %v10032, %v10031
        %v10061 = vpack.c.b16 %v10034, %v10033
        %v10062 = vpack.c.b16 %v10036, %v10035
        %v10063 = vpack.c.b16 %v10038, %v10037
        %v10064 = vpack.c.b16 %v10040, %v10039
        %v10065 = vpack.c.b16 %v10042, %v10041
        %v10066 = vpack.c.b16 %v10044, %v10043
        %v10067 = vpack.c.b16 %v10046, %v10045
        %v10068 = vpack.c.b16 %v10048, %v10047
        %v10069 = vpack.c.b16 %v10050, %v10049
        %v10070 = vpack.c.b16 %v10052, %v10051
        %v10071 = vpack.c.b16 %v10054, %v10053
        %v10072 = vpack.c.b16 %v10056, %v10055
        %10089 = vmatpush.bf16.msra.mxu0 %v10064
        %10090 = vmatpush.bf16.msra.mxu0 %v10063
        %10091 = vmatpush.bf16.msra.mxu0 %v10062
        %10092 = vmatpush.bf16.msra.mxu0 %v10061
        %10093 = vmatpush.bf16.msra.mxu0 %v10060
        %10094 = vmatpush.bf16.msra.mxu0 %v10059
        %10095 = vmatpush.bf16.msra.mxu0 %v10058
        %10096 = vmatpush.bf16.msra.mxu0 %v10057
        %10097 = vmatmul.bf16.gmra.mxu0 %v9955
        %v10098 = vpop.f32.mrf.mxu0
        %v10099 = vadd.f32 %v9991, %v10098
        %v10100 = vpop.f32.mrf.mxu0
        %10101 = vdwg.mxu0
        %10102 = vmatpush.bf16.msra.mxu0 %v10072
        %10103 = vmatpush.bf16.msra.mxu0 %v10071
        %10104 = vmatpush.bf16.msra.mxu0 %v10070
        %10105 = vmatpush.bf16.msra.mxu0 %v10069
        %10106 = vmatpush.bf16.msra.mxu0 %v10068
        %10107 = vmatpush.bf16.msra.mxu0 %v10067
        %10108 = vmatpush.bf16.msra.mxu0 %v10066
        %10109 = vmatpush.bf16.msra.mxu0 %v10065
        %10110 = vmatmul.bf16.gmra.mxu0 %v9956
        %v10111 = vpop.f32.mrf.mxu0
        %v10112 = vadd.f32 %v10099, %v10111
        %v10113 = vpop.f32.mrf.mxu0
        %10114 = vdwg.mxu0
        %10115 = vst [vmem:[%s444] sm:$0xff] %v10112
        %p10116 = scmp.lt.s32.totalorder %s20, 2
        %s10117 = scalar_select %p10116, %s20, 2
        %s10118 = smul.addr %s10117, 8
        %s10119 = scalar_lea.vmem %s9, %s10118
        // Predicated region
        $region80: #{mnist_net_forward.1} parent=74 // pred_check
          %p10120 = pneg %p232
        $region81: #{mnist_net_forward.1} parent=74 // pred_check_branch
          %10122 = sbr.rel (%p10120) target = $region83
        $region82: #{mnist_net_forward.1} parent=74 // pred_region
          _
        $region83: #{mnist_net_forward.1} parent=74 // pred_fallthru
          _
      $region75: #{mnist_net_forward.1} parent=5 // pred_fallthru
        _
      %p10123 = scmp.le.s32.totalorder 2, %s15
      // Predicated region
      $region84: #{mnist_net_forward.1} parent=5 // pred_check
        %p10124 = pneg %p10123
      $region85: #{mnist_net_forward.1} parent=5 // pred_check_branch
        %10126 = sbr.rel (%p10124) target = $region87
      $region86: #{mnist_net_forward.1} parent=5 // pred_region
        %s10127 = ssub.s32 %s15, 2
        // Predicated region
        $region88: #{mnist_net_forward.1} parent=86 // pred_check
          %p10128 = pneg %p238
        $region89: #{mnist_net_forward.1} parent=86 // pred_check_branch
          %10130 = sbr.rel (%p10128) target = $region91
        $region90: #{mnist_net_forward.1} parent=86 // pred_region
          %p10131 = scmp.lt.s32.totalorder %s21, 2
          %s10132 = scalar_select %p10131, %s21, 2
          %s10133 = smul.addr %s10132, 8
          %s10134 = scalar_lea.vmem %s9, %s10133
        $region91: #{mnist_net_forward.1} parent=86 // pred_fallthru
          _
      $region87: #{mnist_net_forward.1} parent=5 // pred_fallthru
        _
    $region6: #{mnist_net_forward.1} parent=1 // loop_footer
      %s19 = sadd.s32 1, %s15
    $region7: #{mnist_net_forward.1} parent=1 // loop_footer_branch
      %14 = sbr.rel target = $region3
    $region8: #{mnist_net_forward.1} parent=1 // loop_exit
      _

</llo_original>
